<compile_context>
chip_gen: v7x
topology: tpu7x:2x2x1
jax: 0.10.0
libtpu: 0.0.40
codegen_flags: <defaults>
</compile_context>

<pallas_src>
import jax
import jax.numpy as jnp
from jax import lax
from jax.experimental import pallas as pl
from jax.experimental.pallas import tpu as pltpu

_IN_EPS = 1e-5


def _round_up(x, m):
    return (x + m - 1) // m * m


def _row_tile(h):
    return next(t for t in (8, 4, 2, 1) if h % t == 0)


def _vmem_cap_bytes():
    """Physical VMEM per core; falls back to 128 MiB if the query fails."""
    try:
        return int(pltpu.get_tpu_info().vmem_capacity_bytes)
    except Exception:  # older jax / non-TPU tracing context
        return 128 << 20


def _resnet_block_kernel(x_ref, w1_ref, w2_ref, o_ref, pad_ref, tmp_ref):
    # x_ref  : (1, H, W, C)       unpadded input block, f32 (residual source)
    # w*_ref : (9, C, C)          bf16, tap-major (tap = 3*dh + dw), HWIO-contracted
    # o_ref  : (1, H, W, C)       f32 output block
    # pad_ref: (H+2, WPP, C)      bf16 VMEM scratch, reflect-padded conv input
    #                             (WPP = round_up(W+2, 8) sublane-aligned rows)
    # tmp_ref: (H, W, C)          f32 VMEM scratch, pre-norm conv output
    _, H, W, C = x_ref.shape
    HP, WPP, _ = pad_ref.shape
    TH = _row_tile(H)
    n_tiles = H // TH
    inv_hw = 1.0 / float(H * W)

    # Zero the slack columns once so uninitialized VMEM never feeds the MXU
    # (those output rows are sliced away, this is purely for determinism).
    if WPP > W + 2:
        pad_ref[:, W + 2:WPP, :] = jnp.zeros((HP, WPP - (W + 2), C), jnp.bfloat16)

    def fill_reflect_pad(src_bf16):
        # src_bf16: (H, W, C) bf16 -> interior + reflected 1-px halo of pad_ref.
        pad_ref[1:H + 1, 1:W + 1, :] = src_bf16
        pad_ref[0:1, 1:W + 1, :] = src_bf16[1:2]                   # top    = row 1
        pad_ref[H + 1:H + 2, 1:W + 1, :] = src_bf16[H - 2:H - 1]   # bottom = row H-2
        pad_ref[:, 0:1, :] = pad_ref[:, 2:3, :]                    # left   = col 1 (incl. corners)
        pad_ref[:, W + 1:W + 2, :] = pad_ref[:, W - 1:W, :]        # right  = col W-2

    def conv3x3_and_stats(w_ref):
        # 3x3 conv over pad_ref -> tmp_ref (f32), with the InstanceNorm
        # sum / sum-of-squares fused into the per-tile epilogue.
        s_tot = jnp.zeros((1, 1, C), jnp.float32)
        q_tot = jnp.zeros((1, 1, C), jnp.float32)
        for t in range(n_tiles):
            r0 = t * TH
            accs = [None, None, None]                       # one per column tap dw
            for dh in range(3):
                # Full padded rows for this dh: aligned load, no window repack.
                rows = pad_ref[r0 + dh:r0 + dh + TH, :, :].reshape(TH * WPP, C)
                for dw in range(3):
                    y = jnp.dot(rows, w_ref[3 * dh + dw],
                                preferred_element_type=jnp.float32)
                    accs[dw] = y if accs[dw] is None else accs[dw] + y
            a0 = accs[0].reshape(TH, WPP, C)
            a1 = accs[1].reshape(TH, WPP, C)
            a2 = accs[2].reshape(TH, WPP, C)
            tile = a0[:, 0:W, :] + a1[:, 1:W + 1, :] + a2[:, 2:W + 2, :]
            tmp_ref[r0:r0 + TH, :, :] = tile
            s_tot = s_tot + jnp.sum(jnp.sum(tile, axis=0, keepdims=True),
                                    axis=1, keepdims=True)
            q_tot = q_tot + jnp.sum(jnp.sum(tile * tile, axis=0, keepdims=True),
                                    axis=1, keepdims=True)
        mean = s_tot * inv_hw
        # Single-pass biased variance in f32 (clamped at 0); matches PyTorch
        # InstanceNorm2d to well within the test tolerances.
        var = jnp.maximum(q_tot * inv_hw - mean * mean, 0.0)
        return mean, var

    # ---- conv1 (+IN+ReLU) ----------------------------------------------------
    fill_reflect_pad(x_ref[0].astype(jnp.bfloat16))
    mean1, var1 = conv3x3_and_stats(w1_ref)
    h = jnp.maximum((tmp_ref[...] - mean1) * lax.rsqrt(var1 + _IN_EPS), 0.0)
    # TODO(synk): nn.Dropout(0.5) branch omitted (use_dropout=False).

    # ---- conv2 (+IN) -----------------------------------------------------------
    fill_reflect_pad(h.astype(jnp.bfloat16))
    mean2, var2 = conv3x3_and_stats(w2_ref)
    y = (tmp_ref[...] - mean2) * lax.rsqrt(var2 + _IN_EPS)

    # ---- residual --------------------------------------------------------------
    o_ref[0] = (x_ref[0] + y).astype(o_ref.dtype)


def resnet_block_forward_nhwc(x_nhwc, w1_oihw, b1, w2_oihw, b2):
    """ResnetBlock forward on NHWC activations (reflect pad, IN(affine=False),
    no dropout).  Use this entry point inside a generator so the NCHW<->NHWC
    transposes are paid once at the model boundary instead of per block.

    b1/b2 are accepted for API parity with the PyTorch module but not used:
    with InstanceNorm2d(affine=False) directly after each conv, a per-channel
    bias is exactly cancelled by the mean subtraction.  This cancellation does
    NOT hold for affine norms / BatchNorm — do not reuse for those variants.
    """
    del b1, b2
    N, H, W, C = x_nhwc.shape
    assert H >= 2 and W >= 2, "ReflectionPad2d(1) needs H >= 2 and W >= 2"
    assert w1_oihw.shape == (C, C, 3, 3) and w2_oihw.shape == (C, C, 3, 3)

    HP = H + 2
    WPP = _round_up(W + 2, 8)          # sublane-aligned padded-row width
    TH = _row_tile(H)

    # OIHW -> HWIO -> tap-major (9, Cin, Cout), bf16 for the MXU.
    w1_k = jnp.transpose(w1_oihw, (2, 3, 1, 0)).reshape(9, C, C).astype(jnp.bfloat16)
    w2_k = jnp.transpose(w2_oihw, (2, 3, 1, 0)).reshape(9, C, C).astype(jnp.bfloat16)

    # VMEM budget from the actual block shapes (generous, capped by capacity).
    io_bytes = 2 * (2 * H * W * C * 4)            # x / out blocks, double-buffered
    w_bytes = 2 * (2 * 9 * C * C * 2)             # two bf16 weight blocks, double-buffered
    pad_bytes = HP * WPP * C * 2                  # bf16 reflect-pad scratch
    tmp_bytes = H * W * C * 4                     # f32 pre-norm conv output scratch
    temp_bytes = 4 * TH * WPP * C * 4 + 4 * H * W * C * 4   # tile accs + norm temps
    vmem_need = io_bytes + w_bytes + pad_bytes + tmp_bytes + temp_bytes
    vmem_limit = int(min(max(vmem_need + (4 << 20), 32 << 20), _vmem_cap_bytes()))

    cost = pl.CostEstimate(
        flops=N * 2 * (2 * 9 * H * W * C * C),
        transcendentals=0,
        bytes_accessed=2 * N * H * W * C * 4 + 2 * 9 * C * C * 2)

    out = pl.pallas_call(
        _resnet_block_kernel,
        out_shape=jax.ShapeDtypeStruct((N, H, W, C), x_nhwc.dtype),
        grid_spec=pltpu.PrefetchScalarGridSpec(
            num_scalar_prefetch=0,
            grid=(N,),
            in_specs=[
                pl.BlockSpec((1, H, W, C), lambda n: (n, 0, 0, 0)),
                # Weight blocks are grid-invariant; Pallas skips the re-DMA when
                # the block index is unchanged between consecutive steps.
                pl.BlockSpec((9, C, C), lambda n: (0, 0, 0)),
                pl.BlockSpec((9, C, C), lambda n: (0, 0, 0)),
            ],
            out_specs=pl.BlockSpec((1, H, W, C), lambda n: (n, 0, 0, 0)),
            scratch_shapes=[
                pltpu.VMEM((HP, WPP, C), jnp.bfloat16),   # reflect-padded conv input
                pltpu.VMEM((H, W, C), jnp.float32),       # pre-norm conv output
            ],
        ),
        compiler_params=pltpu.CompilerParams(
            dimension_semantics=("parallel",),
            vmem_limit_bytes=vmem_limit),
        cost_estimate=cost,
    )(x_nhwc, w1_k, w2_k)
    return out


def resnet_block_forward(x_nchw, w1_oihw, b1, w2_oihw, b2):
    """PyTorch-layout (NCHW) wrapper around the NHWC kernel entry point."""
    x_nhwc = jnp.transpose(x_nchw, (0, 2, 3, 1))
    out = resnet_block_forward_nhwc(x_nhwc, w1_oihw, b1, w2_oihw, b2)
    return jnp.transpose(out, (0, 3, 1, 2))


# ----------------------------- references ------------------------------------
def _inorm_nchw(a, eps=_IN_EPS):
    m = a.mean(axis=(2, 3), keepdims=True)
    v = ((a - m) ** 2).mean(axis=(2, 3), keepdims=True)
    return (a - m) / jnp.sqrt(v + eps)


def _reference_forward_f32(x, w1, b1, w2, b2):
    """Exact PyTorch semantics: f32 everywhere, biases included."""
    def conv(a, w, b):
        ap = jnp.pad(a, ((0, 0), (0, 0), (1, 1), (1, 1)), mode="reflect")
        y = lax.conv_general_dilated(
            ap, w, window_strides=(1, 1), padding="VALID",
            dimension_numbers=("NCHW", "OIHW", "NCHW"))
        return y + b[None, :, None, None]
    h = jnp.maximum(_inorm_nchw(conv(x, w1, b1)), 0.0)
    return x + _inorm_nchw(conv(h, w2, b2))


def _reference_forward_bf16(x, w1, w2):
    """Matches the kernel's numerics: bf16 conv operands, f32 accumulation,
    no biases (exact no-ops under affine-free InstanceNorm)."""
    def conv(a, w):
        ap = jnp.pad(a, ((0, 0), (0, 0), (1, 1), (1, 1)), mode="reflect")
        return lax.conv_general_dilated(
            ap.astype(jnp.bfloat16), w.astype(jnp.bfloat16),
            window_strides=(1, 1), padding="VALID",
            dimension_numbers=("NCHW", "OIHW", "NCHW"),
            preferred_element_type=jnp.float32)
    h = jnp.maximum(_inorm_nchw(conv(x, w1)), 0.0)
    return x + _inorm_nchw(conv(h, w2))


if __name__ == "__main__":
    N, C, H, W = 2, 4, 16, 16
    key = jax.random.PRNGKey(0)
    kx, k1, k2, k3, k4 = jax.random.split(key, 5)

    x = jax.random.normal(kx, (N, C, H, W), dtype=jnp.float32)
    # Deterministic synthetic params (normal(0, 0.02) like init_weights).
    w1 = 0.02 * jax.random.normal(k1, (C, C, 3, 3), dtype=jnp.float32)
    b1 = 0.01 * jax.random.normal(k2, (C,), dtype=jnp.float32)
    w2 = 0.02 * jax.random.normal(k3, (C, C, 3, 3), dtype=jnp.float32)
    b2 = 0.01 * jax.random.normal(k4, (C,), dtype=jnp.float32)

    out = jax.block_until_ready(resnet_block_forward(x, w1, b1, w2, b2))
    assert out.shape == (N, C, H, W)

    # Tight check vs. a reference using the same bf16 matmul operands / f32 acc.
    ref_bf16 = jax.block_until_ready(_reference_forward_bf16(x, w1, w2))
    assert jnp.allclose(out, ref_bf16, atol=2e-3, rtol=2e-3), \
        "mismatch vs bf16-consistent reference"

    # Loose check vs. the exact f32 PyTorch semantics (incl. biases, which are
    # mathematically cancelled by affine-free IN); slack covers bf16 rounding.
    ref_f32 = jax.block_until_ready(_reference_forward_f32(x, w1, b1, w2, b2))
    assert jnp.allclose(out, ref_f32, atol=3e-2, rtol=3e-2), \
        "mismatch vs exact f32 reference"

    # NHWC entry point (transposes hoisted to the generator boundary): chain two
    # blocks back-to-back with no NCHW<->NHWC round-trip in between.
    x_nhwc = jnp.transpose(x, (0, 2, 3, 1))
    y1 = resnet_block_forward_nhwc(x_nhwc, w1, b1, w2, b2)
    y2 = jax.block_until_ready(resnet_block_forward_nhwc(y1, w2, b2, w1, b1))
    assert y2.shape == (N, H, W, C) and bool(jnp.all(jnp.isfinite(y2)))

    print("KERNEL_OK")
</pallas_src>

<mosaic_0001>
module attributes {stable_mosaic.version = 11 : i64} {
  func.func @_resnet_block_kernel(%arg0: i32, %arg1: memref<1x16x16x4xf32, #tpu.memory_space<vmem>>, %arg2: memref<9x4x4xbf16, #tpu.memory_space<vmem>>, %arg3: memref<9x4x4xbf16, #tpu.memory_space<vmem>>, %arg4: memref<1x16x16x4xf32, #tpu.memory_space<vmem>>, %arg5: memref<18x24x4xbf16, #tpu.memory_space<vmem>>, %arg6: memref<16x16x4xf32, #tpu.memory_space<vmem>>) attributes {dimension_semantics = [#tpu.dimension_semantics<parallel>], iteration_bounds = array<i64: 2>, scalar_prefetch = 0 : i64, scratch_operands = 2 : i64, tpu.core_type = #tpu.core_type<tc>, window_params = [{transform_indices = @transform_0, window_bounds = array<i64: 1, 16, 16, 4>}, {pipeline_mode = #tpu.pipeline_mode<synchronous>, transform_indices = @transform_1, window_bounds = array<i64: 9, 4, 4>}, {pipeline_mode = #tpu.pipeline_mode<synchronous>, transform_indices = @transform_2, window_bounds = array<i64: 9, 4, 4>}, {transform_indices = @transform_3, window_bounds = array<i64: 1, 16, 16, 4>}]} {
    %cst = arith.constant 0.000000e+00 : bf16
    %0 = vector.broadcast %cst : bf16 to vector<18x6x4xbf16>
    %c0 = arith.constant 0 : index
    %c18 = arith.constant 18 : index
    %c0_0 = arith.constant 0 : index
    %1 = vector.load %arg5[%c0, %c18, %c0_0] : memref<18x24x4xbf16, #tpu.memory_space<vmem>>, vector<18x6x4xbf16>
    tpu.vector_store %arg5[%c0, %c18, %c0_0], %0 {strides = array<i32>} : memref<18x24x4xbf16, #tpu.memory_space<vmem>>, vector<18x6x4xbf16>,
    %c0_1 = arith.constant 0 : index
    %c0_2 = arith.constant 0 : index
    %c0_3 = arith.constant 0 : index
    %c0_4 = arith.constant 0 : index
    %2 = vector.load %arg1[%c0_1, %c0_2, %c0_3, %c0_4] : memref<1x16x16x4xf32, #tpu.memory_space<vmem>>, vector<1x16x16x4xf32>
    %3 = vector.shape_cast %2 : vector<1x16x16x4xf32> to vector<16x16x4xf32>
    %4 = arith.truncf %3 : vector<16x16x4xf32> to vector<16x16x4xbf16>
    %c1 = arith.constant 1 : index
    %c1_5 = arith.constant 1 : index
    %c0_6 = arith.constant 0 : index
    %5 = vector.load %arg5[%c1, %c1_5, %c0_6] : memref<18x24x4xbf16, #tpu.memory_space<vmem>>, vector<16x16x4xbf16>
    tpu.vector_store %arg5[%c1, %c1_5, %c0_6], %4 {strides = array<i32>} : memref<18x24x4xbf16, #tpu.memory_space<vmem>>, vector<16x16x4xbf16>,
    %6 = vector.extract_strided_slice %4 {offsets = [1, 0, 0], sizes = [1, 16, 4], strides = [1, 1, 1]} : vector<16x16x4xbf16> to vector<1x16x4xbf16>
    %c0_7 = arith.constant 0 : index
    %c1_8 = arith.constant 1 : index
    %c0_9 = arith.constant 0 : index
    %7 = vector.load %arg5[%c0_7, %c1_8, %c0_9] : memref<18x24x4xbf16, #tpu.memory_space<vmem>>, vector<1x16x4xbf16>
    tpu.vector_store %arg5[%c0_7, %c1_8, %c0_9], %6 {strides = array<i32>} : memref<18x24x4xbf16, #tpu.memory_space<vmem>>, vector<1x16x4xbf16>,
    %8 = vector.extract_strided_slice %4 {offsets = [14, 0, 0], sizes = [1, 16, 4], strides = [1, 1, 1]} : vector<16x16x4xbf16> to vector<1x16x4xbf16>
    %c17 = arith.constant 17 : index
    %c1_10 = arith.constant 1 : index
    %c0_11 = arith.constant 0 : index
    %9 = vector.load %arg5[%c17, %c1_10, %c0_11] : memref<18x24x4xbf16, #tpu.memory_space<vmem>>, vector<1x16x4xbf16>
    tpu.vector_store %arg5[%c17, %c1_10, %c0_11], %8 {strides = array<i32>} : memref<18x24x4xbf16, #tpu.memory_space<vmem>>, vector<1x16x4xbf16>,
    %c0_12 = arith.constant 0 : index
    %c2 = arith.constant 2 : index
    %c0_13 = arith.constant 0 : index
    %10 = vector.load %arg5[%c0_12, %c2, %c0_13] : memref<18x24x4xbf16, #tpu.memory_space<vmem>>, vector<18x1x4xbf16>
    %c0_14 = arith.constant 0 : index
    %c0_15 = arith.constant 0 : index
    %c0_16 = arith.constant 0 : index
    %11 = vector.load %arg5[%c0_14, %c0_15, %c0_16] : memref<18x24x4xbf16, #tpu.memory_space<vmem>>, vector<18x1x4xbf16>
    tpu.vector_store %arg5[%c0_14, %c0_15, %c0_16], %10 {strides = array<i32>} : memref<18x24x4xbf16, #tpu.memory_space<vmem>>, vector<18x1x4xbf16>,
    %c0_17 = arith.constant 0 : index
    %c15 = arith.constant 15 : index
    %c0_18 = arith.constant 0 : index
    %12 = vector.load %arg5[%c0_17, %c15, %c0_18] : memref<18x24x4xbf16, #tpu.memory_space<vmem>>, vector<18x1x4xbf16>
    %c0_19 = arith.constant 0 : index
    %c17_20 = arith.constant 17 : index
    %c0_21 = arith.constant 0 : index
    %13 = vector.load %arg5[%c0_19, %c17_20, %c0_21] : memref<18x24x4xbf16, #tpu.memory_space<vmem>>, vector<18x1x4xbf16>
    tpu.vector_store %arg5[%c0_19, %c17_20, %c0_21], %12 {strides = array<i32>} : memref<18x24x4xbf16, #tpu.memory_space<vmem>>, vector<18x1x4xbf16>,
    %cst_22 = arith.constant 0.000000e+00 : f32
    %14 = vector.broadcast %cst_22 : f32 to vector<1x1x4xf32>
    %cst_23 = arith.constant 0.000000e+00 : f32
    %15 = vector.broadcast %cst_23 : f32 to vector<1x1x4xf32>
    %c0_24 = arith.constant 0 : index
    %c0_25 = arith.constant 0 : index
    %c0_26 = arith.constant 0 : index
    %16 = vector.load %arg5[%c0_24, %c0_25, %c0_26] : memref<18x24x4xbf16, #tpu.memory_space<vmem>>, vector<8x24x4xbf16>
    %17 = vector.shape_cast %16 : vector<8x24x4xbf16> to vector<192x4xbf16>
    %c0_27 = arith.constant 0 : index
    %c0_28 = arith.constant 0 : index
    %c0_29 = arith.constant 0 : index
    %18 = vector.load %arg2[%c0_27, %c0_28, %c0_29] : memref<9x4x4xbf16, #tpu.memory_space<vmem>>, vector<1x4x4xbf16>
    %19 = vector.shape_cast %18 : vector<1x4x4xbf16> to vector<4x4xbf16>
    %cst_30 = arith.constant dense<0.000000e+00> : vector<192x4xf32>
    %20 = tpu.matmul %17, %19, %cst_30 {dimension_numbers = #tpu.dot_dimension_numbers<[1], [0], [0], [1], [0, 0, 1, 1], [], []>} : vector<192x4xbf16>, vector<4x4xbf16>, vector<192x4xf32> -> vector<192x4xf32>
    %c1_31 = arith.constant 1 : index
    %c0_32 = arith.constant 0 : index
    %c0_33 = arith.constant 0 : index
    %21 = vector.load %arg2[%c1_31, %c0_32, %c0_33] : memref<9x4x4xbf16, #tpu.memory_space<vmem>>, vector<1x4x4xbf16>
    %22 = vector.shape_cast %21 : vector<1x4x4xbf16> to vector<4x4xbf16>
    %cst_34 = arith.constant dense<0.000000e+00> : vector<192x4xf32>
    %23 = tpu.matmul %17, %22, %cst_34 {dimension_numbers = #tpu.dot_dimension_numbers<[1], [0], [0], [1], [0, 0, 1, 1], [], []>} : vector<192x4xbf16>, vector<4x4xbf16>, vector<192x4xf32> -> vector<192x4xf32>
    %c2_35 = arith.constant 2 : index
    %c0_36 = arith.constant 0 : index
    %c0_37 = arith.constant 0 : index
    %24 = vector.load %arg2[%c2_35, %c0_36, %c0_37] : memref<9x4x4xbf16, #tpu.memory_space<vmem>>, vector<1x4x4xbf16>
    %25 = vector.shape_cast %24 : vector<1x4x4xbf16> to vector<4x4xbf16>
    %cst_38 = arith.constant dense<0.000000e+00> : vector<192x4xf32>
    %26 = tpu.matmul %17, %25, %cst_38 {dimension_numbers = #tpu.dot_dimension_numbers<[1], [0], [0], [1], [0, 0, 1, 1], [], []>} : vector<192x4xbf16>, vector<4x4xbf16>, vector<192x4xf32> -> vector<192x4xf32>
    %c1_39 = arith.constant 1 : index
    %c0_40 = arith.constant 0 : index
    %c0_41 = arith.constant 0 : index
    %27 = vector.load %arg5[%c1_39, %c0_40, %c0_41] : memref<18x24x4xbf16, #tpu.memory_space<vmem>>, vector<8x24x4xbf16>
    %28 = vector.shape_cast %27 : vector<8x24x4xbf16> to vector<192x4xbf16>
    %c3 = arith.constant 3 : index
    %c0_42 = arith.constant 0 : index
    %c0_43 = arith.constant 0 : index
    %29 = vector.load %arg2[%c3, %c0_42, %c0_43] : memref<9x4x4xbf16, #tpu.memory_space<vmem>>, vector<1x4x4xbf16>
    %30 = vector.shape_cast %29 : vector<1x4x4xbf16> to vector<4x4xbf16>
    %cst_44 = arith.constant dense<0.000000e+00> : vector<192x4xf32>
    %31 = tpu.matmul %28, %30, %cst_44 {dimension_numbers = #tpu.dot_dimension_numbers<[1], [0], [0], [1], [0, 0, 1, 1], [], []>} : vector<192x4xbf16>, vector<4x4xbf16>, vector<192x4xf32> -> vector<192x4xf32>
    %32 = arith.addf %20, %31 : vector<192x4xf32>
    %c4 = arith.constant 4 : index
    %c0_45 = arith.constant 0 : index
    %c0_46 = arith.constant 0 : index
    %33 = vector.load %arg2[%c4, %c0_45, %c0_46] : memref<9x4x4xbf16, #tpu.memory_space<vmem>>, vector<1x4x4xbf16>
    %34 = vector.shape_cast %33 : vector<1x4x4xbf16> to vector<4x4xbf16>
    %cst_47 = arith.constant dense<0.000000e+00> : vector<192x4xf32>
    %35 = tpu.matmul %28, %34, %cst_47 {dimension_numbers = #tpu.dot_dimension_numbers<[1], [0], [0], [1], [0, 0, 1, 1], [], []>} : vector<192x4xbf16>, vector<4x4xbf16>, vector<192x4xf32> -> vector<192x4xf32>
    %36 = arith.addf %23, %35 : vector<192x4xf32>
    %c5 = arith.constant 5 : index
    %c0_48 = arith.constant 0 : index
    %c0_49 = arith.constant 0 : index
    %37 = vector.load %arg2[%c5, %c0_48, %c0_49] : memref<9x4x4xbf16, #tpu.memory_space<vmem>>, vector<1x4x4xbf16>
    %38 = vector.shape_cast %37 : vector<1x4x4xbf16> to vector<4x4xbf16>
    %cst_50 = arith.constant dense<0.000000e+00> : vector<192x4xf32>
    %39 = tpu.matmul %28, %38, %cst_50 {dimension_numbers = #tpu.dot_dimension_numbers<[1], [0], [0], [1], [0, 0, 1, 1], [], []>} : vector<192x4xbf16>, vector<4x4xbf16>, vector<192x4xf32> -> vector<192x4xf32>
    %40 = arith.addf %26, %39 : vector<192x4xf32>
    %c2_51 = arith.constant 2 : index
    %c0_52 = arith.constant 0 : index
    %c0_53 = arith.constant 0 : index
    %41 = vector.load %arg5[%c2_51, %c0_52, %c0_53] : memref<18x24x4xbf16, #tpu.memory_space<vmem>>, vector<8x24x4xbf16>
    %42 = vector.shape_cast %41 : vector<8x24x4xbf16> to vector<192x4xbf16>
    %c6 = arith.constant 6 : index
    %c0_54 = arith.constant 0 : index
    %c0_55 = arith.constant 0 : index
    %43 = vector.load %arg2[%c6, %c0_54, %c0_55] : memref<9x4x4xbf16, #tpu.memory_space<vmem>>, vector<1x4x4xbf16>
    %44 = vector.shape_cast %43 : vector<1x4x4xbf16> to vector<4x4xbf16>
    %cst_56 = arith.constant dense<0.000000e+00> : vector<192x4xf32>
    %45 = tpu.matmul %42, %44, %cst_56 {dimension_numbers = #tpu.dot_dimension_numbers<[1], [0], [0], [1], [0, 0, 1, 1], [], []>} : vector<192x4xbf16>, vector<4x4xbf16>, vector<192x4xf32> -> vector<192x4xf32>
    %46 = arith.addf %32, %45 : vector<192x4xf32>
    %c7 = arith.constant 7 : index
    %c0_57 = arith.constant 0 : index
    %c0_58 = arith.constant 0 : index
    %47 = vector.load %arg2[%c7, %c0_57, %c0_58] : memref<9x4x4xbf16, #tpu.memory_space<vmem>>, vector<1x4x4xbf16>
    %48 = vector.shape_cast %47 : vector<1x4x4xbf16> to vector<4x4xbf16>
    %cst_59 = arith.constant dense<0.000000e+00> : vector<192x4xf32>
    %49 = tpu.matmul %42, %48, %cst_59 {dimension_numbers = #tpu.dot_dimension_numbers<[1], [0], [0], [1], [0, 0, 1, 1], [], []>} : vector<192x4xbf16>, vector<4x4xbf16>, vector<192x4xf32> -> vector<192x4xf32>
    %50 = arith.addf %36, %49 : vector<192x4xf32>
    %c8 = arith.constant 8 : index
    %c0_60 = arith.constant 0 : index
    %c0_61 = arith.constant 0 : index
    %51 = vector.load %arg2[%c8, %c0_60, %c0_61] : memref<9x4x4xbf16, #tpu.memory_space<vmem>>, vector<1x4x4xbf16>
    %52 = vector.shape_cast %51 : vector<1x4x4xbf16> to vector<4x4xbf16>
    %cst_62 = arith.constant dense<0.000000e+00> : vector<192x4xf32>
    %53 = tpu.matmul %42, %52, %cst_62 {dimension_numbers = #tpu.dot_dimension_numbers<[1], [0], [0], [1], [0, 0, 1, 1], [], []>} : vector<192x4xbf16>, vector<4x4xbf16>, vector<192x4xf32> -> vector<192x4xf32>
    %54 = arith.addf %40, %53 : vector<192x4xf32>
    %55 = vector.shape_cast %46 : vector<192x4xf32> to vector<8x24x4xf32>
    %56 = vector.shape_cast %50 : vector<192x4xf32> to vector<8x24x4xf32>
    %57 = vector.shape_cast %54 : vector<192x4xf32> to vector<8x24x4xf32>
    %58 = vector.extract_strided_slice %55 {offsets = [0, 0, 0], sizes = [8, 16, 4], strides = [1, 1, 1]} : vector<8x24x4xf32> to vector<8x16x4xf32>
    %59 = vector.extract_strided_slice %56 {offsets = [0, 1, 0], sizes = [8, 16, 4], strides = [1, 1, 1]} : vector<8x24x4xf32> to vector<8x16x4xf32>
    %60 = arith.addf %58, %59 : vector<8x16x4xf32>
    %61 = vector.extract_strided_slice %57 {offsets = [0, 2, 0], sizes = [8, 16, 4], strides = [1, 1, 1]} : vector<8x24x4xf32> to vector<8x16x4xf32>
    %62 = arith.addf %60, %61 : vector<8x16x4xf32>
    %c0_63 = arith.constant 0 : index
    %c0_64 = arith.constant 0 : index
    %c0_65 = arith.constant 0 : index
    %63 = vector.load %arg6[%c0_63, %c0_64, %c0_65] : memref<16x16x4xf32, #tpu.memory_space<vmem>>, vector<8x16x4xf32>
    tpu.vector_store %arg6[%c0_63, %c0_64, %c0_65], %62 {strides = array<i32>} : memref<16x16x4xf32, #tpu.memory_space<vmem>>, vector<8x16x4xf32>,
    %cst_66 = arith.constant dense<0.000000e+00> : vector<16x4xf32>
    %64 = vector.multi_reduction <add>, %62, %cst_66 [0] : vector<8x16x4xf32> to vector<16x4xf32>
    %65 = vector.shape_cast %64 : vector<16x4xf32> to vector<1x16x4xf32>
    %cst_67 = arith.constant dense<0.000000e+00> : vector<1x4xf32>
    %66 = vector.multi_reduction <add>, %65, %cst_67 [1] : vector<1x16x4xf32> to vector<1x4xf32>
    %67 = vector.shape_cast %66 : vector<1x4xf32> to vector<1x1x4xf32>
    %68 = arith.addf %14, %67 : vector<1x1x4xf32>
    %69 = arith.mulf %62, %62 : vector<8x16x4xf32>
    %cst_68 = arith.constant dense<0.000000e+00> : vector<16x4xf32>
    %70 = vector.multi_reduction <add>, %69, %cst_68 [0] : vector<8x16x4xf32> to vector<16x4xf32>
    %71 = vector.shape_cast %70 : vector<16x4xf32> to vector<1x16x4xf32>
    %cst_69 = arith.constant dense<0.000000e+00> : vector<1x4xf32>
    %72 = vector.multi_reduction <add>, %71, %cst_69 [1] : vector<1x16x4xf32> to vector<1x4xf32>
    %73 = vector.shape_cast %72 : vector<1x4xf32> to vector<1x1x4xf32>
    %74 = arith.addf %15, %73 : vector<1x1x4xf32>
    %c8_70 = arith.constant 8 : index
    %c0_71 = arith.constant 0 : index
    %c0_72 = arith.constant 0 : index
    %75 = vector.load %arg5[%c8_70, %c0_71, %c0_72] : memref<18x24x4xbf16, #tpu.memory_space<vmem>>, vector<8x24x4xbf16>
    %76 = vector.shape_cast %75 : vector<8x24x4xbf16> to vector<192x4xbf16>
    %c0_73 = arith.constant 0 : index
    %c0_74 = arith.constant 0 : index
    %c0_75 = arith.constant 0 : index
    %77 = vector.load %arg2[%c0_73, %c0_74, %c0_75] : memref<9x4x4xbf16, #tpu.memory_space<vmem>>, vector<1x4x4xbf16>
    %78 = vector.shape_cast %77 : vector<1x4x4xbf16> to vector<4x4xbf16>
    %cst_76 = arith.constant dense<0.000000e+00> : vector<192x4xf32>
    %79 = tpu.matmul %76, %78, %cst_76 {dimension_numbers = #tpu.dot_dimension_numbers<[1], [0], [0], [1], [0, 0, 1, 1], [], []>} : vector<192x4xbf16>, vector<4x4xbf16>, vector<192x4xf32> -> vector<192x4xf32>
    %c1_77 = arith.constant 1 : index
    %c0_78 = arith.constant 0 : index
    %c0_79 = arith.constant 0 : index
    %80 = vector.load %arg2[%c1_77, %c0_78, %c0_79] : memref<9x4x4xbf16, #tpu.memory_space<vmem>>, vector<1x4x4xbf16>
    %81 = vector.shape_cast %80 : vector<1x4x4xbf16> to vector<4x4xbf16>
    %cst_80 = arith.constant dense<0.000000e+00> : vector<192x4xf32>
    %82 = tpu.matmul %76, %81, %cst_80 {dimension_numbers = #tpu.dot_dimension_numbers<[1], [0], [0], [1], [0, 0, 1, 1], [], []>} : vector<192x4xbf16>, vector<4x4xbf16>, vector<192x4xf32> -> vector<192x4xf32>
    %c2_81 = arith.constant 2 : index
    %c0_82 = arith.constant 0 : index
    %c0_83 = arith.constant 0 : index
    %83 = vector.load %arg2[%c2_81, %c0_82, %c0_83] : memref<9x4x4xbf16, #tpu.memory_space<vmem>>, vector<1x4x4xbf16>
    %84 = vector.shape_cast %83 : vector<1x4x4xbf16> to vector<4x4xbf16>
    %cst_84 = arith.constant dense<0.000000e+00> : vector<192x4xf32>
    %85 = tpu.matmul %76, %84, %cst_84 {dimension_numbers = #tpu.dot_dimension_numbers<[1], [0], [0], [1], [0, 0, 1, 1], [], []>} : vector<192x4xbf16>, vector<4x4xbf16>, vector<192x4xf32> -> vector<192x4xf32>
    %c9 = arith.constant 9 : index
    %c0_85 = arith.constant 0 : index
    %c0_86 = arith.constant 0 : index
    %86 = vector.load %arg5[%c9, %c0_85, %c0_86] : memref<18x24x4xbf16, #tpu.memory_space<vmem>>, vector<8x24x4xbf16>
    %87 = vector.shape_cast %86 : vector<8x24x4xbf16> to vector<192x4xbf16>
    %c3_87 = arith.constant 3 : index
    %c0_88 = arith.constant 0 : index
    %c0_89 = arith.constant 0 : index
    %88 = vector.load %arg2[%c3_87, %c0_88, %c0_89] : memref<9x4x4xbf16, #tpu.memory_space<vmem>>, vector<1x4x4xbf16>
    %89 = vector.shape_cast %88 : vector<1x4x4xbf16> to vector<4x4xbf16>
    %cst_90 = arith.constant dense<0.000000e+00> : vector<192x4xf32>
    %90 = tpu.matmul %87, %89, %cst_90 {dimension_numbers = #tpu.dot_dimension_numbers<[1], [0], [0], [1], [0, 0, 1, 1], [], []>} : vector<192x4xbf16>, vector<4x4xbf16>, vector<192x4xf32> -> vector<192x4xf32>
    %91 = arith.addf %79, %90 : vector<192x4xf32>
    %c4_91 = arith.constant 4 : index
    %c0_92 = arith.constant 0 : index
    %c0_93 = arith.constant 0 : index
    %92 = vector.load %arg2[%c4_91, %c0_92, %c0_93] : memref<9x4x4xbf16, #tpu.memory_space<vmem>>, vector<1x4x4xbf16>
    %93 = vector.shape_cast %92 : vector<1x4x4xbf16> to vector<4x4xbf16>
    %cst_94 = arith.constant dense<0.000000e+00> : vector<192x4xf32>
    %94 = tpu.matmul %87, %93, %cst_94 {dimension_numbers = #tpu.dot_dimension_numbers<[1], [0], [0], [1], [0, 0, 1, 1], [], []>} : vector<192x4xbf16>, vector<4x4xbf16>, vector<192x4xf32> -> vector<192x4xf32>
    %95 = arith.addf %82, %94 : vector<192x4xf32>
    %c5_95 = arith.constant 5 : index
    %c0_96 = arith.constant 0 : index
    %c0_97 = arith.constant 0 : index
    %96 = vector.load %arg2[%c5_95, %c0_96, %c0_97] : memref<9x4x4xbf16, #tpu.memory_space<vmem>>, vector<1x4x4xbf16>
    %97 = vector.shape_cast %96 : vector<1x4x4xbf16> to vector<4x4xbf16>
    %cst_98 = arith.constant dense<0.000000e+00> : vector<192x4xf32>
    %98 = tpu.matmul %87, %97, %cst_98 {dimension_numbers = #tpu.dot_dimension_numbers<[1], [0], [0], [1], [0, 0, 1, 1], [], []>} : vector<192x4xbf16>, vector<4x4xbf16>, vector<192x4xf32> -> vector<192x4xf32>
    %99 = arith.addf %85, %98 : vector<192x4xf32>
    %c10 = arith.constant 10 : index
    %c0_99 = arith.constant 0 : index
    %c0_100 = arith.constant 0 : index
    %100 = vector.load %arg5[%c10, %c0_99, %c0_100] : memref<18x24x4xbf16, #tpu.memory_space<vmem>>, vector<8x24x4xbf16>
    %101 = vector.shape_cast %100 : vector<8x24x4xbf16> to vector<192x4xbf16>
    %c6_101 = arith.constant 6 : index
    %c0_102 = arith.constant 0 : index
    %c0_103 = arith.constant 0 : index
    %102 = vector.load %arg2[%c6_101, %c0_102, %c0_103] : memref<9x4x4xbf16, #tpu.memory_space<vmem>>, vector<1x4x4xbf16>
    %103 = vector.shape_cast %102 : vector<1x4x4xbf16> to vector<4x4xbf16>
    %cst_104 = arith.constant dense<0.000000e+00> : vector<192x4xf32>
    %104 = tpu.matmul %101, %103, %cst_104 {dimension_numbers = #tpu.dot_dimension_numbers<[1], [0], [0], [1], [0, 0, 1, 1], [], []>} : vector<192x4xbf16>, vector<4x4xbf16>, vector<192x4xf32> -> vector<192x4xf32>
    %105 = arith.addf %91, %104 : vector<192x4xf32>
    %c7_105 = arith.constant 7 : index
    %c0_106 = arith.constant 0 : index
    %c0_107 = arith.constant 0 : index
    %106 = vector.load %arg2[%c7_105, %c0_106, %c0_107] : memref<9x4x4xbf16, #tpu.memory_space<vmem>>, vector<1x4x4xbf16>
    %107 = vector.shape_cast %106 : vector<1x4x4xbf16> to vector<4x4xbf16>
    %cst_108 = arith.constant dense<0.000000e+00> : vector<192x4xf32>
    %108 = tpu.matmul %101, %107, %cst_108 {dimension_numbers = #tpu.dot_dimension_numbers<[1], [0], [0], [1], [0, 0, 1, 1], [], []>} : vector<192x4xbf16>, vector<4x4xbf16>, vector<192x4xf32> -> vector<192x4xf32>
    %109 = arith.addf %95, %108 : vector<192x4xf32>
    %c8_109 = arith.constant 8 : index
    %c0_110 = arith.constant 0 : index
    %c0_111 = arith.constant 0 : index
    %110 = vector.load %arg2[%c8_109, %c0_110, %c0_111] : memref<9x4x4xbf16, #tpu.memory_space<vmem>>, vector<1x4x4xbf16>
    %111 = vector.shape_cast %110 : vector<1x4x4xbf16> to vector<4x4xbf16>
    %cst_112 = arith.constant dense<0.000000e+00> : vector<192x4xf32>
    %112 = tpu.matmul %101, %111, %cst_112 {dimension_numbers = #tpu.dot_dimension_numbers<[1], [0], [0], [1], [0, 0, 1, 1], [], []>} : vector<192x4xbf16>, vector<4x4xbf16>, vector<192x4xf32> -> vector<192x4xf32>
    %113 = arith.addf %99, %112 : vector<192x4xf32>
    %114 = vector.shape_cast %105 : vector<192x4xf32> to vector<8x24x4xf32>
    %115 = vector.shape_cast %109 : vector<192x4xf32> to vector<8x24x4xf32>
    %116 = vector.shape_cast %113 : vector<192x4xf32> to vector<8x24x4xf32>
    %117 = vector.extract_strided_slice %114 {offsets = [0, 0, 0], sizes = [8, 16, 4], strides = [1, 1, 1]} : vector<8x24x4xf32> to vector<8x16x4xf32>
    %118 = vector.extract_strided_slice %115 {offsets = [0, 1, 0], sizes = [8, 16, 4], strides = [1, 1, 1]} : vector<8x24x4xf32> to vector<8x16x4xf32>
    %119 = arith.addf %117, %118 : vector<8x16x4xf32>
    %120 = vector.extract_strided_slice %116 {offsets = [0, 2, 0], sizes = [8, 16, 4], strides = [1, 1, 1]} : vector<8x24x4xf32> to vector<8x16x4xf32>
    %121 = arith.addf %119, %120 : vector<8x16x4xf32>
    %c8_113 = arith.constant 8 : index
    %c0_114 = arith.constant 0 : index
    %c0_115 = arith.constant 0 : index
    %122 = vector.load %arg6[%c8_113, %c0_114, %c0_115] : memref<16x16x4xf32, #tpu.memory_space<vmem>>, vector<8x16x4xf32>
    tpu.vector_store %arg6[%c8_113, %c0_114, %c0_115], %121 {strides = array<i32>} : memref<16x16x4xf32, #tpu.memory_space<vmem>>, vector<8x16x4xf32>,
    %cst_116 = arith.constant dense<0.000000e+00> : vector<16x4xf32>
    %123 = vector.multi_reduction <add>, %121, %cst_116 [0] : vector<8x16x4xf32> to vector<16x4xf32>
    %124 = vector.shape_cast %123 : vector<16x4xf32> to vector<1x16x4xf32>
    %cst_117 = arith.constant dense<0.000000e+00> : vector<1x4xf32>
    %125 = vector.multi_reduction <add>, %124, %cst_117 [1] : vector<1x16x4xf32> to vector<1x4xf32>
    %126 = vector.shape_cast %125 : vector<1x4xf32> to vector<1x1x4xf32>
    %127 = arith.addf %68, %126 : vector<1x1x4xf32>
    %128 = arith.mulf %121, %121 : vector<8x16x4xf32>
    %cst_118 = arith.constant dense<0.000000e+00> : vector<16x4xf32>
    %129 = vector.multi_reduction <add>, %128, %cst_118 [0] : vector<8x16x4xf32> to vector<16x4xf32>
    %130 = vector.shape_cast %129 : vector<16x4xf32> to vector<1x16x4xf32>
    %cst_119 = arith.constant dense<0.000000e+00> : vector<1x4xf32>
    %131 = vector.multi_reduction <add>, %130, %cst_119 [1] : vector<1x16x4xf32> to vector<1x4xf32>
    %132 = vector.shape_cast %131 : vector<1x4xf32> to vector<1x1x4xf32>
    %133 = arith.addf %74, %132 : vector<1x1x4xf32>
    %cst_120 = arith.constant 3.906250e-03 : f32
    %134 = vector.broadcast %cst_120 : f32 to vector<1x1x4xf32>
    %135 = arith.mulf %127, %134 : vector<1x1x4xf32>
    %cst_121 = arith.constant 3.906250e-03 : f32
    %136 = vector.broadcast %cst_121 : f32 to vector<1x1x4xf32>
    %137 = arith.mulf %133, %136 : vector<1x1x4xf32>
    %138 = arith.mulf %135, %135 : vector<1x1x4xf32>
    %139 = arith.subf %137, %138 : vector<1x1x4xf32>
    %cst_122 = arith.constant 0.000000e+00 : f32
    %140 = vector.broadcast %cst_122 : f32 to vector<1x1x4xf32>
    %141 = arith.maximumf %139, %140 : vector<1x1x4xf32>
    %c0_123 = arith.constant 0 : index
    %c0_124 = arith.constant 0 : index
    %c0_125 = arith.constant 0 : index
    %142 = vector.load %arg6[%c0_123, %c0_124, %c0_125] : memref<16x16x4xf32, #tpu.memory_space<vmem>>, vector<16x16x4xf32>
    %143 = vector.broadcast %135 : vector<1x1x4xf32> to vector<16x16x4xf32>
    %144 = arith.subf %142, %143 : vector<16x16x4xf32>
    %cst_126 = arith.constant 9.99999974E-6 : f32
    %145 = vector.broadcast %cst_126 : f32 to vector<1x1x4xf32>
    %146 = arith.addf %141, %145 : vector<1x1x4xf32>
    %147 = math.rsqrt %146 : vector<1x1x4xf32>
    %148 = vector.broadcast %147 : vector<1x1x4xf32> to vector<16x16x4xf32>
    %149 = arith.mulf %144, %148 : vector<16x16x4xf32>
    %cst_127 = arith.constant 0.000000e+00 : f32
    %150 = vector.broadcast %cst_127 : f32 to vector<16x16x4xf32>
    %151 = arith.maximumf %149, %150 : vector<16x16x4xf32>
    %152 = arith.truncf %151 : vector<16x16x4xf32> to vector<16x16x4xbf16>
    %c1_128 = arith.constant 1 : index
    %c1_129 = arith.constant 1 : index
    %c0_130 = arith.constant 0 : index
    %153 = vector.load %arg5[%c1_128, %c1_129, %c0_130] : memref<18x24x4xbf16, #tpu.memory_space<vmem>>, vector<16x16x4xbf16>
    tpu.vector_store %arg5[%c1_128, %c1_129, %c0_130], %152 {strides = array<i32>} : memref<18x24x4xbf16, #tpu.memory_space<vmem>>, vector<16x16x4xbf16>,
    %154 = vector.extract_strided_slice %152 {offsets = [1, 0, 0], sizes = [1, 16, 4], strides = [1, 1, 1]} : vector<16x16x4xbf16> to vector<1x16x4xbf16>
    %c0_131 = arith.constant 0 : index
    %c1_132 = arith.constant 1 : index
    %c0_133 = arith.constant 0 : index
    %155 = vector.load %arg5[%c0_131, %c1_132, %c0_133] : memref<18x24x4xbf16, #tpu.memory_space<vmem>>, vector<1x16x4xbf16>
    tpu.vector_store %arg5[%c0_131, %c1_132, %c0_133], %154 {strides = array<i32>} : memref<18x24x4xbf16, #tpu.memory_space<vmem>>, vector<1x16x4xbf16>,
    %156 = vector.extract_strided_slice %152 {offsets = [14, 0, 0], sizes = [1, 16, 4], strides = [1, 1, 1]} : vector<16x16x4xbf16> to vector<1x16x4xbf16>
    %c17_134 = arith.constant 17 : index
    %c1_135 = arith.constant 1 : index
    %c0_136 = arith.constant 0 : index
    %157 = vector.load %arg5[%c17_134, %c1_135, %c0_136] : memref<18x24x4xbf16, #tpu.memory_space<vmem>>, vector<1x16x4xbf16>
    tpu.vector_store %arg5[%c17_134, %c1_135, %c0_136], %156 {strides = array<i32>} : memref<18x24x4xbf16, #tpu.memory_space<vmem>>, vector<1x16x4xbf16>,
    %c0_137 = arith.constant 0 : index
    %c2_138 = arith.constant 2 : index
    %c0_139 = arith.constant 0 : index
    %158 = vector.load %arg5[%c0_137, %c2_138, %c0_139] : memref<18x24x4xbf16, #tpu.memory_space<vmem>>, vector<18x1x4xbf16>
    %c0_140 = arith.constant 0 : index
    %c0_141 = arith.constant 0 : index
    %c0_142 = arith.constant 0 : index
    %159 = vector.load %arg5[%c0_140, %c0_141, %c0_142] : memref<18x24x4xbf16, #tpu.memory_space<vmem>>, vector<18x1x4xbf16>
    tpu.vector_store %arg5[%c0_140, %c0_141, %c0_142], %158 {strides = array<i32>} : memref<18x24x4xbf16, #tpu.memory_space<vmem>>, vector<18x1x4xbf16>,
    %c0_143 = arith.constant 0 : index
    %c15_144 = arith.constant 15 : index
    %c0_145 = arith.constant 0 : index
    %160 = vector.load %arg5[%c0_143, %c15_144, %c0_145] : memref<18x24x4xbf16, #tpu.memory_space<vmem>>, vector<18x1x4xbf16>
    %c0_146 = arith.constant 0 : index
    %c17_147 = arith.constant 17 : index
    %c0_148 = arith.constant 0 : index
    %161 = vector.load %arg5[%c0_146, %c17_147, %c0_148] : memref<18x24x4xbf16, #tpu.memory_space<vmem>>, vector<18x1x4xbf16>
    tpu.vector_store %arg5[%c0_146, %c17_147, %c0_148], %160 {strides = array<i32>} : memref<18x24x4xbf16, #tpu.memory_space<vmem>>, vector<18x1x4xbf16>,
    %cst_149 = arith.constant 0.000000e+00 : f32
    %162 = vector.broadcast %cst_149 : f32 to vector<1x1x4xf32>
    %cst_150 = arith.constant 0.000000e+00 : f32
    %163 = vector.broadcast %cst_150 : f32 to vector<1x1x4xf32>
    %c0_151 = arith.constant 0 : index
    %c0_152 = arith.constant 0 : index
    %c0_153 = arith.constant 0 : index
    %164 = vector.load %arg5[%c0_151, %c0_152, %c0_153] : memref<18x24x4xbf16, #tpu.memory_space<vmem>>, vector<8x24x4xbf16>
    %165 = vector.shape_cast %164 : vector<8x24x4xbf16> to vector<192x4xbf16>
    %c0_154 = arith.constant 0 : index
    %c0_155 = arith.constant 0 : index
    %c0_156 = arith.constant 0 : index
    %166 = vector.load %arg3[%c0_154, %c0_155, %c0_156] : memref<9x4x4xbf16, #tpu.memory_space<vmem>>, vector<1x4x4xbf16>
    %167 = vector.shape_cast %166 : vector<1x4x4xbf16> to vector<4x4xbf16>
    %cst_157 = arith.constant dense<0.000000e+00> : vector<192x4xf32>
    %168 = tpu.matmul %165, %167, %cst_157 {dimension_numbers = #tpu.dot_dimension_numbers<[1], [0], [0], [1], [0, 0, 1, 1], [], []>} : vector<192x4xbf16>, vector<4x4xbf16>, vector<192x4xf32> -> vector<192x4xf32>
    %c1_158 = arith.constant 1 : index
    %c0_159 = arith.constant 0 : index
    %c0_160 = arith.constant 0 : index
    %169 = vector.load %arg3[%c1_158, %c0_159, %c0_160] : memref<9x4x4xbf16, #tpu.memory_space<vmem>>, vector<1x4x4xbf16>
    %170 = vector.shape_cast %169 : vector<1x4x4xbf16> to vector<4x4xbf16>
    %cst_161 = arith.constant dense<0.000000e+00> : vector<192x4xf32>
    %171 = tpu.matmul %165, %170, %cst_161 {dimension_numbers = #tpu.dot_dimension_numbers<[1], [0], [0], [1], [0, 0, 1, 1], [], []>} : vector<192x4xbf16>, vector<4x4xbf16>, vector<192x4xf32> -> vector<192x4xf32>
    %c2_162 = arith.constant 2 : index
    %c0_163 = arith.constant 0 : index
    %c0_164 = arith.constant 0 : index
    %172 = vector.load %arg3[%c2_162, %c0_163, %c0_164] : memref<9x4x4xbf16, #tpu.memory_space<vmem>>, vector<1x4x4xbf16>
    %173 = vector.shape_cast %172 : vector<1x4x4xbf16> to vector<4x4xbf16>
    %cst_165 = arith.constant dense<0.000000e+00> : vector<192x4xf32>
    %174 = tpu.matmul %165, %173, %cst_165 {dimension_numbers = #tpu.dot_dimension_numbers<[1], [0], [0], [1], [0, 0, 1, 1], [], []>} : vector<192x4xbf16>, vector<4x4xbf16>, vector<192x4xf32> -> vector<192x4xf32>
    %c1_166 = arith.constant 1 : index
    %c0_167 = arith.constant 0 : index
    %c0_168 = arith.constant 0 : index
    %175 = vector.load %arg5[%c1_166, %c0_167, %c0_168] : memref<18x24x4xbf16, #tpu.memory_space<vmem>>, vector<8x24x4xbf16>
    %176 = vector.shape_cast %175 : vector<8x24x4xbf16> to vector<192x4xbf16>
    %c3_169 = arith.constant 3 : index
    %c0_170 = arith.constant 0 : index
    %c0_171 = arith.constant 0 : index
    %177 = vector.load %arg3[%c3_169, %c0_170, %c0_171] : memref<9x4x4xbf16, #tpu.memory_space<vmem>>, vector<1x4x4xbf16>
    %178 = vector.shape_cast %177 : vector<1x4x4xbf16> to vector<4x4xbf16>
    %cst_172 = arith.constant dense<0.000000e+00> : vector<192x4xf32>
    %179 = tpu.matmul %176, %178, %cst_172 {dimension_numbers = #tpu.dot_dimension_numbers<[1], [0], [0], [1], [0, 0, 1, 1], [], []>} : vector<192x4xbf16>, vector<4x4xbf16>, vector<192x4xf32> -> vector<192x4xf32>
    %180 = arith.addf %168, %179 : vector<192x4xf32>
    %c4_173 = arith.constant 4 : index
    %c0_174 = arith.constant 0 : index
    %c0_175 = arith.constant 0 : index
    %181 = vector.load %arg3[%c4_173, %c0_174, %c0_175] : memref<9x4x4xbf16, #tpu.memory_space<vmem>>, vector<1x4x4xbf16>
    %182 = vector.shape_cast %181 : vector<1x4x4xbf16> to vector<4x4xbf16>
    %cst_176 = arith.constant dense<0.000000e+00> : vector<192x4xf32>
    %183 = tpu.matmul %176, %182, %cst_176 {dimension_numbers = #tpu.dot_dimension_numbers<[1], [0], [0], [1], [0, 0, 1, 1], [], []>} : vector<192x4xbf16>, vector<4x4xbf16>, vector<192x4xf32> -> vector<192x4xf32>
    %184 = arith.addf %171, %183 : vector<192x4xf32>
    %c5_177 = arith.constant 5 : index
    %c0_178 = arith.constant 0 : index
    %c0_179 = arith.constant 0 : index
    %185 = vector.load %arg3[%c5_177, %c0_178, %c0_179] : memref<9x4x4xbf16, #tpu.memory_space<vmem>>, vector<1x4x4xbf16>
    %186 = vector.shape_cast %185 : vector<1x4x4xbf16> to vector<4x4xbf16>
    %cst_180 = arith.constant dense<0.000000e+00> : vector<192x4xf32>
    %187 = tpu.matmul %176, %186, %cst_180 {dimension_numbers = #tpu.dot_dimension_numbers<[1], [0], [0], [1], [0, 0, 1, 1], [], []>} : vector<192x4xbf16>, vector<4x4xbf16>, vector<192x4xf32> -> vector<192x4xf32>
    %188 = arith.addf %174, %187 : vector<192x4xf32>
    %c2_181 = arith.constant 2 : index
    %c0_182 = arith.constant 0 : index
    %c0_183 = arith.constant 0 : index
    %189 = vector.load %arg5[%c2_181, %c0_182, %c0_183] : memref<18x24x4xbf16, #tpu.memory_space<vmem>>, vector<8x24x4xbf16>
    %190 = vector.shape_cast %189 : vector<8x24x4xbf16> to vector<192x4xbf16>
    %c6_184 = arith.constant 6 : index
    %c0_185 = arith.constant 0 : index
    %c0_186 = arith.constant 0 : index
    %191 = vector.load %arg3[%c6_184, %c0_185, %c0_186] : memref<9x4x4xbf16, #tpu.memory_space<vmem>>, vector<1x4x4xbf16>
    %192 = vector.shape_cast %191 : vector<1x4x4xbf16> to vector<4x4xbf16>
    %cst_187 = arith.constant dense<0.000000e+00> : vector<192x4xf32>
    %193 = tpu.matmul %190, %192, %cst_187 {dimension_numbers = #tpu.dot_dimension_numbers<[1], [0], [0], [1], [0, 0, 1, 1], [], []>} : vector<192x4xbf16>, vector<4x4xbf16>, vector<192x4xf32> -> vector<192x4xf32>
    %194 = arith.addf %180, %193 : vector<192x4xf32>
    %c7_188 = arith.constant 7 : index
    %c0_189 = arith.constant 0 : index
    %c0_190 = arith.constant 0 : index
    %195 = vector.load %arg3[%c7_188, %c0_189, %c0_190] : memref<9x4x4xbf16, #tpu.memory_space<vmem>>, vector<1x4x4xbf16>
    %196 = vector.shape_cast %195 : vector<1x4x4xbf16> to vector<4x4xbf16>
    %cst_191 = arith.constant dense<0.000000e+00> : vector<192x4xf32>
    %197 = tpu.matmul %190, %196, %cst_191 {dimension_numbers = #tpu.dot_dimension_numbers<[1], [0], [0], [1], [0, 0, 1, 1], [], []>} : vector<192x4xbf16>, vector<4x4xbf16>, vector<192x4xf32> -> vector<192x4xf32>
    %198 = arith.addf %184, %197 : vector<192x4xf32>
    %c8_192 = arith.constant 8 : index
    %c0_193 = arith.constant 0 : index
    %c0_194 = arith.constant 0 : index
    %199 = vector.load %arg3[%c8_192, %c0_193, %c0_194] : memref<9x4x4xbf16, #tpu.memory_space<vmem>>, vector<1x4x4xbf16>
    %200 = vector.shape_cast %199 : vector<1x4x4xbf16> to vector<4x4xbf16>
    %cst_195 = arith.constant dense<0.000000e+00> : vector<192x4xf32>
    %201 = tpu.matmul %190, %200, %cst_195 {dimension_numbers = #tpu.dot_dimension_numbers<[1], [0], [0], [1], [0, 0, 1, 1], [], []>} : vector<192x4xbf16>, vector<4x4xbf16>, vector<192x4xf32> -> vector<192x4xf32>
    %202 = arith.addf %188, %201 : vector<192x4xf32>
    %203 = vector.shape_cast %194 : vector<192x4xf32> to vector<8x24x4xf32>
    %204 = vector.shape_cast %198 : vector<192x4xf32> to vector<8x24x4xf32>
    %205 = vector.shape_cast %202 : vector<192x4xf32> to vector<8x24x4xf32>
    %206 = vector.extract_strided_slice %203 {offsets = [0, 0, 0], sizes = [8, 16, 4], strides = [1, 1, 1]} : vector<8x24x4xf32> to vector<8x16x4xf32>
    %207 = vector.extract_strided_slice %204 {offsets = [0, 1, 0], sizes = [8, 16, 4], strides = [1, 1, 1]} : vector<8x24x4xf32> to vector<8x16x4xf32>
    %208 = arith.addf %206, %207 : vector<8x16x4xf32>
    %209 = vector.extract_strided_slice %205 {offsets = [0, 2, 0], sizes = [8, 16, 4], strides = [1, 1, 1]} : vector<8x24x4xf32> to vector<8x16x4xf32>
    %210 = arith.addf %208, %209 : vector<8x16x4xf32>
    %c0_196 = arith.constant 0 : index
    %c0_197 = arith.constant 0 : index
    %c0_198 = arith.constant 0 : index
    %211 = vector.load %arg6[%c0_196, %c0_197, %c0_198] : memref<16x16x4xf32, #tpu.memory_space<vmem>>, vector<8x16x4xf32>
    tpu.vector_store %arg6[%c0_196, %c0_197, %c0_198], %210 {strides = array<i32>} : memref<16x16x4xf32, #tpu.memory_space<vmem>>, vector<8x16x4xf32>,
    %cst_199 = arith.constant dense<0.000000e+00> : vector<16x4xf32>
    %212 = vector.multi_reduction <add>, %210, %cst_199 [0] : vector<8x16x4xf32> to vector<16x4xf32>
    %213 = vector.shape_cast %212 : vector<16x4xf32> to vector<1x16x4xf32>
    %cst_200 = arith.constant dense<0.000000e+00> : vector<1x4xf32>
    %214 = vector.multi_reduction <add>, %213, %cst_200 [1] : vector<1x16x4xf32> to vector<1x4xf32>
    %215 = vector.shape_cast %214 : vector<1x4xf32> to vector<1x1x4xf32>
    %216 = arith.addf %162, %215 : vector<1x1x4xf32>
    %217 = arith.mulf %210, %210 : vector<8x16x4xf32>
    %cst_201 = arith.constant dense<0.000000e+00> : vector<16x4xf32>
    %218 = vector.multi_reduction <add>, %217, %cst_201 [0] : vector<8x16x4xf32> to vector<16x4xf32>
    %219 = vector.shape_cast %218 : vector<16x4xf32> to vector<1x16x4xf32>
    %cst_202 = arith.constant dense<0.000000e+00> : vector<1x4xf32>
    %220 = vector.multi_reduction <add>, %219, %cst_202 [1] : vector<1x16x4xf32> to vector<1x4xf32>
    %221 = vector.shape_cast %220 : vector<1x4xf32> to vector<1x1x4xf32>
    %222 = arith.addf %163, %221 : vector<1x1x4xf32>
    %c8_203 = arith.constant 8 : index
    %c0_204 = arith.constant 0 : index
    %c0_205 = arith.constant 0 : index
    %223 = vector.load %arg5[%c8_203, %c0_204, %c0_205] : memref<18x24x4xbf16, #tpu.memory_space<vmem>>, vector<8x24x4xbf16>
    %224 = vector.shape_cast %223 : vector<8x24x4xbf16> to vector<192x4xbf16>
    %c0_206 = arith.constant 0 : index
    %c0_207 = arith.constant 0 : index
    %c0_208 = arith.constant 0 : index
    %225 = vector.load %arg3[%c0_206, %c0_207, %c0_208] : memref<9x4x4xbf16, #tpu.memory_space<vmem>>, vector<1x4x4xbf16>
    %226 = vector.shape_cast %225 : vector<1x4x4xbf16> to vector<4x4xbf16>
    %cst_209 = arith.constant dense<0.000000e+00> : vector<192x4xf32>
    %227 = tpu.matmul %224, %226, %cst_209 {dimension_numbers = #tpu.dot_dimension_numbers<[1], [0], [0], [1], [0, 0, 1, 1], [], []>} : vector<192x4xbf16>, vector<4x4xbf16>, vector<192x4xf32> -> vector<192x4xf32>
    %c1_210 = arith.constant 1 : index
    %c0_211 = arith.constant 0 : index
    %c0_212 = arith.constant 0 : index
    %228 = vector.load %arg3[%c1_210, %c0_211, %c0_212] : memref<9x4x4xbf16, #tpu.memory_space<vmem>>, vector<1x4x4xbf16>
    %229 = vector.shape_cast %228 : vector<1x4x4xbf16> to vector<4x4xbf16>
    %cst_213 = arith.constant dense<0.000000e+00> : vector<192x4xf32>
    %230 = tpu.matmul %224, %229, %cst_213 {dimension_numbers = #tpu.dot_dimension_numbers<[1], [0], [0], [1], [0, 0, 1, 1], [], []>} : vector<192x4xbf16>, vector<4x4xbf16>, vector<192x4xf32> -> vector<192x4xf32>
    %c2_214 = arith.constant 2 : index
    %c0_215 = arith.constant 0 : index
    %c0_216 = arith.constant 0 : index
    %231 = vector.load %arg3[%c2_214, %c0_215, %c0_216] : memref<9x4x4xbf16, #tpu.memory_space<vmem>>, vector<1x4x4xbf16>
    %232 = vector.shape_cast %231 : vector<1x4x4xbf16> to vector<4x4xbf16>
    %cst_217 = arith.constant dense<0.000000e+00> : vector<192x4xf32>
    %233 = tpu.matmul %224, %232, %cst_217 {dimension_numbers = #tpu.dot_dimension_numbers<[1], [0], [0], [1], [0, 0, 1, 1], [], []>} : vector<192x4xbf16>, vector<4x4xbf16>, vector<192x4xf32> -> vector<192x4xf32>
    %c9_218 = arith.constant 9 : index
    %c0_219 = arith.constant 0 : index
    %c0_220 = arith.constant 0 : index
    %234 = vector.load %arg5[%c9_218, %c0_219, %c0_220] : memref<18x24x4xbf16, #tpu.memory_space<vmem>>, vector<8x24x4xbf16>
    %235 = vector.shape_cast %234 : vector<8x24x4xbf16> to vector<192x4xbf16>
    %c3_221 = arith.constant 3 : index
    %c0_222 = arith.constant 0 : index
    %c0_223 = arith.constant 0 : index
    %236 = vector.load %arg3[%c3_221, %c0_222, %c0_223] : memref<9x4x4xbf16, #tpu.memory_space<vmem>>, vector<1x4x4xbf16>
    %237 = vector.shape_cast %236 : vector<1x4x4xbf16> to vector<4x4xbf16>
    %cst_224 = arith.constant dense<0.000000e+00> : vector<192x4xf32>
    %238 = tpu.matmul %235, %237, %cst_224 {dimension_numbers = #tpu.dot_dimension_numbers<[1], [0], [0], [1], [0, 0, 1, 1], [], []>} : vector<192x4xbf16>, vector<4x4xbf16>, vector<192x4xf32> -> vector<192x4xf32>
    %239 = arith.addf %227, %238 : vector<192x4xf32>
    %c4_225 = arith.constant 4 : index
    %c0_226 = arith.constant 0 : index
    %c0_227 = arith.constant 0 : index
    %240 = vector.load %arg3[%c4_225, %c0_226, %c0_227] : memref<9x4x4xbf16, #tpu.memory_space<vmem>>, vector<1x4x4xbf16>
    %241 = vector.shape_cast %240 : vector<1x4x4xbf16> to vector<4x4xbf16>
    %cst_228 = arith.constant dense<0.000000e+00> : vector<192x4xf32>
    %242 = tpu.matmul %235, %241, %cst_228 {dimension_numbers = #tpu.dot_dimension_numbers<[1], [0], [0], [1], [0, 0, 1, 1], [], []>} : vector<192x4xbf16>, vector<4x4xbf16>, vector<192x4xf32> -> vector<192x4xf32>
    %243 = arith.addf %230, %242 : vector<192x4xf32>
    %c5_229 = arith.constant 5 : index
    %c0_230 = arith.constant 0 : index
    %c0_231 = arith.constant 0 : index
    %244 = vector.load %arg3[%c5_229, %c0_230, %c0_231] : memref<9x4x4xbf16, #tpu.memory_space<vmem>>, vector<1x4x4xbf16>
    %245 = vector.shape_cast %244 : vector<1x4x4xbf16> to vector<4x4xbf16>
    %cst_232 = arith.constant dense<0.000000e+00> : vector<192x4xf32>
    %246 = tpu.matmul %235, %245, %cst_232 {dimension_numbers = #tpu.dot_dimension_numbers<[1], [0], [0], [1], [0, 0, 1, 1], [], []>} : vector<192x4xbf16>, vector<4x4xbf16>, vector<192x4xf32> -> vector<192x4xf32>
    %247 = arith.addf %233, %246 : vector<192x4xf32>
    %c10_233 = arith.constant 10 : index
    %c0_234 = arith.constant 0 : index
    %c0_235 = arith.constant 0 : index
    %248 = vector.load %arg5[%c10_233, %c0_234, %c0_235] : memref<18x24x4xbf16, #tpu.memory_space<vmem>>, vector<8x24x4xbf16>
    %249 = vector.shape_cast %248 : vector<8x24x4xbf16> to vector<192x4xbf16>
    %c6_236 = arith.constant 6 : index
    %c0_237 = arith.constant 0 : index
    %c0_238 = arith.constant 0 : index
    %250 = vector.load %arg3[%c6_236, %c0_237, %c0_238] : memref<9x4x4xbf16, #tpu.memory_space<vmem>>, vector<1x4x4xbf16>
    %251 = vector.shape_cast %250 : vector<1x4x4xbf16> to vector<4x4xbf16>
    %cst_239 = arith.constant dense<0.000000e+00> : vector<192x4xf32>
    %252 = tpu.matmul %249, %251, %cst_239 {dimension_numbers = #tpu.dot_dimension_numbers<[1], [0], [0], [1], [0, 0, 1, 1], [], []>} : vector<192x4xbf16>, vector<4x4xbf16>, vector<192x4xf32> -> vector<192x4xf32>
    %253 = arith.addf %239, %252 : vector<192x4xf32>
    %c7_240 = arith.constant 7 : index
    %c0_241 = arith.constant 0 : index
    %c0_242 = arith.constant 0 : index
    %254 = vector.load %arg3[%c7_240, %c0_241, %c0_242] : memref<9x4x4xbf16, #tpu.memory_space<vmem>>, vector<1x4x4xbf16>
    %255 = vector.shape_cast %254 : vector<1x4x4xbf16> to vector<4x4xbf16>
    %cst_243 = arith.constant dense<0.000000e+00> : vector<192x4xf32>
    %256 = tpu.matmul %249, %255, %cst_243 {dimension_numbers = #tpu.dot_dimension_numbers<[1], [0], [0], [1], [0, 0, 1, 1], [], []>} : vector<192x4xbf16>, vector<4x4xbf16>, vector<192x4xf32> -> vector<192x4xf32>
    %257 = arith.addf %243, %256 : vector<192x4xf32>
    %c8_244 = arith.constant 8 : index
    %c0_245 = arith.constant 0 : index
    %c0_246 = arith.constant 0 : index
    %258 = vector.load %arg3[%c8_244, %c0_245, %c0_246] : memref<9x4x4xbf16, #tpu.memory_space<vmem>>, vector<1x4x4xbf16>
    %259 = vector.shape_cast %258 : vector<1x4x4xbf16> to vector<4x4xbf16>
    %cst_247 = arith.constant dense<0.000000e+00> : vector<192x4xf32>
    %260 = tpu.matmul %249, %259, %cst_247 {dimension_numbers = #tpu.dot_dimension_numbers<[1], [0], [0], [1], [0, 0, 1, 1], [], []>} : vector<192x4xbf16>, vector<4x4xbf16>, vector<192x4xf32> -> vector<192x4xf32>
    %261 = arith.addf %247, %260 : vector<192x4xf32>
    %262 = vector.shape_cast %253 : vector<192x4xf32> to vector<8x24x4xf32>
    %263 = vector.shape_cast %257 : vector<192x4xf32> to vector<8x24x4xf32>
    %264 = vector.shape_cast %261 : vector<192x4xf32> to vector<8x24x4xf32>
    %265 = vector.extract_strided_slice %262 {offsets = [0, 0, 0], sizes = [8, 16, 4], strides = [1, 1, 1]} : vector<8x24x4xf32> to vector<8x16x4xf32>
    %266 = vector.extract_strided_slice %263 {offsets = [0, 1, 0], sizes = [8, 16, 4], strides = [1, 1, 1]} : vector<8x24x4xf32> to vector<8x16x4xf32>
    %267 = arith.addf %265, %266 : vector<8x16x4xf32>
    %268 = vector.extract_strided_slice %264 {offsets = [0, 2, 0], sizes = [8, 16, 4], strides = [1, 1, 1]} : vector<8x24x4xf32> to vector<8x16x4xf32>
    %269 = arith.addf %267, %268 : vector<8x16x4xf32>
    %c8_248 = arith.constant 8 : index
    %c0_249 = arith.constant 0 : index
    %c0_250 = arith.constant 0 : index
    %270 = vector.load %arg6[%c8_248, %c0_249, %c0_250] : memref<16x16x4xf32, #tpu.memory_space<vmem>>, vector<8x16x4xf32>
    tpu.vector_store %arg6[%c8_248, %c0_249, %c0_250], %269 {strides = array<i32>} : memref<16x16x4xf32, #tpu.memory_space<vmem>>, vector<8x16x4xf32>,
    %cst_251 = arith.constant dense<0.000000e+00> : vector<16x4xf32>
    %271 = vector.multi_reduction <add>, %269, %cst_251 [0] : vector<8x16x4xf32> to vector<16x4xf32>
    %272 = vector.shape_cast %271 : vector<16x4xf32> to vector<1x16x4xf32>
    %cst_252 = arith.constant dense<0.000000e+00> : vector<1x4xf32>
    %273 = vector.multi_reduction <add>, %272, %cst_252 [1] : vector<1x16x4xf32> to vector<1x4xf32>
    %274 = vector.shape_cast %273 : vector<1x4xf32> to vector<1x1x4xf32>
    %275 = arith.addf %216, %274 : vector<1x1x4xf32>
    %276 = arith.mulf %269, %269 : vector<8x16x4xf32>
    %cst_253 = arith.constant dense<0.000000e+00> : vector<16x4xf32>
    %277 = vector.multi_reduction <add>, %276, %cst_253 [0] : vector<8x16x4xf32> to vector<16x4xf32>
    %278 = vector.shape_cast %277 : vector<16x4xf32> to vector<1x16x4xf32>
    %cst_254 = arith.constant dense<0.000000e+00> : vector<1x4xf32>
    %279 = vector.multi_reduction <add>, %278, %cst_254 [1] : vector<1x16x4xf32> to vector<1x4xf32>
    %280 = vector.shape_cast %279 : vector<1x4xf32> to vector<1x1x4xf32>
    %281 = arith.addf %222, %280 : vector<1x1x4xf32>
    %cst_255 = arith.constant 3.906250e-03 : f32
    %282 = vector.broadcast %cst_255 : f32 to vector<1x1x4xf32>
    %283 = arith.mulf %275, %282 : vector<1x1x4xf32>
    %cst_256 = arith.constant 3.906250e-03 : f32
    %284 = vector.broadcast %cst_256 : f32 to vector<1x1x4xf32>
    %285 = arith.mulf %281, %284 : vector<1x1x4xf32>
    %286 = arith.mulf %283, %283 : vector<1x1x4xf32>
    %287 = arith.subf %285, %286 : vector<1x1x4xf32>
    %cst_257 = arith.constant 0.000000e+00 : f32
    %288 = vector.broadcast %cst_257 : f32 to vector<1x1x4xf32>
    %289 = arith.maximumf %287, %288 : vector<1x1x4xf32>
    %c0_258 = arith.constant 0 : index
    %c0_259 = arith.constant 0 : index
    %c0_260 = arith.constant 0 : index
    %290 = vector.load %arg6[%c0_258, %c0_259, %c0_260] : memref<16x16x4xf32, #tpu.memory_space<vmem>>, vector<16x16x4xf32>
    %291 = vector.broadcast %283 : vector<1x1x4xf32> to vector<16x16x4xf32>
    %292 = arith.subf %290, %291 : vector<16x16x4xf32>
    %cst_261 = arith.constant 9.99999974E-6 : f32
    %293 = vector.broadcast %cst_261 : f32 to vector<1x1x4xf32>
    %294 = arith.addf %289, %293 : vector<1x1x4xf32>
    %295 = math.rsqrt %294 : vector<1x1x4xf32>
    %296 = vector.broadcast %295 : vector<1x1x4xf32> to vector<16x16x4xf32>
    %297 = arith.mulf %292, %296 : vector<16x16x4xf32>
    %c0_262 = arith.constant 0 : index
    %c0_263 = arith.constant 0 : index
    %c0_264 = arith.constant 0 : index
    %c0_265 = arith.constant 0 : index
    %298 = vector.load %arg1[%c0_262, %c0_263, %c0_264, %c0_265] : memref<1x16x16x4xf32, #tpu.memory_space<vmem>>, vector<1x16x16x4xf32>
    %299 = vector.shape_cast %298 : vector<1x16x16x4xf32> to vector<16x16x4xf32>
    %300 = arith.addf %299, %297 : vector<16x16x4xf32>
    %c0_266 = arith.constant 0 : index
    %c0_267 = arith.constant 0 : index
    %c0_268 = arith.constant 0 : index
    %c0_269 = arith.constant 0 : index
    %301 = vector.load %arg4[%c0_266, %c0_267, %c0_268, %c0_269] : memref<1x16x16x4xf32, #tpu.memory_space<vmem>>, vector<1x16x16x4xf32>
    %302 = vector.shape_cast %301 : vector<1x16x16x4xf32> to vector<16x16x4xf32>
    %303 = vector.shape_cast %300 : vector<16x16x4xf32> to vector<1x16x16x4xf32>
    tpu.vector_store %arg4[%c0_266, %c0_267, %c0_268, %c0_269], %303 {strides = array<i32>} : memref<1x16x16x4xf32, #tpu.memory_space<vmem>>, vector<1x16x16x4xf32>,
    return
  }
  func.func @transform_0(%arg0: i32) -> (i32, i32, i32, i32) {
    %c0_i32 = arith.constant 0 : i32
    %c0_i32_0 = arith.constant 0 : i32
    %c0_i32_1 = arith.constant 0 : i32
    %c0_i32_2 = arith.constant 0 : i32
    return %arg0, %c0_i32, %c0_i32_0, %c0_i32_1 : i32, i32, i32, i32
  }
  func.func @transform_1(%arg0: i32) -> (i32, i32, i32) {
    %c0_i32 = arith.constant 0 : i32
    %c0_i32_0 = arith.constant 0 : i32
    %c0_i32_1 = arith.constant 0 : i32
    %c0_i32_2 = arith.constant 0 : i32
    return %c0_i32, %c0_i32_0, %c0_i32_1 : i32, i32, i32
  }
  func.func @transform_2(%arg0: i32) -> (i32, i32, i32) {
    %c0_i32 = arith.constant 0 : i32
    %c0_i32_0 = arith.constant 0 : i32
    %c0_i32_1 = arith.constant 0 : i32
    %c0_i32_2 = arith.constant 0 : i32
    return %c0_i32, %c0_i32_0, %c0_i32_1 : i32, i32, i32
  }
  func.func @transform_3(%arg0: i32) -> (i32, i32, i32, i32) {
    %c0_i32 = arith.constant 0 : i32
    %c0_i32_0 = arith.constant 0 : i32
    %c0_i32_1 = arith.constant 0 : i32
    %c0_i32_2 = arith.constant 0 : i32
    return %arg0, %c0_i32, %c0_i32_0, %c0_i32_1 : i32, i32, i32, i32
  }
}

</mosaic_0001>

<llo_original>
// kernel: tpu_custom_call.1
$region0: #{tpu_custom_call.1}
  #allocation0 [shape = 'u32[]', space=smem, size = 0x4, offset = 0x4, fixed_abs, tag = 'smem constant byte address 0x4 - core index']
  #allocation1 [shape = 'u32[144,128]{1,0:T(1,128)}', space=vmem, size = 0x12000, scoped, tag = 'internal scratch']
  #allocation2 [shape = 'bf16[18,24,4]{2,1,0:T(8,128)(2,1)}', space=vmem, size = 0x1b000, scoped, tag = 'scratch operand']
  #allocation3 [shape = 'f32[16,16,4]{2,1,0:T(8,128)}', space=vmem, size = 0x20000, scoped, tag = 'scratch operand']
  %s0 = inlined_call_operand.vmem [shape: f32[2,16,16,4], index: 0, kind: input, shape index: {}]
  %s1 = inlined_call_operand.vmem [shape: bf16[9,4,4], index: 1, kind: input, shape index: {}]
  %s2 = inlined_call_operand.vmem [shape: bf16[9,4,4], index: 2, kind: input, shape index: {}]
  %s3 = inlined_call_operand.vmem [shape: f32[2,16,16,4], index: 3, kind: output, shape index: {}]
  %s4 = sld [smem:[#allocation0]]
  $region45: #{tpu_custom_call.1} parent=0
    _
  %s6 = ssub.s32 1, %s4
  %s7 = scalar_select 0, %s6, %s4
  loop: start=0, step=1, limit=4
  $region2: #{tpu_custom_call.1} parent=0 // loop_pre_header
    _
  $region3: #{tpu_custom_call.1} parent=0 // loop_header
    %s9 = sphi 0, %s13
    %p10 = scmp.ge.s32.totalorder %s9, 4
    %s19 = sphi 0, %s21
    %s22 = sphi 0, %s19
    %s23 = sphi 0, %s22
    %s39 = sphi 0, %s23
    %s43 = sphi 0, %s43
    %s45 = sphi 0, %s43
    %s46 = sphi 0, %s45
    %s60 = sphi 0, %s46
    %s64 = sphi 0, %s64
    %s66 = sphi 0, %s64
    %s67 = sphi 0, %s66
    %s81 = sphi 0, %s67
    %s87 = sphi 0, %s89
    %s90 = sphi 0, %s87
    %s91 = sphi 0, %s90
    %s107 = sphi 0, %s91
  $region4: #{tpu_custom_call.1} parent=0 // loop_header_branch
    %12 = sbr.rel (%p10) target = $region8
  $region5: #{tpu_custom_call.1} parent=0 // loop_body
    %s14 = ssub.s32 %s9, 1
    %s15 = ssub.s32 %s9, 2
    %s16 = sadd.s32 %s9, 1
    %s17 = ssub.s32 %s9, %s16
    %p18 = scmp.eq.s32.totalorder %s17, 0
    %s20 = sadd.s32 %s19, 1
    %s21 = scalar_select %p18, %s19, %s20
    %p24 = pneg %p18
    %p25 = scmp.eq.s32.totalorder %s9, 1
    %p26 = por %p24, %p25
    %p27 = scmp.ne.s32.totalorder %s19, %s22
    %p28 = scmp.eq.s32.totalorder %s9, 0
    %p29 = por %p27, %p28
    %p30 = scmp.ne.s32.totalorder %s19, %s22
    %p31 = scmp.eq.s32.totalorder %s14, 1
    %p32 = por %p30, %p31
    %p33 = scmp.ne.s32.totalorder %s22, %s23
    %p34 = scmp.eq.s32.totalorder %s14, 0
    %p35 = por %p33, %p34
    %p36 = scmp.ne.s32.totalorder %s22, %s23
    %p37 = scmp.eq.s32.totalorder %s15, 1
    %p38 = por %p36, %p37
    %p40 = scmp.ne.s32.totalorder %s23, %s39
    %p41 = scmp.eq.s32.totalorder %s15, 0
    %p42 = por %p40, %p41
    %s44 = sadd.s32 %s43, 1
    %p47 = scmp.eq.s32.totalorder %s9, 1
    %p48 = scmp.ne.s32.totalorder %s43, %s45
    %p49 = scmp.eq.s32.totalorder %s9, 0
    %p50 = por %p48, %p49
    %p51 = scmp.ne.s32.totalorder %s43, %s45
    %p52 = scmp.eq.s32.totalorder %s14, 1
    %p53 = por %p51, %p52
    %p54 = scmp.ne.s32.totalorder %s45, %s46
    %p55 = scmp.eq.s32.totalorder %s14, 0
    %p56 = por %p54, %p55
    %p57 = scmp.ne.s32.totalorder %s45, %s46
    %p58 = scmp.eq.s32.totalorder %s15, 1
    %p59 = por %p57, %p58
    %p61 = scmp.ne.s32.totalorder %s46, %s60
    %p62 = scmp.eq.s32.totalorder %s15, 0
    %p63 = por %p61, %p62
    %s65 = sadd.s32 %s64, 1
    %p68 = scmp.eq.s32.totalorder %s9, 1
    %p69 = scmp.ne.s32.totalorder %s64, %s66
    %p70 = scmp.eq.s32.totalorder %s9, 0
    %p71 = por %p69, %p70
    %p72 = scmp.ne.s32.totalorder %s64, %s66
    %p73 = scmp.eq.s32.totalorder %s14, 1
    %p74 = por %p72, %p73
    %p75 = scmp.ne.s32.totalorder %s66, %s67
    %p76 = scmp.eq.s32.totalorder %s14, 0
    %p77 = por %p75, %p76
    %p78 = scmp.ne.s32.totalorder %s66, %s67
    %p79 = scmp.eq.s32.totalorder %s15, 1
    %p80 = por %p78, %p79
    %p82 = scmp.ne.s32.totalorder %s67, %s81
    %p83 = scmp.eq.s32.totalorder %s15, 0
    %p84 = por %p82, %p83
    %s85 = ssub.s32 %s9, %s16
    %p86 = scmp.eq.s32.totalorder %s85, 0
    %s88 = sadd.s32 %s87, 1
    %s89 = scalar_select %p86, %s87, %s88
    %p92 = pneg %p86
    %p93 = scmp.eq.s32.totalorder %s9, 1
    %p94 = por %p92, %p93
    %p95 = scmp.ne.s32.totalorder %s87, %s90
    %p96 = scmp.eq.s32.totalorder %s9, 0
    %p97 = por %p95, %p96
    %p98 = scmp.ne.s32.totalorder %s87, %s90
    %p99 = scmp.eq.s32.totalorder %s14, 1
    %p100 = por %p98, %p99
    %p101 = scmp.ne.s32.totalorder %s90, %s91
    %p102 = scmp.eq.s32.totalorder %s14, 0
    %p103 = por %p101, %p102
    %p104 = scmp.ne.s32.totalorder %s90, %s91
    %p105 = scmp.eq.s32.totalorder %s15, 1
    %p106 = por %p104, %p105
    %p108 = scmp.ne.s32.totalorder %s91, %s107
    %p109 = scmp.eq.s32.totalorder %s15, 0
    %p110 = por %p108, %p109
    %p111 = scmp.le.s32.totalorder 1, %s9
    %p112 = scmp.lt.s32.totalorder %s9, 3
    %p113 = pnand %p111, %p112
    %p114 = pneg %p113
    // Predicated region
    $region9: #{tpu_custom_call.1} parent=5 // pred_check
      _
    $region10: #{tpu_custom_call.1} parent=5 // pred_check_branch
      %116 = sbr.rel (%p113) target = $region12
    $region11: #{tpu_custom_call.1} parent=5 // pred_region
      %s117 = ssub.s32 %s9, 1
      // Predicated region
      $region13: #{tpu_custom_call.1} parent=11 // pred_check
        %p118 = pneg %p56
      $region14: #{tpu_custom_call.1} parent=11 // pred_check_branch
        %120 = sbr.rel (%p118) target = $region16
      $region15: #{tpu_custom_call.1} parent=11 // pred_region
        _
      $region16: #{tpu_custom_call.1} parent=11 // pred_fallthru
        _
      // Predicated region
      $region17: #{tpu_custom_call.1} parent=11 // pred_check
        %p121 = pneg %p77
      $region18: #{tpu_custom_call.1} parent=11 // pred_check_branch
        %123 = sbr.rel (%p121) target = $region20
      $region19: #{tpu_custom_call.1} parent=11 // pred_region
        _
      $region20: #{tpu_custom_call.1} parent=11 // pred_fallthru
        _
    $region12: #{tpu_custom_call.1} parent=5 // pred_fallthru
      _
    %p124 = scmp.lt.s32.totalorder %s9, 2
    // Predicated region
    $region21: #{tpu_custom_call.1} parent=5 // pred_check
      %p125 = pneg %p124
    $region22: #{tpu_custom_call.1} parent=5 // pred_check_branch
      %127 = sbr.rel (%p125) target = $region24
    $region23: #{tpu_custom_call.1} parent=5 // pred_region
      // Predicated region
      $region25: #{tpu_custom_call.1} parent=23 // pred_check
        %p128 = pneg %p29
      $region26: #{tpu_custom_call.1} parent=23 // pred_check_branch
        %130 = sbr.rel (%p128) target = $region28
      $region27: #{tpu_custom_call.1} parent=23 // pred_region
        %p131 = scmp.lt.s32.totalorder %s9, 1
        %s132 = scalar_select %p131, %s9, 1
        %s133 = smul.addr %s132, 32
        %s134 = smul.addr %s133, 8
        %s135 = scalar_lea.vmem %s0, %s134
      $region28: #{tpu_custom_call.1} parent=23 // pred_fallthru
        _
    $region24: #{tpu_custom_call.1} parent=5 // pred_fallthru
      _
    %p136 = scmp.le.s32.totalorder 1, %s9
    %p137 = scmp.lt.s32.totalorder %s9, 3
    %p138 = pnand %p136, %p137
    %p139 = pneg %p138
    // Predicated region
    $region29: #{tpu_custom_call.1} parent=5 // pred_check
      _
    $region30: #{tpu_custom_call.1} parent=5 // pred_check_branch
      %141 = sbr.rel (%p138) target = $region32
    $region31: #{tpu_custom_call.1} parent=5 // pred_region
      %s142 = ssub.s32 %s9, 1
      %p143 = scmp.lt.s32.totalorder %s14, 1
      %s144 = scalar_select %p143, %s14, 1
      %s145 = smul.addr %s144, 32
      %s146 = smul.addr %s145, 8
      %s147 = scalar_lea.vmem %s0, %s146
      %p148 = pneg %p35
      %p149 = pneg %p32
      %p150 = pneg %p56
      %p151 = pneg %p53
      %p152 = pneg %p77
      %p153 = pneg %p74
      %p154 = pneg %p103
      %p155 = pneg %p100
      %p156 = scmp.lt.s32.totalorder %s14, 1
      %s157 = scalar_select %p156, %s14, 1
      %s158 = smul.addr %s157, 32
      %s159 = smul.addr %s158, 8
      %s160 = scalar_lea.vmem %s3, %s159
      %p161 = scmp.lt.s32.totalorder %s14, 1
      %s162 = scalar_select %p161, %s14, 1
      %s163 = smul.addr %s162, 32
      %s164 = smul.addr %s163, 8
      %s165 = scalar_lea.vmem %s0, %s164
      %p166 = scmp.lt.s32.totalorder %s14, 1
      %s167 = scalar_select %p166, %s14, 1
      %s168 = smul.addr %s167, 32
      %s169 = smul.addr %s168, 8
      %s170 = scalar_lea.vmem %s3, %s169
      %vm172 = vcmask 27649
      %173 = vst.msk [vmem:[#allocation2 + $0x8] sm:$0xe] %vm172, 0
      %174 = vst.msk [vmem:[#allocation2 + $0x14] sm:$0xe] %vm172, 0
      %175 = vst.msk [vmem:[#allocation2 + $0x20] sm:$0xe] %vm172, 0
      %176 = vst.msk [vmem:[#allocation2 + $0x2c] sm:$0xe] %vm172, 0
      %177 = vst.msk [vmem:[#allocation2 + $0x38] sm:$0xe] %vm172, 0
      %178 = vst.msk [vmem:[#allocation2 + $0x44] sm:$0xe] %vm172, 0
      %179 = vst.msk [vmem:[#allocation2 + $0x50] sm:$0xe] %vm172, 0
      %180 = vst.msk [vmem:[#allocation2 + $0x5c] sm:$0xe] %vm172, 0
      %181 = vst.msk [vmem:[#allocation2 + $0x68] sm:$0xe] %vm172, 0
      %182 = vst.msk [vmem:[#allocation2 + $0x74] sm:$0xe] %vm172, 0
      %183 = vst.msk [vmem:[#allocation2 + $0x80] sm:$0xe] %vm172, 0
      %184 = vst.msk [vmem:[#allocation2 + $0x8c] sm:$0xe] %vm172, 0
      %185 = vst.msk [vmem:[#allocation2 + $0x98] sm:$0xe] %vm172, 0
      %186 = vst.msk [vmem:[#allocation2 + $0xa4] sm:$0xe] %vm172, 0
      %187 = vst.msk [vmem:[#allocation2 + $0xb0] sm:$0xe] %vm172, 0
      %188 = vst.msk [vmem:[#allocation2 + $0xbc] sm:$0xe] %vm172, 0
      %189 = vst.msk [vmem:[#allocation2 + $0xc8] sm:$0xe] %vm172, 0
      %190 = vst.msk [vmem:[#allocation2 + $0xd4] sm:$0xe] %vm172, 0
      %v191 = vld [vmem:[%s165] sm:$0xff]
      %v192 = vld [vmem:[%s165 + $0x8] sm:$0xff]
      %v193 = vld [vmem:[%s165 + $0x10] sm:$0xff]
      %v194 = vld [vmem:[%s165 + $0x18] sm:$0xff]
      %v195 = vld [vmem:[%s165 + $0x20] sm:$0xff]
      %v196 = vld [vmem:[%s165 + $0x28] sm:$0xff]
      %v197 = vld [vmem:[%s165 + $0x30] sm:$0xff]
      %v198 = vld [vmem:[%s165 + $0x38] sm:$0xff]
      %v199 = vld [vmem:[%s165 + $0x40] sm:$0xff]
      %v200 = vld [vmem:[%s165 + $0x48] sm:$0xff]
      %v201 = vld [vmem:[%s165 + $0x50] sm:$0xff]
      %v202 = vld [vmem:[%s165 + $0x58] sm:$0xff]
      %v203 = vld [vmem:[%s165 + $0x60] sm:$0xff]
      %v204 = vld [vmem:[%s165 + $0x68] sm:$0xff]
      %v205 = vld [vmem:[%s165 + $0x70] sm:$0xff]
      %v206 = vld [vmem:[%s165 + $0x78] sm:$0xff]
      %v207 = vld [vmem:[%s165 + $0x80] sm:$0xff]
      %v208 = vld [vmem:[%s165 + $0x88] sm:$0xff]
      %v209 = vld [vmem:[%s165 + $0x90] sm:$0xff]
      %v210 = vld [vmem:[%s165 + $0x98] sm:$0xff]
      %v211 = vld [vmem:[%s165 + $0xa0] sm:$0xff]
      %v212 = vld [vmem:[%s165 + $0xa8] sm:$0xff]
      %v213 = vld [vmem:[%s165 + $0xb0] sm:$0xff]
      %v214 = vld [vmem:[%s165 + $0xb8] sm:$0xff]
      %v215 = vld [vmem:[%s165 + $0xc0] sm:$0xff]
      %v216 = vld [vmem:[%s165 + $0xc8] sm:$0xff]
      %v217 = vld [vmem:[%s165 + $0xd0] sm:$0xff]
      %v218 = vld [vmem:[%s165 + $0xd8] sm:$0xff]
      %v219 = vld [vmem:[%s165 + $0xe0] sm:$0xff]
      %v220 = vld [vmem:[%s165 + $0xe8] sm:$0xff]
      %v221 = vld [vmem:[%s165 + $0xf0] sm:$0xff]
      %v222 = vld [vmem:[%s165 + $0xf8] sm:$0xff]
      %v223 = vpack.c.bf16 %v192, %v191
      %v224 = vpack.c.bf16 %v194, %v193
      %v225 = vpack.c.bf16 %v196, %v195
      %v226 = vpack.c.bf16 %v198, %v197
      %v227 = vpack.c.bf16 %v200, %v199
      %v228 = vpack.c.bf16 %v202, %v201
      %v229 = vpack.c.bf16 %v204, %v203
      %v230 = vpack.c.bf16 %v206, %v205
      %v231 = vpack.c.bf16 %v208, %v207
      %v232 = vpack.c.bf16 %v210, %v209
      %v233 = vpack.c.bf16 %v212, %v211
      %v234 = vpack.c.bf16 %v214, %v213
      %v235 = vpack.c.bf16 %v216, %v215
      %v236 = vpack.c.bf16 %v218, %v217
      %v237 = vpack.c.bf16 %v220, %v219
      %v238 = vpack.c.bf16 %v222, %v221
      %v255 = vunpack.c.l.b16 %v223
      %v256 = vunpack.c.h.b16 %v223
      %v257 = vunpack.c.l.b16 %v224
      %v258 = vunpack.c.h.b16 %v224
      %v259 = vunpack.c.l.b16 %v225
      %v260 = vunpack.c.h.b16 %v225
      %v261 = vunpack.c.l.b16 %v226
      %v262 = vunpack.c.h.b16 %v226
      %v263 = vunpack.c.l.b16 %v227
      %v264 = vunpack.c.h.b16 %v227
      %v265 = vunpack.c.l.b16 %v228
      %v266 = vunpack.c.h.b16 %v228
      %v267 = vunpack.c.l.b16 %v229
      %v268 = vunpack.c.h.b16 %v229
      %v269 = vunpack.c.l.b16 %v230
      %v270 = vunpack.c.h.b16 %v230
      %v271 = vunpack.c.l.b16 %v231
      %v272 = vunpack.c.h.b16 %v231
      %v273 = vunpack.c.l.b16 %v232
      %v274 = vunpack.c.h.b16 %v232
      %v275 = vunpack.c.l.b16 %v233
      %v276 = vunpack.c.h.b16 %v233
      %v277 = vunpack.c.l.b16 %v234
      %v278 = vunpack.c.h.b16 %v234
      %v279 = vunpack.c.l.b16 %v235
      %v280 = vunpack.c.h.b16 %v235
      %v281 = vunpack.c.l.b16 %v236
      %v282 = vunpack.c.h.b16 %v236
      %v283 = vunpack.c.l.b16 %v237
      %v284 = vunpack.c.h.b16 %v237
      %v285 = vunpack.c.l.b16 %v238
      %v286 = vunpack.c.h.b16 %v238
      %v287 = vpack.c.b16 %v255, %v255
      %v288 = vpack.c.b16 %v256, %v256
      %v289 = vpack.c.b16 %v257, %v257
      %v290 = vpack.c.b16 %v258, %v258
      %v291 = vpack.c.b16 %v259, %v259
      %v292 = vpack.c.b16 %v260, %v260
      %v293 = vpack.c.b16 %v261, %v261
      %v294 = vpack.c.b16 %v262, %v262
      %v295 = vpack.c.b16 %v263, %v263
      %v296 = vpack.c.b16 %v264, %v264
      %v297 = vpack.c.b16 %v265, %v265
      %v298 = vpack.c.b16 %v266, %v266
      %v299 = vpack.c.b16 %v267, %v267
      %v300 = vpack.c.b16 %v268, %v268
      %v301 = vpack.c.b16 %v269, %v269
      %v302 = vpack.c.b16 %v270, %v270
      %v303 = vpack.c.b16 %v271, %v271
      %v304 = vpack.c.b16 %v272, %v272
      %v305 = vpack.c.b16 %v273, %v273
      %v306 = vpack.c.b16 %v274, %v274
      %v307 = vpack.c.b16 %v275, %v275
      %v308 = vpack.c.b16 %v276, %v276
      %v309 = vpack.c.b16 %v277, %v277
      %v310 = vpack.c.b16 %v278, %v278
      %v311 = vpack.c.b16 %v279, %v279
      %v312 = vpack.c.b16 %v280, %v280
      %v313 = vpack.c.b16 %v281, %v281
      %v314 = vpack.c.b16 %v282, %v282
      %v315 = vpack.c.b16 %v283, %v283
      %v316 = vpack.c.b16 %v284, %v284
      %v317 = vpack.c.b16 %v285, %v285
      %v318 = vpack.c.b16 %v286, %v286
      %vm319 = vsmask.f32 256
      %vm320 = vsmask.f32 4368
      %vm321 = vmor %vm319, %vm320
      %v323 = vshrl.u32 %v287, 16
      %v325 = vrot.slane %v323, 7
      %v326 = vshll.u32 %v287, 16
      %v328 = vor.u32 %v325, %v326
      %v329 = vrot.slane %v325, 4
      %v331 = vshrl.u32 %v288, 16
      %v333 = vrot.slane %v331, 7
      %v334 = vshll.u32 %v288, 16
      %v336 = vor.u32 %v333, %v334
      %v337 = vsel %vm321, %v329, %v336
      %v338 = vrot.slane %v333, 4
      %v340 = vshrl.u32 %v289, 16
      %v342 = vrot.slane %v340, 7
      %v343 = vshll.u32 %v289, 16
      %v345 = vor.u32 %v342, %v343
      %v346 = vrot.slane %v342, 4
      %v348 = vshrl.u32 %v290, 16
      %v350 = vrot.slane %v348, 7
      %v351 = vshll.u32 %v290, 16
      %v353 = vor.u32 %v350, %v351
      %v354 = vsel %vm321, %v346, %v353
      %v355 = vrot.slane %v350, 4
      %v357 = vshrl.u32 %v291, 16
      %v359 = vrot.slane %v357, 7
      %v360 = vshll.u32 %v291, 16
      %v362 = vor.u32 %v359, %v360
      %v363 = vrot.slane %v359, 4
      %v365 = vshrl.u32 %v292, 16
      %v367 = vrot.slane %v365, 7
      %v368 = vshll.u32 %v292, 16
      %v370 = vor.u32 %v367, %v368
      %v371 = vsel %vm321, %v363, %v370
      %v372 = vrot.slane %v367, 4
      %v374 = vshrl.u32 %v293, 16
      %v376 = vrot.slane %v374, 7
      %v377 = vshll.u32 %v293, 16
      %v379 = vor.u32 %v376, %v377
      %v380 = vrot.slane %v376, 4
      %v382 = vshrl.u32 %v294, 16
      %v384 = vrot.slane %v382, 7
      %v385 = vshll.u32 %v294, 16
      %v387 = vor.u32 %v384, %v385
      %v388 = vsel %vm321, %v380, %v387
      %v389 = vrot.slane %v384, 4
      %v391 = vshrl.u32 %v295, 16
      %v393 = vrot.slane %v391, 7
      %v394 = vshll.u32 %v295, 16
      %v396 = vor.u32 %v393, %v394
      %v397 = vrot.slane %v393, 4
      %v399 = vshrl.u32 %v296, 16
      %v401 = vrot.slane %v399, 7
      %v402 = vshll.u32 %v296, 16
      %v404 = vor.u32 %v401, %v402
      %v405 = vsel %vm321, %v397, %v404
      %v406 = vrot.slane %v401, 4
      %v408 = vshrl.u32 %v297, 16
      %v410 = vrot.slane %v408, 7
      %v411 = vshll.u32 %v297, 16
      %v413 = vor.u32 %v410, %v411
      %v414 = vrot.slane %v410, 4
      %v416 = vshrl.u32 %v298, 16
      %v418 = vrot.slane %v416, 7
      %v419 = vshll.u32 %v298, 16
      %v421 = vor.u32 %v418, %v419
      %v422 = vsel %vm321, %v414, %v421
      %v423 = vrot.slane %v418, 4
      %v425 = vshrl.u32 %v299, 16
      %v427 = vrot.slane %v425, 7
      %v428 = vshll.u32 %v299, 16
      %v430 = vor.u32 %v427, %v428
      %v431 = vrot.slane %v427, 4
      %v433 = vshrl.u32 %v300, 16
      %v435 = vrot.slane %v433, 7
      %v436 = vshll.u32 %v300, 16
      %v438 = vor.u32 %v435, %v436
      %v439 = vsel %vm321, %v431, %v438
      %v440 = vrot.slane %v435, 4
      %v442 = vshrl.u32 %v301, 16
      %v444 = vrot.slane %v442, 7
      %v445 = vshll.u32 %v301, 16
      %v447 = vor.u32 %v444, %v445
      %v448 = vrot.slane %v444, 4
      %v450 = vshrl.u32 %v302, 16
      %v452 = vrot.slane %v450, 7
      %v453 = vshll.u32 %v302, 16
      %v455 = vor.u32 %v452, %v453
      %v456 = vsel %vm321, %v448, %v455
      %v457 = vrot.slane %v452, 4
      %v459 = vshrl.u32 %v303, 16
      %v461 = vrot.slane %v459, 7
      %v462 = vshll.u32 %v303, 16
      %v464 = vor.u32 %v461, %v462
      %v465 = vrot.slane %v461, 4
      %v467 = vshrl.u32 %v304, 16
      %v469 = vrot.slane %v467, 7
      %v470 = vshll.u32 %v304, 16
      %v472 = vor.u32 %v469, %v470
      %v473 = vsel %vm321, %v465, %v472
      %v474 = vrot.slane %v469, 4
      %v476 = vshrl.u32 %v305, 16
      %v478 = vrot.slane %v476, 7
      %v479 = vshll.u32 %v305, 16
      %v481 = vor.u32 %v478, %v479
      %v482 = vrot.slane %v478, 4
      %v484 = vshrl.u32 %v306, 16
      %v486 = vrot.slane %v484, 7
      %v487 = vshll.u32 %v306, 16
      %v489 = vor.u32 %v486, %v487
      %v490 = vsel %vm321, %v482, %v489
      %v491 = vrot.slane %v486, 4
      %v493 = vshrl.u32 %v307, 16
      %v495 = vrot.slane %v493, 7
      %v496 = vshll.u32 %v307, 16
      %v498 = vor.u32 %v495, %v496
      %v499 = vrot.slane %v495, 4
      %v501 = vshrl.u32 %v308, 16
      %v503 = vrot.slane %v501, 7
      %v504 = vshll.u32 %v308, 16
      %v506 = vor.u32 %v503, %v504
      %v507 = vsel %vm321, %v499, %v506
      %v508 = vrot.slane %v503, 4
      %v510 = vshrl.u32 %v309, 16
      %v512 = vrot.slane %v510, 7
      %v513 = vshll.u32 %v309, 16
      %v515 = vor.u32 %v512, %v513
      %v516 = vrot.slane %v512, 4
      %v518 = vshrl.u32 %v310, 16
      %v520 = vrot.slane %v518, 7
      %v521 = vshll.u32 %v310, 16
      %v523 = vor.u32 %v520, %v521
      %v524 = vsel %vm321, %v516, %v523
      %v525 = vrot.slane %v520, 4
      %v527 = vshrl.u32 %v311, 16
      %v529 = vrot.slane %v527, 7
      %v530 = vshll.u32 %v311, 16
      %v532 = vor.u32 %v529, %v530
      %v533 = vrot.slane %v529, 4
      %v535 = vshrl.u32 %v312, 16
      %v537 = vrot.slane %v535, 7
      %v538 = vshll.u32 %v312, 16
      %v540 = vor.u32 %v537, %v538
      %v541 = vsel %vm321, %v533, %v540
      %v542 = vrot.slane %v537, 4
      %v544 = vshrl.u32 %v313, 16
      %v546 = vrot.slane %v544, 7
      %v547 = vshll.u32 %v313, 16
      %v549 = vor.u32 %v546, %v547
      %v550 = vrot.slane %v546, 4
      %v552 = vshrl.u32 %v314, 16
      %v554 = vrot.slane %v552, 7
      %v555 = vshll.u32 %v314, 16
      %v557 = vor.u32 %v554, %v555
      %v558 = vsel %vm321, %v550, %v557
      %v559 = vrot.slane %v554, 4
      %v561 = vshrl.u32 %v315, 16
      %v563 = vrot.slane %v561, 7
      %v564 = vshll.u32 %v315, 16
      %v566 = vor.u32 %v563, %v564
      %v567 = vrot.slane %v563, 4
      %v569 = vshrl.u32 %v316, 16
      %v571 = vrot.slane %v569, 7
      %v572 = vshll.u32 %v316, 16
      %v574 = vor.u32 %v571, %v572
      %v575 = vsel %vm321, %v567, %v574
      %v576 = vrot.slane %v571, 4
      %v578 = vshrl.u32 %v317, 16
      %v580 = vrot.slane %v578, 7
      %v581 = vshll.u32 %v317, 16
      %v583 = vor.u32 %v580, %v581
      %v584 = vrot.slane %v580, 4
      %v586 = vshrl.u32 %v318, 16
      %v588 = vrot.slane %v586, 7
      %v589 = vshll.u32 %v318, 16
      %v591 = vor.u32 %v588, %v589
      %v592 = vsel %vm321, %v584, %v591
      %v593 = vrot.slane %v588, 4
      %s642 = scalar_lea.vmem [#allocation2], 12
      %vm643 = vcmask 27648
      %vm644 = vsmask.f32 7938
      %vm645 = vmand %vm643, %vm644
      %v646 = vld [vmem:[%s642] sm:$0xf]
      %v647 = vsel %vm645, %v328, %v646
      %648 = vst [vmem:[%s642] sm:$0xf] %v647
      %vm649 = vcmask 27648
      %650 = vst.msk [vmem:[%s642 + $0x4] sm:$0xf] %vm649, %v337
      %vm651 = vcmask 24576
      %vm652 = vmand %vm651, %vm319
      %v653 = vld [vmem:[%s642 + $0x8] sm:$0x1]
      %v654 = vsel %vm652, %v338, %v653
      %655 = vst [vmem:[%s642 + $0x8] sm:$0x1] %v654
      %v656 = vld [vmem:[%s642 + $0xc] sm:$0xf]
      %v657 = vsel %vm645, %v345, %v656
      %658 = vst [vmem:[%s642 + $0xc] sm:$0xf] %v657
      %659 = vst.msk [vmem:[%s642 + $0x10] sm:$0xf] %vm649, %v354
      %v660 = vld [vmem:[%s642 + $0x14] sm:$0x1]
      %v661 = vsel %vm652, %v355, %v660
      %662 = vst [vmem:[%s642 + $0x14] sm:$0x1] %v661
      %v663 = vld [vmem:[%s642 + $0x18] sm:$0xf]
      %v664 = vsel %vm645, %v362, %v663
      %665 = vst [vmem:[%s642 + $0x18] sm:$0xf] %v664
      %666 = vst.msk [vmem:[%s642 + $0x1c] sm:$0xf] %vm649, %v371
      %v667 = vld [vmem:[%s642 + $0x20] sm:$0x1]
      %v668 = vsel %vm652, %v372, %v667
      %669 = vst [vmem:[%s642 + $0x20] sm:$0x1] %v668
      %v670 = vld [vmem:[%s642 + $0x24] sm:$0xf]
      %v671 = vsel %vm645, %v379, %v670
      %672 = vst [vmem:[%s642 + $0x24] sm:$0xf] %v671
      %673 = vst.msk [vmem:[%s642 + $0x28] sm:$0xf] %vm649, %v388
      %v674 = vld [vmem:[%s642 + $0x2c] sm:$0x1]
      %v675 = vsel %vm652, %v389, %v674
      %676 = vst [vmem:[%s642 + $0x2c] sm:$0x1] %v675
      %v677 = vld [vmem:[%s642 + $0x30] sm:$0xf]
      %v678 = vsel %vm645, %v396, %v677
      %679 = vst [vmem:[%s642 + $0x30] sm:$0xf] %v678
      %680 = vst.msk [vmem:[%s642 + $0x34] sm:$0xf] %vm649, %v405
      %v681 = vld [vmem:[%s642 + $0x38] sm:$0x1]
      %v682 = vsel %vm652, %v406, %v681
      %683 = vst [vmem:[%s642 + $0x38] sm:$0x1] %v682
      %v684 = vld [vmem:[%s642 + $0x3c] sm:$0xf]
      %v685 = vsel %vm645, %v413, %v684
      %686 = vst [vmem:[%s642 + $0x3c] sm:$0xf] %v685
      %687 = vst.msk [vmem:[%s642 + $0x40] sm:$0xf] %vm649, %v422
      %v688 = vld [vmem:[%s642 + $0x44] sm:$0x1]
      %v689 = vsel %vm652, %v423, %v688
      %690 = vst [vmem:[%s642 + $0x44] sm:$0x1] %v689
      %v691 = vld [vmem:[%s642 + $0x48] sm:$0xf]
      %v692 = vsel %vm645, %v430, %v691
      %693 = vst [vmem:[%s642 + $0x48] sm:$0xf] %v692
      %694 = vst.msk [vmem:[%s642 + $0x4c] sm:$0xf] %vm649, %v439
      %v695 = vld [vmem:[%s642 + $0x50] sm:$0x1]
      %v696 = vsel %vm652, %v440, %v695
      %697 = vst [vmem:[%s642 + $0x50] sm:$0x1] %v696
      %v698 = vld [vmem:[%s642 + $0x54] sm:$0xf]
      %v699 = vsel %vm645, %v447, %v698
      %700 = vst [vmem:[%s642 + $0x54] sm:$0xf] %v699
      %701 = vst.msk [vmem:[%s642 + $0x58] sm:$0xf] %vm649, %v456
      %v702 = vld [vmem:[%s642 + $0x5c] sm:$0x1]
      %v703 = vsel %vm652, %v457, %v702
      %704 = vst [vmem:[%s642 + $0x5c] sm:$0x1] %v703
      %v705 = vld [vmem:[%s642 + $0x60] sm:$0xf]
      %v706 = vsel %vm645, %v464, %v705
      %707 = vst [vmem:[%s642 + $0x60] sm:$0xf] %v706
      %708 = vst.msk [vmem:[%s642 + $0x64] sm:$0xf] %vm649, %v473
      %v709 = vld [vmem:[%s642 + $0x68] sm:$0x1]
      %v710 = vsel %vm652, %v474, %v709
      %711 = vst [vmem:[%s642 + $0x68] sm:$0x1] %v710
      %v712 = vld [vmem:[%s642 + $0x6c] sm:$0xf]
      %v713 = vsel %vm645, %v481, %v712
      %714 = vst [vmem:[%s642 + $0x6c] sm:$0xf] %v713
      %715 = vst.msk [vmem:[%s642 + $0x70] sm:$0xf] %vm649, %v490
      %v716 = vld [vmem:[%s642 + $0x74] sm:$0x1]
      %v717 = vsel %vm652, %v491, %v716
      %718 = vst [vmem:[%s642 + $0x74] sm:$0x1] %v717
      %v719 = vld [vmem:[%s642 + $0x78] sm:$0xf]
      %v720 = vsel %vm645, %v498, %v719
      %721 = vst [vmem:[%s642 + $0x78] sm:$0xf] %v720
      %722 = vst.msk [vmem:[%s642 + $0x7c] sm:$0xf] %vm649, %v507
      %v723 = vld [vmem:[%s642 + $0x80] sm:$0x1]
      %v724 = vsel %vm652, %v508, %v723
      %725 = vst [vmem:[%s642 + $0x80] sm:$0x1] %v724
      %v726 = vld [vmem:[%s642 + $0x84] sm:$0xf]
      %v727 = vsel %vm645, %v515, %v726
      %728 = vst [vmem:[%s642 + $0x84] sm:$0xf] %v727
      %729 = vst.msk [vmem:[%s642 + $0x88] sm:$0xf] %vm649, %v524
      %v730 = vld [vmem:[%s642 + $0x8c] sm:$0x1]
      %v731 = vsel %vm652, %v525, %v730
      %732 = vst [vmem:[%s642 + $0x8c] sm:$0x1] %v731
      %v733 = vld [vmem:[%s642 + $0x90] sm:$0xf]
      %v734 = vsel %vm645, %v532, %v733
      %735 = vst [vmem:[%s642 + $0x90] sm:$0xf] %v734
      %736 = vst.msk [vmem:[%s642 + $0x94] sm:$0xf] %vm649, %v541
      %v737 = vld [vmem:[%s642 + $0x98] sm:$0x1]
      %v738 = vsel %vm652, %v542, %v737
      %739 = vst [vmem:[%s642 + $0x98] sm:$0x1] %v738
      %v740 = vld [vmem:[%s642 + $0x9c] sm:$0xf]
      %v741 = vsel %vm645, %v549, %v740
      %742 = vst [vmem:[%s642 + $0x9c] sm:$0xf] %v741
      %743 = vst.msk [vmem:[%s642 + $0xa0] sm:$0xf] %vm649, %v558
      %v744 = vld [vmem:[%s642 + $0xa4] sm:$0x1]
      %v745 = vsel %vm652, %v559, %v744
      %746 = vst [vmem:[%s642 + $0xa4] sm:$0x1] %v745
      %v747 = vld [vmem:[%s642 + $0xa8] sm:$0xf]
      %v748 = vsel %vm645, %v566, %v747
      %749 = vst [vmem:[%s642 + $0xa8] sm:$0xf] %v748
      %750 = vst.msk [vmem:[%s642 + $0xac] sm:$0xf] %vm649, %v575
      %v751 = vld [vmem:[%s642 + $0xb0] sm:$0x1]
      %v752 = vsel %vm652, %v576, %v751
      %753 = vst [vmem:[%s642 + $0xb0] sm:$0x1] %v752
      %v754 = vld [vmem:[%s642 + $0xb4] sm:$0xf]
      %v755 = vsel %vm645, %v583, %v754
      %756 = vst [vmem:[%s642 + $0xb4] sm:$0xf] %v755
      %757 = vst.msk [vmem:[%s642 + $0xb8] sm:$0xf] %vm649, %v592
      %v758 = vld [vmem:[%s642 + $0xbc] sm:$0x1]
      %v759 = vsel %vm652, %v593, %v758
      %760 = vst [vmem:[%s642 + $0xbc] sm:$0x1] %v759
      %v761 = vld [vmem:[#allocation2] sm:$0xf]
      %v762 = vsel %vm645, %v345, %v761
      %763 = vst [vmem:[#allocation2] sm:$0xf] %v762
      %764 = vst.msk [vmem:[#allocation2 + $0x4] sm:$0xf] %vm649, %v354
      %v765 = vld [vmem:[#allocation2 + $0x8] sm:$0x1]
      %v766 = vsel %vm652, %v355, %v765
      %767 = vst [vmem:[#allocation2 + $0x8] sm:$0x1] %v766
      %s768 = scalar_lea.vmem [#allocation2], 204
      %v769 = vld [vmem:[%s768] sm:$0xf]
      %v770 = vsel %vm645, %v566, %v769
      %771 = vst [vmem:[%s768] sm:$0xf] %v770
      %772 = vst.msk [vmem:[%s768 + $0x4] sm:$0xf] %vm649, %v575
      %v773 = vld [vmem:[%s768 + $0x8] sm:$0x1]
      %v774 = vsel %vm652, %v576, %v773
      %775 = vst [vmem:[%s768 + $0x8] sm:$0x1] %v774
      %v776 = vld [vmem:[#allocation2] sm:$0x2]
      %v777 = vld [vmem:[#allocation2 + $0xc] sm:$0x2]
      %v778 = vld [vmem:[#allocation2 + $0x18] sm:$0x2]
      %v779 = vld [vmem:[#allocation2 + $0x24] sm:$0x2]
      %v780 = vld [vmem:[#allocation2 + $0x30] sm:$0x2]
      %v781 = vld [vmem:[#allocation2 + $0x3c] sm:$0x2]
      %v782 = vld [vmem:[#allocation2 + $0x48] sm:$0x2]
      %v783 = vld [vmem:[#allocation2 + $0x54] sm:$0x2]
      %v784 = vld [vmem:[#allocation2 + $0x60] sm:$0x2]
      %v785 = vld [vmem:[#allocation2 + $0x6c] sm:$0x2]
      %v786 = vld [vmem:[#allocation2 + $0x78] sm:$0x2]
      %v787 = vld [vmem:[#allocation2 + $0x84] sm:$0x2]
      %v788 = vld [vmem:[#allocation2 + $0x90] sm:$0x2]
      %v789 = vld [vmem:[#allocation2 + $0x9c] sm:$0x2]
      %v790 = vld [vmem:[#allocation2 + $0xa8] sm:$0x2]
      %v791 = vld [vmem:[#allocation2 + $0xb4] sm:$0x2]
      %v792 = vld [vmem:[#allocation2 + $0xc0] sm:$0x2]
      %v793 = vld [vmem:[#allocation2 + $0xcc] sm:$0x2]
      %v812 = vrot.slane %v776, 5
      %v813 = vrot.slane %v812, 4
      %v814 = vrot.slane %v777, 5
      %v815 = vrot.slane %v814, 4
      %v816 = vrot.slane %v778, 5
      %v817 = vrot.slane %v816, 4
      %v818 = vrot.slane %v779, 5
      %v819 = vrot.slane %v818, 4
      %v820 = vrot.slane %v780, 5
      %v821 = vrot.slane %v820, 4
      %v822 = vrot.slane %v781, 5
      %v823 = vrot.slane %v822, 4
      %v824 = vrot.slane %v782, 5
      %v825 = vrot.slane %v824, 4
      %v826 = vrot.slane %v783, 5
      %v827 = vrot.slane %v826, 4
      %v828 = vrot.slane %v784, 5
      %v829 = vrot.slane %v828, 4
      %v830 = vrot.slane %v785, 5
      %v831 = vrot.slane %v830, 4
      %v832 = vrot.slane %v786, 5
      %v833 = vrot.slane %v832, 4
      %v834 = vrot.slane %v787, 5
      %v835 = vrot.slane %v834, 4
      %v836 = vrot.slane %v788, 5
      %v837 = vrot.slane %v836, 4
      %v838 = vrot.slane %v789, 5
      %v839 = vrot.slane %v838, 4
      %v840 = vrot.slane %v790, 5
      %v841 = vrot.slane %v840, 4
      %v842 = vrot.slane %v791, 5
      %v843 = vrot.slane %v842, 4
      %v844 = vrot.slane %v792, 5
      %v845 = vrot.slane %v844, 4
      %v846 = vrot.slane %v793, 5
      %v847 = vrot.slane %v846, 4
      %v866 = vld [vmem:[#allocation2] sm:$0x1]
      %v867 = vsel %vm652, %v813, %v866
      %868 = vst [vmem:[#allocation2] sm:$0x1] %v867
      %v869 = vld [vmem:[#allocation2 + $0xc] sm:$0x1]
      %v870 = vsel %vm652, %v815, %v869
      %871 = vst [vmem:[#allocation2 + $0xc] sm:$0x1] %v870
      %v872 = vld [vmem:[#allocation2 + $0x18] sm:$0x1]
      %v873 = vsel %vm652, %v817, %v872
      %874 = vst [vmem:[#allocation2 + $0x18] sm:$0x1] %v873
      %v875 = vld [vmem:[#allocation2 + $0x24] sm:$0x1]
      %v876 = vsel %vm652, %v819, %v875
      %877 = vst [vmem:[#allocation2 + $0x24] sm:$0x1] %v876
      %v878 = vld [vmem:[#allocation2 + $0x30] sm:$0x1]
      %v879 = vsel %vm652, %v821, %v878
      %880 = vst [vmem:[#allocation2 + $0x30] sm:$0x1] %v879
      %v881 = vld [vmem:[#allocation2 + $0x3c] sm:$0x1]
      %v882 = vsel %vm652, %v823, %v881
      %883 = vst [vmem:[#allocation2 + $0x3c] sm:$0x1] %v882
      %v884 = vld [vmem:[#allocation2 + $0x48] sm:$0x1]
      %v885 = vsel %vm652, %v825, %v884
      %886 = vst [vmem:[#allocation2 + $0x48] sm:$0x1] %v885
      %v887 = vld [vmem:[#allocation2 + $0x54] sm:$0x1]
      %v888 = vsel %vm652, %v827, %v887
      %889 = vst [vmem:[#allocation2 + $0x54] sm:$0x1] %v888
      %v890 = vld [vmem:[#allocation2 + $0x60] sm:$0x1]
      %v891 = vsel %vm652, %v829, %v890
      %892 = vst [vmem:[#allocation2 + $0x60] sm:$0x1] %v891
      %v893 = vld [vmem:[#allocation2 + $0x6c] sm:$0x1]
      %v894 = vsel %vm652, %v831, %v893
      %895 = vst [vmem:[#allocation2 + $0x6c] sm:$0x1] %v894
      %v896 = vld [vmem:[#allocation2 + $0x78] sm:$0x1]
      %v897 = vsel %vm652, %v833, %v896
      %898 = vst [vmem:[#allocation2 + $0x78] sm:$0x1] %v897
      %v899 = vld [vmem:[#allocation2 + $0x84] sm:$0x1]
      %v900 = vsel %vm652, %v835, %v899
      %901 = vst [vmem:[#allocation2 + $0x84] sm:$0x1] %v900
      %v902 = vld [vmem:[#allocation2 + $0x90] sm:$0x1]
      %v903 = vsel %vm652, %v837, %v902
      %904 = vst [vmem:[#allocation2 + $0x90] sm:$0x1] %v903
      %v905 = vld [vmem:[#allocation2 + $0x9c] sm:$0x1]
      %v906 = vsel %vm652, %v839, %v905
      %907 = vst [vmem:[#allocation2 + $0x9c] sm:$0x1] %v906
      %v908 = vld [vmem:[#allocation2 + $0xa8] sm:$0x1]
      %v909 = vsel %vm652, %v841, %v908
      %910 = vst [vmem:[#allocation2 + $0xa8] sm:$0x1] %v909
      %v911 = vld [vmem:[#allocation2 + $0xb4] sm:$0x1]
      %v912 = vsel %vm652, %v843, %v911
      %913 = vst [vmem:[#allocation2 + $0xb4] sm:$0x1] %v912
      %v914 = vld [vmem:[#allocation2 + $0xc0] sm:$0x1]
      %v915 = vsel %vm652, %v845, %v914
      %916 = vst [vmem:[#allocation2 + $0xc0] sm:$0x1] %v915
      %v917 = vld [vmem:[#allocation2 + $0xcc] sm:$0x1]
      %v918 = vsel %vm652, %v847, %v917
      %919 = vst [vmem:[#allocation2 + $0xcc] sm:$0x1] %v918
      %v920 = vld [vmem:[#allocation2 + $0x4] sm:$0x8]
      %v921 = vld [vmem:[#allocation2 + $0x10] sm:$0x8]
      %v922 = vld [vmem:[#allocation2 + $0x1c] sm:$0x8]
      %v923 = vld [vmem:[#allocation2 + $0x28] sm:$0x8]
      %v924 = vld [vmem:[#allocation2 + $0x34] sm:$0x8]
      %v925 = vld [vmem:[#allocation2 + $0x40] sm:$0x8]
      %v926 = vld [vmem:[#allocation2 + $0x4c] sm:$0x8]
      %v927 = vld [vmem:[#allocation2 + $0x58] sm:$0x8]
      %v928 = vld [vmem:[#allocation2 + $0x64] sm:$0x8]
      %v929 = vld [vmem:[#allocation2 + $0x70] sm:$0x8]
      %v930 = vld [vmem:[#allocation2 + $0x7c] sm:$0x8]
      %v931 = vld [vmem:[#allocation2 + $0x88] sm:$0x8]
      %v932 = vld [vmem:[#allocation2 + $0x94] sm:$0x8]
      %v933 = vld [vmem:[#allocation2 + $0xa0] sm:$0x8]
      %v934 = vld [vmem:[#allocation2 + $0xac] sm:$0x8]
      %v935 = vld [vmem:[#allocation2 + $0xb8] sm:$0x8]
      %v936 = vld [vmem:[#allocation2 + $0xc4] sm:$0x8]
      %v937 = vld [vmem:[#allocation2 + $0xd0] sm:$0x8]
      %v956 = vrot.slane %v920, 7
      %v957 = vrot.slane %v956, 4
      %v958 = vrot.slane %v921, 7
      %v959 = vrot.slane %v958, 4
      %v960 = vrot.slane %v922, 7
      %v961 = vrot.slane %v960, 4
      %v962 = vrot.slane %v923, 7
      %v963 = vrot.slane %v962, 4
      %v964 = vrot.slane %v924, 7
      %v965 = vrot.slane %v964, 4
      %v966 = vrot.slane %v925, 7
      %v967 = vrot.slane %v966, 4
      %v968 = vrot.slane %v926, 7
      %v969 = vrot.slane %v968, 4
      %v970 = vrot.slane %v927, 7
      %v971 = vrot.slane %v970, 4
      %v972 = vrot.slane %v928, 7
      %v973 = vrot.slane %v972, 4
      %v974 = vrot.slane %v929, 7
      %v975 = vrot.slane %v974, 4
      %v976 = vrot.slane %v930, 7
      %v977 = vrot.slane %v976, 4
      %v978 = vrot.slane %v931, 7
      %v979 = vrot.slane %v978, 4
      %v980 = vrot.slane %v932, 7
      %v981 = vrot.slane %v980, 4
      %v982 = vrot.slane %v933, 7
      %v983 = vrot.slane %v982, 4
      %v984 = vrot.slane %v934, 7
      %v985 = vrot.slane %v984, 4
      %v986 = vrot.slane %v935, 7
      %v987 = vrot.slane %v986, 4
      %v988 = vrot.slane %v936, 7
      %v989 = vrot.slane %v988, 4
      %v990 = vrot.slane %v937, 7
      %v991 = vrot.slane %v990, 4
      %vm1010 = vmand %vm651, %vm644
      %v1011 = vld [vmem:[#allocation2 + $0x8] sm:$0x1]
      %v1012 = vsel %vm1010, %v957, %v1011
      %1013 = vst [vmem:[#allocation2 + $0x8] sm:$0x1] %v1012
      %v1014 = vld [vmem:[#allocation2 + $0x14] sm:$0x1]
      %v1015 = vsel %vm1010, %v959, %v1014
      %1016 = vst [vmem:[#allocation2 + $0x14] sm:$0x1] %v1015
      %v1017 = vld [vmem:[#allocation2 + $0x20] sm:$0x1]
      %v1018 = vsel %vm1010, %v961, %v1017
      %1019 = vst [vmem:[#allocation2 + $0x20] sm:$0x1] %v1018
      %v1020 = vld [vmem:[#allocation2 + $0x2c] sm:$0x1]
      %v1021 = vsel %vm1010, %v963, %v1020
      %1022 = vst [vmem:[#allocation2 + $0x2c] sm:$0x1] %v1021
      %v1023 = vld [vmem:[#allocation2 + $0x38] sm:$0x1]
      %v1024 = vsel %vm1010, %v965, %v1023
      %1025 = vst [vmem:[#allocation2 + $0x38] sm:$0x1] %v1024
      %v1026 = vld [vmem:[#allocation2 + $0x44] sm:$0x1]
      %v1027 = vsel %vm1010, %v967, %v1026
      %1028 = vst [vmem:[#allocation2 + $0x44] sm:$0x1] %v1027
      %v1029 = vld [vmem:[#allocation2 + $0x50] sm:$0x1]
      %v1030 = vsel %vm1010, %v969, %v1029
      %1031 = vst [vmem:[#allocation2 + $0x50] sm:$0x1] %v1030
      %v1032 = vld [vmem:[#allocation2 + $0x5c] sm:$0x1]
      %v1033 = vsel %vm1010, %v971, %v1032
      %1034 = vst [vmem:[#allocation2 + $0x5c] sm:$0x1] %v1033
      %v1035 = vld [vmem:[#allocation2 + $0x68] sm:$0x1]
      %v1036 = vsel %vm1010, %v973, %v1035
      %1037 = vst [vmem:[#allocation2 + $0x68] sm:$0x1] %v1036
      %v1038 = vld [vmem:[#allocation2 + $0x74] sm:$0x1]
      %v1039 = vsel %vm1010, %v975, %v1038
      %1040 = vst [vmem:[#allocation2 + $0x74] sm:$0x1] %v1039
      %v1041 = vld [vmem:[#allocation2 + $0x80] sm:$0x1]
      %v1042 = vsel %vm1010, %v977, %v1041
      %1043 = vst [vmem:[#allocation2 + $0x80] sm:$0x1] %v1042
      %v1044 = vld [vmem:[#allocation2 + $0x8c] sm:$0x1]
      %v1045 = vsel %vm1010, %v979, %v1044
      %1046 = vst [vmem:[#allocation2 + $0x8c] sm:$0x1] %v1045
      %v1047 = vld [vmem:[#allocation2 + $0x98] sm:$0x1]
      %v1048 = vsel %vm1010, %v981, %v1047
      %1049 = vst [vmem:[#allocation2 + $0x98] sm:$0x1] %v1048
      %v1050 = vld [vmem:[#allocation2 + $0xa4] sm:$0x1]
      %v1051 = vsel %vm1010, %v983, %v1050
      %1052 = vst [vmem:[#allocation2 + $0xa4] sm:$0x1] %v1051
      %v1053 = vld [vmem:[#allocation2 + $0xb0] sm:$0x1]
      %v1054 = vsel %vm1010, %v985, %v1053
      %1055 = vst [vmem:[#allocation2 + $0xb0] sm:$0x1] %v1054
      %v1056 = vld [vmem:[#allocation2 + $0xbc] sm:$0x1]
      %v1057 = vsel %vm1010, %v987, %v1056
      %1058 = vst [vmem:[#allocation2 + $0xbc] sm:$0x1] %v1057
      %v1059 = vld [vmem:[#allocation2 + $0xc8] sm:$0x1]
      %v1060 = vsel %vm1010, %v989, %v1059
      %1061 = vst [vmem:[#allocation2 + $0xc8] sm:$0x1] %v1060
      %v1062 = vld [vmem:[#allocation2 + $0xd4] sm:$0x1]
      %v1063 = vsel %vm1010, %v991, %v1062
      %1064 = vst [vmem:[#allocation2 + $0xd4] sm:$0x1] %v1063
      %v1065 = vld [vmem:[#allocation2] sm:$0xf]
      %v1066 = vld [vmem:[#allocation2 + $0x4] sm:$0xf]
      %v1067 = vld [vmem:[#allocation2 + $0x8] sm:$0xf]
      %v1068 = vld [vmem:[#allocation2 + $0xc] sm:$0xf]
      %v1069 = vld [vmem:[#allocation2 + $0x10] sm:$0xf]
      %v1070 = vld [vmem:[#allocation2 + $0x14] sm:$0xf]
      %v1071 = vld [vmem:[#allocation2 + $0x18] sm:$0xf]
      %v1072 = vld [vmem:[#allocation2 + $0x1c] sm:$0xf]
      %v1073 = vld [vmem:[#allocation2 + $0x20] sm:$0xf]
      %v1074 = vld [vmem:[#allocation2 + $0x24] sm:$0xf]
      %v1075 = vld [vmem:[#allocation2 + $0x28] sm:$0xf]
      %v1076 = vld [vmem:[#allocation2 + $0x2c] sm:$0xf]
      %v1077 = vld [vmem:[#allocation2 + $0x30] sm:$0xf]
      %v1078 = vld [vmem:[#allocation2 + $0x34] sm:$0xf]
      %v1079 = vld [vmem:[#allocation2 + $0x38] sm:$0xf]
      %v1080 = vld [vmem:[#allocation2 + $0x3c] sm:$0xf]
      %v1081 = vld [vmem:[#allocation2 + $0x40] sm:$0xf]
      %v1082 = vld [vmem:[#allocation2 + $0x44] sm:$0xf]
      %v1083 = vld [vmem:[#allocation2 + $0x48] sm:$0xf]
      %v1084 = vld [vmem:[#allocation2 + $0x4c] sm:$0xf]
      %v1085 = vld [vmem:[#allocation2 + $0x50] sm:$0xf]
      %v1086 = vld [vmem:[#allocation2 + $0x54] sm:$0xf]
      %v1087 = vld [vmem:[#allocation2 + $0x58] sm:$0xf]
      %v1088 = vld [vmem:[#allocation2 + $0x5c] sm:$0xf]
      %v1089 = vld [vmem:[%s1] sm:$0x3]
      %s1090 = scalar_lea.vmem %s1, 2
      %v1091 = vld [vmem:[%s1090] sm:$0x3]
      %s1092 = scalar_lea.vmem %s1, 4
      %v1093 = vld [vmem:[%s1092] sm:$0x3]
      %v1094 = vld [vmem:[%s642] sm:$0xf]
      %v1095 = vld [vmem:[%s642 + $0x4] sm:$0xf]
      %v1096 = vld [vmem:[%s642 + $0x8] sm:$0xf]
      %v1097 = vld [vmem:[%s642 + $0xc] sm:$0xf]
      %v1098 = vld [vmem:[%s642 + $0x10] sm:$0xf]
      %v1099 = vld [vmem:[%s642 + $0x14] sm:$0xf]
      %v1100 = vld [vmem:[%s642 + $0x18] sm:$0xf]
      %v1101 = vld [vmem:[%s642 + $0x1c] sm:$0xf]
      %v1102 = vld [vmem:[%s642 + $0x20] sm:$0xf]
      %v1103 = vld [vmem:[%s642 + $0x24] sm:$0xf]
      %v1104 = vld [vmem:[%s642 + $0x28] sm:$0xf]
      %v1105 = vld [vmem:[%s642 + $0x2c] sm:$0xf]
      %v1106 = vld [vmem:[%s642 + $0x30] sm:$0xf]
      %v1107 = vld [vmem:[%s642 + $0x34] sm:$0xf]
      %v1108 = vld [vmem:[%s642 + $0x38] sm:$0xf]
      %v1109 = vld [vmem:[%s642 + $0x3c] sm:$0xf]
      %v1110 = vld [vmem:[%s642 + $0x40] sm:$0xf]
      %v1111 = vld [vmem:[%s642 + $0x44] sm:$0xf]
      %v1112 = vld [vmem:[%s642 + $0x48] sm:$0xf]
      %v1113 = vld [vmem:[%s642 + $0x4c] sm:$0xf]
      %v1114 = vld [vmem:[%s642 + $0x50] sm:$0xf]
      %v1115 = vld [vmem:[%s642 + $0x54] sm:$0xf]
      %v1116 = vld [vmem:[%s642 + $0x58] sm:$0xf]
      %v1117 = vld [vmem:[%s642 + $0x5c] sm:$0xf]
      %s1118 = scalar_lea.vmem %s1, 6
      %v1119 = vld [vmem:[%s1118] sm:$0x3]
      %v1144 = vunpack.c.l.b16 %v1094
      %v1145 = vunpack.c.l.b16 %v1095
      %v1146 = vunpack.c.l.b16 %v1096
      %v1147 = vunpack.c.l.b16 %v1097
      %v1148 = vunpack.c.l.b16 %v1098
      %v1149 = vunpack.c.l.b16 %v1099
      %v1150 = vunpack.c.l.b16 %v1100
      %v1151 = vunpack.c.l.b16 %v1101
      %v1152 = vunpack.c.l.b16 %v1102
      %v1153 = vunpack.c.l.b16 %v1103
      %v1154 = vunpack.c.l.b16 %v1104
      %v1155 = vunpack.c.l.b16 %v1105
      %v1156 = vunpack.c.l.b16 %v1106
      %v1157 = vunpack.c.l.b16 %v1107
      %v1158 = vunpack.c.l.b16 %v1108
      %v1159 = vunpack.c.l.b16 %v1109
      %v1160 = vunpack.c.l.b16 %v1110
      %v1161 = vunpack.c.l.b16 %v1111
      %v1162 = vunpack.c.l.b16 %v1112
      %v1163 = vunpack.c.l.b16 %v1113
      %v1164 = vunpack.c.l.b16 %v1114
      %v1165 = vunpack.c.l.b16 %v1115
      %v1166 = vunpack.c.l.b16 %v1116
      %v1167 = vunpack.c.l.b16 %v1117
      %v1168 = vpack.c.b16 %v1145, %v1144
      %v1169 = vpack.c.b16 %v1147, %v1146
      %v1170 = vpack.c.b16 %v1149, %v1148
      %v1171 = vpack.c.b16 %v1151, %v1150
      %v1172 = vpack.c.b16 %v1153, %v1152
      %v1173 = vpack.c.b16 %v1155, %v1154
      %v1174 = vpack.c.b16 %v1157, %v1156
      %v1175 = vpack.c.b16 %v1159, %v1158
      %v1176 = vpack.c.b16 %v1161, %v1160
      %v1177 = vpack.c.b16 %v1163, %v1162
      %v1178 = vpack.c.b16 %v1165, %v1164
      %v1179 = vpack.c.b16 %v1167, %v1166
      %vm1180 = vcmask 31744
      %v1182 = vsel %vm1180, %v1168, 0
      %v1185 = vsel %vm1180, %v1169, 0
      %v1188 = vsel %vm1180, %v1170, 0
      %v1191 = vsel %vm1180, %v1171, 0
      %v1194 = vsel %vm1180, %v1172, 0
      %v1197 = vsel %vm1180, %v1173, 0
      %v1200 = vsel %vm1180, %v1174, 0
      %v1203 = vsel %vm1180, %v1175, 0
      %v1206 = vsel %vm1180, %v1176, 0
      %v1209 = vsel %vm1180, %v1177, 0
      %v1212 = vsel %vm1180, %v1178, 0
      %v1215 = vsel %vm1180, %v1179, 0
      %vm1217 = vcmask 1041408
      %v1219 = vsel %vm1217, %v1119, 0
      %1221 = vmatprep.subr.bf16.mxu0 0
      %1222 = vmatpush1.bf16.msra.mxu0 %v1219
      %1223 = vmatprep.subr.bf16.mxu0 0
      %1224 = vmatpush1.bf16.msra.mxu0 0
      %1225 = vmatprep.subr.bf16.mxu0 0
      %1226 = vmatpush1.bf16.msra.mxu0 0
      %1227 = vmatprep.subr.bf16.mxu0 0
      %1228 = vmatpush1.bf16.msra.mxu0 0
      %1229 = vmatprep.subr.bf16.mxu0 0
      %1230 = vmatpush1.bf16.msra.mxu0 0
      %1231 = vmatprep.subr.bf16.mxu0 0
      %1232 = vmatpush1.bf16.msra.mxu0 0
      %1233 = vmatprep.subr.bf16.mxu0 0
      %1234 = vmatpush1.bf16.msra.mxu0 0
      %1235 = vmatprep.subr.bf16.mxu0 0
      %1236 = vmatpush1.bf16.msra.mxu0 0
      %1237 = vmatprep.subr.bf16.mxu0 0
      %1238 = vmatpush1.bf16.msra.mxu0 0
      %1239 = vmatprep.subr.bf16.mxu0 0
      %1240 = vmatpush1.bf16.msra.mxu0 0
      %1241 = vmatprep.subr.bf16.mxu0 0
      %1242 = vmatpush1.bf16.msra.mxu0 0
      %1243 = vmatprep.subr.bf16.mxu0 0
      %1244 = vmatpush1.bf16.msra.mxu0 0
      %1245 = vmatprep.subr.bf16.mxu0 0
      %1246 = vmatpush1.bf16.msra.mxu0 0
      %1247 = vmatprep.subr.bf16.mxu0 0
      %1248 = vmatpush1.bf16.msra.mxu0 0
      %1249 = vmatprep.subr.bf16.mxu0 0
      %1250 = vmatpush1.bf16.msra.mxu0 0
      %1251 = vmatprep.subr.bf16.mxu0 0
      %1252 = vmatpush1.bf16.msra.mxu0 0
      %1253 = vmatprep.mubr.bf16.mxu0 0
      %1254 = vmatmul.mubr.bf16.gmra.mrb[0].mxu0 %v1182
      %v1255 = vpop.f32.mrb[0].mxu0
      %v1256 = vadd.f32 0.0, %v1255
      %v1257 = vpop.f32.mrb[0].mxu0
      %v1258 = vpop.f32.mrb[0].mxu0
      %v1259 = vadd.f32 0.0, %v1258
      %v1260 = vpop.f32.mrb[0].mxu0
      %1261 = vmatprep.mubr.bf16.mxu0 0
      %1262 = vmatmul.mubr.bf16.gmra.mrb[0].mxu0 %v1185
      %v1263 = vpop.f32.mrb[0].mxu0
      %v1264 = vpop.f32.mrb[0].mxu0
      %v1265 = vpop.f32.mrb[0].mxu0
      %v1266 = vadd.f32 0.0, %v1265
      %v1267 = vpop.f32.mrb[0].mxu0
      %1268 = vmatprep.mubr.bf16.mxu0 0
      %1269 = vmatmul.mubr.bf16.gmra.mrb[0].mxu0 %v1188
      %v1270 = vpop.f32.mrb[0].mxu0
      %v1271 = vadd.f32 0.0, %v1270
      %v1272 = vpop.f32.mrb[0].mxu0
      %v1273 = vpop.f32.mrb[0].mxu0
      %v1274 = vpop.f32.mrb[0].mxu0
      %1275 = vmatprep.mubr.bf16.mxu0 0
      %1276 = vmatmul.mubr.bf16.gmra.mrb[0].mxu0 %v1191
      %v1277 = vpop.f32.mrb[0].mxu0
      %v1278 = vadd.f32 0.0, %v1277
      %v1279 = vpop.f32.mrb[0].mxu0
      %v1280 = vpop.f32.mrb[0].mxu0
      %v1281 = vadd.f32 0.0, %v1280
      %v1282 = vpop.f32.mrb[0].mxu0
      %1283 = vmatprep.mubr.bf16.mxu0 0
      %1284 = vmatmul.mubr.bf16.gmra.mrb[0].mxu0 %v1194
      %v1285 = vpop.f32.mrb[0].mxu0
      %v1286 = vpop.f32.mrb[0].mxu0
      %v1287 = vpop.f32.mrb[0].mxu0
      %v1288 = vadd.f32 0.0, %v1287
      %v1289 = vpop.f32.mrb[0].mxu0
      %1290 = vmatprep.mubr.bf16.mxu0 0
      %1291 = vmatmul.mubr.bf16.gmra.mrb[0].mxu0 %v1197
      %v1292 = vpop.f32.mrb[0].mxu0
      %v1293 = vadd.f32 0.0, %v1292
      %v1294 = vpop.f32.mrb[0].mxu0
      %v1295 = vpop.f32.mrb[0].mxu0
      %v1296 = vpop.f32.mrb[0].mxu0
      %1297 = vmatprep.mubr.bf16.mxu0 0
      %1298 = vmatmul.mubr.bf16.gmra.mrb[0].mxu0 %v1200
      %v1299 = vpop.f32.mrb[0].mxu0
      %v1300 = vadd.f32 0.0, %v1299
      %v1301 = vpop.f32.mrb[0].mxu0
      %v1302 = vpop.f32.mrb[0].mxu0
      %v1303 = vadd.f32 0.0, %v1302
      %v1304 = vpop.f32.mrb[0].mxu0
      %1305 = vmatprep.mubr.bf16.mxu0 0
      %1306 = vmatmul.mubr.bf16.gmra.mrb[0].mxu0 %v1203
      %v1307 = vpop.f32.mrb[0].mxu0
      %v1308 = vpop.f32.mrb[0].mxu0
      %v1309 = vpop.f32.mrb[0].mxu0
      %v1310 = vadd.f32 0.0, %v1309
      %v1311 = vpop.f32.mrb[0].mxu0
      %1312 = vmatprep.mubr.bf16.mxu0 0
      %1313 = vmatmul.mubr.bf16.gmra.mrb[0].mxu0 %v1206
      %v1314 = vpop.f32.mrb[0].mxu0
      %v1315 = vadd.f32 0.0, %v1314
      %v1316 = vpop.f32.mrb[0].mxu0
      %v1317 = vpop.f32.mrb[0].mxu0
      %v1318 = vpop.f32.mrb[0].mxu0
      %1319 = vmatprep.mubr.bf16.mxu0 0
      %1320 = vmatmul.mubr.bf16.gmra.mrb[0].mxu0 %v1209
      %v1321 = vpop.f32.mrb[0].mxu0
      %v1322 = vadd.f32 0.0, %v1321
      %v1323 = vpop.f32.mrb[0].mxu0
      %v1324 = vpop.f32.mrb[0].mxu0
      %v1325 = vadd.f32 0.0, %v1324
      %v1326 = vpop.f32.mrb[0].mxu0
      %1327 = vmatprep.mubr.bf16.mxu0 0
      %1328 = vmatmul.mubr.bf16.gmra.mrb[0].mxu0 %v1212
      %v1329 = vpop.f32.mrb[0].mxu0
      %v1330 = vpop.f32.mrb[0].mxu0
      %v1331 = vpop.f32.mrb[0].mxu0
      %v1332 = vadd.f32 0.0, %v1331
      %v1333 = vpop.f32.mrb[0].mxu0
      %1334 = vmatprep.mubr.bf16.mxu0 0
      %1335 = vmatmul.mubr.bf16.gmra.mrb[0].mxu0 %v1215
      %v1336 = vpop.f32.mrb[0].mxu0
      %v1337 = vadd.f32 0.0, %v1336
      %v1338 = vpop.f32.mrb[0].mxu0
      %v1339 = vpop.f32.mrb[0].mxu0
      %v1340 = vpop.f32.mrb[0].mxu0
      %1341 = vdwg.mxu0
      %v1366 = vunpack.c.l.b16 %v1065
      %v1367 = vunpack.c.l.b16 %v1066
      %v1368 = vunpack.c.l.b16 %v1067
      %v1369 = vunpack.c.l.b16 %v1068
      %v1370 = vunpack.c.l.b16 %v1069
      %v1371 = vunpack.c.l.b16 %v1070
      %v1372 = vunpack.c.l.b16 %v1071
      %v1373 = vunpack.c.l.b16 %v1072
      %v1374 = vunpack.c.l.b16 %v1073
      %v1375 = vunpack.c.l.b16 %v1074
      %v1376 = vunpack.c.l.b16 %v1075
      %v1377 = vunpack.c.l.b16 %v1076
      %v1378 = vunpack.c.l.b16 %v1077
      %v1379 = vunpack.c.l.b16 %v1078
      %v1380 = vunpack.c.l.b16 %v1079
      %v1381 = vunpack.c.l.b16 %v1080
      %v1382 = vunpack.c.l.b16 %v1081
      %v1383 = vunpack.c.l.b16 %v1082
      %v1384 = vunpack.c.l.b16 %v1083
      %v1385 = vunpack.c.l.b16 %v1084
      %v1386 = vunpack.c.l.b16 %v1085
      %v1387 = vunpack.c.l.b16 %v1086
      %v1388 = vunpack.c.l.b16 %v1087
      %v1389 = vunpack.c.l.b16 %v1088
      %v1390 = vpack.c.b16 %v1367, %v1366
      %v1391 = vpack.c.b16 %v1369, %v1368
      %v1392 = vpack.c.b16 %v1371, %v1370
      %v1393 = vpack.c.b16 %v1373, %v1372
      %v1394 = vpack.c.b16 %v1375, %v1374
      %v1395 = vpack.c.b16 %v1377, %v1376
      %v1396 = vpack.c.b16 %v1379, %v1378
      %v1397 = vpack.c.b16 %v1381, %v1380
      %v1398 = vpack.c.b16 %v1383, %v1382
      %v1399 = vpack.c.b16 %v1385, %v1384
      %v1400 = vpack.c.b16 %v1387, %v1386
      %v1401 = vpack.c.b16 %v1389, %v1388
      %v1403 = vsel %vm1180, %v1390, 0
      %v1406 = vsel %vm1180, %v1391, 0
      %v1409 = vsel %vm1180, %v1392, 0
      %v1412 = vsel %vm1180, %v1393, 0
      %v1415 = vsel %vm1180, %v1394, 0
      %v1418 = vsel %vm1180, %v1395, 0
      %v1421 = vsel %vm1180, %v1396, 0
      %v1424 = vsel %vm1180, %v1397, 0
      %v1427 = vsel %vm1180, %v1398, 0
      %v1430 = vsel %vm1180, %v1399, 0
      %v1433 = vsel %vm1180, %v1400, 0
      %v1436 = vsel %vm1180, %v1401, 0
      %v1439 = vsel %vm1217, %v1089, 0
      %1441 = vmatprep.subr.bf16.mxu0 0
      %1442 = vmatpush1.bf16.msra.mxu0 %v1439
      %1443 = vmatprep.subr.bf16.mxu0 0
      %1444 = vmatpush1.bf16.msra.mxu0 0
      %1445 = vmatprep.subr.bf16.mxu0 0
      %1446 = vmatpush1.bf16.msra.mxu0 0
      %1447 = vmatprep.subr.bf16.mxu0 0
      %1448 = vmatpush1.bf16.msra.mxu0 0
      %1449 = vmatprep.subr.bf16.mxu0 0
      %1450 = vmatpush1.bf16.msra.mxu0 0
      %1451 = vmatprep.subr.bf16.mxu0 0
      %1452 = vmatpush1.bf16.msra.mxu0 0
      %1453 = vmatprep.subr.bf16.mxu0 0
      %1454 = vmatpush1.bf16.msra.mxu0 0
      %1455 = vmatprep.subr.bf16.mxu0 0
      %1456 = vmatpush1.bf16.msra.mxu0 0
      %1457 = vmatprep.subr.bf16.mxu0 0
      %1458 = vmatpush1.bf16.msra.mxu0 0
      %1459 = vmatprep.subr.bf16.mxu0 0
      %1460 = vmatpush1.bf16.msra.mxu0 0
      %1461 = vmatprep.subr.bf16.mxu0 0
      %1462 = vmatpush1.bf16.msra.mxu0 0
      %1463 = vmatprep.subr.bf16.mxu0 0
      %1464 = vmatpush1.bf16.msra.mxu0 0
      %1465 = vmatprep.subr.bf16.mxu0 0
      %1466 = vmatpush1.bf16.msra.mxu0 0
      %1467 = vmatprep.subr.bf16.mxu0 0
      %1468 = vmatpush1.bf16.msra.mxu0 0
      %1469 = vmatprep.subr.bf16.mxu0 0
      %1470 = vmatpush1.bf16.msra.mxu0 0
      %1471 = vmatprep.subr.bf16.mxu0 0
      %1472 = vmatpush1.bf16.msra.mxu0 0
      %1473 = vmatprep.mubr.bf16.mxu0 0
      %1474 = vmatmul.mubr.bf16.gmra.mrb[0].mxu0 %v1403
      %v1475 = vpop.f32.mrb[0].mxu0
      %v1476 = vadd.f32 %v1256, %v1475
      %v1477 = vpop.f32.mrb[0].mxu0
      %v1478 = vpop.f32.mrb[0].mxu0
      %v1479 = vadd.f32 %v1259, %v1478
      %v1480 = vpop.f32.mrb[0].mxu0
      %1481 = vmatprep.mubr.bf16.mxu0 0
      %1482 = vmatmul.mubr.bf16.gmra.mrb[0].mxu0 %v1406
      %v1483 = vpop.f32.mrb[0].mxu0
      %v1484 = vpop.f32.mrb[0].mxu0
      %v1485 = vpop.f32.mrb[0].mxu0
      %v1486 = vadd.f32 %v1266, %v1485
      %v1487 = vpop.f32.mrb[0].mxu0
      %1488 = vmatprep.mubr.bf16.mxu0 0
      %1489 = vmatmul.mubr.bf16.gmra.mrb[0].mxu0 %v1409
      %v1490 = vpop.f32.mrb[0].mxu0
      %v1491 = vadd.f32 %v1271, %v1490
      %v1492 = vpop.f32.mrb[0].mxu0
      %v1493 = vpop.f32.mrb[0].mxu0
      %v1494 = vpop.f32.mrb[0].mxu0
      %1495 = vmatprep.mubr.bf16.mxu0 0
      %1496 = vmatmul.mubr.bf16.gmra.mrb[0].mxu0 %v1412
      %v1497 = vpop.f32.mrb[0].mxu0
      %v1498 = vadd.f32 %v1278, %v1497
      %v1499 = vpop.f32.mrb[0].mxu0
      %v1500 = vpop.f32.mrb[0].mxu0
      %v1501 = vadd.f32 %v1281, %v1500
      %v1502 = vpop.f32.mrb[0].mxu0
      %1503 = vmatprep.mubr.bf16.mxu0 0
      %1504 = vmatmul.mubr.bf16.gmra.mrb[0].mxu0 %v1415
      %v1505 = vpop.f32.mrb[0].mxu0
      %v1506 = vpop.f32.mrb[0].mxu0
      %v1507 = vpop.f32.mrb[0].mxu0
      %v1508 = vadd.f32 %v1288, %v1507
      %v1509 = vpop.f32.mrb[0].mxu0
      %1510 = vmatprep.mubr.bf16.mxu0 0
      %1511 = vmatmul.mubr.bf16.gmra.mrb[0].mxu0 %v1418
      %v1512 = vpop.f32.mrb[0].mxu0
      %v1513 = vadd.f32 %v1293, %v1512
      %v1514 = vpop.f32.mrb[0].mxu0
      %v1515 = vpop.f32.mrb[0].mxu0
      %v1516 = vpop.f32.mrb[0].mxu0
      %1517 = vmatprep.mubr.bf16.mxu0 0
      %1518 = vmatmul.mubr.bf16.gmra.mrb[0].mxu0 %v1421
      %v1519 = vpop.f32.mrb[0].mxu0
      %v1520 = vadd.f32 %v1300, %v1519
      %v1521 = vpop.f32.mrb[0].mxu0
      %v1522 = vpop.f32.mrb[0].mxu0
      %v1523 = vadd.f32 %v1303, %v1522
      %v1524 = vpop.f32.mrb[0].mxu0
      %1525 = vmatprep.mubr.bf16.mxu0 0
      %1526 = vmatmul.mubr.bf16.gmra.mrb[0].mxu0 %v1424
      %v1527 = vpop.f32.mrb[0].mxu0
      %v1528 = vpop.f32.mrb[0].mxu0
      %v1529 = vpop.f32.mrb[0].mxu0
      %v1530 = vadd.f32 %v1310, %v1529
      %v1531 = vpop.f32.mrb[0].mxu0
      %1532 = vmatprep.mubr.bf16.mxu0 0
      %1533 = vmatmul.mubr.bf16.gmra.mrb[0].mxu0 %v1427
      %v1534 = vpop.f32.mrb[0].mxu0
      %v1535 = vadd.f32 %v1315, %v1534
      %v1536 = vpop.f32.mrb[0].mxu0
      %v1537 = vpop.f32.mrb[0].mxu0
      %v1538 = vpop.f32.mrb[0].mxu0
      %1539 = vmatprep.mubr.bf16.mxu0 0
      %1540 = vmatmul.mubr.bf16.gmra.mrb[0].mxu0 %v1430
      %v1541 = vpop.f32.mrb[0].mxu0
      %v1542 = vadd.f32 %v1322, %v1541
      %v1543 = vpop.f32.mrb[0].mxu0
      %v1544 = vpop.f32.mrb[0].mxu0
      %v1545 = vadd.f32 %v1325, %v1544
      %v1546 = vpop.f32.mrb[0].mxu0
      %1547 = vmatprep.mubr.bf16.mxu0 0
      %1548 = vmatmul.mubr.bf16.gmra.mrb[0].mxu0 %v1433
      %v1549 = vpop.f32.mrb[0].mxu0
      %v1550 = vpop.f32.mrb[0].mxu0
      %v1551 = vpop.f32.mrb[0].mxu0
      %v1552 = vadd.f32 %v1332, %v1551
      %v1553 = vpop.f32.mrb[0].mxu0
      %1554 = vmatprep.mubr.bf16.mxu0 0
      %1555 = vmatmul.mubr.bf16.gmra.mrb[0].mxu0 %v1436
      %v1556 = vpop.f32.mrb[0].mxu0
      %v1557 = vadd.f32 %v1337, %v1556
      %v1558 = vpop.f32.mrb[0].mxu0
      %v1559 = vpop.f32.mrb[0].mxu0
      %v1560 = vpop.f32.mrb[0].mxu0
      %1561 = vdwg.mxu0
      %s1562 = scalar_lea.vmem %s1, 8
      %v1563 = vld [vmem:[%s1562] sm:$0x3]
      %v1565 = vsel %vm1217, %v1563, 0
      %1567 = vmatprep.subr.bf16.mxu0 0
      %1568 = vmatpush1.bf16.msra.mxu0 %v1565
      %1569 = vmatprep.subr.bf16.mxu0 0
      %1570 = vmatpush1.bf16.msra.mxu0 0
      %1571 = vmatprep.subr.bf16.mxu0 0
      %1572 = vmatpush1.bf16.msra.mxu0 0
      %1573 = vmatprep.subr.bf16.mxu0 0
      %1574 = vmatpush1.bf16.msra.mxu0 0
      %1575 = vmatprep.subr.bf16.mxu0 0
      %1576 = vmatpush1.bf16.msra.mxu0 0
      %1577 = vmatprep.subr.bf16.mxu0 0
      %1578 = vmatpush1.bf16.msra.mxu0 0
      %1579 = vmatprep.subr.bf16.mxu0 0
      %1580 = vmatpush1.bf16.msra.mxu0 0
      %1581 = vmatprep.subr.bf16.mxu0 0
      %1582 = vmatpush1.bf16.msra.mxu0 0
      %1583 = vmatprep.subr.bf16.mxu0 0
      %1584 = vmatpush1.bf16.msra.mxu0 0
      %1585 = vmatprep.subr.bf16.mxu0 0
      %1586 = vmatpush1.bf16.msra.mxu0 0
      %1587 = vmatprep.subr.bf16.mxu0 0
      %1588 = vmatpush1.bf16.msra.mxu0 0
      %1589 = vmatprep.subr.bf16.mxu0 0
      %1590 = vmatpush1.bf16.msra.mxu0 0
      %1591 = vmatprep.subr.bf16.mxu0 0
      %1592 = vmatpush1.bf16.msra.mxu0 0
      %1593 = vmatprep.subr.bf16.mxu0 0
      %1594 = vmatpush1.bf16.msra.mxu0 0
      %1595 = vmatprep.subr.bf16.mxu0 0
      %1596 = vmatpush1.bf16.msra.mxu0 0
      %1597 = vmatprep.subr.bf16.mxu0 0
      %1598 = vmatpush1.bf16.msra.mxu0 0
      %1599 = vmatprep.mubr.bf16.mxu0 0
      %1600 = vmatmul.mubr.bf16.gmra.mrb[0].mxu0 %v1182
      %v1601 = vpop.f32.mrb[0].mxu0
      %v1602 = vadd.f32 0.0, %v1601
      %v1603 = vpop.f32.mrb[0].mxu0
      %v1604 = vpop.f32.mrb[0].mxu0
      %v1605 = vadd.f32 0.0, %v1604
      %v1606 = vpop.f32.mrb[0].mxu0
      %1607 = vmatprep.mubr.bf16.mxu0 0
      %1608 = vmatmul.mubr.bf16.gmra.mrb[0].mxu0 %v1185
      %v1609 = vpop.f32.mrb[0].mxu0
      %v1610 = vadd.f32 0.0, %v1609
      %v1611 = vpop.f32.mrb[0].mxu0
      %v1612 = vpop.f32.mrb[0].mxu0
      %v1613 = vadd.f32 0.0, %v1612
      %v1614 = vpop.f32.mrb[0].mxu0
      %1615 = vmatprep.mubr.bf16.mxu0 0
      %1616 = vmatmul.mubr.bf16.gmra.mrb[0].mxu0 %v1188
      %v1617 = vpop.f32.mrb[0].mxu0
      %v1618 = vadd.f32 0.0, %v1617
      %v1619 = vpop.f32.mrb[0].mxu0
      %v1620 = vpop.f32.mrb[0].mxu0
      %v1621 = vadd.f32 0.0, %v1620
      %v1622 = vpop.f32.mrb[0].mxu0
      %1623 = vmatprep.mubr.bf16.mxu0 0
      %1624 = vmatmul.mubr.bf16.gmra.mrb[0].mxu0 %v1191
      %v1625 = vpop.f32.mrb[0].mxu0
      %v1626 = vadd.f32 0.0, %v1625
      %v1627 = vpop.f32.mrb[0].mxu0
      %v1628 = vpop.f32.mrb[0].mxu0
      %v1629 = vadd.f32 0.0, %v1628
      %v1630 = vpop.f32.mrb[0].mxu0
      %1631 = vmatprep.mubr.bf16.mxu0 0
      %1632 = vmatmul.mubr.bf16.gmra.mrb[0].mxu0 %v1194
      %v1633 = vpop.f32.mrb[0].mxu0
      %v1634 = vadd.f32 0.0, %v1633
      %v1635 = vpop.f32.mrb[0].mxu0
      %v1636 = vpop.f32.mrb[0].mxu0
      %v1637 = vadd.f32 0.0, %v1636
      %v1638 = vpop.f32.mrb[0].mxu0
      %1639 = vmatprep.mubr.bf16.mxu0 0
      %1640 = vmatmul.mubr.bf16.gmra.mrb[0].mxu0 %v1197
      %v1641 = vpop.f32.mrb[0].mxu0
      %v1642 = vadd.f32 0.0, %v1641
      %v1643 = vpop.f32.mrb[0].mxu0
      %v1644 = vpop.f32.mrb[0].mxu0
      %v1645 = vadd.f32 0.0, %v1644
      %v1646 = vpop.f32.mrb[0].mxu0
      %1647 = vmatprep.mubr.bf16.mxu0 0
      %1648 = vmatmul.mubr.bf16.gmra.mrb[0].mxu0 %v1200
      %v1649 = vpop.f32.mrb[0].mxu0
      %v1650 = vadd.f32 0.0, %v1649
      %v1651 = vpop.f32.mrb[0].mxu0
      %v1652 = vpop.f32.mrb[0].mxu0
      %v1653 = vadd.f32 0.0, %v1652
      %v1654 = vpop.f32.mrb[0].mxu0
      %1655 = vmatprep.mubr.bf16.mxu0 0
      %1656 = vmatmul.mubr.bf16.gmra.mrb[0].mxu0 %v1203
      %v1657 = vpop.f32.mrb[0].mxu0
      %v1658 = vadd.f32 0.0, %v1657
      %v1659 = vpop.f32.mrb[0].mxu0
      %v1660 = vpop.f32.mrb[0].mxu0
      %v1661 = vadd.f32 0.0, %v1660
      %v1662 = vpop.f32.mrb[0].mxu0
      %1663 = vmatprep.mubr.bf16.mxu0 0
      %1664 = vmatmul.mubr.bf16.gmra.mrb[0].mxu0 %v1206
      %v1665 = vpop.f32.mrb[0].mxu0
      %v1666 = vadd.f32 0.0, %v1665
      %v1667 = vpop.f32.mrb[0].mxu0
      %v1668 = vpop.f32.mrb[0].mxu0
      %v1669 = vadd.f32 0.0, %v1668
      %v1670 = vpop.f32.mrb[0].mxu0
      %1671 = vmatprep.mubr.bf16.mxu0 0
      %1672 = vmatmul.mubr.bf16.gmra.mrb[0].mxu0 %v1209
      %v1673 = vpop.f32.mrb[0].mxu0
      %v1674 = vadd.f32 0.0, %v1673
      %v1675 = vpop.f32.mrb[0].mxu0
      %v1676 = vpop.f32.mrb[0].mxu0
      %v1677 = vadd.f32 0.0, %v1676
      %v1678 = vpop.f32.mrb[0].mxu0
      %1679 = vmatprep.mubr.bf16.mxu0 0
      %1680 = vmatmul.mubr.bf16.gmra.mrb[0].mxu0 %v1212
      %v1681 = vpop.f32.mrb[0].mxu0
      %v1682 = vadd.f32 0.0, %v1681
      %v1683 = vpop.f32.mrb[0].mxu0
      %v1684 = vpop.f32.mrb[0].mxu0
      %v1685 = vadd.f32 0.0, %v1684
      %v1686 = vpop.f32.mrb[0].mxu0
      %1687 = vmatprep.mubr.bf16.mxu0 0
      %1688 = vmatmul.mubr.bf16.gmra.mrb[0].mxu0 %v1215
      %v1689 = vpop.f32.mrb[0].mxu0
      %v1690 = vadd.f32 0.0, %v1689
      %v1691 = vpop.f32.mrb[0].mxu0
      %v1692 = vpop.f32.mrb[0].mxu0
      %v1693 = vadd.f32 0.0, %v1692
      %v1694 = vpop.f32.mrb[0].mxu0
      %1695 = vdwg.mxu0
      %v1697 = vsel %vm1217, %v1091, 0
      %1699 = vmatprep.subr.bf16.mxu0 0
      %1700 = vmatpush1.bf16.msra.mxu0 %v1697
      %1701 = vmatprep.subr.bf16.mxu0 0
      %1702 = vmatpush1.bf16.msra.mxu0 0
      %1703 = vmatprep.subr.bf16.mxu0 0
      %1704 = vmatpush1.bf16.msra.mxu0 0
      %1705 = vmatprep.subr.bf16.mxu0 0
      %1706 = vmatpush1.bf16.msra.mxu0 0
      %1707 = vmatprep.subr.bf16.mxu0 0
      %1708 = vmatpush1.bf16.msra.mxu0 0
      %1709 = vmatprep.subr.bf16.mxu0 0
      %1710 = vmatpush1.bf16.msra.mxu0 0
      %1711 = vmatprep.subr.bf16.mxu0 0
      %1712 = vmatpush1.bf16.msra.mxu0 0
      %1713 = vmatprep.subr.bf16.mxu0 0
      %1714 = vmatpush1.bf16.msra.mxu0 0
      %1715 = vmatprep.subr.bf16.mxu0 0
      %1716 = vmatpush1.bf16.msra.mxu0 0
      %1717 = vmatprep.subr.bf16.mxu0 0
      %1718 = vmatpush1.bf16.msra.mxu0 0
      %1719 = vmatprep.subr.bf16.mxu0 0
      %1720 = vmatpush1.bf16.msra.mxu0 0
      %1721 = vmatprep.subr.bf16.mxu0 0
      %1722 = vmatpush1.bf16.msra.mxu0 0
      %1723 = vmatprep.subr.bf16.mxu0 0
      %1724 = vmatpush1.bf16.msra.mxu0 0
      %1725 = vmatprep.subr.bf16.mxu0 0
      %1726 = vmatpush1.bf16.msra.mxu0 0
      %1727 = vmatprep.subr.bf16.mxu0 0
      %1728 = vmatpush1.bf16.msra.mxu0 0
      %1729 = vmatprep.subr.bf16.mxu0 0
      %1730 = vmatpush1.bf16.msra.mxu0 0
      %1731 = vmatprep.mubr.bf16.mxu0 0
      %1732 = vmatmul.mubr.bf16.gmra.mrb[0].mxu0 %v1403
      %v1733 = vpop.f32.mrb[0].mxu0
      %v1734 = vadd.f32 %v1602, %v1733
      %v1735 = vpop.f32.mrb[0].mxu0
      %v1736 = vpop.f32.mrb[0].mxu0
      %v1737 = vadd.f32 %v1605, %v1736
      %v1738 = vpop.f32.mrb[0].mxu0
      %1739 = vmatprep.mubr.bf16.mxu0 0
      %1740 = vmatmul.mubr.bf16.gmra.mrb[0].mxu0 %v1406
      %v1741 = vpop.f32.mrb[0].mxu0
      %v1742 = vadd.f32 %v1610, %v1741
      %v1743 = vpop.f32.mrb[0].mxu0
      %v1744 = vpop.f32.mrb[0].mxu0
      %v1745 = vadd.f32 %v1613, %v1744
      %v1746 = vpop.f32.mrb[0].mxu0
      %1747 = vmatprep.mubr.bf16.mxu0 0
      %1748 = vmatmul.mubr.bf16.gmra.mrb[0].mxu0 %v1409
      %v1749 = vpop.f32.mrb[0].mxu0
      %v1750 = vadd.f32 %v1618, %v1749
      %v1751 = vpop.f32.mrb[0].mxu0
      %v1752 = vpop.f32.mrb[0].mxu0
      %v1753 = vadd.f32 %v1621, %v1752
      %v1754 = vpop.f32.mrb[0].mxu0
      %1755 = vmatprep.mubr.bf16.mxu0 0
      %1756 = vmatmul.mubr.bf16.gmra.mrb[0].mxu0 %v1412
      %v1757 = vpop.f32.mrb[0].mxu0
      %v1758 = vadd.f32 %v1626, %v1757
      %v1759 = vpop.f32.mrb[0].mxu0
      %v1760 = vpop.f32.mrb[0].mxu0
      %v1761 = vadd.f32 %v1629, %v1760
      %v1762 = vpop.f32.mrb[0].mxu0
      %1763 = vmatprep.mubr.bf16.mxu0 0
      %1764 = vmatmul.mubr.bf16.gmra.mrb[0].mxu0 %v1415
      %v1765 = vpop.f32.mrb[0].mxu0
      %v1766 = vadd.f32 %v1634, %v1765
      %v1767 = vpop.f32.mrb[0].mxu0
      %v1768 = vpop.f32.mrb[0].mxu0
      %v1769 = vadd.f32 %v1637, %v1768
      %v1770 = vpop.f32.mrb[0].mxu0
      %1771 = vmatprep.mubr.bf16.mxu0 0
      %1772 = vmatmul.mubr.bf16.gmra.mrb[0].mxu0 %v1418
      %v1773 = vpop.f32.mrb[0].mxu0
      %v1774 = vadd.f32 %v1642, %v1773
      %v1775 = vpop.f32.mrb[0].mxu0
      %v1776 = vpop.f32.mrb[0].mxu0
      %v1777 = vadd.f32 %v1645, %v1776
      %v1778 = vpop.f32.mrb[0].mxu0
      %1779 = vmatprep.mubr.bf16.mxu0 0
      %1780 = vmatmul.mubr.bf16.gmra.mrb[0].mxu0 %v1421
      %v1781 = vpop.f32.mrb[0].mxu0
      %v1782 = vadd.f32 %v1650, %v1781
      %v1783 = vpop.f32.mrb[0].mxu0
      %v1784 = vpop.f32.mrb[0].mxu0
      %v1785 = vadd.f32 %v1653, %v1784
      %v1786 = vpop.f32.mrb[0].mxu0
      %1787 = vmatprep.mubr.bf16.mxu0 0
      %1788 = vmatmul.mubr.bf16.gmra.mrb[0].mxu0 %v1424
      %v1789 = vpop.f32.mrb[0].mxu0
      %v1790 = vadd.f32 %v1658, %v1789
      %v1791 = vpop.f32.mrb[0].mxu0
      %v1792 = vpop.f32.mrb[0].mxu0
      %v1793 = vadd.f32 %v1661, %v1792
      %v1794 = vpop.f32.mrb[0].mxu0
      %1795 = vmatprep.mubr.bf16.mxu0 0
      %1796 = vmatmul.mubr.bf16.gmra.mrb[0].mxu0 %v1427
      %v1797 = vpop.f32.mrb[0].mxu0
      %v1798 = vadd.f32 %v1666, %v1797
      %v1799 = vpop.f32.mrb[0].mxu0
      %v1800 = vpop.f32.mrb[0].mxu0
      %v1801 = vadd.f32 %v1669, %v1800
      %v1802 = vpop.f32.mrb[0].mxu0
      %1803 = vmatprep.mubr.bf16.mxu0 0
      %1804 = vmatmul.mubr.bf16.gmra.mrb[0].mxu0 %v1430
      %v1805 = vpop.f32.mrb[0].mxu0
      %v1806 = vadd.f32 %v1674, %v1805
      %v1807 = vpop.f32.mrb[0].mxu0
      %v1808 = vpop.f32.mrb[0].mxu0
      %v1809 = vadd.f32 %v1677, %v1808
      %v1810 = vpop.f32.mrb[0].mxu0
      %1811 = vmatprep.mubr.bf16.mxu0 0
      %1812 = vmatmul.mubr.bf16.gmra.mrb[0].mxu0 %v1433
      %v1813 = vpop.f32.mrb[0].mxu0
      %v1814 = vadd.f32 %v1682, %v1813
      %v1815 = vpop.f32.mrb[0].mxu0
      %v1816 = vpop.f32.mrb[0].mxu0
      %v1817 = vadd.f32 %v1685, %v1816
      %v1818 = vpop.f32.mrb[0].mxu0
      %1819 = vmatprep.mubr.bf16.mxu0 0
      %1820 = vmatmul.mubr.bf16.gmra.mrb[0].mxu0 %v1436
      %v1821 = vpop.f32.mrb[0].mxu0
      %v1822 = vadd.f32 %v1690, %v1821
      %v1823 = vpop.f32.mrb[0].mxu0
      %v1824 = vpop.f32.mrb[0].mxu0
      %v1825 = vadd.f32 %v1693, %v1824
      %v1826 = vpop.f32.mrb[0].mxu0
      %1827 = vdwg.mxu0
      %s1828 = scalar_lea.vmem %s1, 10
      %v1829 = vld [vmem:[%s1828] sm:$0x3]
      %v1831 = vsel %vm1217, %v1829, 0
      %1833 = vmatprep.subr.bf16.mxu0 0
      %1834 = vmatpush1.bf16.msra.mxu0 %v1831
      %1835 = vmatprep.subr.bf16.mxu0 0
      %1836 = vmatpush1.bf16.msra.mxu0 0
      %1837 = vmatprep.subr.bf16.mxu0 0
      %1838 = vmatpush1.bf16.msra.mxu0 0
      %1839 = vmatprep.subr.bf16.mxu0 0
      %1840 = vmatpush1.bf16.msra.mxu0 0
      %1841 = vmatprep.subr.bf16.mxu0 0
      %1842 = vmatpush1.bf16.msra.mxu0 0
      %1843 = vmatprep.subr.bf16.mxu0 0
      %1844 = vmatpush1.bf16.msra.mxu0 0
      %1845 = vmatprep.subr.bf16.mxu0 0
      %1846 = vmatpush1.bf16.msra.mxu0 0
      %1847 = vmatprep.subr.bf16.mxu0 0
      %1848 = vmatpush1.bf16.msra.mxu0 0
      %1849 = vmatprep.subr.bf16.mxu0 0
      %1850 = vmatpush1.bf16.msra.mxu0 0
      %1851 = vmatprep.subr.bf16.mxu0 0
      %1852 = vmatpush1.bf16.msra.mxu0 0
      %1853 = vmatprep.subr.bf16.mxu0 0
      %1854 = vmatpush1.bf16.msra.mxu0 0
      %1855 = vmatprep.subr.bf16.mxu0 0
      %1856 = vmatpush1.bf16.msra.mxu0 0
      %1857 = vmatprep.subr.bf16.mxu0 0
      %1858 = vmatpush1.bf16.msra.mxu0 0
      %1859 = vmatprep.subr.bf16.mxu0 0
      %1860 = vmatpush1.bf16.msra.mxu0 0
      %1861 = vmatprep.subr.bf16.mxu0 0
      %1862 = vmatpush1.bf16.msra.mxu0 0
      %1863 = vmatprep.subr.bf16.mxu0 0
      %1864 = vmatpush1.bf16.msra.mxu0 0
      %1865 = vmatprep.mubr.bf16.mxu0 0
      %1866 = vmatmul.mubr.bf16.gmra.mrb[0].mxu0 %v1182
      %v1867 = vpop.f32.mrb[0].mxu0
      %v1868 = vadd.f32 0.0, %v1867
      %v1869 = vpop.f32.mrb[0].mxu0
      %v1870 = vpop.f32.mrb[0].mxu0
      %v1871 = vadd.f32 0.0, %v1870
      %v1872 = vpop.f32.mrb[0].mxu0
      %1873 = vmatprep.mubr.bf16.mxu0 0
      %1874 = vmatmul.mubr.bf16.gmra.mrb[0].mxu0 %v1185
      %v1875 = vpop.f32.mrb[0].mxu0
      %v1876 = vadd.f32 0.0, %v1875
      %v1877 = vpop.f32.mrb[0].mxu0
      %v1878 = vpop.f32.mrb[0].mxu0
      %v1879 = vadd.f32 0.0, %v1878
      %v1880 = vpop.f32.mrb[0].mxu0
      %1881 = vmatprep.mubr.bf16.mxu0 0
      %1882 = vmatmul.mubr.bf16.gmra.mrb[0].mxu0 %v1188
      %v1883 = vpop.f32.mrb[0].mxu0
      %v1884 = vadd.f32 0.0, %v1883
      %v1885 = vpop.f32.mrb[0].mxu0
      %v1886 = vpop.f32.mrb[0].mxu0
      %v1887 = vadd.f32 0.0, %v1886
      %v1888 = vpop.f32.mrb[0].mxu0
      %1889 = vmatprep.mubr.bf16.mxu0 0
      %1890 = vmatmul.mubr.bf16.gmra.mrb[0].mxu0 %v1191
      %v1891 = vpop.f32.mrb[0].mxu0
      %v1892 = vadd.f32 0.0, %v1891
      %v1893 = vpop.f32.mrb[0].mxu0
      %v1894 = vpop.f32.mrb[0].mxu0
      %v1895 = vadd.f32 0.0, %v1894
      %v1896 = vpop.f32.mrb[0].mxu0
      %1897 = vmatprep.mubr.bf16.mxu0 0
      %1898 = vmatmul.mubr.bf16.gmra.mrb[0].mxu0 %v1194
      %v1899 = vpop.f32.mrb[0].mxu0
      %v1900 = vadd.f32 0.0, %v1899
      %v1901 = vpop.f32.mrb[0].mxu0
      %v1902 = vpop.f32.mrb[0].mxu0
      %v1903 = vadd.f32 0.0, %v1902
      %v1904 = vpop.f32.mrb[0].mxu0
      %1905 = vmatprep.mubr.bf16.mxu0 0
      %1906 = vmatmul.mubr.bf16.gmra.mrb[0].mxu0 %v1197
      %v1907 = vpop.f32.mrb[0].mxu0
      %v1908 = vadd.f32 0.0, %v1907
      %v1909 = vpop.f32.mrb[0].mxu0
      %v1910 = vpop.f32.mrb[0].mxu0
      %v1911 = vadd.f32 0.0, %v1910
      %v1912 = vpop.f32.mrb[0].mxu0
      %1913 = vmatprep.mubr.bf16.mxu0 0
      %1914 = vmatmul.mubr.bf16.gmra.mrb[0].mxu0 %v1200
      %v1915 = vpop.f32.mrb[0].mxu0
      %v1916 = vadd.f32 0.0, %v1915
      %v1917 = vpop.f32.mrb[0].mxu0
      %v1918 = vpop.f32.mrb[0].mxu0
      %v1919 = vadd.f32 0.0, %v1918
      %v1920 = vpop.f32.mrb[0].mxu0
      %1921 = vmatprep.mubr.bf16.mxu0 0
      %1922 = vmatmul.mubr.bf16.gmra.mrb[0].mxu0 %v1203
      %v1923 = vpop.f32.mrb[0].mxu0
      %v1924 = vadd.f32 0.0, %v1923
      %v1925 = vpop.f32.mrb[0].mxu0
      %v1926 = vpop.f32.mrb[0].mxu0
      %v1927 = vadd.f32 0.0, %v1926
      %v1928 = vpop.f32.mrb[0].mxu0
      %1929 = vmatprep.mubr.bf16.mxu0 0
      %1930 = vmatmul.mubr.bf16.gmra.mrb[0].mxu0 %v1206
      %v1931 = vpop.f32.mrb[0].mxu0
      %v1932 = vadd.f32 0.0, %v1931
      %v1933 = vpop.f32.mrb[0].mxu0
      %v1934 = vpop.f32.mrb[0].mxu0
      %v1935 = vadd.f32 0.0, %v1934
      %v1936 = vpop.f32.mrb[0].mxu0
      %1937 = vmatprep.mubr.bf16.mxu0 0
      %1938 = vmatmul.mubr.bf16.gmra.mrb[0].mxu0 %v1209
      %v1939 = vpop.f32.mrb[0].mxu0
      %v1940 = vadd.f32 0.0, %v1939
      %v1941 = vpop.f32.mrb[0].mxu0
      %v1942 = vpop.f32.mrb[0].mxu0
      %v1943 = vadd.f32 0.0, %v1942
      %v1944 = vpop.f32.mrb[0].mxu0
      %1945 = vmatprep.mubr.bf16.mxu0 0
      %1946 = vmatmul.mubr.bf16.gmra.mrb[0].mxu0 %v1212
      %v1947 = vpop.f32.mrb[0].mxu0
      %v1948 = vadd.f32 0.0, %v1947
      %v1949 = vpop.f32.mrb[0].mxu0
      %v1950 = vpop.f32.mrb[0].mxu0
      %v1951 = vadd.f32 0.0, %v1950
      %v1952 = vpop.f32.mrb[0].mxu0
      %1953 = vmatprep.mubr.bf16.mxu0 0
      %1954 = vmatmul.mubr.bf16.gmra.mrb[0].mxu0 %v1215
      %v1955 = vpop.f32.mrb[0].mxu0
      %v1956 = vadd.f32 0.0, %v1955
      %v1957 = vpop.f32.mrb[0].mxu0
      %v1958 = vpop.f32.mrb[0].mxu0
      %v1959 = vadd.f32 0.0, %v1958
      %v1960 = vpop.f32.mrb[0].mxu0
      %1961 = vdwg.mxu0
      %v1963 = vsel %vm1217, %v1093, 0
      %1965 = vmatprep.subr.bf16.mxu0 0
      %1966 = vmatpush1.bf16.msra.mxu0 %v1963
      %1967 = vmatprep.subr.bf16.mxu0 0
      %1968 = vmatpush1.bf16.msra.mxu0 0
      %1969 = vmatprep.subr.bf16.mxu0 0
      %1970 = vmatpush1.bf16.msra.mxu0 0
      %1971 = vmatprep.subr.bf16.mxu0 0
      %1972 = vmatpush1.bf16.msra.mxu0 0
      %1973 = vmatprep.subr.bf16.mxu0 0
      %1974 = vmatpush1.bf16.msra.mxu0 0
      %1975 = vmatprep.subr.bf16.mxu0 0
      %1976 = vmatpush1.bf16.msra.mxu0 0
      %1977 = vmatprep.subr.bf16.mxu0 0
      %1978 = vmatpush1.bf16.msra.mxu0 0
      %1979 = vmatprep.subr.bf16.mxu0 0
      %1980 = vmatpush1.bf16.msra.mxu0 0
      %1981 = vmatprep.subr.bf16.mxu0 0
      %1982 = vmatpush1.bf16.msra.mxu0 0
      %1983 = vmatprep.subr.bf16.mxu0 0
      %1984 = vmatpush1.bf16.msra.mxu0 0
      %1985 = vmatprep.subr.bf16.mxu0 0
      %1986 = vmatpush1.bf16.msra.mxu0 0
      %1987 = vmatprep.subr.bf16.mxu0 0
      %1988 = vmatpush1.bf16.msra.mxu0 0
      %1989 = vmatprep.subr.bf16.mxu0 0
      %1990 = vmatpush1.bf16.msra.mxu0 0
      %1991 = vmatprep.subr.bf16.mxu0 0
      %1992 = vmatpush1.bf16.msra.mxu0 0
      %1993 = vmatprep.subr.bf16.mxu0 0
      %1994 = vmatpush1.bf16.msra.mxu0 0
      %1995 = vmatprep.subr.bf16.mxu0 0
      %1996 = vmatpush1.bf16.msra.mxu0 0
      %1997 = vmatprep.mubr.bf16.mxu0 0
      %1998 = vmatmul.mubr.bf16.gmra.mrb[0].mxu0 %v1403
      %v1999 = vpop.f32.mrb[0].mxu0
      %v2000 = vadd.f32 %v1868, %v1999
      %v2001 = vpop.f32.mrb[0].mxu0
      %v2002 = vpop.f32.mrb[0].mxu0
      %v2003 = vadd.f32 %v1871, %v2002
      %v2004 = vpop.f32.mrb[0].mxu0
      %2005 = vmatprep.mubr.bf16.mxu0 0
      %2006 = vmatmul.mubr.bf16.gmra.mrb[0].mxu0 %v1406
      %v2007 = vpop.f32.mrb[0].mxu0
      %v2008 = vadd.f32 %v1876, %v2007
      %v2009 = vpop.f32.mrb[0].mxu0
      %v2010 = vpop.f32.mrb[0].mxu0
      %v2011 = vadd.f32 %v1879, %v2010
      %v2012 = vpop.f32.mrb[0].mxu0
      %2013 = vmatprep.mubr.bf16.mxu0 0
      %2014 = vmatmul.mubr.bf16.gmra.mrb[0].mxu0 %v1409
      %v2015 = vpop.f32.mrb[0].mxu0
      %v2016 = vadd.f32 %v1884, %v2015
      %v2017 = vpop.f32.mrb[0].mxu0
      %v2018 = vpop.f32.mrb[0].mxu0
      %v2019 = vadd.f32 %v1887, %v2018
      %v2020 = vpop.f32.mrb[0].mxu0
      %2021 = vmatprep.mubr.bf16.mxu0 0
      %2022 = vmatmul.mubr.bf16.gmra.mrb[0].mxu0 %v1412
      %v2023 = vpop.f32.mrb[0].mxu0
      %v2024 = vadd.f32 %v1892, %v2023
      %v2025 = vpop.f32.mrb[0].mxu0
      %v2026 = vpop.f32.mrb[0].mxu0
      %v2027 = vadd.f32 %v1895, %v2026
      %v2028 = vpop.f32.mrb[0].mxu0
      %2029 = vmatprep.mubr.bf16.mxu0 0
      %2030 = vmatmul.mubr.bf16.gmra.mrb[0].mxu0 %v1415
      %v2031 = vpop.f32.mrb[0].mxu0
      %v2032 = vadd.f32 %v1900, %v2031
      %v2033 = vpop.f32.mrb[0].mxu0
      %v2034 = vpop.f32.mrb[0].mxu0
      %v2035 = vadd.f32 %v1903, %v2034
      %v2036 = vpop.f32.mrb[0].mxu0
      %2037 = vmatprep.mubr.bf16.mxu0 0
      %2038 = vmatmul.mubr.bf16.gmra.mrb[0].mxu0 %v1418
      %v2039 = vpop.f32.mrb[0].mxu0
      %v2040 = vadd.f32 %v1908, %v2039
      %v2041 = vpop.f32.mrb[0].mxu0
      %v2042 = vpop.f32.mrb[0].mxu0
      %v2043 = vadd.f32 %v1911, %v2042
      %v2044 = vpop.f32.mrb[0].mxu0
      %2045 = vmatprep.mubr.bf16.mxu0 0
      %2046 = vmatmul.mubr.bf16.gmra.mrb[0].mxu0 %v1421
      %v2047 = vpop.f32.mrb[0].mxu0
      %v2048 = vadd.f32 %v1916, %v2047
      %v2049 = vpop.f32.mrb[0].mxu0
      %v2050 = vpop.f32.mrb[0].mxu0
      %v2051 = vadd.f32 %v1919, %v2050
      %v2052 = vpop.f32.mrb[0].mxu0
      %2053 = vmatprep.mubr.bf16.mxu0 0
      %2054 = vmatmul.mubr.bf16.gmra.mrb[0].mxu0 %v1424
      %v2055 = vpop.f32.mrb[0].mxu0
      %v2056 = vadd.f32 %v1924, %v2055
      %v2057 = vpop.f32.mrb[0].mxu0
      %v2058 = vpop.f32.mrb[0].mxu0
      %v2059 = vadd.f32 %v1927, %v2058
      %v2060 = vpop.f32.mrb[0].mxu0
      %2061 = vmatprep.mubr.bf16.mxu0 0
      %2062 = vmatmul.mubr.bf16.gmra.mrb[0].mxu0 %v1427
      %v2063 = vpop.f32.mrb[0].mxu0
      %v2064 = vadd.f32 %v1932, %v2063
      %v2065 = vpop.f32.mrb[0].mxu0
      %v2066 = vpop.f32.mrb[0].mxu0
      %v2067 = vadd.f32 %v1935, %v2066
      %v2068 = vpop.f32.mrb[0].mxu0
      %2069 = vmatprep.mubr.bf16.mxu0 0
      %2070 = vmatmul.mubr.bf16.gmra.mrb[0].mxu0 %v1430
      %v2071 = vpop.f32.mrb[0].mxu0
      %v2072 = vadd.f32 %v1940, %v2071
      %v2073 = vpop.f32.mrb[0].mxu0
      %v2074 = vpop.f32.mrb[0].mxu0
      %v2075 = vadd.f32 %v1943, %v2074
      %v2076 = vpop.f32.mrb[0].mxu0
      %2077 = vmatprep.mubr.bf16.mxu0 0
      %2078 = vmatmul.mubr.bf16.gmra.mrb[0].mxu0 %v1433
      %v2079 = vpop.f32.mrb[0].mxu0
      %v2080 = vadd.f32 %v1948, %v2079
      %v2081 = vpop.f32.mrb[0].mxu0
      %v2082 = vpop.f32.mrb[0].mxu0
      %v2083 = vadd.f32 %v1951, %v2082
      %v2084 = vpop.f32.mrb[0].mxu0
      %2085 = vmatprep.mubr.bf16.mxu0 0
      %2086 = vmatmul.mubr.bf16.gmra.mrb[0].mxu0 %v1436
      %v2087 = vpop.f32.mrb[0].mxu0
      %v2088 = vadd.f32 %v1956, %v2087
      %v2089 = vpop.f32.mrb[0].mxu0
      %v2090 = vpop.f32.mrb[0].mxu0
      %v2091 = vadd.f32 %v1959, %v2090
      %v2092 = vpop.f32.mrb[0].mxu0
      %2093 = vdwg.mxu0
      %s2094 = scalar_lea.vmem [#allocation2], 24
      %v2095 = vld [vmem:[%s2094] sm:$0xf]
      %v2096 = vld [vmem:[%s2094 + $0x4] sm:$0xf]
      %v2097 = vld [vmem:[%s2094 + $0x8] sm:$0xf]
      %v2098 = vld [vmem:[%s2094 + $0xc] sm:$0xf]
      %v2099 = vld [vmem:[%s2094 + $0x10] sm:$0xf]
      %v2100 = vld [vmem:[%s2094 + $0x14] sm:$0xf]
      %v2101 = vld [vmem:[%s2094 + $0x18] sm:$0xf]
      %v2102 = vld [vmem:[%s2094 + $0x1c] sm:$0xf]
      %v2103 = vld [vmem:[%s2094 + $0x20] sm:$0xf]
      %v2104 = vld [vmem:[%s2094 + $0x24] sm:$0xf]
      %v2105 = vld [vmem:[%s2094 + $0x28] sm:$0xf]
      %v2106 = vld [vmem:[%s2094 + $0x2c] sm:$0xf]
      %v2107 = vld [vmem:[%s2094 + $0x30] sm:$0xf]
      %v2108 = vld [vmem:[%s2094 + $0x34] sm:$0xf]
      %v2109 = vld [vmem:[%s2094 + $0x38] sm:$0xf]
      %v2110 = vld [vmem:[%s2094 + $0x3c] sm:$0xf]
      %v2111 = vld [vmem:[%s2094 + $0x40] sm:$0xf]
      %v2112 = vld [vmem:[%s2094 + $0x44] sm:$0xf]
      %v2113 = vld [vmem:[%s2094 + $0x48] sm:$0xf]
      %v2114 = vld [vmem:[%s2094 + $0x4c] sm:$0xf]
      %v2115 = vld [vmem:[%s2094 + $0x50] sm:$0xf]
      %v2116 = vld [vmem:[%s2094 + $0x54] sm:$0xf]
      %v2117 = vld [vmem:[%s2094 + $0x58] sm:$0xf]
      %v2118 = vld [vmem:[%s2094 + $0x5c] sm:$0xf]
      %s2119 = scalar_lea.vmem %s1, 12
      %v2120 = vld [vmem:[%s2119] sm:$0x3]
      %v2145 = vunpack.c.l.b16 %v2095
      %v2146 = vunpack.c.l.b16 %v2096
      %v2147 = vunpack.c.l.b16 %v2097
      %v2148 = vunpack.c.l.b16 %v2098
      %v2149 = vunpack.c.l.b16 %v2099
      %v2150 = vunpack.c.l.b16 %v2100
      %v2151 = vunpack.c.l.b16 %v2101
      %v2152 = vunpack.c.l.b16 %v2102
      %v2153 = vunpack.c.l.b16 %v2103
      %v2154 = vunpack.c.l.b16 %v2104
      %v2155 = vunpack.c.l.b16 %v2105
      %v2156 = vunpack.c.l.b16 %v2106
      %v2157 = vunpack.c.l.b16 %v2107
      %v2158 = vunpack.c.l.b16 %v2108
      %v2159 = vunpack.c.l.b16 %v2109
      %v2160 = vunpack.c.l.b16 %v2110
      %v2161 = vunpack.c.l.b16 %v2111
      %v2162 = vunpack.c.l.b16 %v2112
      %v2163 = vunpack.c.l.b16 %v2113
      %v2164 = vunpack.c.l.b16 %v2114
      %v2165 = vunpack.c.l.b16 %v2115
      %v2166 = vunpack.c.l.b16 %v2116
      %v2167 = vunpack.c.l.b16 %v2117
      %v2168 = vunpack.c.l.b16 %v2118
      %v2169 = vpack.c.b16 %v2146, %v2145
      %v2170 = vpack.c.b16 %v2148, %v2147
      %v2171 = vpack.c.b16 %v2150, %v2149
      %v2172 = vpack.c.b16 %v2152, %v2151
      %v2173 = vpack.c.b16 %v2154, %v2153
      %v2174 = vpack.c.b16 %v2156, %v2155
      %v2175 = vpack.c.b16 %v2158, %v2157
      %v2176 = vpack.c.b16 %v2160, %v2159
      %v2177 = vpack.c.b16 %v2162, %v2161
      %v2178 = vpack.c.b16 %v2164, %v2163
      %v2179 = vpack.c.b16 %v2166, %v2165
      %v2180 = vpack.c.b16 %v2168, %v2167
      %v2182 = vsel %vm1180, %v2169, 0
      %v2185 = vsel %vm1180, %v2170, 0
      %v2188 = vsel %vm1180, %v2171, 0
      %v2191 = vsel %vm1180, %v2172, 0
      %v2194 = vsel %vm1180, %v2173, 0
      %v2197 = vsel %vm1180, %v2174, 0
      %v2200 = vsel %vm1180, %v2175, 0
      %v2203 = vsel %vm1180, %v2176, 0
      %v2206 = vsel %vm1180, %v2177, 0
      %v2209 = vsel %vm1180, %v2178, 0
      %v2212 = vsel %vm1180, %v2179, 0
      %v2215 = vsel %vm1180, %v2180, 0
      %v2218 = vsel %vm1217, %v2120, 0
      %2220 = vmatprep.subr.bf16.mxu0 0
      %2221 = vmatpush1.bf16.msra.mxu0 %v2218
      %2222 = vmatprep.subr.bf16.mxu0 0
      %2223 = vmatpush1.bf16.msra.mxu0 0
      %2224 = vmatprep.subr.bf16.mxu0 0
      %2225 = vmatpush1.bf16.msra.mxu0 0
      %2226 = vmatprep.subr.bf16.mxu0 0
      %2227 = vmatpush1.bf16.msra.mxu0 0
      %2228 = vmatprep.subr.bf16.mxu0 0
      %2229 = vmatpush1.bf16.msra.mxu0 0
      %2230 = vmatprep.subr.bf16.mxu0 0
      %2231 = vmatpush1.bf16.msra.mxu0 0
      %2232 = vmatprep.subr.bf16.mxu0 0
      %2233 = vmatpush1.bf16.msra.mxu0 0
      %2234 = vmatprep.subr.bf16.mxu0 0
      %2235 = vmatpush1.bf16.msra.mxu0 0
      %2236 = vmatprep.subr.bf16.mxu0 0
      %2237 = vmatpush1.bf16.msra.mxu0 0
      %2238 = vmatprep.subr.bf16.mxu0 0
      %2239 = vmatpush1.bf16.msra.mxu0 0
      %2240 = vmatprep.subr.bf16.mxu0 0
      %2241 = vmatpush1.bf16.msra.mxu0 0
      %2242 = vmatprep.subr.bf16.mxu0 0
      %2243 = vmatpush1.bf16.msra.mxu0 0
      %2244 = vmatprep.subr.bf16.mxu0 0
      %2245 = vmatpush1.bf16.msra.mxu0 0
      %2246 = vmatprep.subr.bf16.mxu0 0
      %2247 = vmatpush1.bf16.msra.mxu0 0
      %2248 = vmatprep.subr.bf16.mxu0 0
      %2249 = vmatpush1.bf16.msra.mxu0 0
      %2250 = vmatprep.subr.bf16.mxu0 0
      %2251 = vmatpush1.bf16.msra.mxu0 0
      %2252 = vmatprep.mubr.bf16.mxu0 0
      %2253 = vmatmul.mubr.bf16.gmra.mrb[0].mxu0 %v2182
      %v2254 = vpop.f32.mrb[0].mxu0
      %v2255 = vadd.f32 0.0, %v2254
      %v2256 = vpop.f32.mrb[0].mxu0
      %v2257 = vpop.f32.mrb[0].mxu0
      %v2258 = vadd.f32 0.0, %v2257
      %v2259 = vpop.f32.mrb[0].mxu0
      %2260 = vmatprep.mubr.bf16.mxu0 0
      %2261 = vmatmul.mubr.bf16.gmra.mrb[0].mxu0 %v2185
      %v2262 = vpop.f32.mrb[0].mxu0
      %v2263 = vpop.f32.mrb[0].mxu0
      %v2264 = vpop.f32.mrb[0].mxu0
      %v2265 = vadd.f32 0.0, %v2264
      %v2266 = vpop.f32.mrb[0].mxu0
      %2267 = vmatprep.mubr.bf16.mxu0 0
      %2268 = vmatmul.mubr.bf16.gmra.mrb[0].mxu0 %v2188
      %v2269 = vpop.f32.mrb[0].mxu0
      %v2270 = vadd.f32 0.0, %v2269
      %v2271 = vpop.f32.mrb[0].mxu0
      %v2272 = vpop.f32.mrb[0].mxu0
      %v2273 = vpop.f32.mrb[0].mxu0
      %2274 = vmatprep.mubr.bf16.mxu0 0
      %2275 = vmatmul.mubr.bf16.gmra.mrb[0].mxu0 %v2191
      %v2276 = vpop.f32.mrb[0].mxu0
      %v2277 = vadd.f32 0.0, %v2276
      %v2278 = vpop.f32.mrb[0].mxu0
      %v2279 = vpop.f32.mrb[0].mxu0
      %v2280 = vadd.f32 0.0, %v2279
      %v2281 = vpop.f32.mrb[0].mxu0
      %2282 = vmatprep.mubr.bf16.mxu0 0
      %2283 = vmatmul.mubr.bf16.gmra.mrb[0].mxu0 %v2194
      %v2284 = vpop.f32.mrb[0].mxu0
      %v2285 = vpop.f32.mrb[0].mxu0
      %v2286 = vpop.f32.mrb[0].mxu0
      %v2287 = vadd.f32 0.0, %v2286
      %v2288 = vpop.f32.mrb[0].mxu0
      %2289 = vmatprep.mubr.bf16.mxu0 0
      %2290 = vmatmul.mubr.bf16.gmra.mrb[0].mxu0 %v2197
      %v2291 = vpop.f32.mrb[0].mxu0
      %v2292 = vadd.f32 0.0, %v2291
      %v2293 = vpop.f32.mrb[0].mxu0
      %v2294 = vpop.f32.mrb[0].mxu0
      %v2295 = vpop.f32.mrb[0].mxu0
      %2296 = vmatprep.mubr.bf16.mxu0 0
      %2297 = vmatmul.mubr.bf16.gmra.mrb[0].mxu0 %v2200
      %v2298 = vpop.f32.mrb[0].mxu0
      %v2299 = vadd.f32 0.0, %v2298
      %v2300 = vpop.f32.mrb[0].mxu0
      %v2301 = vpop.f32.mrb[0].mxu0
      %v2302 = vadd.f32 0.0, %v2301
      %v2303 = vpop.f32.mrb[0].mxu0
      %2304 = vmatprep.mubr.bf16.mxu0 0
      %2305 = vmatmul.mubr.bf16.gmra.mrb[0].mxu0 %v2203
      %v2306 = vpop.f32.mrb[0].mxu0
      %v2307 = vpop.f32.mrb[0].mxu0
      %v2308 = vpop.f32.mrb[0].mxu0
      %v2309 = vadd.f32 0.0, %v2308
      %v2310 = vpop.f32.mrb[0].mxu0
      %2311 = vmatprep.mubr.bf16.mxu0 0
      %2312 = vmatmul.mubr.bf16.gmra.mrb[0].mxu0 %v2206
      %v2313 = vpop.f32.mrb[0].mxu0
      %v2314 = vadd.f32 0.0, %v2313
      %v2315 = vpop.f32.mrb[0].mxu0
      %v2316 = vpop.f32.mrb[0].mxu0
      %v2317 = vpop.f32.mrb[0].mxu0
      %2318 = vmatprep.mubr.bf16.mxu0 0
      %2319 = vmatmul.mubr.bf16.gmra.mrb[0].mxu0 %v2209
      %v2320 = vpop.f32.mrb[0].mxu0
      %v2321 = vadd.f32 0.0, %v2320
      %v2322 = vpop.f32.mrb[0].mxu0
      %v2323 = vpop.f32.mrb[0].mxu0
      %v2324 = vadd.f32 0.0, %v2323
      %v2325 = vpop.f32.mrb[0].mxu0
      %2326 = vmatprep.mubr.bf16.mxu0 0
      %2327 = vmatmul.mubr.bf16.gmra.mrb[0].mxu0 %v2212
      %v2328 = vpop.f32.mrb[0].mxu0
      %v2329 = vpop.f32.mrb[0].mxu0
      %v2330 = vpop.f32.mrb[0].mxu0
      %v2331 = vadd.f32 0.0, %v2330
      %v2332 = vpop.f32.mrb[0].mxu0
      %2333 = vmatprep.mubr.bf16.mxu0 0
      %2334 = vmatmul.mubr.bf16.gmra.mrb[0].mxu0 %v2215
      %v2335 = vpop.f32.mrb[0].mxu0
      %v2336 = vadd.f32 0.0, %v2335
      %v2337 = vpop.f32.mrb[0].mxu0
      %v2338 = vpop.f32.mrb[0].mxu0
      %v2339 = vpop.f32.mrb[0].mxu0
      %2340 = vdwg.mxu0
      %v2341 = vadd.f32 %v1476, %v2255
      %v2342 = vadd.f32 %v1479, %v2258
      %v2343 = vadd.f32 %v1486, %v2265
      %v2344 = vadd.f32 %v1491, %v2270
      %v2345 = vadd.f32 %v1498, %v2277
      %v2346 = vadd.f32 %v1501, %v2280
      %v2347 = vadd.f32 %v1508, %v2287
      %v2348 = vadd.f32 %v1513, %v2292
      %v2349 = vadd.f32 %v1520, %v2299
      %v2350 = vadd.f32 %v1523, %v2302
      %v2351 = vadd.f32 %v1530, %v2309
      %v2352 = vadd.f32 %v1535, %v2314
      %v2353 = vadd.f32 %v1542, %v2321
      %v2354 = vadd.f32 %v1545, %v2324
      %v2355 = vadd.f32 %v1552, %v2331
      %v2356 = vadd.f32 %v1557, %v2336
      %s2357 = scalar_lea.vmem %s1, 14
      %v2358 = vld [vmem:[%s2357] sm:$0x3]
      %v2360 = vsel %vm1217, %v2358, 0
      %2362 = vmatprep.subr.bf16.mxu0 0
      %2363 = vmatpush1.bf16.msra.mxu0 %v2360
      %2364 = vmatprep.subr.bf16.mxu0 0
      %2365 = vmatpush1.bf16.msra.mxu0 0
      %2366 = vmatprep.subr.bf16.mxu0 0
      %2367 = vmatpush1.bf16.msra.mxu0 0
      %2368 = vmatprep.subr.bf16.mxu0 0
      %2369 = vmatpush1.bf16.msra.mxu0 0
      %2370 = vmatprep.subr.bf16.mxu0 0
      %2371 = vmatpush1.bf16.msra.mxu0 0
      %2372 = vmatprep.subr.bf16.mxu0 0
      %2373 = vmatpush1.bf16.msra.mxu0 0
      %2374 = vmatprep.subr.bf16.mxu0 0
      %2375 = vmatpush1.bf16.msra.mxu0 0
      %2376 = vmatprep.subr.bf16.mxu0 0
      %2377 = vmatpush1.bf16.msra.mxu0 0
      %2378 = vmatprep.subr.bf16.mxu0 0
      %2379 = vmatpush1.bf16.msra.mxu0 0
      %2380 = vmatprep.subr.bf16.mxu0 0
      %2381 = vmatpush1.bf16.msra.mxu0 0
      %2382 = vmatprep.subr.bf16.mxu0 0
      %2383 = vmatpush1.bf16.msra.mxu0 0
      %2384 = vmatprep.subr.bf16.mxu0 0
      %2385 = vmatpush1.bf16.msra.mxu0 0
      %2386 = vmatprep.subr.bf16.mxu0 0
      %2387 = vmatpush1.bf16.msra.mxu0 0
      %2388 = vmatprep.subr.bf16.mxu0 0
      %2389 = vmatpush1.bf16.msra.mxu0 0
      %2390 = vmatprep.subr.bf16.mxu0 0
      %2391 = vmatpush1.bf16.msra.mxu0 0
      %2392 = vmatprep.subr.bf16.mxu0 0
      %2393 = vmatpush1.bf16.msra.mxu0 0
      %2394 = vmatprep.mubr.bf16.mxu0 0
      %2395 = vmatmul.mubr.bf16.gmra.mrb[0].mxu0 %v2182
      %v2396 = vpop.f32.mrb[0].mxu0
      %v2397 = vadd.f32 0.0, %v2396
      %v2398 = vpop.f32.mrb[0].mxu0
      %v2399 = vpop.f32.mrb[0].mxu0
      %v2400 = vadd.f32 0.0, %v2399
      %v2401 = vpop.f32.mrb[0].mxu0
      %2402 = vmatprep.mubr.bf16.mxu0 0
      %2403 = vmatmul.mubr.bf16.gmra.mrb[0].mxu0 %v2185
      %v2404 = vpop.f32.mrb[0].mxu0
      %v2405 = vadd.f32 0.0, %v2404
      %v2406 = vpop.f32.mrb[0].mxu0
      %v2407 = vpop.f32.mrb[0].mxu0
      %v2408 = vadd.f32 0.0, %v2407
      %v2409 = vpop.f32.mrb[0].mxu0
      %2410 = vmatprep.mubr.bf16.mxu0 0
      %2411 = vmatmul.mubr.bf16.gmra.mrb[0].mxu0 %v2188
      %v2412 = vpop.f32.mrb[0].mxu0
      %v2413 = vadd.f32 0.0, %v2412
      %v2414 = vpop.f32.mrb[0].mxu0
      %v2415 = vpop.f32.mrb[0].mxu0
      %v2416 = vadd.f32 0.0, %v2415
      %v2417 = vpop.f32.mrb[0].mxu0
      %2418 = vmatprep.mubr.bf16.mxu0 0
      %2419 = vmatmul.mubr.bf16.gmra.mrb[0].mxu0 %v2191
      %v2420 = vpop.f32.mrb[0].mxu0
      %v2421 = vadd.f32 0.0, %v2420
      %v2422 = vpop.f32.mrb[0].mxu0
      %v2423 = vpop.f32.mrb[0].mxu0
      %v2424 = vadd.f32 0.0, %v2423
      %v2425 = vpop.f32.mrb[0].mxu0
      %2426 = vmatprep.mubr.bf16.mxu0 0
      %2427 = vmatmul.mubr.bf16.gmra.mrb[0].mxu0 %v2194
      %v2428 = vpop.f32.mrb[0].mxu0
      %v2429 = vadd.f32 0.0, %v2428
      %v2430 = vpop.f32.mrb[0].mxu0
      %v2431 = vpop.f32.mrb[0].mxu0
      %v2432 = vadd.f32 0.0, %v2431
      %v2433 = vpop.f32.mrb[0].mxu0
      %2434 = vmatprep.mubr.bf16.mxu0 0
      %2435 = vmatmul.mubr.bf16.gmra.mrb[0].mxu0 %v2197
      %v2436 = vpop.f32.mrb[0].mxu0
      %v2437 = vadd.f32 0.0, %v2436
      %v2438 = vpop.f32.mrb[0].mxu0
      %v2439 = vpop.f32.mrb[0].mxu0
      %v2440 = vadd.f32 0.0, %v2439
      %v2441 = vpop.f32.mrb[0].mxu0
      %2442 = vmatprep.mubr.bf16.mxu0 0
      %2443 = vmatmul.mubr.bf16.gmra.mrb[0].mxu0 %v2200
      %v2444 = vpop.f32.mrb[0].mxu0
      %v2445 = vadd.f32 0.0, %v2444
      %v2446 = vpop.f32.mrb[0].mxu0
      %v2447 = vpop.f32.mrb[0].mxu0
      %v2448 = vadd.f32 0.0, %v2447
      %v2449 = vpop.f32.mrb[0].mxu0
      %2450 = vmatprep.mubr.bf16.mxu0 0
      %2451 = vmatmul.mubr.bf16.gmra.mrb[0].mxu0 %v2203
      %v2452 = vpop.f32.mrb[0].mxu0
      %v2453 = vadd.f32 0.0, %v2452
      %v2454 = vpop.f32.mrb[0].mxu0
      %v2455 = vpop.f32.mrb[0].mxu0
      %v2456 = vadd.f32 0.0, %v2455
      %v2457 = vpop.f32.mrb[0].mxu0
      %2458 = vmatprep.mubr.bf16.mxu0 0
      %2459 = vmatmul.mubr.bf16.gmra.mrb[0].mxu0 %v2206
      %v2460 = vpop.f32.mrb[0].mxu0
      %v2461 = vadd.f32 0.0, %v2460
      %v2462 = vpop.f32.mrb[0].mxu0
      %v2463 = vpop.f32.mrb[0].mxu0
      %v2464 = vadd.f32 0.0, %v2463
      %v2465 = vpop.f32.mrb[0].mxu0
      %2466 = vmatprep.mubr.bf16.mxu0 0
      %2467 = vmatmul.mubr.bf16.gmra.mrb[0].mxu0 %v2209
      %v2468 = vpop.f32.mrb[0].mxu0
      %v2469 = vadd.f32 0.0, %v2468
      %v2470 = vpop.f32.mrb[0].mxu0
      %v2471 = vpop.f32.mrb[0].mxu0
      %v2472 = vadd.f32 0.0, %v2471
      %v2473 = vpop.f32.mrb[0].mxu0
      %2474 = vmatprep.mubr.bf16.mxu0 0
      %2475 = vmatmul.mubr.bf16.gmra.mrb[0].mxu0 %v2212
      %v2476 = vpop.f32.mrb[0].mxu0
      %v2477 = vadd.f32 0.0, %v2476
      %v2478 = vpop.f32.mrb[0].mxu0
      %v2479 = vpop.f32.mrb[0].mxu0
      %v2480 = vadd.f32 0.0, %v2479
      %v2481 = vpop.f32.mrb[0].mxu0
      %2482 = vmatprep.mubr.bf16.mxu0 0
      %2483 = vmatmul.mubr.bf16.gmra.mrb[0].mxu0 %v2215
      %v2484 = vpop.f32.mrb[0].mxu0
      %v2485 = vadd.f32 0.0, %v2484
      %v2486 = vpop.f32.mrb[0].mxu0
      %v2487 = vpop.f32.mrb[0].mxu0
      %v2488 = vadd.f32 0.0, %v2487
      %v2489 = vpop.f32.mrb[0].mxu0
      %2490 = vdwg.mxu0
      %v2491 = vadd.f32 %v1734, %v2397
      %v2492 = vadd.f32 %v1737, %v2400
      %v2493 = vadd.f32 %v1742, %v2405
      %v2494 = vadd.f32 %v1745, %v2408
      %v2495 = vadd.f32 %v1750, %v2413
      %v2496 = vadd.f32 %v1753, %v2416
      %v2497 = vadd.f32 %v1758, %v2421
      %v2498 = vadd.f32 %v1761, %v2424
      %v2499 = vadd.f32 %v1766, %v2429
      %v2500 = vadd.f32 %v1769, %v2432
      %v2501 = vadd.f32 %v1774, %v2437
      %v2502 = vadd.f32 %v1777, %v2440
      %v2503 = vadd.f32 %v1782, %v2445
      %v2504 = vadd.f32 %v1785, %v2448
      %v2505 = vadd.f32 %v1790, %v2453
      %v2506 = vadd.f32 %v1793, %v2456
      %v2507 = vadd.f32 %v1798, %v2461
      %v2508 = vadd.f32 %v1801, %v2464
      %v2509 = vadd.f32 %v1806, %v2469
      %v2510 = vadd.f32 %v1809, %v2472
      %v2511 = vadd.f32 %v1814, %v2477
      %v2512 = vadd.f32 %v1817, %v2480
      %v2513 = vadd.f32 %v1822, %v2485
      %v2514 = vadd.f32 %v1825, %v2488
      %s2515 = scalar_lea.vmem %s1, 16
      %v2516 = vld [vmem:[%s2515] sm:$0x3]
      %v2518 = vsel %vm1217, %v2516, 0
      %2520 = vmatprep.subr.bf16.mxu0 0
      %2521 = vmatpush1.bf16.msra.mxu0 %v2518
      %2522 = vmatprep.subr.bf16.mxu0 0
      %2523 = vmatpush1.bf16.msra.mxu0 0
      %2524 = vmatprep.subr.bf16.mxu0 0
      %2525 = vmatpush1.bf16.msra.mxu0 0
      %2526 = vmatprep.subr.bf16.mxu0 0
      %2527 = vmatpush1.bf16.msra.mxu0 0
      %2528 = vmatprep.subr.bf16.mxu0 0
      %2529 = vmatpush1.bf16.msra.mxu0 0
      %2530 = vmatprep.subr.bf16.mxu0 0
      %2531 = vmatpush1.bf16.msra.mxu0 0
      %2532 = vmatprep.subr.bf16.mxu0 0
      %2533 = vmatpush1.bf16.msra.mxu0 0
      %2534 = vmatprep.subr.bf16.mxu0 0
      %2535 = vmatpush1.bf16.msra.mxu0 0
      %2536 = vmatprep.subr.bf16.mxu0 0
      %2537 = vmatpush1.bf16.msra.mxu0 0
      %2538 = vmatprep.subr.bf16.mxu0 0
      %2539 = vmatpush1.bf16.msra.mxu0 0
      %2540 = vmatprep.subr.bf16.mxu0 0
      %2541 = vmatpush1.bf16.msra.mxu0 0
      %2542 = vmatprep.subr.bf16.mxu0 0
      %2543 = vmatpush1.bf16.msra.mxu0 0
      %2544 = vmatprep.subr.bf16.mxu0 0
      %2545 = vmatpush1.bf16.msra.mxu0 0
      %2546 = vmatprep.subr.bf16.mxu0 0
      %2547 = vmatpush1.bf16.msra.mxu0 0
      %2548 = vmatprep.subr.bf16.mxu0 0
      %2549 = vmatpush1.bf16.msra.mxu0 0
      %2550 = vmatprep.subr.bf16.mxu0 0
      %2551 = vmatpush1.bf16.msra.mxu0 0
      %2552 = vmatprep.mubr.bf16.mxu0 0
      %2553 = vmatmul.mubr.bf16.gmra.mrb[0].mxu0 %v2182
      %v2554 = vpop.f32.mrb[0].mxu0
      %v2555 = vadd.f32 0.0, %v2554
      %v2556 = vpop.f32.mrb[0].mxu0
      %v2557 = vpop.f32.mrb[0].mxu0
      %v2558 = vadd.f32 0.0, %v2557
      %v2559 = vpop.f32.mrb[0].mxu0
      %2560 = vmatprep.mubr.bf16.mxu0 0
      %2561 = vmatmul.mubr.bf16.gmra.mrb[0].mxu0 %v2185
      %v2562 = vpop.f32.mrb[0].mxu0
      %v2563 = vadd.f32 0.0, %v2562
      %v2564 = vpop.f32.mrb[0].mxu0
      %v2565 = vpop.f32.mrb[0].mxu0
      %v2566 = vadd.f32 0.0, %v2565
      %v2567 = vpop.f32.mrb[0].mxu0
      %2568 = vmatprep.mubr.bf16.mxu0 0
      %2569 = vmatmul.mubr.bf16.gmra.mrb[0].mxu0 %v2188
      %v2570 = vpop.f32.mrb[0].mxu0
      %v2571 = vadd.f32 0.0, %v2570
      %v2572 = vpop.f32.mrb[0].mxu0
      %v2573 = vpop.f32.mrb[0].mxu0
      %v2574 = vadd.f32 0.0, %v2573
      %v2575 = vpop.f32.mrb[0].mxu0
      %2576 = vmatprep.mubr.bf16.mxu0 0
      %2577 = vmatmul.mubr.bf16.gmra.mrb[0].mxu0 %v2191
      %v2578 = vpop.f32.mrb[0].mxu0
      %v2579 = vadd.f32 0.0, %v2578
      %v2580 = vpop.f32.mrb[0].mxu0
      %v2581 = vpop.f32.mrb[0].mxu0
      %v2582 = vadd.f32 0.0, %v2581
      %v2583 = vpop.f32.mrb[0].mxu0
      %2584 = vmatprep.mubr.bf16.mxu0 0
      %2585 = vmatmul.mubr.bf16.gmra.mrb[0].mxu0 %v2194
      %v2586 = vpop.f32.mrb[0].mxu0
      %v2587 = vadd.f32 0.0, %v2586
      %v2588 = vpop.f32.mrb[0].mxu0
      %v2589 = vpop.f32.mrb[0].mxu0
      %v2590 = vadd.f32 0.0, %v2589
      %v2591 = vpop.f32.mrb[0].mxu0
      %2592 = vmatprep.mubr.bf16.mxu0 0
      %2593 = vmatmul.mubr.bf16.gmra.mrb[0].mxu0 %v2197
      %v2594 = vpop.f32.mrb[0].mxu0
      %v2595 = vadd.f32 0.0, %v2594
      %v2596 = vpop.f32.mrb[0].mxu0
      %v2597 = vpop.f32.mrb[0].mxu0
      %v2598 = vadd.f32 0.0, %v2597
      %v2599 = vpop.f32.mrb[0].mxu0
      %2600 = vmatprep.mubr.bf16.mxu0 0
      %2601 = vmatmul.mubr.bf16.gmra.mrb[0].mxu0 %v2200
      %v2602 = vpop.f32.mrb[0].mxu0
      %v2603 = vadd.f32 0.0, %v2602
      %v2604 = vpop.f32.mrb[0].mxu0
      %v2605 = vpop.f32.mrb[0].mxu0
      %v2606 = vadd.f32 0.0, %v2605
      %v2607 = vpop.f32.mrb[0].mxu0
      %2608 = vmatprep.mubr.bf16.mxu0 0
      %2609 = vmatmul.mubr.bf16.gmra.mrb[0].mxu0 %v2203
      %v2610 = vpop.f32.mrb[0].mxu0
      %v2611 = vadd.f32 0.0, %v2610
      %v2612 = vpop.f32.mrb[0].mxu0
      %v2613 = vpop.f32.mrb[0].mxu0
      %v2614 = vadd.f32 0.0, %v2613
      %v2615 = vpop.f32.mrb[0].mxu0
      %2616 = vmatprep.mubr.bf16.mxu0 0
      %2617 = vmatmul.mubr.bf16.gmra.mrb[0].mxu0 %v2206
      %v2618 = vpop.f32.mrb[0].mxu0
      %v2619 = vadd.f32 0.0, %v2618
      %v2620 = vpop.f32.mrb[0].mxu0
      %v2621 = vpop.f32.mrb[0].mxu0
      %v2622 = vadd.f32 0.0, %v2621
      %v2623 = vpop.f32.mrb[0].mxu0
      %2624 = vmatprep.mubr.bf16.mxu0 0
      %2625 = vmatmul.mubr.bf16.gmra.mrb[0].mxu0 %v2209
      %v2626 = vpop.f32.mrb[0].mxu0
      %v2627 = vadd.f32 0.0, %v2626
      %v2628 = vpop.f32.mrb[0].mxu0
      %v2629 = vpop.f32.mrb[0].mxu0
      %v2630 = vadd.f32 0.0, %v2629
      %v2631 = vpop.f32.mrb[0].mxu0
      %2632 = vmatprep.mubr.bf16.mxu0 0
      %2633 = vmatmul.mubr.bf16.gmra.mrb[0].mxu0 %v2212
      %v2634 = vpop.f32.mrb[0].mxu0
      %v2635 = vadd.f32 0.0, %v2634
      %v2636 = vpop.f32.mrb[0].mxu0
      %v2637 = vpop.f32.mrb[0].mxu0
      %v2638 = vadd.f32 0.0, %v2637
      %v2639 = vpop.f32.mrb[0].mxu0
      %2640 = vmatprep.mubr.bf16.mxu0 0
      %2641 = vmatmul.mubr.bf16.gmra.mrb[0].mxu0 %v2215
      %v2642 = vpop.f32.mrb[0].mxu0
      %v2643 = vadd.f32 0.0, %v2642
      %v2644 = vpop.f32.mrb[0].mxu0
      %v2645 = vpop.f32.mrb[0].mxu0
      %v2646 = vadd.f32 0.0, %v2645
      %v2647 = vpop.f32.mrb[0].mxu0
      %2648 = vdwg.mxu0
      %v2649 = vadd.f32 %v2000, %v2555
      %v2650 = vadd.f32 %v2003, %v2558
      %v2651 = vadd.f32 %v2008, %v2563
      %v2652 = vadd.f32 %v2011, %v2566
      %v2653 = vadd.f32 %v2016, %v2571
      %v2654 = vadd.f32 %v2019, %v2574
      %v2655 = vadd.f32 %v2024, %v2579
      %v2656 = vadd.f32 %v2027, %v2582
      %v2657 = vadd.f32 %v2032, %v2587
      %v2658 = vadd.f32 %v2035, %v2590
      %v2659 = vadd.f32 %v2040, %v2595
      %v2660 = vadd.f32 %v2043, %v2598
      %v2661 = vadd.f32 %v2048, %v2603
      %v2662 = vadd.f32 %v2051, %v2606
      %v2663 = vadd.f32 %v2056, %v2611
      %v2664 = vadd.f32 %v2059, %v2614
      %v2665 = vadd.f32 %v2064, %v2619
      %v2666 = vadd.f32 %v2067, %v2622
      %v2667 = vadd.f32 %v2072, %v2627
      %v2668 = vadd.f32 %v2075, %v2630
      %v2669 = vadd.f32 %v2080, %v2635
      %v2670 = vadd.f32 %v2083, %v2638
      %v2671 = vadd.f32 %v2088, %v2643
      %v2672 = vadd.f32 %v2091, %v2646
      %vm2697 = vcmask 1046528
      %v2698 = vrot.slane %v2491, 1
      %v2699 = vrot.slane %v2492, 1
      %v2700 = vsel %vm2697, %v2698, %v2699
      %v2701 = vrot.slane %v2493, 1
      %v2702 = vsel %vm2697, %v2699, %v2701
      %v2703 = vrot.slane %v2494, 1
      %v2704 = vrot.slane %v2495, 1
      %v2705 = vsel %vm2697, %v2703, %v2704
      %v2706 = vrot.slane %v2496, 1
      %v2707 = vsel %vm2697, %v2704, %v2706
      %v2708 = vrot.slane %v2497, 1
      %v2709 = vrot.slane %v2498, 1
      %v2710 = vsel %vm2697, %v2708, %v2709
      %v2711 = vrot.slane %v2499, 1
      %v2712 = vsel %vm2697, %v2709, %v2711
      %v2713 = vrot.slane %v2500, 1
      %v2714 = vrot.slane %v2501, 1
      %v2715 = vsel %vm2697, %v2713, %v2714
      %v2716 = vrot.slane %v2502, 1
      %v2717 = vsel %vm2697, %v2714, %v2716
      %v2718 = vrot.slane %v2503, 1
      %v2719 = vrot.slane %v2504, 1
      %v2720 = vsel %vm2697, %v2718, %v2719
      %v2721 = vrot.slane %v2505, 1
      %v2722 = vsel %vm2697, %v2719, %v2721
      %v2723 = vrot.slane %v2506, 1
      %v2724 = vrot.slane %v2507, 1
      %v2725 = vsel %vm2697, %v2723, %v2724
      %v2726 = vrot.slane %v2508, 1
      %v2727 = vsel %vm2697, %v2724, %v2726
      %v2728 = vrot.slane %v2509, 1
      %v2729 = vrot.slane %v2510, 1
      %v2730 = vsel %vm2697, %v2728, %v2729
      %v2731 = vrot.slane %v2511, 1
      %v2732 = vsel %vm2697, %v2729, %v2731
      %v2733 = vrot.slane %v2512, 1
      %v2734 = vrot.slane %v2513, 1
      %v2735 = vsel %vm2697, %v2733, %v2734
      %v2736 = vrot.slane %v2514, 1
      %v2737 = vsel %vm2697, %v2734, %v2736
      %v2754 = vadd.f32 %v2341, %v2700
      %v2755 = vadd.f32 %v2342, %v2702
      %v2756 = vadd.f32 %v2343, %v2705
      %v2757 = vadd.f32 %v2344, %v2707
      %v2758 = vadd.f32 %v2345, %v2710
      %v2759 = vadd.f32 %v2346, %v2712
      %v2760 = vadd.f32 %v2347, %v2715
      %v2761 = vadd.f32 %v2348, %v2717
      %v2762 = vadd.f32 %v2349, %v2720
      %v2763 = vadd.f32 %v2350, %v2722
      %v2764 = vadd.f32 %v2351, %v2725
      %v2765 = vadd.f32 %v2352, %v2727
      %v2766 = vadd.f32 %v2353, %v2730
      %v2767 = vadd.f32 %v2354, %v2732
      %v2768 = vadd.f32 %v2355, %v2735
      %v2769 = vadd.f32 %v2356, %v2737
      %vm2794 = vcmask 1045504
      %v2795 = vrot.slane %v2649, 2
      %v2796 = vrot.slane %v2650, 2
      %v2797 = vsel %vm2794, %v2795, %v2796
      %v2798 = vrot.slane %v2651, 2
      %v2799 = vsel %vm2794, %v2796, %v2798
      %v2800 = vrot.slane %v2652, 2
      %v2801 = vrot.slane %v2653, 2
      %v2802 = vsel %vm2794, %v2800, %v2801
      %v2803 = vrot.slane %v2654, 2
      %v2804 = vsel %vm2794, %v2801, %v2803
      %v2805 = vrot.slane %v2655, 2
      %v2806 = vrot.slane %v2656, 2
      %v2807 = vsel %vm2794, %v2805, %v2806
      %v2808 = vrot.slane %v2657, 2
      %v2809 = vsel %vm2794, %v2806, %v2808
      %v2810 = vrot.slane %v2658, 2
      %v2811 = vrot.slane %v2659, 2
      %v2812 = vsel %vm2794, %v2810, %v2811
      %v2813 = vrot.slane %v2660, 2
      %v2814 = vsel %vm2794, %v2811, %v2813
      %v2815 = vrot.slane %v2661, 2
      %v2816 = vrot.slane %v2662, 2
      %v2817 = vsel %vm2794, %v2815, %v2816
      %v2818 = vrot.slane %v2663, 2
      %v2819 = vsel %vm2794, %v2816, %v2818
      %v2820 = vrot.slane %v2664, 2
      %v2821 = vrot.slane %v2665, 2
      %v2822 = vsel %vm2794, %v2820, %v2821
      %v2823 = vrot.slane %v2666, 2
      %v2824 = vsel %vm2794, %v2821, %v2823
      %v2825 = vrot.slane %v2667, 2
      %v2826 = vrot.slane %v2668, 2
      %v2827 = vsel %vm2794, %v2825, %v2826
      %v2828 = vrot.slane %v2669, 2
      %v2829 = vsel %vm2794, %v2826, %v2828
      %v2830 = vrot.slane %v2670, 2
      %v2831 = vrot.slane %v2671, 2
      %v2832 = vsel %vm2794, %v2830, %v2831
      %v2833 = vrot.slane %v2672, 2
      %v2834 = vsel %vm2794, %v2831, %v2833
      %v2851 = vadd.f32 %v2754, %v2797
      %v2852 = vadd.f32 %v2755, %v2799
      %v2853 = vadd.f32 %v2756, %v2802
      %v2854 = vadd.f32 %v2757, %v2804
      %v2855 = vadd.f32 %v2758, %v2807
      %v2856 = vadd.f32 %v2759, %v2809
      %v2857 = vadd.f32 %v2760, %v2812
      %v2858 = vadd.f32 %v2761, %v2814
      %v2859 = vadd.f32 %v2762, %v2817
      %v2860 = vadd.f32 %v2763, %v2819
      %v2861 = vadd.f32 %v2764, %v2822
      %v2862 = vadd.f32 %v2765, %v2824
      %v2863 = vadd.f32 %v2766, %v2827
      %v2864 = vadd.f32 %v2767, %v2829
      %v2865 = vadd.f32 %v2768, %v2832
      %v2866 = vadd.f32 %v2769, %v2834
      %2867 = vst.msk [vmem:[#allocation3] sm:$0xff] %vm1180, %v2851
      %2868 = vst.msk [vmem:[#allocation3 + $0x8] sm:$0xff] %vm1180, %v2852
      %2869 = vst.msk [vmem:[#allocation3 + $0x10] sm:$0xff] %vm1180, %v2853
      %2870 = vst.msk [vmem:[#allocation3 + $0x18] sm:$0xff] %vm1180, %v2854
      %2871 = vst.msk [vmem:[#allocation3 + $0x20] sm:$0xff] %vm1180, %v2855
      %2872 = vst.msk [vmem:[#allocation3 + $0x28] sm:$0xff] %vm1180, %v2856
      %2873 = vst.msk [vmem:[#allocation3 + $0x30] sm:$0xff] %vm1180, %v2857
      %2874 = vst.msk [vmem:[#allocation3 + $0x38] sm:$0xff] %vm1180, %v2858
      %2875 = vst.msk [vmem:[#allocation3 + $0x40] sm:$0xff] %vm1180, %v2859
      %2876 = vst.msk [vmem:[#allocation3 + $0x48] sm:$0xff] %vm1180, %v2860
      %2877 = vst.msk [vmem:[#allocation3 + $0x50] sm:$0xff] %vm1180, %v2861
      %2878 = vst.msk [vmem:[#allocation3 + $0x58] sm:$0xff] %vm1180, %v2862
      %2879 = vst.msk [vmem:[#allocation3 + $0x60] sm:$0xff] %vm1180, %v2863
      %2880 = vst.msk [vmem:[#allocation3 + $0x68] sm:$0xff] %vm1180, %v2864
      %2881 = vst.msk [vmem:[#allocation3 + $0x70] sm:$0xff] %vm1180, %v2865
      %2882 = vst.msk [vmem:[#allocation3 + $0x78] sm:$0xff] %vm1180, %v2866
      %v2883 = vsel %vm1180, %v2851, 0.0
      %v2884 = vsel %vm1180, %v2853, 0.0
      %v2885 = vadd.f32 %v2883, %v2884
      %v2886 = vsel %vm1180, %v2855, 0.0
      %v2887 = vadd.f32 %v2885, %v2886
      %v2888 = vsel %vm1180, %v2857, 0.0
      %v2889 = vadd.f32 %v2887, %v2888
      %v2890 = vsel %vm1180, %v2859, 0.0
      %v2891 = vadd.f32 %v2889, %v2890
      %v2892 = vsel %vm1180, %v2861, 0.0
      %v2893 = vadd.f32 %v2891, %v2892
      %v2894 = vsel %vm1180, %v2863, 0.0
      %v2895 = vadd.f32 %v2893, %v2894
      %v2896 = vsel %vm1180, %v2865, 0.0
      %v2897 = vadd.f32 %v2895, %v2896
      %v2898 = vsel %vm1180, %v2852, 0.0
      %v2899 = vsel %vm1180, %v2854, 0.0
      %v2900 = vadd.f32 %v2898, %v2899
      %v2901 = vsel %vm1180, %v2856, 0.0
      %v2902 = vadd.f32 %v2900, %v2901
      %v2903 = vsel %vm1180, %v2858, 0.0
      %v2904 = vadd.f32 %v2902, %v2903
      %v2905 = vsel %vm1180, %v2860, 0.0
      %v2906 = vadd.f32 %v2904, %v2905
      %v2907 = vsel %vm1180, %v2862, 0.0
      %v2908 = vadd.f32 %v2906, %v2907
      %v2909 = vsel %vm1180, %v2864, 0.0
      %v2910 = vadd.f32 %v2908, %v2909
      %v2911 = vsel %vm1180, %v2866, 0.0
      %v2912 = vadd.f32 %v2910, %v2911
      %v2913 = vsel %vm1180, %v2897, 0.0
      %v2914 = vsel %vm1180, %v2912, 0.0
      %v2915 = vadd.f32 %v2913, %v2914
      %v2916 = vrot.slane %v2915, 4
      %v2917 = vadd.f32 %v2915, %v2916
      %v2918 = vrot.slane %v2917, 2
      %v2919 = vadd.f32 %v2917, %v2918
      %v2920 = vrot.slane %v2919, 1
      %v2921 = vadd.f32 %v2919, %v2920
      %v2922 = vadd.f32 %v2921, 0.0
      %v2923 = vmul.f32 %v2851, %v2851
      %v2924 = vmul.f32 %v2852, %v2852
      %v2925 = vmul.f32 %v2853, %v2853
      %v2926 = vmul.f32 %v2854, %v2854
      %v2927 = vmul.f32 %v2855, %v2855
      %v2928 = vmul.f32 %v2856, %v2856
      %v2929 = vmul.f32 %v2857, %v2857
      %v2930 = vmul.f32 %v2858, %v2858
      %v2931 = vmul.f32 %v2859, %v2859
      %v2932 = vmul.f32 %v2860, %v2860
      %v2933 = vmul.f32 %v2861, %v2861
      %v2934 = vmul.f32 %v2862, %v2862
      %v2935 = vmul.f32 %v2863, %v2863
      %v2936 = vmul.f32 %v2864, %v2864
      %v2937 = vmul.f32 %v2865, %v2865
      %v2938 = vmul.f32 %v2866, %v2866
      %v2939 = vsel %vm1180, %v2923, 0.0
      %v2940 = vsel %vm1180, %v2925, 0.0
      %v2941 = vadd.f32 %v2939, %v2940
      %v2942 = vsel %vm1180, %v2927, 0.0
      %v2943 = vadd.f32 %v2941, %v2942
      %v2944 = vsel %vm1180, %v2929, 0.0
      %v2945 = vadd.f32 %v2943, %v2944
      %v2946 = vsel %vm1180, %v2931, 0.0
      %v2947 = vadd.f32 %v2945, %v2946
      %v2948 = vsel %vm1180, %v2933, 0.0
      %v2949 = vadd.f32 %v2947, %v2948
      %v2950 = vsel %vm1180, %v2935, 0.0
      %v2951 = vadd.f32 %v2949, %v2950
      %v2952 = vsel %vm1180, %v2937, 0.0
      %v2953 = vadd.f32 %v2951, %v2952
      %v2954 = vsel %vm1180, %v2924, 0.0
      %v2955 = vsel %vm1180, %v2926, 0.0
      %v2956 = vadd.f32 %v2954, %v2955
      %v2957 = vsel %vm1180, %v2928, 0.0
      %v2958 = vadd.f32 %v2956, %v2957
      %v2959 = vsel %vm1180, %v2930, 0.0
      %v2960 = vadd.f32 %v2958, %v2959
      %v2961 = vsel %vm1180, %v2932, 0.0
      %v2962 = vadd.f32 %v2960, %v2961
      %v2963 = vsel %vm1180, %v2934, 0.0
      %v2964 = vadd.f32 %v2962, %v2963
      %v2965 = vsel %vm1180, %v2936, 0.0
      %v2966 = vadd.f32 %v2964, %v2965
      %v2967 = vsel %vm1180, %v2938, 0.0
      %v2968 = vadd.f32 %v2966, %v2967
      %v2969 = vsel %vm1180, %v2953, 0.0
      %v2970 = vsel %vm1180, %v2968, 0.0
      %v2971 = vadd.f32 %v2969, %v2970
      %v2972 = vrot.slane %v2971, 4
      %v2973 = vadd.f32 %v2971, %v2972
      %v2974 = vrot.slane %v2973, 2
      %v2975 = vadd.f32 %v2973, %v2974
      %v2976 = vrot.slane %v2975, 1
      %v2977 = vadd.f32 %v2975, %v2976
      %v2978 = vadd.f32 %v2977, 0.0
      %s2979 = scalar_lea.vmem [#allocation2], 96
      %v2980 = vld [vmem:[%s2979] sm:$0xf]
      %v2981 = vld [vmem:[%s2979 + $0x4] sm:$0xf]
      %v2982 = vld [vmem:[%s2979 + $0x8] sm:$0xf]
      %v2983 = vld [vmem:[%s2979 + $0xc] sm:$0xf]
      %v2984 = vld [vmem:[%s2979 + $0x10] sm:$0xf]
      %v2985 = vld [vmem:[%s2979 + $0x14] sm:$0xf]
      %v2986 = vld [vmem:[%s2979 + $0x18] sm:$0xf]
      %v2987 = vld [vmem:[%s2979 + $0x1c] sm:$0xf]
      %v2988 = vld [vmem:[%s2979 + $0x20] sm:$0xf]
      %v2989 = vld [vmem:[%s2979 + $0x24] sm:$0xf]
      %v2990 = vld [vmem:[%s2979 + $0x28] sm:$0xf]
      %v2991 = vld [vmem:[%s2979 + $0x2c] sm:$0xf]
      %v2992 = vld [vmem:[%s2979 + $0x30] sm:$0xf]
      %v2993 = vld [vmem:[%s2979 + $0x34] sm:$0xf]
      %v2994 = vld [vmem:[%s2979 + $0x38] sm:$0xf]
      %v2995 = vld [vmem:[%s2979 + $0x3c] sm:$0xf]
      %v2996 = vld [vmem:[%s2979 + $0x40] sm:$0xf]
      %v2997 = vld [vmem:[%s2979 + $0x44] sm:$0xf]
      %v2998 = vld [vmem:[%s2979 + $0x48] sm:$0xf]
      %v2999 = vld [vmem:[%s2979 + $0x4c] sm:$0xf]
      %v3000 = vld [vmem:[%s2979 + $0x50] sm:$0xf]
      %v3001 = vld [vmem:[%s2979 + $0x54] sm:$0xf]
      %v3002 = vld [vmem:[%s2979 + $0x58] sm:$0xf]
      %v3003 = vld [vmem:[%s2979 + $0x5c] sm:$0xf]
      %v3004 = vld [vmem:[%s1] sm:$0x3]
      %v3005 = vld [vmem:[%s1090] sm:$0x3]
      %v3006 = vld [vmem:[%s1092] sm:$0x3]
      %s3007 = scalar_lea.vmem [#allocation2], 108
      %v3008 = vld [vmem:[%s3007] sm:$0xf]
      %v3009 = vld [vmem:[%s3007 + $0x4] sm:$0xf]
      %v3010 = vld [vmem:[%s3007 + $0x8] sm:$0xf]
      %v3011 = vld [vmem:[%s3007 + $0xc] sm:$0xf]
      %v3012 = vld [vmem:[%s3007 + $0x10] sm:$0xf]
      %v3013 = vld [vmem:[%s3007 + $0x14] sm:$0xf]
      %v3014 = vld [vmem:[%s3007 + $0x18] sm:$0xf]
      %v3015 = vld [vmem:[%s3007 + $0x1c] sm:$0xf]
      %v3016 = vld [vmem:[%s3007 + $0x20] sm:$0xf]
      %v3017 = vld [vmem:[%s3007 + $0x24] sm:$0xf]
      %v3018 = vld [vmem:[%s3007 + $0x28] sm:$0xf]
      %v3019 = vld [vmem:[%s3007 + $0x2c] sm:$0xf]
      %v3020 = vld [vmem:[%s3007 + $0x30] sm:$0xf]
      %v3021 = vld [vmem:[%s3007 + $0x34] sm:$0xf]
      %v3022 = vld [vmem:[%s3007 + $0x38] sm:$0xf]
      %v3023 = vld [vmem:[%s3007 + $0x3c] sm:$0xf]
      %v3024 = vld [vmem:[%s3007 + $0x40] sm:$0xf]
      %v3025 = vld [vmem:[%s3007 + $0x44] sm:$0xf]
      %v3026 = vld [vmem:[%s3007 + $0x48] sm:$0xf]
      %v3027 = vld [vmem:[%s3007 + $0x4c] sm:$0xf]
      %v3028 = vld [vmem:[%s3007 + $0x50] sm:$0xf]
      %v3029 = vld [vmem:[%s3007 + $0x54] sm:$0xf]
      %v3030 = vld [vmem:[%s3007 + $0x58] sm:$0xf]
      %v3031 = vld [vmem:[%s3007 + $0x5c] sm:$0xf]
      %v3032 = vld [vmem:[%s1118] sm:$0x3]
      %v3057 = vunpack.c.l.b16 %v3008
      %v3058 = vunpack.c.l.b16 %v3009
      %v3059 = vunpack.c.l.b16 %v3010
      %v3060 = vunpack.c.l.b16 %v3011
      %v3061 = vunpack.c.l.b16 %v3012
      %v3062 = vunpack.c.l.b16 %v3013
      %v3063 = vunpack.c.l.b16 %v3014
      %v3064 = vunpack.c.l.b16 %v3015
      %v3065 = vunpack.c.l.b16 %v3016
      %v3066 = vunpack.c.l.b16 %v3017
      %v3067 = vunpack.c.l.b16 %v3018
      %v3068 = vunpack.c.l.b16 %v3019
      %v3069 = vunpack.c.l.b16 %v3020
      %v3070 = vunpack.c.l.b16 %v3021
      %v3071 = vunpack.c.l.b16 %v3022
      %v3072 = vunpack.c.l.b16 %v3023
      %v3073 = vunpack.c.l.b16 %v3024
      %v3074 = vunpack.c.l.b16 %v3025
      %v3075 = vunpack.c.l.b16 %v3026
      %v3076 = vunpack.c.l.b16 %v3027
      %v3077 = vunpack.c.l.b16 %v3028
      %v3078 = vunpack.c.l.b16 %v3029
      %v3079 = vunpack.c.l.b16 %v3030
      %v3080 = vunpack.c.l.b16 %v3031
      %v3081 = vpack.c.b16 %v3058, %v3057
      %v3082 = vpack.c.b16 %v3060, %v3059
      %v3083 = vpack.c.b16 %v3062, %v3061
      %v3084 = vpack.c.b16 %v3064, %v3063
      %v3085 = vpack.c.b16 %v3066, %v3065
      %v3086 = vpack.c.b16 %v3068, %v3067
      %v3087 = vpack.c.b16 %v3070, %v3069
      %v3088 = vpack.c.b16 %v3072, %v3071
      %v3089 = vpack.c.b16 %v3074, %v3073
      %v3090 = vpack.c.b16 %v3076, %v3075
      %v3091 = vpack.c.b16 %v3078, %v3077
      %v3092 = vpack.c.b16 %v3080, %v3079
      %v3094 = vsel %vm1180, %v3081, 0
      %v3097 = vsel %vm1180, %v3082, 0
      %v3100 = vsel %vm1180, %v3083, 0
      %v3103 = vsel %vm1180, %v3084, 0
      %v3106 = vsel %vm1180, %v3085, 0
      %v3109 = vsel %vm1180, %v3086, 0
      %v3112 = vsel %vm1180, %v3087, 0
      %v3115 = vsel %vm1180, %v3088, 0
      %v3118 = vsel %vm1180, %v3089, 0
      %v3121 = vsel %vm1180, %v3090, 0
      %v3124 = vsel %vm1180, %v3091, 0
      %v3127 = vsel %vm1180, %v3092, 0
      %v3130 = vsel %vm1217, %v3032, 0
      %3132 = vmatprep.subr.bf16.mxu0 0
      %3133 = vmatpush1.bf16.msra.mxu0 %v3130
      %3134 = vmatprep.subr.bf16.mxu0 0
      %3135 = vmatpush1.bf16.msra.mxu0 0
      %3136 = vmatprep.subr.bf16.mxu0 0
      %3137 = vmatpush1.bf16.msra.mxu0 0
      %3138 = vmatprep.subr.bf16.mxu0 0
      %3139 = vmatpush1.bf16.msra.mxu0 0
      %3140 = vmatprep.subr.bf16.mxu0 0
      %3141 = vmatpush1.bf16.msra.mxu0 0
      %3142 = vmatprep.subr.bf16.mxu0 0
      %3143 = vmatpush1.bf16.msra.mxu0 0
      %3144 = vmatprep.subr.bf16.mxu0 0
      %3145 = vmatpush1.bf16.msra.mxu0 0
      %3146 = vmatprep.subr.bf16.mxu0 0
      %3147 = vmatpush1.bf16.msra.mxu0 0
      %3148 = vmatprep.subr.bf16.mxu0 0
      %3149 = vmatpush1.bf16.msra.mxu0 0
      %3150 = vmatprep.subr.bf16.mxu0 0
      %3151 = vmatpush1.bf16.msra.mxu0 0
      %3152 = vmatprep.subr.bf16.mxu0 0
      %3153 = vmatpush1.bf16.msra.mxu0 0
      %3154 = vmatprep.subr.bf16.mxu0 0
      %3155 = vmatpush1.bf16.msra.mxu0 0
      %3156 = vmatprep.subr.bf16.mxu0 0
      %3157 = vmatpush1.bf16.msra.mxu0 0
      %3158 = vmatprep.subr.bf16.mxu0 0
      %3159 = vmatpush1.bf16.msra.mxu0 0
      %3160 = vmatprep.subr.bf16.mxu0 0
      %3161 = vmatpush1.bf16.msra.mxu0 0
      %3162 = vmatprep.subr.bf16.mxu0 0
      %3163 = vmatpush1.bf16.msra.mxu0 0
      %3164 = vmatprep.mubr.bf16.mxu0 0
      %3165 = vmatmul.mubr.bf16.gmra.mrb[0].mxu0 %v3094
      %v3166 = vpop.f32.mrb[0].mxu0
      %v3167 = vadd.f32 0.0, %v3166
      %v3168 = vpop.f32.mrb[0].mxu0
      %v3169 = vpop.f32.mrb[0].mxu0
      %v3170 = vadd.f32 0.0, %v3169
      %v3171 = vpop.f32.mrb[0].mxu0
      %3172 = vmatprep.mubr.bf16.mxu0 0
      %3173 = vmatmul.mubr.bf16.gmra.mrb[0].mxu0 %v3097
      %v3174 = vpop.f32.mrb[0].mxu0
      %v3175 = vpop.f32.mrb[0].mxu0
      %v3176 = vpop.f32.mrb[0].mxu0
      %v3177 = vadd.f32 0.0, %v3176
      %v3178 = vpop.f32.mrb[0].mxu0
      %3179 = vmatprep.mubr.bf16.mxu0 0
      %3180 = vmatmul.mubr.bf16.gmra.mrb[0].mxu0 %v3100
      %v3181 = vpop.f32.mrb[0].mxu0
      %v3182 = vadd.f32 0.0, %v3181
      %v3183 = vpop.f32.mrb[0].mxu0
      %v3184 = vpop.f32.mrb[0].mxu0
      %v3185 = vpop.f32.mrb[0].mxu0
      %3186 = vmatprep.mubr.bf16.mxu0 0
      %3187 = vmatmul.mubr.bf16.gmra.mrb[0].mxu0 %v3103
      %v3188 = vpop.f32.mrb[0].mxu0
      %v3189 = vadd.f32 0.0, %v3188
      %v3190 = vpop.f32.mrb[0].mxu0
      %v3191 = vpop.f32.mrb[0].mxu0
      %v3192 = vadd.f32 0.0, %v3191
      %v3193 = vpop.f32.mrb[0].mxu0
      %3194 = vmatprep.mubr.bf16.mxu0 0
      %3195 = vmatmul.mubr.bf16.gmra.mrb[0].mxu0 %v3106
      %v3196 = vpop.f32.mrb[0].mxu0
      %v3197 = vpop.f32.mrb[0].mxu0
      %v3198 = vpop.f32.mrb[0].mxu0
      %v3199 = vadd.f32 0.0, %v3198
      %v3200 = vpop.f32.mrb[0].mxu0
      %3201 = vmatprep.mubr.bf16.mxu0 0
      %3202 = vmatmul.mubr.bf16.gmra.mrb[0].mxu0 %v3109
      %v3203 = vpop.f32.mrb[0].mxu0
      %v3204 = vadd.f32 0.0, %v3203
      %v3205 = vpop.f32.mrb[0].mxu0
      %v3206 = vpop.f32.mrb[0].mxu0
      %v3207 = vpop.f32.mrb[0].mxu0
      %3208 = vmatprep.mubr.bf16.mxu0 0
      %3209 = vmatmul.mubr.bf16.gmra.mrb[0].mxu0 %v3112
      %v3210 = vpop.f32.mrb[0].mxu0
      %v3211 = vadd.f32 0.0, %v3210
      %v3212 = vpop.f32.mrb[0].mxu0
      %v3213 = vpop.f32.mrb[0].mxu0
      %v3214 = vadd.f32 0.0, %v3213
      %v3215 = vpop.f32.mrb[0].mxu0
      %3216 = vmatprep.mubr.bf16.mxu0 0
      %3217 = vmatmul.mubr.bf16.gmra.mrb[0].mxu0 %v3115
      %v3218 = vpop.f32.mrb[0].mxu0
      %v3219 = vpop.f32.mrb[0].mxu0
      %v3220 = vpop.f32.mrb[0].mxu0
      %v3221 = vadd.f32 0.0, %v3220
      %v3222 = vpop.f32.mrb[0].mxu0
      %3223 = vmatprep.mubr.bf16.mxu0 0
      %3224 = vmatmul.mubr.bf16.gmra.mrb[0].mxu0 %v3118
      %v3225 = vpop.f32.mrb[0].mxu0
      %v3226 = vadd.f32 0.0, %v3225
      %v3227 = vpop.f32.mrb[0].mxu0
      %v3228 = vpop.f32.mrb[0].mxu0
      %v3229 = vpop.f32.mrb[0].mxu0
      %3230 = vmatprep.mubr.bf16.mxu0 0
      %3231 = vmatmul.mubr.bf16.gmra.mrb[0].mxu0 %v3121
      %v3232 = vpop.f32.mrb[0].mxu0
      %v3233 = vadd.f32 0.0, %v3232
      %v3234 = vpop.f32.mrb[0].mxu0
      %v3235 = vpop.f32.mrb[0].mxu0
      %v3236 = vadd.f32 0.0, %v3235
      %v3237 = vpop.f32.mrb[0].mxu0
      %3238 = vmatprep.mubr.bf16.mxu0 0
      %3239 = vmatmul.mubr.bf16.gmra.mrb[0].mxu0 %v3124
      %v3240 = vpop.f32.mrb[0].mxu0
      %v3241 = vpop.f32.mrb[0].mxu0
      %v3242 = vpop.f32.mrb[0].mxu0
      %v3243 = vadd.f32 0.0, %v3242
      %v3244 = vpop.f32.mrb[0].mxu0
      %3245 = vmatprep.mubr.bf16.mxu0 0
      %3246 = vmatmul.mubr.bf16.gmra.mrb[0].mxu0 %v3127
      %v3247 = vpop.f32.mrb[0].mxu0
      %v3248 = vadd.f32 0.0, %v3247
      %v3249 = vpop.f32.mrb[0].mxu0
      %v3250 = vpop.f32.mrb[0].mxu0
      %v3251 = vpop.f32.mrb[0].mxu0
      %3252 = vdwg.mxu0
      %v3277 = vunpack.c.l.b16 %v2980
      %v3278 = vunpack.c.l.b16 %v2981
      %v3279 = vunpack.c.l.b16 %v2982
      %v3280 = vunpack.c.l.b16 %v2983
      %v3281 = vunpack.c.l.b16 %v2984
      %v3282 = vunpack.c.l.b16 %v2985
      %v3283 = vunpack.c.l.b16 %v2986
      %v3284 = vunpack.c.l.b16 %v2987
      %v3285 = vunpack.c.l.b16 %v2988
      %v3286 = vunpack.c.l.b16 %v2989
      %v3287 = vunpack.c.l.b16 %v2990
      %v3288 = vunpack.c.l.b16 %v2991
      %v3289 = vunpack.c.l.b16 %v2992
      %v3290 = vunpack.c.l.b16 %v2993
      %v3291 = vunpack.c.l.b16 %v2994
      %v3292 = vunpack.c.l.b16 %v2995
      %v3293 = vunpack.c.l.b16 %v2996
      %v3294 = vunpack.c.l.b16 %v2997
      %v3295 = vunpack.c.l.b16 %v2998
      %v3296 = vunpack.c.l.b16 %v2999
      %v3297 = vunpack.c.l.b16 %v3000
      %v3298 = vunpack.c.l.b16 %v3001
      %v3299 = vunpack.c.l.b16 %v3002
      %v3300 = vunpack.c.l.b16 %v3003
      %v3301 = vpack.c.b16 %v3278, %v3277
      %v3302 = vpack.c.b16 %v3280, %v3279
      %v3303 = vpack.c.b16 %v3282, %v3281
      %v3304 = vpack.c.b16 %v3284, %v3283
      %v3305 = vpack.c.b16 %v3286, %v3285
      %v3306 = vpack.c.b16 %v3288, %v3287
      %v3307 = vpack.c.b16 %v3290, %v3289
      %v3308 = vpack.c.b16 %v3292, %v3291
      %v3309 = vpack.c.b16 %v3294, %v3293
      %v3310 = vpack.c.b16 %v3296, %v3295
      %v3311 = vpack.c.b16 %v3298, %v3297
      %v3312 = vpack.c.b16 %v3300, %v3299
      %v3314 = vsel %vm1180, %v3301, 0
      %v3317 = vsel %vm1180, %v3302, 0
      %v3320 = vsel %vm1180, %v3303, 0
      %v3323 = vsel %vm1180, %v3304, 0
      %v3326 = vsel %vm1180, %v3305, 0
      %v3329 = vsel %vm1180, %v3306, 0
      %v3332 = vsel %vm1180, %v3307, 0
      %v3335 = vsel %vm1180, %v3308, 0
      %v3338 = vsel %vm1180, %v3309, 0
      %v3341 = vsel %vm1180, %v3310, 0
      %v3344 = vsel %vm1180, %v3311, 0
      %v3347 = vsel %vm1180, %v3312, 0
      %v3350 = vsel %vm1217, %v3004, 0
      %3352 = vmatprep.subr.bf16.mxu0 0
      %3353 = vmatpush1.bf16.msra.mxu0 %v3350
      %3354 = vmatprep.subr.bf16.mxu0 0
      %3355 = vmatpush1.bf16.msra.mxu0 0
      %3356 = vmatprep.subr.bf16.mxu0 0
      %3357 = vmatpush1.bf16.msra.mxu0 0
      %3358 = vmatprep.subr.bf16.mxu0 0
      %3359 = vmatpush1.bf16.msra.mxu0 0
      %3360 = vmatprep.subr.bf16.mxu0 0
      %3361 = vmatpush1.bf16.msra.mxu0 0
      %3362 = vmatprep.subr.bf16.mxu0 0
      %3363 = vmatpush1.bf16.msra.mxu0 0
      %3364 = vmatprep.subr.bf16.mxu0 0
      %3365 = vmatpush1.bf16.msra.mxu0 0
      %3366 = vmatprep.subr.bf16.mxu0 0
      %3367 = vmatpush1.bf16.msra.mxu0 0
      %3368 = vmatprep.subr.bf16.mxu0 0
      %3369 = vmatpush1.bf16.msra.mxu0 0
      %3370 = vmatprep.subr.bf16.mxu0 0
      %3371 = vmatpush1.bf16.msra.mxu0 0
      %3372 = vmatprep.subr.bf16.mxu0 0
      %3373 = vmatpush1.bf16.msra.mxu0 0
      %3374 = vmatprep.subr.bf16.mxu0 0
      %3375 = vmatpush1.bf16.msra.mxu0 0
      %3376 = vmatprep.subr.bf16.mxu0 0
      %3377 = vmatpush1.bf16.msra.mxu0 0
      %3378 = vmatprep.subr.bf16.mxu0 0
      %3379 = vmatpush1.bf16.msra.mxu0 0
      %3380 = vmatprep.subr.bf16.mxu0 0
      %3381 = vmatpush1.bf16.msra.mxu0 0
      %3382 = vmatprep.subr.bf16.mxu0 0
      %3383 = vmatpush1.bf16.msra.mxu0 0
      %3384 = vmatprep.mubr.bf16.mxu0 0
      %3385 = vmatmul.mubr.bf16.gmra.mrb[0].mxu0 %v3314
      %v3386 = vpop.f32.mrb[0].mxu0
      %v3387 = vadd.f32 %v3167, %v3386
      %v3388 = vpop.f32.mrb[0].mxu0
      %v3389 = vpop.f32.mrb[0].mxu0
      %v3390 = vadd.f32 %v3170, %v3389
      %v3391 = vpop.f32.mrb[0].mxu0
      %3392 = vmatprep.mubr.bf16.mxu0 0
      %3393 = vmatmul.mubr.bf16.gmra.mrb[0].mxu0 %v3317
      %v3394 = vpop.f32.mrb[0].mxu0
      %v3395 = vpop.f32.mrb[0].mxu0
      %v3396 = vpop.f32.mrb[0].mxu0
      %v3397 = vadd.f32 %v3177, %v3396
      %v3398 = vpop.f32.mrb[0].mxu0
      %3399 = vmatprep.mubr.bf16.mxu0 0
      %3400 = vmatmul.mubr.bf16.gmra.mrb[0].mxu0 %v3320
      %v3401 = vpop.f32.mrb[0].mxu0
      %v3402 = vadd.f32 %v3182, %v3401
      %v3403 = vpop.f32.mrb[0].mxu0
      %v3404 = vpop.f32.mrb[0].mxu0
      %v3405 = vpop.f32.mrb[0].mxu0
      %3406 = vmatprep.mubr.bf16.mxu0 0
      %3407 = vmatmul.mubr.bf16.gmra.mrb[0].mxu0 %v3323
      %v3408 = vpop.f32.mrb[0].mxu0
      %v3409 = vadd.f32 %v3189, %v3408
      %v3410 = vpop.f32.mrb[0].mxu0
      %v3411 = vpop.f32.mrb[0].mxu0
      %v3412 = vadd.f32 %v3192, %v3411
      %v3413 = vpop.f32.mrb[0].mxu0
      %3414 = vmatprep.mubr.bf16.mxu0 0
      %3415 = vmatmul.mubr.bf16.gmra.mrb[0].mxu0 %v3326
      %v3416 = vpop.f32.mrb[0].mxu0
      %v3417 = vpop.f32.mrb[0].mxu0
      %v3418 = vpop.f32.mrb[0].mxu0
      %v3419 = vadd.f32 %v3199, %v3418
      %v3420 = vpop.f32.mrb[0].mxu0
      %3421 = vmatprep.mubr.bf16.mxu0 0
      %3422 = vmatmul.mubr.bf16.gmra.mrb[0].mxu0 %v3329
      %v3423 = vpop.f32.mrb[0].mxu0
      %v3424 = vadd.f32 %v3204, %v3423
      %v3425 = vpop.f32.mrb[0].mxu0
      %v3426 = vpop.f32.mrb[0].mxu0
      %v3427 = vpop.f32.mrb[0].mxu0
      %3428 = vmatprep.mubr.bf16.mxu0 0
      %3429 = vmatmul.mubr.bf16.gmra.mrb[0].mxu0 %v3332
      %v3430 = vpop.f32.mrb[0].mxu0
      %v3431 = vadd.f32 %v3211, %v3430
      %v3432 = vpop.f32.mrb[0].mxu0
      %v3433 = vpop.f32.mrb[0].mxu0
      %v3434 = vadd.f32 %v3214, %v3433
      %v3435 = vpop.f32.mrb[0].mxu0
      %3436 = vmatprep.mubr.bf16.mxu0 0
      %3437 = vmatmul.mubr.bf16.gmra.mrb[0].mxu0 %v3335
      %v3438 = vpop.f32.mrb[0].mxu0
      %v3439 = vpop.f32.mrb[0].mxu0
      %v3440 = vpop.f32.mrb[0].mxu0
      %v3441 = vadd.f32 %v3221, %v3440
      %v3442 = vpop.f32.mrb[0].mxu0
      %3443 = vmatprep.mubr.bf16.mxu0 0
      %3444 = vmatmul.mubr.bf16.gmra.mrb[0].mxu0 %v3338
      %v3445 = vpop.f32.mrb[0].mxu0
      %v3446 = vadd.f32 %v3226, %v3445
      %v3447 = vpop.f32.mrb[0].mxu0
      %v3448 = vpop.f32.mrb[0].mxu0
      %v3449 = vpop.f32.mrb[0].mxu0
      %3450 = vmatprep.mubr.bf16.mxu0 0
      %3451 = vmatmul.mubr.bf16.gmra.mrb[0].mxu0 %v3341
      %v3452 = vpop.f32.mrb[0].mxu0
      %v3453 = vadd.f32 %v3233, %v3452
      %v3454 = vpop.f32.mrb[0].mxu0
      %v3455 = vpop.f32.mrb[0].mxu0
      %v3456 = vadd.f32 %v3236, %v3455
      %v3457 = vpop.f32.mrb[0].mxu0
      %3458 = vmatprep.mubr.bf16.mxu0 0
      %3459 = vmatmul.mubr.bf16.gmra.mrb[0].mxu0 %v3344
      %v3460 = vpop.f32.mrb[0].mxu0
      %v3461 = vpop.f32.mrb[0].mxu0
      %v3462 = vpop.f32.mrb[0].mxu0
      %v3463 = vadd.f32 %v3243, %v3462
      %v3464 = vpop.f32.mrb[0].mxu0
      %3465 = vmatprep.mubr.bf16.mxu0 0
      %3466 = vmatmul.mubr.bf16.gmra.mrb[0].mxu0 %v3347
      %v3467 = vpop.f32.mrb[0].mxu0
      %v3468 = vadd.f32 %v3248, %v3467
      %v3469 = vpop.f32.mrb[0].mxu0
      %v3470 = vpop.f32.mrb[0].mxu0
      %v3471 = vpop.f32.mrb[0].mxu0
      %3472 = vdwg.mxu0
      %v3473 = vld [vmem:[%s1562] sm:$0x3]
      %v3475 = vsel %vm1217, %v3473, 0
      %3477 = vmatprep.subr.bf16.mxu0 0
      %3478 = vmatpush1.bf16.msra.mxu0 %v3475
      %3479 = vmatprep.subr.bf16.mxu0 0
      %3480 = vmatpush1.bf16.msra.mxu0 0
      %3481 = vmatprep.subr.bf16.mxu0 0
      %3482 = vmatpush1.bf16.msra.mxu0 0
      %3483 = vmatprep.subr.bf16.mxu0 0
      %3484 = vmatpush1.bf16.msra.mxu0 0
      %3485 = vmatprep.subr.bf16.mxu0 0
      %3486 = vmatpush1.bf16.msra.mxu0 0
      %3487 = vmatprep.subr.bf16.mxu0 0
      %3488 = vmatpush1.bf16.msra.mxu0 0
      %3489 = vmatprep.subr.bf16.mxu0 0
      %3490 = vmatpush1.bf16.msra.mxu0 0
      %3491 = vmatprep.subr.bf16.mxu0 0
      %3492 = vmatpush1.bf16.msra.mxu0 0
      %3493 = vmatprep.subr.bf16.mxu0 0
      %3494 = vmatpush1.bf16.msra.mxu0 0
      %3495 = vmatprep.subr.bf16.mxu0 0
      %3496 = vmatpush1.bf16.msra.mxu0 0
      %3497 = vmatprep.subr.bf16.mxu0 0
      %3498 = vmatpush1.bf16.msra.mxu0 0
      %3499 = vmatprep.subr.bf16.mxu0 0
      %3500 = vmatpush1.bf16.msra.mxu0 0
      %3501 = vmatprep.subr.bf16.mxu0 0
      %3502 = vmatpush1.bf16.msra.mxu0 0
      %3503 = vmatprep.subr.bf16.mxu0 0
      %3504 = vmatpush1.bf16.msra.mxu0 0
      %3505 = vmatprep.subr.bf16.mxu0 0
      %3506 = vmatpush1.bf16.msra.mxu0 0
      %3507 = vmatprep.subr.bf16.mxu0 0
      %3508 = vmatpush1.bf16.msra.mxu0 0
      %3509 = vmatprep.mubr.bf16.mxu0 0
      %3510 = vmatmul.mubr.bf16.gmra.mrb[0].mxu0 %v3094
      %v3511 = vpop.f32.mrb[0].mxu0
      %v3512 = vadd.f32 0.0, %v3511
      %v3513 = vpop.f32.mrb[0].mxu0
      %v3514 = vpop.f32.mrb[0].mxu0
      %v3515 = vadd.f32 0.0, %v3514
      %v3516 = vpop.f32.mrb[0].mxu0
      %3517 = vmatprep.mubr.bf16.mxu0 0
      %3518 = vmatmul.mubr.bf16.gmra.mrb[0].mxu0 %v3097
      %v3519 = vpop.f32.mrb[0].mxu0
      %v3520 = vadd.f32 0.0, %v3519
      %v3521 = vpop.f32.mrb[0].mxu0
      %v3522 = vpop.f32.mrb[0].mxu0
      %v3523 = vadd.f32 0.0, %v3522
      %v3524 = vpop.f32.mrb[0].mxu0
      %3525 = vmatprep.mubr.bf16.mxu0 0
      %3526 = vmatmul.mubr.bf16.gmra.mrb[0].mxu0 %v3100
      %v3527 = vpop.f32.mrb[0].mxu0
      %v3528 = vadd.f32 0.0, %v3527
      %v3529 = vpop.f32.mrb[0].mxu0
      %v3530 = vpop.f32.mrb[0].mxu0
      %v3531 = vadd.f32 0.0, %v3530
      %v3532 = vpop.f32.mrb[0].mxu0
      %3533 = vmatprep.mubr.bf16.mxu0 0
      %3534 = vmatmul.mubr.bf16.gmra.mrb[0].mxu0 %v3103
      %v3535 = vpop.f32.mrb[0].mxu0
      %v3536 = vadd.f32 0.0, %v3535
      %v3537 = vpop.f32.mrb[0].mxu0
      %v3538 = vpop.f32.mrb[0].mxu0
      %v3539 = vadd.f32 0.0, %v3538
      %v3540 = vpop.f32.mrb[0].mxu0
      %3541 = vmatprep.mubr.bf16.mxu0 0
      %3542 = vmatmul.mubr.bf16.gmra.mrb[0].mxu0 %v3106
      %v3543 = vpop.f32.mrb[0].mxu0
      %v3544 = vadd.f32 0.0, %v3543
      %v3545 = vpop.f32.mrb[0].mxu0
      %v3546 = vpop.f32.mrb[0].mxu0
      %v3547 = vadd.f32 0.0, %v3546
      %v3548 = vpop.f32.mrb[0].mxu0
      %3549 = vmatprep.mubr.bf16.mxu0 0
      %3550 = vmatmul.mubr.bf16.gmra.mrb[0].mxu0 %v3109
      %v3551 = vpop.f32.mrb[0].mxu0
      %v3552 = vadd.f32 0.0, %v3551
      %v3553 = vpop.f32.mrb[0].mxu0
      %v3554 = vpop.f32.mrb[0].mxu0
      %v3555 = vadd.f32 0.0, %v3554
      %v3556 = vpop.f32.mrb[0].mxu0
      %3557 = vmatprep.mubr.bf16.mxu0 0
      %3558 = vmatmul.mubr.bf16.gmra.mrb[0].mxu0 %v3112
      %v3559 = vpop.f32.mrb[0].mxu0
      %v3560 = vadd.f32 0.0, %v3559
      %v3561 = vpop.f32.mrb[0].mxu0
      %v3562 = vpop.f32.mrb[0].mxu0
      %v3563 = vadd.f32 0.0, %v3562
      %v3564 = vpop.f32.mrb[0].mxu0
      %3565 = vmatprep.mubr.bf16.mxu0 0
      %3566 = vmatmul.mubr.bf16.gmra.mrb[0].mxu0 %v3115
      %v3567 = vpop.f32.mrb[0].mxu0
      %v3568 = vadd.f32 0.0, %v3567
      %v3569 = vpop.f32.mrb[0].mxu0
      %v3570 = vpop.f32.mrb[0].mxu0
      %v3571 = vadd.f32 0.0, %v3570
      %v3572 = vpop.f32.mrb[0].mxu0
      %3573 = vmatprep.mubr.bf16.mxu0 0
      %3574 = vmatmul.mubr.bf16.gmra.mrb[0].mxu0 %v3118
      %v3575 = vpop.f32.mrb[0].mxu0
      %v3576 = vadd.f32 0.0, %v3575
      %v3577 = vpop.f32.mrb[0].mxu0
      %v3578 = vpop.f32.mrb[0].mxu0
      %v3579 = vadd.f32 0.0, %v3578
      %v3580 = vpop.f32.mrb[0].mxu0
      %3581 = vmatprep.mubr.bf16.mxu0 0
      %3582 = vmatmul.mubr.bf16.gmra.mrb[0].mxu0 %v3121
      %v3583 = vpop.f32.mrb[0].mxu0
      %v3584 = vadd.f32 0.0, %v3583
      %v3585 = vpop.f32.mrb[0].mxu0
      %v3586 = vpop.f32.mrb[0].mxu0
      %v3587 = vadd.f32 0.0, %v3586
      %v3588 = vpop.f32.mrb[0].mxu0
      %3589 = vmatprep.mubr.bf16.mxu0 0
      %3590 = vmatmul.mubr.bf16.gmra.mrb[0].mxu0 %v3124
      %v3591 = vpop.f32.mrb[0].mxu0
      %v3592 = vadd.f32 0.0, %v3591
      %v3593 = vpop.f32.mrb[0].mxu0
      %v3594 = vpop.f32.mrb[0].mxu0
      %v3595 = vadd.f32 0.0, %v3594
      %v3596 = vpop.f32.mrb[0].mxu0
      %3597 = vmatprep.mubr.bf16.mxu0 0
      %3598 = vmatmul.mubr.bf16.gmra.mrb[0].mxu0 %v3127
      %v3599 = vpop.f32.mrb[0].mxu0
      %v3600 = vadd.f32 0.0, %v3599
      %v3601 = vpop.f32.mrb[0].mxu0
      %v3602 = vpop.f32.mrb[0].mxu0
      %v3603 = vadd.f32 0.0, %v3602
      %v3604 = vpop.f32.mrb[0].mxu0
      %3605 = vdwg.mxu0
      %v3607 = vsel %vm1217, %v3005, 0
      %3609 = vmatprep.subr.bf16.mxu0 0
      %3610 = vmatpush1.bf16.msra.mxu0 %v3607
      %3611 = vmatprep.subr.bf16.mxu0 0
      %3612 = vmatpush1.bf16.msra.mxu0 0
      %3613 = vmatprep.subr.bf16.mxu0 0
      %3614 = vmatpush1.bf16.msra.mxu0 0
      %3615 = vmatprep.subr.bf16.mxu0 0
      %3616 = vmatpush1.bf16.msra.mxu0 0
      %3617 = vmatprep.subr.bf16.mxu0 0
      %3618 = vmatpush1.bf16.msra.mxu0 0
      %3619 = vmatprep.subr.bf16.mxu0 0
      %3620 = vmatpush1.bf16.msra.mxu0 0
      %3621 = vmatprep.subr.bf16.mxu0 0
      %3622 = vmatpush1.bf16.msra.mxu0 0
      %3623 = vmatprep.subr.bf16.mxu0 0
      %3624 = vmatpush1.bf16.msra.mxu0 0
      %3625 = vmatprep.subr.bf16.mxu0 0
      %3626 = vmatpush1.bf16.msra.mxu0 0
      %3627 = vmatprep.subr.bf16.mxu0 0
      %3628 = vmatpush1.bf16.msra.mxu0 0
      %3629 = vmatprep.subr.bf16.mxu0 0
      %3630 = vmatpush1.bf16.msra.mxu0 0
      %3631 = vmatprep.subr.bf16.mxu0 0
      %3632 = vmatpush1.bf16.msra.mxu0 0
      %3633 = vmatprep.subr.bf16.mxu0 0
      %3634 = vmatpush1.bf16.msra.mxu0 0
      %3635 = vmatprep.subr.bf16.mxu0 0
      %3636 = vmatpush1.bf16.msra.mxu0 0
      %3637 = vmatprep.subr.bf16.mxu0 0
      %3638 = vmatpush1.bf16.msra.mxu0 0
      %3639 = vmatprep.subr.bf16.mxu0 0
      %3640 = vmatpush1.bf16.msra.mxu0 0
      %3641 = vmatprep.mubr.bf16.mxu0 0
      %3642 = vmatmul.mubr.bf16.gmra.mrb[0].mxu0 %v3314
      %v3643 = vpop.f32.mrb[0].mxu0
      %v3644 = vadd.f32 %v3512, %v3643
      %v3645 = vpop.f32.mrb[0].mxu0
      %v3646 = vpop.f32.mrb[0].mxu0
      %v3647 = vadd.f32 %v3515, %v3646
      %v3648 = vpop.f32.mrb[0].mxu0
      %3649 = vmatprep.mubr.bf16.mxu0 0
      %3650 = vmatmul.mubr.bf16.gmra.mrb[0].mxu0 %v3317
      %v3651 = vpop.f32.mrb[0].mxu0
      %v3652 = vadd.f32 %v3520, %v3651
      %v3653 = vpop.f32.mrb[0].mxu0
      %v3654 = vpop.f32.mrb[0].mxu0
      %v3655 = vadd.f32 %v3523, %v3654
      %v3656 = vpop.f32.mrb[0].mxu0
      %3657 = vmatprep.mubr.bf16.mxu0 0
      %3658 = vmatmul.mubr.bf16.gmra.mrb[0].mxu0 %v3320
      %v3659 = vpop.f32.mrb[0].mxu0
      %v3660 = vadd.f32 %v3528, %v3659
      %v3661 = vpop.f32.mrb[0].mxu0
      %v3662 = vpop.f32.mrb[0].mxu0
      %v3663 = vadd.f32 %v3531, %v3662
      %v3664 = vpop.f32.mrb[0].mxu0
      %3665 = vmatprep.mubr.bf16.mxu0 0
      %3666 = vmatmul.mubr.bf16.gmra.mrb[0].mxu0 %v3323
      %v3667 = vpop.f32.mrb[0].mxu0
      %v3668 = vadd.f32 %v3536, %v3667
      %v3669 = vpop.f32.mrb[0].mxu0
      %v3670 = vpop.f32.mrb[0].mxu0
      %v3671 = vadd.f32 %v3539, %v3670
      %v3672 = vpop.f32.mrb[0].mxu0
      %3673 = vmatprep.mubr.bf16.mxu0 0
      %3674 = vmatmul.mubr.bf16.gmra.mrb[0].mxu0 %v3326
      %v3675 = vpop.f32.mrb[0].mxu0
      %v3676 = vadd.f32 %v3544, %v3675
      %v3677 = vpop.f32.mrb[0].mxu0
      %v3678 = vpop.f32.mrb[0].mxu0
      %v3679 = vadd.f32 %v3547, %v3678
      %v3680 = vpop.f32.mrb[0].mxu0
      %3681 = vmatprep.mubr.bf16.mxu0 0
      %3682 = vmatmul.mubr.bf16.gmra.mrb[0].mxu0 %v3329
      %v3683 = vpop.f32.mrb[0].mxu0
      %v3684 = vadd.f32 %v3552, %v3683
      %v3685 = vpop.f32.mrb[0].mxu0
      %v3686 = vpop.f32.mrb[0].mxu0
      %v3687 = vadd.f32 %v3555, %v3686
      %v3688 = vpop.f32.mrb[0].mxu0
      %3689 = vmatprep.mubr.bf16.mxu0 0
      %3690 = vmatmul.mubr.bf16.gmra.mrb[0].mxu0 %v3332
      %v3691 = vpop.f32.mrb[0].mxu0
      %v3692 = vadd.f32 %v3560, %v3691
      %v3693 = vpop.f32.mrb[0].mxu0
      %v3694 = vpop.f32.mrb[0].mxu0
      %v3695 = vadd.f32 %v3563, %v3694
      %v3696 = vpop.f32.mrb[0].mxu0
      %3697 = vmatprep.mubr.bf16.mxu0 0
      %3698 = vmatmul.mubr.bf16.gmra.mrb[0].mxu0 %v3335
      %v3699 = vpop.f32.mrb[0].mxu0
      %v3700 = vadd.f32 %v3568, %v3699
      %v3701 = vpop.f32.mrb[0].mxu0
      %v3702 = vpop.f32.mrb[0].mxu0
      %v3703 = vadd.f32 %v3571, %v3702
      %v3704 = vpop.f32.mrb[0].mxu0
      %3705 = vmatprep.mubr.bf16.mxu0 0
      %3706 = vmatmul.mubr.bf16.gmra.mrb[0].mxu0 %v3338
      %v3707 = vpop.f32.mrb[0].mxu0
      %v3708 = vadd.f32 %v3576, %v3707
      %v3709 = vpop.f32.mrb[0].mxu0
      %v3710 = vpop.f32.mrb[0].mxu0
      %v3711 = vadd.f32 %v3579, %v3710
      %v3712 = vpop.f32.mrb[0].mxu0
      %3713 = vmatprep.mubr.bf16.mxu0 0
      %3714 = vmatmul.mubr.bf16.gmra.mrb[0].mxu0 %v3341
      %v3715 = vpop.f32.mrb[0].mxu0
      %v3716 = vadd.f32 %v3584, %v3715
      %v3717 = vpop.f32.mrb[0].mxu0
      %v3718 = vpop.f32.mrb[0].mxu0
      %v3719 = vadd.f32 %v3587, %v3718
      %v3720 = vpop.f32.mrb[0].mxu0
      %3721 = vmatprep.mubr.bf16.mxu0 0
      %3722 = vmatmul.mubr.bf16.gmra.mrb[0].mxu0 %v3344
      %v3723 = vpop.f32.mrb[0].mxu0
      %v3724 = vadd.f32 %v3592, %v3723
      %v3725 = vpop.f32.mrb[0].mxu0
      %v3726 = vpop.f32.mrb[0].mxu0
      %v3727 = vadd.f32 %v3595, %v3726
      %v3728 = vpop.f32.mrb[0].mxu0
      %3729 = vmatprep.mubr.bf16.mxu0 0
      %3730 = vmatmul.mubr.bf16.gmra.mrb[0].mxu0 %v3347
      %v3731 = vpop.f32.mrb[0].mxu0
      %v3732 = vadd.f32 %v3600, %v3731
      %v3733 = vpop.f32.mrb[0].mxu0
      %v3734 = vpop.f32.mrb[0].mxu0
      %v3735 = vadd.f32 %v3603, %v3734
      %v3736 = vpop.f32.mrb[0].mxu0
      %3737 = vdwg.mxu0
      %v3738 = vld [vmem:[%s1828] sm:$0x3]
      %v3740 = vsel %vm1217, %v3738, 0
      %3742 = vmatprep.subr.bf16.mxu0 0
      %3743 = vmatpush1.bf16.msra.mxu0 %v3740
      %3744 = vmatprep.subr.bf16.mxu0 0
      %3745 = vmatpush1.bf16.msra.mxu0 0
      %3746 = vmatprep.subr.bf16.mxu0 0
      %3747 = vmatpush1.bf16.msra.mxu0 0
      %3748 = vmatprep.subr.bf16.mxu0 0
      %3749 = vmatpush1.bf16.msra.mxu0 0
      %3750 = vmatprep.subr.bf16.mxu0 0
      %3751 = vmatpush1.bf16.msra.mxu0 0
      %3752 = vmatprep.subr.bf16.mxu0 0
      %3753 = vmatpush1.bf16.msra.mxu0 0
      %3754 = vmatprep.subr.bf16.mxu0 0
      %3755 = vmatpush1.bf16.msra.mxu0 0
      %3756 = vmatprep.subr.bf16.mxu0 0
      %3757 = vmatpush1.bf16.msra.mxu0 0
      %3758 = vmatprep.subr.bf16.mxu0 0
      %3759 = vmatpush1.bf16.msra.mxu0 0
      %3760 = vmatprep.subr.bf16.mxu0 0
      %3761 = vmatpush1.bf16.msra.mxu0 0
      %3762 = vmatprep.subr.bf16.mxu0 0
      %3763 = vmatpush1.bf16.msra.mxu0 0
      %3764 = vmatprep.subr.bf16.mxu0 0
      %3765 = vmatpush1.bf16.msra.mxu0 0
      %3766 = vmatprep.subr.bf16.mxu0 0
      %3767 = vmatpush1.bf16.msra.mxu0 0
      %3768 = vmatprep.subr.bf16.mxu0 0
      %3769 = vmatpush1.bf16.msra.mxu0 0
      %3770 = vmatprep.subr.bf16.mxu0 0
      %3771 = vmatpush1.bf16.msra.mxu0 0
      %3772 = vmatprep.subr.bf16.mxu0 0
      %3773 = vmatpush1.bf16.msra.mxu0 0
      %3774 = vmatprep.mubr.bf16.mxu0 0
      %3775 = vmatmul.mubr.bf16.gmra.mrb[0].mxu0 %v3094
      %v3776 = vpop.f32.mrb[0].mxu0
      %v3777 = vadd.f32 0.0, %v3776
      %v3778 = vpop.f32.mrb[0].mxu0
      %v3779 = vpop.f32.mrb[0].mxu0
      %v3780 = vadd.f32 0.0, %v3779
      %v3781 = vpop.f32.mrb[0].mxu0
      %3782 = vmatprep.mubr.bf16.mxu0 0
      %3783 = vmatmul.mubr.bf16.gmra.mrb[0].mxu0 %v3097
      %v3784 = vpop.f32.mrb[0].mxu0
      %v3785 = vadd.f32 0.0, %v3784
      %v3786 = vpop.f32.mrb[0].mxu0
      %v3787 = vpop.f32.mrb[0].mxu0
      %v3788 = vadd.f32 0.0, %v3787
      %v3789 = vpop.f32.mrb[0].mxu0
      %3790 = vmatprep.mubr.bf16.mxu0 0
      %3791 = vmatmul.mubr.bf16.gmra.mrb[0].mxu0 %v3100
      %v3792 = vpop.f32.mrb[0].mxu0
      %v3793 = vadd.f32 0.0, %v3792
      %v3794 = vpop.f32.mrb[0].mxu0
      %v3795 = vpop.f32.mrb[0].mxu0
      %v3796 = vadd.f32 0.0, %v3795
      %v3797 = vpop.f32.mrb[0].mxu0
      %3798 = vmatprep.mubr.bf16.mxu0 0
      %3799 = vmatmul.mubr.bf16.gmra.mrb[0].mxu0 %v3103
      %v3800 = vpop.f32.mrb[0].mxu0
      %v3801 = vadd.f32 0.0, %v3800
      %v3802 = vpop.f32.mrb[0].mxu0
      %v3803 = vpop.f32.mrb[0].mxu0
      %v3804 = vadd.f32 0.0, %v3803
      %v3805 = vpop.f32.mrb[0].mxu0
      %3806 = vmatprep.mubr.bf16.mxu0 0
      %3807 = vmatmul.mubr.bf16.gmra.mrb[0].mxu0 %v3106
      %v3808 = vpop.f32.mrb[0].mxu0
      %v3809 = vadd.f32 0.0, %v3808
      %v3810 = vpop.f32.mrb[0].mxu0
      %v3811 = vpop.f32.mrb[0].mxu0
      %v3812 = vadd.f32 0.0, %v3811
      %v3813 = vpop.f32.mrb[0].mxu0
      %3814 = vmatprep.mubr.bf16.mxu0 0
      %3815 = vmatmul.mubr.bf16.gmra.mrb[0].mxu0 %v3109
      %v3816 = vpop.f32.mrb[0].mxu0
      %v3817 = vadd.f32 0.0, %v3816
      %v3818 = vpop.f32.mrb[0].mxu0
      %v3819 = vpop.f32.mrb[0].mxu0
      %v3820 = vadd.f32 0.0, %v3819
      %v3821 = vpop.f32.mrb[0].mxu0
      %3822 = vmatprep.mubr.bf16.mxu0 0
      %3823 = vmatmul.mubr.bf16.gmra.mrb[0].mxu0 %v3112
      %v3824 = vpop.f32.mrb[0].mxu0
      %v3825 = vadd.f32 0.0, %v3824
      %v3826 = vpop.f32.mrb[0].mxu0
      %v3827 = vpop.f32.mrb[0].mxu0
      %v3828 = vadd.f32 0.0, %v3827
      %v3829 = vpop.f32.mrb[0].mxu0
      %3830 = vmatprep.mubr.bf16.mxu0 0
      %3831 = vmatmul.mubr.bf16.gmra.mrb[0].mxu0 %v3115
      %v3832 = vpop.f32.mrb[0].mxu0
      %v3833 = vadd.f32 0.0, %v3832
      %v3834 = vpop.f32.mrb[0].mxu0
      %v3835 = vpop.f32.mrb[0].mxu0
      %v3836 = vadd.f32 0.0, %v3835
      %v3837 = vpop.f32.mrb[0].mxu0
      %3838 = vmatprep.mubr.bf16.mxu0 0
      %3839 = vmatmul.mubr.bf16.gmra.mrb[0].mxu0 %v3118
      %v3840 = vpop.f32.mrb[0].mxu0
      %v3841 = vadd.f32 0.0, %v3840
      %v3842 = vpop.f32.mrb[0].mxu0
      %v3843 = vpop.f32.mrb[0].mxu0
      %v3844 = vadd.f32 0.0, %v3843
      %v3845 = vpop.f32.mrb[0].mxu0
      %3846 = vmatprep.mubr.bf16.mxu0 0
      %3847 = vmatmul.mubr.bf16.gmra.mrb[0].mxu0 %v3121
      %v3848 = vpop.f32.mrb[0].mxu0
      %v3849 = vadd.f32 0.0, %v3848
      %v3850 = vpop.f32.mrb[0].mxu0
      %v3851 = vpop.f32.mrb[0].mxu0
      %v3852 = vadd.f32 0.0, %v3851
      %v3853 = vpop.f32.mrb[0].mxu0
      %3854 = vmatprep.mubr.bf16.mxu0 0
      %3855 = vmatmul.mubr.bf16.gmra.mrb[0].mxu0 %v3124
      %v3856 = vpop.f32.mrb[0].mxu0
      %v3857 = vadd.f32 0.0, %v3856
      %v3858 = vpop.f32.mrb[0].mxu0
      %v3859 = vpop.f32.mrb[0].mxu0
      %v3860 = vadd.f32 0.0, %v3859
      %v3861 = vpop.f32.mrb[0].mxu0
      %3862 = vmatprep.mubr.bf16.mxu0 0
      %3863 = vmatmul.mubr.bf16.gmra.mrb[0].mxu0 %v3127
      %v3864 = vpop.f32.mrb[0].mxu0
      %v3865 = vadd.f32 0.0, %v3864
      %v3866 = vpop.f32.mrb[0].mxu0
      %v3867 = vpop.f32.mrb[0].mxu0
      %v3868 = vadd.f32 0.0, %v3867
      %v3869 = vpop.f32.mrb[0].mxu0
      %3870 = vdwg.mxu0
      %v3872 = vsel %vm1217, %v3006, 0
      %3874 = vmatprep.subr.bf16.mxu0 0
      %3875 = vmatpush1.bf16.msra.mxu0 %v3872
      %3876 = vmatprep.subr.bf16.mxu0 0
      %3877 = vmatpush1.bf16.msra.mxu0 0
      %3878 = vmatprep.subr.bf16.mxu0 0
      %3879 = vmatpush1.bf16.msra.mxu0 0
      %3880 = vmatprep.subr.bf16.mxu0 0
      %3881 = vmatpush1.bf16.msra.mxu0 0
      %3882 = vmatprep.subr.bf16.mxu0 0
      %3883 = vmatpush1.bf16.msra.mxu0 0
      %3884 = vmatprep.subr.bf16.mxu0 0
      %3885 = vmatpush1.bf16.msra.mxu0 0
      %3886 = vmatprep.subr.bf16.mxu0 0
      %3887 = vmatpush1.bf16.msra.mxu0 0
      %3888 = vmatprep.subr.bf16.mxu0 0
      %3889 = vmatpush1.bf16.msra.mxu0 0
      %3890 = vmatprep.subr.bf16.mxu0 0
      %3891 = vmatpush1.bf16.msra.mxu0 0
      %3892 = vmatprep.subr.bf16.mxu0 0
      %3893 = vmatpush1.bf16.msra.mxu0 0
      %3894 = vmatprep.subr.bf16.mxu0 0
      %3895 = vmatpush1.bf16.msra.mxu0 0
      %3896 = vmatprep.subr.bf16.mxu0 0
      %3897 = vmatpush1.bf16.msra.mxu0 0
      %3898 = vmatprep.subr.bf16.mxu0 0
      %3899 = vmatpush1.bf16.msra.mxu0 0
      %3900 = vmatprep.subr.bf16.mxu0 0
      %3901 = vmatpush1.bf16.msra.mxu0 0
      %3902 = vmatprep.subr.bf16.mxu0 0
      %3903 = vmatpush1.bf16.msra.mxu0 0
      %3904 = vmatprep.subr.bf16.mxu0 0
      %3905 = vmatpush1.bf16.msra.mxu0 0
      %3906 = vmatprep.mubr.bf16.mxu0 0
      %3907 = vmatmul.mubr.bf16.gmra.mrb[0].mxu0 %v3314
      %v3908 = vpop.f32.mrb[0].mxu0
      %v3909 = vadd.f32 %v3777, %v3908
      %v3910 = vpop.f32.mrb[0].mxu0
      %v3911 = vpop.f32.mrb[0].mxu0
      %v3912 = vadd.f32 %v3780, %v3911
      %v3913 = vpop.f32.mrb[0].mxu0
      %3914 = vmatprep.mubr.bf16.mxu0 0
      %3915 = vmatmul.mubr.bf16.gmra.mrb[0].mxu0 %v3317
      %v3916 = vpop.f32.mrb[0].mxu0
      %v3917 = vadd.f32 %v3785, %v3916
      %v3918 = vpop.f32.mrb[0].mxu0
      %v3919 = vpop.f32.mrb[0].mxu0
      %v3920 = vadd.f32 %v3788, %v3919
      %v3921 = vpop.f32.mrb[0].mxu0
      %3922 = vmatprep.mubr.bf16.mxu0 0
      %3923 = vmatmul.mubr.bf16.gmra.mrb[0].mxu0 %v3320
      %v3924 = vpop.f32.mrb[0].mxu0
      %v3925 = vadd.f32 %v3793, %v3924
      %v3926 = vpop.f32.mrb[0].mxu0
      %v3927 = vpop.f32.mrb[0].mxu0
      %v3928 = vadd.f32 %v3796, %v3927
      %v3929 = vpop.f32.mrb[0].mxu0
      %3930 = vmatprep.mubr.bf16.mxu0 0
      %3931 = vmatmul.mubr.bf16.gmra.mrb[0].mxu0 %v3323
      %v3932 = vpop.f32.mrb[0].mxu0
      %v3933 = vadd.f32 %v3801, %v3932
      %v3934 = vpop.f32.mrb[0].mxu0
      %v3935 = vpop.f32.mrb[0].mxu0
      %v3936 = vadd.f32 %v3804, %v3935
      %v3937 = vpop.f32.mrb[0].mxu0
      %3938 = vmatprep.mubr.bf16.mxu0 0
      %3939 = vmatmul.mubr.bf16.gmra.mrb[0].mxu0 %v3326
      %v3940 = vpop.f32.mrb[0].mxu0
      %v3941 = vadd.f32 %v3809, %v3940
      %v3942 = vpop.f32.mrb[0].mxu0
      %v3943 = vpop.f32.mrb[0].mxu0
      %v3944 = vadd.f32 %v3812, %v3943
      %v3945 = vpop.f32.mrb[0].mxu0
      %3946 = vmatprep.mubr.bf16.mxu0 0
      %3947 = vmatmul.mubr.bf16.gmra.mrb[0].mxu0 %v3329
      %v3948 = vpop.f32.mrb[0].mxu0
      %v3949 = vadd.f32 %v3817, %v3948
      %v3950 = vpop.f32.mrb[0].mxu0
      %v3951 = vpop.f32.mrb[0].mxu0
      %v3952 = vadd.f32 %v3820, %v3951
      %v3953 = vpop.f32.mrb[0].mxu0
      %3954 = vmatprep.mubr.bf16.mxu0 0
      %3955 = vmatmul.mubr.bf16.gmra.mrb[0].mxu0 %v3332
      %v3956 = vpop.f32.mrb[0].mxu0
      %v3957 = vadd.f32 %v3825, %v3956
      %v3958 = vpop.f32.mrb[0].mxu0
      %v3959 = vpop.f32.mrb[0].mxu0
      %v3960 = vadd.f32 %v3828, %v3959
      %v3961 = vpop.f32.mrb[0].mxu0
      %3962 = vmatprep.mubr.bf16.mxu0 0
      %3963 = vmatmul.mubr.bf16.gmra.mrb[0].mxu0 %v3335
      %v3964 = vpop.f32.mrb[0].mxu0
      %v3965 = vadd.f32 %v3833, %v3964
      %v3966 = vpop.f32.mrb[0].mxu0
      %v3967 = vpop.f32.mrb[0].mxu0
      %v3968 = vadd.f32 %v3836, %v3967
      %v3969 = vpop.f32.mrb[0].mxu0
      %3970 = vmatprep.mubr.bf16.mxu0 0
      %3971 = vmatmul.mubr.bf16.gmra.mrb[0].mxu0 %v3338
      %v3972 = vpop.f32.mrb[0].mxu0
      %v3973 = vadd.f32 %v3841, %v3972
      %v3974 = vpop.f32.mrb[0].mxu0
      %v3975 = vpop.f32.mrb[0].mxu0
      %v3976 = vadd.f32 %v3844, %v3975
      %v3977 = vpop.f32.mrb[0].mxu0
      %3978 = vmatprep.mubr.bf16.mxu0 0
      %3979 = vmatmul.mubr.bf16.gmra.mrb[0].mxu0 %v3341
      %v3980 = vpop.f32.mrb[0].mxu0
      %v3981 = vadd.f32 %v3849, %v3980
      %v3982 = vpop.f32.mrb[0].mxu0
      %v3983 = vpop.f32.mrb[0].mxu0
      %v3984 = vadd.f32 %v3852, %v3983
      %v3985 = vpop.f32.mrb[0].mxu0
      %3986 = vmatprep.mubr.bf16.mxu0 0
      %3987 = vmatmul.mubr.bf16.gmra.mrb[0].mxu0 %v3344
      %v3988 = vpop.f32.mrb[0].mxu0
      %v3989 = vadd.f32 %v3857, %v3988
      %v3990 = vpop.f32.mrb[0].mxu0
      %v3991 = vpop.f32.mrb[0].mxu0
      %v3992 = vadd.f32 %v3860, %v3991
      %v3993 = vpop.f32.mrb[0].mxu0
      %3994 = vmatprep.mubr.bf16.mxu0 0
      %3995 = vmatmul.mubr.bf16.gmra.mrb[0].mxu0 %v3347
      %v3996 = vpop.f32.mrb[0].mxu0
      %v3997 = vadd.f32 %v3865, %v3996
      %v3998 = vpop.f32.mrb[0].mxu0
      %v3999 = vpop.f32.mrb[0].mxu0
      %v4000 = vadd.f32 %v3868, %v3999
      %v4001 = vpop.f32.mrb[0].mxu0
      %4002 = vdwg.mxu0
      %s4003 = scalar_lea.vmem [#allocation2], 120
      %v4004 = vld [vmem:[%s4003] sm:$0xf]
      %v4005 = vld [vmem:[%s4003 + $0x4] sm:$0xf]
      %v4006 = vld [vmem:[%s4003 + $0x8] sm:$0xf]
      %v4007 = vld [vmem:[%s4003 + $0xc] sm:$0xf]
      %v4008 = vld [vmem:[%s4003 + $0x10] sm:$0xf]
      %v4009 = vld [vmem:[%s4003 + $0x14] sm:$0xf]
      %v4010 = vld [vmem:[%s4003 + $0x18] sm:$0xf]
      %v4011 = vld [vmem:[%s4003 + $0x1c] sm:$0xf]
      %v4012 = vld [vmem:[%s4003 + $0x20] sm:$0xf]
      %v4013 = vld [vmem:[%s4003 + $0x24] sm:$0xf]
      %v4014 = vld [vmem:[%s4003 + $0x28] sm:$0xf]
      %v4015 = vld [vmem:[%s4003 + $0x2c] sm:$0xf]
      %v4016 = vld [vmem:[%s4003 + $0x30] sm:$0xf]
      %v4017 = vld [vmem:[%s4003 + $0x34] sm:$0xf]
      %v4018 = vld [vmem:[%s4003 + $0x38] sm:$0xf]
      %v4019 = vld [vmem:[%s4003 + $0x3c] sm:$0xf]
      %v4020 = vld [vmem:[%s4003 + $0x40] sm:$0xf]
      %v4021 = vld [vmem:[%s4003 + $0x44] sm:$0xf]
      %v4022 = vld [vmem:[%s4003 + $0x48] sm:$0xf]
      %v4023 = vld [vmem:[%s4003 + $0x4c] sm:$0xf]
      %v4024 = vld [vmem:[%s4003 + $0x50] sm:$0xf]
      %v4025 = vld [vmem:[%s4003 + $0x54] sm:$0xf]
      %v4026 = vld [vmem:[%s4003 + $0x58] sm:$0xf]
      %v4027 = vld [vmem:[%s4003 + $0x5c] sm:$0xf]
      %v4028 = vld [vmem:[%s2119] sm:$0x3]
      %v4053 = vunpack.c.l.b16 %v4004
      %v4054 = vunpack.c.l.b16 %v4005
      %v4055 = vunpack.c.l.b16 %v4006
      %v4056 = vunpack.c.l.b16 %v4007
      %v4057 = vunpack.c.l.b16 %v4008
      %v4058 = vunpack.c.l.b16 %v4009
      %v4059 = vunpack.c.l.b16 %v4010
      %v4060 = vunpack.c.l.b16 %v4011
      %v4061 = vunpack.c.l.b16 %v4012
      %v4062 = vunpack.c.l.b16 %v4013
      %v4063 = vunpack.c.l.b16 %v4014
      %v4064 = vunpack.c.l.b16 %v4015
      %v4065 = vunpack.c.l.b16 %v4016
      %v4066 = vunpack.c.l.b16 %v4017
      %v4067 = vunpack.c.l.b16 %v4018
      %v4068 = vunpack.c.l.b16 %v4019
      %v4069 = vunpack.c.l.b16 %v4020
      %v4070 = vunpack.c.l.b16 %v4021
      %v4071 = vunpack.c.l.b16 %v4022
      %v4072 = vunpack.c.l.b16 %v4023
      %v4073 = vunpack.c.l.b16 %v4024
      %v4074 = vunpack.c.l.b16 %v4025
      %v4075 = vunpack.c.l.b16 %v4026
      %v4076 = vunpack.c.l.b16 %v4027
      %v4077 = vpack.c.b16 %v4054, %v4053
      %v4078 = vpack.c.b16 %v4056, %v4055
      %v4079 = vpack.c.b16 %v4058, %v4057
      %v4080 = vpack.c.b16 %v4060, %v4059
      %v4081 = vpack.c.b16 %v4062, %v4061
      %v4082 = vpack.c.b16 %v4064, %v4063
      %v4083 = vpack.c.b16 %v4066, %v4065
      %v4084 = vpack.c.b16 %v4068, %v4067
      %v4085 = vpack.c.b16 %v4070, %v4069
      %v4086 = vpack.c.b16 %v4072, %v4071
      %v4087 = vpack.c.b16 %v4074, %v4073
      %v4088 = vpack.c.b16 %v4076, %v4075
      %v4090 = vsel %vm1180, %v4077, 0
      %v4093 = vsel %vm1180, %v4078, 0
      %v4096 = vsel %vm1180, %v4079, 0
      %v4099 = vsel %vm1180, %v4080, 0
      %v4102 = vsel %vm1180, %v4081, 0
      %v4105 = vsel %vm1180, %v4082, 0
      %v4108 = vsel %vm1180, %v4083, 0
      %v4111 = vsel %vm1180, %v4084, 0
      %v4114 = vsel %vm1180, %v4085, 0
      %v4117 = vsel %vm1180, %v4086, 0
      %v4120 = vsel %vm1180, %v4087, 0
      %v4123 = vsel %vm1180, %v4088, 0
      %v4126 = vsel %vm1217, %v4028, 0
      %4128 = vmatprep.subr.bf16.mxu0 0
      %4129 = vmatpush1.bf16.msra.mxu0 %v4126
      %4130 = vmatprep.subr.bf16.mxu0 0
      %4131 = vmatpush1.bf16.msra.mxu0 0
      %4132 = vmatprep.subr.bf16.mxu0 0
      %4133 = vmatpush1.bf16.msra.mxu0 0
      %4134 = vmatprep.subr.bf16.mxu0 0
      %4135 = vmatpush1.bf16.msra.mxu0 0
      %4136 = vmatprep.subr.bf16.mxu0 0
      %4137 = vmatpush1.bf16.msra.mxu0 0
      %4138 = vmatprep.subr.bf16.mxu0 0
      %4139 = vmatpush1.bf16.msra.mxu0 0
      %4140 = vmatprep.subr.bf16.mxu0 0
      %4141 = vmatpush1.bf16.msra.mxu0 0
      %4142 = vmatprep.subr.bf16.mxu0 0
      %4143 = vmatpush1.bf16.msra.mxu0 0
      %4144 = vmatprep.subr.bf16.mxu0 0
      %4145 = vmatpush1.bf16.msra.mxu0 0
      %4146 = vmatprep.subr.bf16.mxu0 0
      %4147 = vmatpush1.bf16.msra.mxu0 0
      %4148 = vmatprep.subr.bf16.mxu0 0
      %4149 = vmatpush1.bf16.msra.mxu0 0
      %4150 = vmatprep.subr.bf16.mxu0 0
      %4151 = vmatpush1.bf16.msra.mxu0 0
      %4152 = vmatprep.subr.bf16.mxu0 0
      %4153 = vmatpush1.bf16.msra.mxu0 0
      %4154 = vmatprep.subr.bf16.mxu0 0
      %4155 = vmatpush1.bf16.msra.mxu0 0
      %4156 = vmatprep.subr.bf16.mxu0 0
      %4157 = vmatpush1.bf16.msra.mxu0 0
      %4158 = vmatprep.subr.bf16.mxu0 0
      %4159 = vmatpush1.bf16.msra.mxu0 0
      %4160 = vmatprep.mubr.bf16.mxu0 0
      %4161 = vmatmul.mubr.bf16.gmra.mrb[0].mxu0 %v4090
      %v4162 = vpop.f32.mrb[0].mxu0
      %v4163 = vadd.f32 0.0, %v4162
      %v4164 = vpop.f32.mrb[0].mxu0
      %v4165 = vpop.f32.mrb[0].mxu0
      %v4166 = vadd.f32 0.0, %v4165
      %v4167 = vpop.f32.mrb[0].mxu0
      %4168 = vmatprep.mubr.bf16.mxu0 0
      %4169 = vmatmul.mubr.bf16.gmra.mrb[0].mxu0 %v4093
      %v4170 = vpop.f32.mrb[0].mxu0
      %v4171 = vpop.f32.mrb[0].mxu0
      %v4172 = vpop.f32.mrb[0].mxu0
      %v4173 = vadd.f32 0.0, %v4172
      %v4174 = vpop.f32.mrb[0].mxu0
      %4175 = vmatprep.mubr.bf16.mxu0 0
      %4176 = vmatmul.mubr.bf16.gmra.mrb[0].mxu0 %v4096
      %v4177 = vpop.f32.mrb[0].mxu0
      %v4178 = vadd.f32 0.0, %v4177
      %v4179 = vpop.f32.mrb[0].mxu0
      %v4180 = vpop.f32.mrb[0].mxu0
      %v4181 = vpop.f32.mrb[0].mxu0
      %4182 = vmatprep.mubr.bf16.mxu0 0
      %4183 = vmatmul.mubr.bf16.gmra.mrb[0].mxu0 %v4099
      %v4184 = vpop.f32.mrb[0].mxu0
      %v4185 = vadd.f32 0.0, %v4184
      %v4186 = vpop.f32.mrb[0].mxu0
      %v4187 = vpop.f32.mrb[0].mxu0
      %v4188 = vadd.f32 0.0, %v4187
      %v4189 = vpop.f32.mrb[0].mxu0
      %4190 = vmatprep.mubr.bf16.mxu0 0
      %4191 = vmatmul.mubr.bf16.gmra.mrb[0].mxu0 %v4102
      %v4192 = vpop.f32.mrb[0].mxu0
      %v4193 = vpop.f32.mrb[0].mxu0
      %v4194 = vpop.f32.mrb[0].mxu0
      %v4195 = vadd.f32 0.0, %v4194
      %v4196 = vpop.f32.mrb[0].mxu0
      %4197 = vmatprep.mubr.bf16.mxu0 0
      %4198 = vmatmul.mubr.bf16.gmra.mrb[0].mxu0 %v4105
      %v4199 = vpop.f32.mrb[0].mxu0
      %v4200 = vadd.f32 0.0, %v4199
      %v4201 = vpop.f32.mrb[0].mxu0
      %v4202 = vpop.f32.mrb[0].mxu0
      %v4203 = vpop.f32.mrb[0].mxu0
      %4204 = vmatprep.mubr.bf16.mxu0 0
      %4205 = vmatmul.mubr.bf16.gmra.mrb[0].mxu0 %v4108
      %v4206 = vpop.f32.mrb[0].mxu0
      %v4207 = vadd.f32 0.0, %v4206
      %v4208 = vpop.f32.mrb[0].mxu0
      %v4209 = vpop.f32.mrb[0].mxu0
      %v4210 = vadd.f32 0.0, %v4209
      %v4211 = vpop.f32.mrb[0].mxu0
      %4212 = vmatprep.mubr.bf16.mxu0 0
      %4213 = vmatmul.mubr.bf16.gmra.mrb[0].mxu0 %v4111
      %v4214 = vpop.f32.mrb[0].mxu0
      %v4215 = vpop.f32.mrb[0].mxu0
      %v4216 = vpop.f32.mrb[0].mxu0
      %v4217 = vadd.f32 0.0, %v4216
      %v4218 = vpop.f32.mrb[0].mxu0
      %4219 = vmatprep.mubr.bf16.mxu0 0
      %4220 = vmatmul.mubr.bf16.gmra.mrb[0].mxu0 %v4114
      %v4221 = vpop.f32.mrb[0].mxu0
      %v4222 = vadd.f32 0.0, %v4221
      %v4223 = vpop.f32.mrb[0].mxu0
      %v4224 = vpop.f32.mrb[0].mxu0
      %v4225 = vpop.f32.mrb[0].mxu0
      %4226 = vmatprep.mubr.bf16.mxu0 0
      %4227 = vmatmul.mubr.bf16.gmra.mrb[0].mxu0 %v4117
      %v4228 = vpop.f32.mrb[0].mxu0
      %v4229 = vadd.f32 0.0, %v4228
      %v4230 = vpop.f32.mrb[0].mxu0
      %v4231 = vpop.f32.mrb[0].mxu0
      %v4232 = vadd.f32 0.0, %v4231
      %v4233 = vpop.f32.mrb[0].mxu0
      %4234 = vmatprep.mubr.bf16.mxu0 0
      %4235 = vmatmul.mubr.bf16.gmra.mrb[0].mxu0 %v4120
      %v4236 = vpop.f32.mrb[0].mxu0
      %v4237 = vpop.f32.mrb[0].mxu0
      %v4238 = vpop.f32.mrb[0].mxu0
      %v4239 = vadd.f32 0.0, %v4238
      %v4240 = vpop.f32.mrb[0].mxu0
      %4241 = vmatprep.mubr.bf16.mxu0 0
      %4242 = vmatmul.mubr.bf16.gmra.mrb[0].mxu0 %v4123
      %v4243 = vpop.f32.mrb[0].mxu0
      %v4244 = vadd.f32 0.0, %v4243
      %v4245 = vpop.f32.mrb[0].mxu0
      %v4246 = vpop.f32.mrb[0].mxu0
      %v4247 = vpop.f32.mrb[0].mxu0
      %4248 = vdwg.mxu0
      %v4249 = vadd.f32 %v3387, %v4163
      %v4250 = vadd.f32 %v3390, %v4166
      %v4251 = vadd.f32 %v3397, %v4173
      %v4252 = vadd.f32 %v3402, %v4178
      %v4253 = vadd.f32 %v3409, %v4185
      %v4254 = vadd.f32 %v3412, %v4188
      %v4255 = vadd.f32 %v3419, %v4195
      %v4256 = vadd.f32 %v3424, %v4200
      %v4257 = vadd.f32 %v3431, %v4207
      %v4258 = vadd.f32 %v3434, %v4210
      %v4259 = vadd.f32 %v3441, %v4217
      %v4260 = vadd.f32 %v3446, %v4222
      %v4261 = vadd.f32 %v3453, %v4229
      %v4262 = vadd.f32 %v3456, %v4232
      %v4263 = vadd.f32 %v3463, %v4239
      %v4264 = vadd.f32 %v3468, %v4244
      %v4265 = vld [vmem:[%s2357] sm:$0x3]
      %v4267 = vsel %vm1217, %v4265, 0
      %4269 = vmatprep.subr.bf16.mxu0 0
      %4270 = vmatpush1.bf16.msra.mxu0 %v4267
      %4271 = vmatprep.subr.bf16.mxu0 0
      %4272 = vmatpush1.bf16.msra.mxu0 0
      %4273 = vmatprep.subr.bf16.mxu0 0
      %4274 = vmatpush1.bf16.msra.mxu0 0
      %4275 = vmatprep.subr.bf16.mxu0 0
      %4276 = vmatpush1.bf16.msra.mxu0 0
      %4277 = vmatprep.subr.bf16.mxu0 0
      %4278 = vmatpush1.bf16.msra.mxu0 0
      %4279 = vmatprep.subr.bf16.mxu0 0
      %4280 = vmatpush1.bf16.msra.mxu0 0
      %4281 = vmatprep.subr.bf16.mxu0 0
      %4282 = vmatpush1.bf16.msra.mxu0 0
      %4283 = vmatprep.subr.bf16.mxu0 0
      %4284 = vmatpush1.bf16.msra.mxu0 0
      %4285 = vmatprep.subr.bf16.mxu0 0
      %4286 = vmatpush1.bf16.msra.mxu0 0
      %4287 = vmatprep.subr.bf16.mxu0 0
      %4288 = vmatpush1.bf16.msra.mxu0 0
      %4289 = vmatprep.subr.bf16.mxu0 0
      %4290 = vmatpush1.bf16.msra.mxu0 0
      %4291 = vmatprep.subr.bf16.mxu0 0
      %4292 = vmatpush1.bf16.msra.mxu0 0
      %4293 = vmatprep.subr.bf16.mxu0 0
      %4294 = vmatpush1.bf16.msra.mxu0 0
      %4295 = vmatprep.subr.bf16.mxu0 0
      %4296 = vmatpush1.bf16.msra.mxu0 0
      %4297 = vmatprep.subr.bf16.mxu0 0
      %4298 = vmatpush1.bf16.msra.mxu0 0
      %4299 = vmatprep.subr.bf16.mxu0 0
      %4300 = vmatpush1.bf16.msra.mxu0 0
      %4301 = vmatprep.mubr.bf16.mxu0 0
      %4302 = vmatmul.mubr.bf16.gmra.mrb[0].mxu0 %v4090
      %v4303 = vpop.f32.mrb[0].mxu0
      %v4304 = vadd.f32 0.0, %v4303
      %v4305 = vpop.f32.mrb[0].mxu0
      %v4306 = vpop.f32.mrb[0].mxu0
      %v4307 = vadd.f32 0.0, %v4306
      %v4308 = vpop.f32.mrb[0].mxu0
      %4309 = vmatprep.mubr.bf16.mxu0 0
      %4310 = vmatmul.mubr.bf16.gmra.mrb[0].mxu0 %v4093
      %v4311 = vpop.f32.mrb[0].mxu0
      %v4312 = vadd.f32 0.0, %v4311
      %v4313 = vpop.f32.mrb[0].mxu0
      %v4314 = vpop.f32.mrb[0].mxu0
      %v4315 = vadd.f32 0.0, %v4314
      %v4316 = vpop.f32.mrb[0].mxu0
      %4317 = vmatprep.mubr.bf16.mxu0 0
      %4318 = vmatmul.mubr.bf16.gmra.mrb[0].mxu0 %v4096
      %v4319 = vpop.f32.mrb[0].mxu0
      %v4320 = vadd.f32 0.0, %v4319
      %v4321 = vpop.f32.mrb[0].mxu0
      %v4322 = vpop.f32.mrb[0].mxu0
      %v4323 = vadd.f32 0.0, %v4322
      %v4324 = vpop.f32.mrb[0].mxu0
      %4325 = vmatprep.mubr.bf16.mxu0 0
      %4326 = vmatmul.mubr.bf16.gmra.mrb[0].mxu0 %v4099
      %v4327 = vpop.f32.mrb[0].mxu0
      %v4328 = vadd.f32 0.0, %v4327
      %v4329 = vpop.f32.mrb[0].mxu0
      %v4330 = vpop.f32.mrb[0].mxu0
      %v4331 = vadd.f32 0.0, %v4330
      %v4332 = vpop.f32.mrb[0].mxu0
      %4333 = vmatprep.mubr.bf16.mxu0 0
      %4334 = vmatmul.mubr.bf16.gmra.mrb[0].mxu0 %v4102
      %v4335 = vpop.f32.mrb[0].mxu0
      %v4336 = vadd.f32 0.0, %v4335
      %v4337 = vpop.f32.mrb[0].mxu0
      %v4338 = vpop.f32.mrb[0].mxu0
      %v4339 = vadd.f32 0.0, %v4338
      %v4340 = vpop.f32.mrb[0].mxu0
      %4341 = vmatprep.mubr.bf16.mxu0 0
      %4342 = vmatmul.mubr.bf16.gmra.mrb[0].mxu0 %v4105
      %v4343 = vpop.f32.mrb[0].mxu0
      %v4344 = vadd.f32 0.0, %v4343
      %v4345 = vpop.f32.mrb[0].mxu0
      %v4346 = vpop.f32.mrb[0].mxu0
      %v4347 = vadd.f32 0.0, %v4346
      %v4348 = vpop.f32.mrb[0].mxu0
      %4349 = vmatprep.mubr.bf16.mxu0 0
      %4350 = vmatmul.mubr.bf16.gmra.mrb[0].mxu0 %v4108
      %v4351 = vpop.f32.mrb[0].mxu0
      %v4352 = vadd.f32 0.0, %v4351
      %v4353 = vpop.f32.mrb[0].mxu0
      %v4354 = vpop.f32.mrb[0].mxu0
      %v4355 = vadd.f32 0.0, %v4354
      %v4356 = vpop.f32.mrb[0].mxu0
      %4357 = vmatprep.mubr.bf16.mxu0 0
      %4358 = vmatmul.mubr.bf16.gmra.mrb[0].mxu0 %v4111
      %v4359 = vpop.f32.mrb[0].mxu0
      %v4360 = vadd.f32 0.0, %v4359
      %v4361 = vpop.f32.mrb[0].mxu0
      %v4362 = vpop.f32.mrb[0].mxu0
      %v4363 = vadd.f32 0.0, %v4362
      %v4364 = vpop.f32.mrb[0].mxu0
      %4365 = vmatprep.mubr.bf16.mxu0 0
      %4366 = vmatmul.mubr.bf16.gmra.mrb[0].mxu0 %v4114
      %v4367 = vpop.f32.mrb[0].mxu0
      %v4368 = vadd.f32 0.0, %v4367
      %v4369 = vpop.f32.mrb[0].mxu0
      %v4370 = vpop.f32.mrb[0].mxu0
      %v4371 = vadd.f32 0.0, %v4370
      %v4372 = vpop.f32.mrb[0].mxu0
      %4373 = vmatprep.mubr.bf16.mxu0 0
      %4374 = vmatmul.mubr.bf16.gmra.mrb[0].mxu0 %v4117
      %v4375 = vpop.f32.mrb[0].mxu0
      %v4376 = vadd.f32 0.0, %v4375
      %v4377 = vpop.f32.mrb[0].mxu0
      %v4378 = vpop.f32.mrb[0].mxu0
      %v4379 = vadd.f32 0.0, %v4378
      %v4380 = vpop.f32.mrb[0].mxu0
      %4381 = vmatprep.mubr.bf16.mxu0 0
      %4382 = vmatmul.mubr.bf16.gmra.mrb[0].mxu0 %v4120
      %v4383 = vpop.f32.mrb[0].mxu0
      %v4384 = vadd.f32 0.0, %v4383
      %v4385 = vpop.f32.mrb[0].mxu0
      %v4386 = vpop.f32.mrb[0].mxu0
      %v4387 = vadd.f32 0.0, %v4386
      %v4388 = vpop.f32.mrb[0].mxu0
      %4389 = vmatprep.mubr.bf16.mxu0 0
      %4390 = vmatmul.mubr.bf16.gmra.mrb[0].mxu0 %v4123
      %v4391 = vpop.f32.mrb[0].mxu0
      %v4392 = vadd.f32 0.0, %v4391
      %v4393 = vpop.f32.mrb[0].mxu0
      %v4394 = vpop.f32.mrb[0].mxu0
      %v4395 = vadd.f32 0.0, %v4394
      %v4396 = vpop.f32.mrb[0].mxu0
      %4397 = vdwg.mxu0
      %v4398 = vadd.f32 %v3644, %v4304
      %v4399 = vadd.f32 %v3647, %v4307
      %v4400 = vadd.f32 %v3652, %v4312
      %v4401 = vadd.f32 %v3655, %v4315
      %v4402 = vadd.f32 %v3660, %v4320
      %v4403 = vadd.f32 %v3663, %v4323
      %v4404 = vadd.f32 %v3668, %v4328
      %v4405 = vadd.f32 %v3671, %v4331
      %v4406 = vadd.f32 %v3676, %v4336
      %v4407 = vadd.f32 %v3679, %v4339
      %v4408 = vadd.f32 %v3684, %v4344
      %v4409 = vadd.f32 %v3687, %v4347
      %v4410 = vadd.f32 %v3692, %v4352
      %v4411 = vadd.f32 %v3695, %v4355
      %v4412 = vadd.f32 %v3700, %v4360
      %v4413 = vadd.f32 %v3703, %v4363
      %v4414 = vadd.f32 %v3708, %v4368
      %v4415 = vadd.f32 %v3711, %v4371
      %v4416 = vadd.f32 %v3716, %v4376
      %v4417 = vadd.f32 %v3719, %v4379
      %v4418 = vadd.f32 %v3724, %v4384
      %v4419 = vadd.f32 %v3727, %v4387
      %v4420 = vadd.f32 %v3732, %v4392
      %v4421 = vadd.f32 %v3735, %v4395
      %v4422 = vld [vmem:[%s2515] sm:$0x3]
      %v4424 = vsel %vm1217, %v4422, 0
      %4426 = vmatprep.subr.bf16.mxu0 0
      %4427 = vmatpush1.bf16.msra.mxu0 %v4424
      %4428 = vmatprep.subr.bf16.mxu0 0
      %4429 = vmatpush1.bf16.msra.mxu0 0
      %4430 = vmatprep.subr.bf16.mxu0 0
      %4431 = vmatpush1.bf16.msra.mxu0 0
      %4432 = vmatprep.subr.bf16.mxu0 0
      %4433 = vmatpush1.bf16.msra.mxu0 0
      %4434 = vmatprep.subr.bf16.mxu0 0
      %4435 = vmatpush1.bf16.msra.mxu0 0
      %4436 = vmatprep.subr.bf16.mxu0 0
      %4437 = vmatpush1.bf16.msra.mxu0 0
      %4438 = vmatprep.subr.bf16.mxu0 0
      %4439 = vmatpush1.bf16.msra.mxu0 0
      %4440 = vmatprep.subr.bf16.mxu0 0
      %4441 = vmatpush1.bf16.msra.mxu0 0
      %4442 = vmatprep.subr.bf16.mxu0 0
      %4443 = vmatpush1.bf16.msra.mxu0 0
      %4444 = vmatprep.subr.bf16.mxu0 0
      %4445 = vmatpush1.bf16.msra.mxu0 0
      %4446 = vmatprep.subr.bf16.mxu0 0
      %4447 = vmatpush1.bf16.msra.mxu0 0
      %4448 = vmatprep.subr.bf16.mxu0 0
      %4449 = vmatpush1.bf16.msra.mxu0 0
      %4450 = vmatprep.subr.bf16.mxu0 0
      %4451 = vmatpush1.bf16.msra.mxu0 0
      %4452 = vmatprep.subr.bf16.mxu0 0
      %4453 = vmatpush1.bf16.msra.mxu0 0
      %4454 = vmatprep.subr.bf16.mxu0 0
      %4455 = vmatpush1.bf16.msra.mxu0 0
      %4456 = vmatprep.subr.bf16.mxu0 0
      %4457 = vmatpush1.bf16.msra.mxu0 0
      %4458 = vmatprep.mubr.bf16.mxu0 0
      %4459 = vmatmul.mubr.bf16.gmra.mrb[0].mxu0 %v4090
      %v4460 = vpop.f32.mrb[0].mxu0
      %v4461 = vadd.f32 0.0, %v4460
      %v4462 = vpop.f32.mrb[0].mxu0
      %v4463 = vpop.f32.mrb[0].mxu0
      %v4464 = vadd.f32 0.0, %v4463
      %v4465 = vpop.f32.mrb[0].mxu0
      %4466 = vmatprep.mubr.bf16.mxu0 0
      %4467 = vmatmul.mubr.bf16.gmra.mrb[0].mxu0 %v4093
      %v4468 = vpop.f32.mrb[0].mxu0
      %v4469 = vadd.f32 0.0, %v4468
      %v4470 = vpop.f32.mrb[0].mxu0
      %v4471 = vpop.f32.mrb[0].mxu0
      %v4472 = vadd.f32 0.0, %v4471
      %v4473 = vpop.f32.mrb[0].mxu0
      %4474 = vmatprep.mubr.bf16.mxu0 0
      %4475 = vmatmul.mubr.bf16.gmra.mrb[0].mxu0 %v4096
      %v4476 = vpop.f32.mrb[0].mxu0
      %v4477 = vadd.f32 0.0, %v4476
      %v4478 = vpop.f32.mrb[0].mxu0
      %v4479 = vpop.f32.mrb[0].mxu0
      %v4480 = vadd.f32 0.0, %v4479
      %v4481 = vpop.f32.mrb[0].mxu0
      %4482 = vmatprep.mubr.bf16.mxu0 0
      %4483 = vmatmul.mubr.bf16.gmra.mrb[0].mxu0 %v4099
      %v4484 = vpop.f32.mrb[0].mxu0
      %v4485 = vadd.f32 0.0, %v4484
      %v4486 = vpop.f32.mrb[0].mxu0
      %v4487 = vpop.f32.mrb[0].mxu0
      %v4488 = vadd.f32 0.0, %v4487
      %v4489 = vpop.f32.mrb[0].mxu0
      %4490 = vmatprep.mubr.bf16.mxu0 0
      %4491 = vmatmul.mubr.bf16.gmra.mrb[0].mxu0 %v4102
      %v4492 = vpop.f32.mrb[0].mxu0
      %v4493 = vadd.f32 0.0, %v4492
      %v4494 = vpop.f32.mrb[0].mxu0
      %v4495 = vpop.f32.mrb[0].mxu0
      %v4496 = vadd.f32 0.0, %v4495
      %v4497 = vpop.f32.mrb[0].mxu0
      %4498 = vmatprep.mubr.bf16.mxu0 0
      %4499 = vmatmul.mubr.bf16.gmra.mrb[0].mxu0 %v4105
      %v4500 = vpop.f32.mrb[0].mxu0
      %v4501 = vadd.f32 0.0, %v4500
      %v4502 = vpop.f32.mrb[0].mxu0
      %v4503 = vpop.f32.mrb[0].mxu0
      %v4504 = vadd.f32 0.0, %v4503
      %v4505 = vpop.f32.mrb[0].mxu0
      %4506 = vmatprep.mubr.bf16.mxu0 0
      %4507 = vmatmul.mubr.bf16.gmra.mrb[0].mxu0 %v4108
      %v4508 = vpop.f32.mrb[0].mxu0
      %v4509 = vadd.f32 0.0, %v4508
      %v4510 = vpop.f32.mrb[0].mxu0
      %v4511 = vpop.f32.mrb[0].mxu0
      %v4512 = vadd.f32 0.0, %v4511
      %v4513 = vpop.f32.mrb[0].mxu0
      %4514 = vmatprep.mubr.bf16.mxu0 0
      %4515 = vmatmul.mubr.bf16.gmra.mrb[0].mxu0 %v4111
      %v4516 = vpop.f32.mrb[0].mxu0
      %v4517 = vadd.f32 0.0, %v4516
      %v4518 = vpop.f32.mrb[0].mxu0
      %v4519 = vpop.f32.mrb[0].mxu0
      %v4520 = vadd.f32 0.0, %v4519
      %v4521 = vpop.f32.mrb[0].mxu0
      %4522 = vmatprep.mubr.bf16.mxu0 0
      %4523 = vmatmul.mubr.bf16.gmra.mrb[0].mxu0 %v4114
      %v4524 = vpop.f32.mrb[0].mxu0
      %v4525 = vadd.f32 0.0, %v4524
      %v4526 = vpop.f32.mrb[0].mxu0
      %v4527 = vpop.f32.mrb[0].mxu0
      %v4528 = vadd.f32 0.0, %v4527
      %v4529 = vpop.f32.mrb[0].mxu0
      %4530 = vmatprep.mubr.bf16.mxu0 0
      %4531 = vmatmul.mubr.bf16.gmra.mrb[0].mxu0 %v4117
      %v4532 = vpop.f32.mrb[0].mxu0
      %v4533 = vadd.f32 0.0, %v4532
      %v4534 = vpop.f32.mrb[0].mxu0
      %v4535 = vpop.f32.mrb[0].mxu0
      %v4536 = vadd.f32 0.0, %v4535
      %v4537 = vpop.f32.mrb[0].mxu0
      %4538 = vmatprep.mubr.bf16.mxu0 0
      %4539 = vmatmul.mubr.bf16.gmra.mrb[0].mxu0 %v4120
      %v4540 = vpop.f32.mrb[0].mxu0
      %v4541 = vadd.f32 0.0, %v4540
      %v4542 = vpop.f32.mrb[0].mxu0
      %v4543 = vpop.f32.mrb[0].mxu0
      %v4544 = vadd.f32 0.0, %v4543
      %v4545 = vpop.f32.mrb[0].mxu0
      %4546 = vmatprep.mubr.bf16.mxu0 0
      %4547 = vmatmul.mubr.bf16.gmra.mrb[0].mxu0 %v4123
      %v4548 = vpop.f32.mrb[0].mxu0
      %v4549 = vadd.f32 0.0, %v4548
      %v4550 = vpop.f32.mrb[0].mxu0
      %v4551 = vpop.f32.mrb[0].mxu0
      %v4552 = vadd.f32 0.0, %v4551
      %v4553 = vpop.f32.mrb[0].mxu0
      %4554 = vdwg.mxu0
      %v4555 = vadd.f32 %v3909, %v4461
      %v4556 = vadd.f32 %v3912, %v4464
      %v4557 = vadd.f32 %v3917, %v4469
      %v4558 = vadd.f32 %v3920, %v4472
      %v4559 = vadd.f32 %v3925, %v4477
      %v4560 = vadd.f32 %v3928, %v4480
      %v4561 = vadd.f32 %v3933, %v4485
      %v4562 = vadd.f32 %v3936, %v4488
      %v4563 = vadd.f32 %v3941, %v4493
      %v4564 = vadd.f32 %v3944, %v4496
      %v4565 = vadd.f32 %v3949, %v4501
      %v4566 = vadd.f32 %v3952, %v4504
      %v4567 = vadd.f32 %v3957, %v4509
      %v4568 = vadd.f32 %v3960, %v4512
      %v4569 = vadd.f32 %v3965, %v4517
      %v4570 = vadd.f32 %v3968, %v4520
      %v4571 = vadd.f32 %v3973, %v4525
      %v4572 = vadd.f32 %v3976, %v4528
      %v4573 = vadd.f32 %v3981, %v4533
      %v4574 = vadd.f32 %v3984, %v4536
      %v4575 = vadd.f32 %v3989, %v4541
      %v4576 = vadd.f32 %v3992, %v4544
      %v4577 = vadd.f32 %v3997, %v4549
      %v4578 = vadd.f32 %v4000, %v4552
      %v4603 = vrot.slane %v4398, 1
      %v4604 = vrot.slane %v4399, 1
      %v4605 = vsel %vm2697, %v4603, %v4604
      %v4606 = vrot.slane %v4400, 1
      %v4607 = vsel %vm2697, %v4604, %v4606
      %v4608 = vrot.slane %v4401, 1
      %v4609 = vrot.slane %v4402, 1
      %v4610 = vsel %vm2697, %v4608, %v4609
      %v4611 = vrot.slane %v4403, 1
      %v4612 = vsel %vm2697, %v4609, %v4611
      %v4613 = vrot.slane %v4404, 1
      %v4614 = vrot.slane %v4405, 1
      %v4615 = vsel %vm2697, %v4613, %v4614
      %v4616 = vrot.slane %v4406, 1
      %v4617 = vsel %vm2697, %v4614, %v4616
      %v4618 = vrot.slane %v4407, 1
      %v4619 = vrot.slane %v4408, 1
      %v4620 = vsel %vm2697, %v4618, %v4619
      %v4621 = vrot.slane %v4409, 1
      %v4622 = vsel %vm2697, %v4619, %v4621
      %v4623 = vrot.slane %v4410, 1
      %v4624 = vrot.slane %v4411, 1
      %v4625 = vsel %vm2697, %v4623, %v4624
      %v4626 = vrot.slane %v4412, 1
      %v4627 = vsel %vm2697, %v4624, %v4626
      %v4628 = vrot.slane %v4413, 1
      %v4629 = vrot.slane %v4414, 1
      %v4630 = vsel %vm2697, %v4628, %v4629
      %v4631 = vrot.slane %v4415, 1
      %v4632 = vsel %vm2697, %v4629, %v4631
      %v4633 = vrot.slane %v4416, 1
      %v4634 = vrot.slane %v4417, 1
      %v4635 = vsel %vm2697, %v4633, %v4634
      %v4636 = vrot.slane %v4418, 1
      %v4637 = vsel %vm2697, %v4634, %v4636
      %v4638 = vrot.slane %v4419, 1
      %v4639 = vrot.slane %v4420, 1
      %v4640 = vsel %vm2697, %v4638, %v4639
      %v4641 = vrot.slane %v4421, 1
      %v4642 = vsel %vm2697, %v4639, %v4641
      %v4659 = vadd.f32 %v4249, %v4605
      %v4660 = vadd.f32 %v4250, %v4607
      %v4661 = vadd.f32 %v4251, %v4610
      %v4662 = vadd.f32 %v4252, %v4612
      %v4663 = vadd.f32 %v4253, %v4615
      %v4664 = vadd.f32 %v4254, %v4617
      %v4665 = vadd.f32 %v4255, %v4620
      %v4666 = vadd.f32 %v4256, %v4622
      %v4667 = vadd.f32 %v4257, %v4625
      %v4668 = vadd.f32 %v4258, %v4627
      %v4669 = vadd.f32 %v4259, %v4630
      %v4670 = vadd.f32 %v4260, %v4632
      %v4671 = vadd.f32 %v4261, %v4635
      %v4672 = vadd.f32 %v4262, %v4637
      %v4673 = vadd.f32 %v4263, %v4640
      %v4674 = vadd.f32 %v4264, %v4642
      %v4699 = vrot.slane %v4555, 2
      %v4700 = vrot.slane %v4556, 2
      %v4701 = vsel %vm2794, %v4699, %v4700
      %v4702 = vrot.slane %v4557, 2
      %v4703 = vsel %vm2794, %v4700, %v4702
      %v4704 = vrot.slane %v4558, 2
      %v4705 = vrot.slane %v4559, 2
      %v4706 = vsel %vm2794, %v4704, %v4705
      %v4707 = vrot.slane %v4560, 2
      %v4708 = vsel %vm2794, %v4705, %v4707
      %v4709 = vrot.slane %v4561, 2
      %v4710 = vrot.slane %v4562, 2
      %v4711 = vsel %vm2794, %v4709, %v4710
      %v4712 = vrot.slane %v4563, 2
      %v4713 = vsel %vm2794, %v4710, %v4712
      %v4714 = vrot.slane %v4564, 2
      %v4715 = vrot.slane %v4565, 2
      %v4716 = vsel %vm2794, %v4714, %v4715
      %v4717 = vrot.slane %v4566, 2
      %v4718 = vsel %vm2794, %v4715, %v4717
      %v4719 = vrot.slane %v4567, 2
      %v4720 = vrot.slane %v4568, 2
      %v4721 = vsel %vm2794, %v4719, %v4720
      %v4722 = vrot.slane %v4569, 2
      %v4723 = vsel %vm2794, %v4720, %v4722
      %v4724 = vrot.slane %v4570, 2
      %v4725 = vrot.slane %v4571, 2
      %v4726 = vsel %vm2794, %v4724, %v4725
      %v4727 = vrot.slane %v4572, 2
      %v4728 = vsel %vm2794, %v4725, %v4727
      %v4729 = vrot.slane %v4573, 2
      %v4730 = vrot.slane %v4574, 2
      %v4731 = vsel %vm2794, %v4729, %v4730
      %v4732 = vrot.slane %v4575, 2
      %v4733 = vsel %vm2794, %v4730, %v4732
      %v4734 = vrot.slane %v4576, 2
      %v4735 = vrot.slane %v4577, 2
      %v4736 = vsel %vm2794, %v4734, %v4735
      %v4737 = vrot.slane %v4578, 2
      %v4738 = vsel %vm2794, %v4735, %v4737
      %v4755 = vadd.f32 %v4659, %v4701
      %v4756 = vadd.f32 %v4660, %v4703
      %v4757 = vadd.f32 %v4661, %v4706
      %v4758 = vadd.f32 %v4662, %v4708
      %v4759 = vadd.f32 %v4663, %v4711
      %v4760 = vadd.f32 %v4664, %v4713
      %v4761 = vadd.f32 %v4665, %v4716
      %v4762 = vadd.f32 %v4666, %v4718
      %v4763 = vadd.f32 %v4667, %v4721
      %v4764 = vadd.f32 %v4668, %v4723
      %v4765 = vadd.f32 %v4669, %v4726
      %v4766 = vadd.f32 %v4670, %v4728
      %v4767 = vadd.f32 %v4671, %v4731
      %v4768 = vadd.f32 %v4672, %v4733
      %v4769 = vadd.f32 %v4673, %v4736
      %v4770 = vadd.f32 %v4674, %v4738
      %s4771 = scalar_lea.vmem [#allocation3], 128
      %4772 = vst.msk [vmem:[%s4771] sm:$0xff] %vm1180, %v4755
      %4773 = vst.msk [vmem:[%s4771 + $0x8] sm:$0xff] %vm1180, %v4756
      %4774 = vst.msk [vmem:[%s4771 + $0x10] sm:$0xff] %vm1180, %v4757
      %4775 = vst.msk [vmem:[%s4771 + $0x18] sm:$0xff] %vm1180, %v4758
      %4776 = vst.msk [vmem:[%s4771 + $0x20] sm:$0xff] %vm1180, %v4759
      %4777 = vst.msk [vmem:[%s4771 + $0x28] sm:$0xff] %vm1180, %v4760
      %4778 = vst.msk [vmem:[%s4771 + $0x30] sm:$0xff] %vm1180, %v4761
      %4779 = vst.msk [vmem:[%s4771 + $0x38] sm:$0xff] %vm1180, %v4762
      %4780 = vst.msk [vmem:[%s4771 + $0x40] sm:$0xff] %vm1180, %v4763
      %4781 = vst.msk [vmem:[%s4771 + $0x48] sm:$0xff] %vm1180, %v4764
      %4782 = vst.msk [vmem:[%s4771 + $0x50] sm:$0xff] %vm1180, %v4765
      %4783 = vst.msk [vmem:[%s4771 + $0x58] sm:$0xff] %vm1180, %v4766
      %4784 = vst.msk [vmem:[%s4771 + $0x60] sm:$0xff] %vm1180, %v4767
      %4785 = vst.msk [vmem:[%s4771 + $0x68] sm:$0xff] %vm1180, %v4768
      %4786 = vst.msk [vmem:[%s4771 + $0x70] sm:$0xff] %vm1180, %v4769
      %4787 = vst.msk [vmem:[%s4771 + $0x78] sm:$0xff] %vm1180, %v4770
      %v4788 = vsel %vm1180, %v4755, 0.0
      %v4789 = vsel %vm1180, %v4757, 0.0
      %v4790 = vadd.f32 %v4788, %v4789
      %v4791 = vsel %vm1180, %v4759, 0.0
      %v4792 = vadd.f32 %v4790, %v4791
      %v4793 = vsel %vm1180, %v4761, 0.0
      %v4794 = vadd.f32 %v4792, %v4793
      %v4795 = vsel %vm1180, %v4763, 0.0
      %v4796 = vadd.f32 %v4794, %v4795
      %v4797 = vsel %vm1180, %v4765, 0.0
      %v4798 = vadd.f32 %v4796, %v4797
      %v4799 = vsel %vm1180, %v4767, 0.0
      %v4800 = vadd.f32 %v4798, %v4799
      %v4801 = vsel %vm1180, %v4769, 0.0
      %v4802 = vadd.f32 %v4800, %v4801
      %v4803 = vsel %vm1180, %v4756, 0.0
      %v4804 = vsel %vm1180, %v4758, 0.0
      %v4805 = vadd.f32 %v4803, %v4804
      %v4806 = vsel %vm1180, %v4760, 0.0
      %v4807 = vadd.f32 %v4805, %v4806
      %v4808 = vsel %vm1180, %v4762, 0.0
      %v4809 = vadd.f32 %v4807, %v4808
      %v4810 = vsel %vm1180, %v4764, 0.0
      %v4811 = vadd.f32 %v4809, %v4810
      %v4812 = vsel %vm1180, %v4766, 0.0
      %v4813 = vadd.f32 %v4811, %v4812
      %v4814 = vsel %vm1180, %v4768, 0.0
      %v4815 = vadd.f32 %v4813, %v4814
      %v4816 = vsel %vm1180, %v4770, 0.0
      %v4817 = vadd.f32 %v4815, %v4816
      %v4818 = vsel %vm1180, %v4802, 0.0
      %v4819 = vsel %vm1180, %v4817, 0.0
      %v4820 = vadd.f32 %v4818, %v4819
      %v4821 = vrot.slane %v4820, 4
      %v4822 = vadd.f32 %v4820, %v4821
      %v4823 = vrot.slane %v4822, 2
      %v4824 = vadd.f32 %v4822, %v4823
      %v4825 = vrot.slane %v4824, 1
      %v4826 = vadd.f32 %v4824, %v4825
      %v4827 = vadd.f32 %v2922, %v4826
      %v4828 = vmul.f32 %v4755, %v4755
      %v4829 = vmul.f32 %v4756, %v4756
      %v4830 = vmul.f32 %v4757, %v4757
      %v4831 = vmul.f32 %v4758, %v4758
      %v4832 = vmul.f32 %v4759, %v4759
      %v4833 = vmul.f32 %v4760, %v4760
      %v4834 = vmul.f32 %v4761, %v4761
      %v4835 = vmul.f32 %v4762, %v4762
      %v4836 = vmul.f32 %v4763, %v4763
      %v4837 = vmul.f32 %v4764, %v4764
      %v4838 = vmul.f32 %v4765, %v4765
      %v4839 = vmul.f32 %v4766, %v4766
      %v4840 = vmul.f32 %v4767, %v4767
      %v4841 = vmul.f32 %v4768, %v4768
      %v4842 = vmul.f32 %v4769, %v4769
      %v4843 = vmul.f32 %v4770, %v4770
      %v4844 = vsel %vm1180, %v4828, 0.0
      %v4845 = vsel %vm1180, %v4830, 0.0
      %v4846 = vadd.f32 %v4844, %v4845
      %v4847 = vsel %vm1180, %v4832, 0.0
      %v4848 = vadd.f32 %v4846, %v4847
      %v4849 = vsel %vm1180, %v4834, 0.0
      %v4850 = vadd.f32 %v4848, %v4849
      %v4851 = vsel %vm1180, %v4836, 0.0
      %v4852 = vadd.f32 %v4850, %v4851
      %v4853 = vsel %vm1180, %v4838, 0.0
      %v4854 = vadd.f32 %v4852, %v4853
      %v4855 = vsel %vm1180, %v4840, 0.0
      %v4856 = vadd.f32 %v4854, %v4855
      %v4857 = vsel %vm1180, %v4842, 0.0
      %v4858 = vadd.f32 %v4856, %v4857
      %v4859 = vsel %vm1180, %v4829, 0.0
      %v4860 = vsel %vm1180, %v4831, 0.0
      %v4861 = vadd.f32 %v4859, %v4860
      %v4862 = vsel %vm1180, %v4833, 0.0
      %v4863 = vadd.f32 %v4861, %v4862
      %v4864 = vsel %vm1180, %v4835, 0.0
      %v4865 = vadd.f32 %v4863, %v4864
      %v4866 = vsel %vm1180, %v4837, 0.0
      %v4867 = vadd.f32 %v4865, %v4866
      %v4868 = vsel %vm1180, %v4839, 0.0
      %v4869 = vadd.f32 %v4867, %v4868
      %v4870 = vsel %vm1180, %v4841, 0.0
      %v4871 = vadd.f32 %v4869, %v4870
      %v4872 = vsel %vm1180, %v4843, 0.0
      %v4873 = vadd.f32 %v4871, %v4872
      %v4874 = vsel %vm1180, %v4858, 0.0
      %v4875 = vsel %vm1180, %v4873, 0.0
      %v4876 = vadd.f32 %v4874, %v4875
      %v4877 = vrot.slane %v4876, 4
      %v4878 = vadd.f32 %v4876, %v4877
      %v4879 = vrot.slane %v4878, 2
      %v4880 = vadd.f32 %v4878, %v4879
      %v4881 = vrot.slane %v4880, 1
      %v4882 = vadd.f32 %v4880, %v4881
      %v4883 = vadd.f32 %v2978, %v4882
      %v4884 = vmul.f32 %v4827, 0.00390625
      %v4885 = vmul.f32 %v4883, 0.00390625
      %v4886 = vmul.f32 %v4884, %v4884
      %v4887 = vsub.f32 %v4885, %v4886
      %v4888 = vmax.f32 %v4887, 0.0
      %v4889 = vld [vmem:[#allocation3] sm:$0xff]
      %v4890 = vld [vmem:[#allocation3 + $0x8] sm:$0xff]
      %v4891 = vld [vmem:[#allocation3 + $0x10] sm:$0xff]
      %v4892 = vld [vmem:[#allocation3 + $0x18] sm:$0xff]
      %v4893 = vld [vmem:[#allocation3 + $0x20] sm:$0xff]
      %v4894 = vld [vmem:[#allocation3 + $0x28] sm:$0xff]
      %v4895 = vld [vmem:[#allocation3 + $0x30] sm:$0xff]
      %v4896 = vld [vmem:[#allocation3 + $0x38] sm:$0xff]
      %v4897 = vld [vmem:[#allocation3 + $0x40] sm:$0xff]
      %v4898 = vld [vmem:[#allocation3 + $0x48] sm:$0xff]
      %v4899 = vld [vmem:[#allocation3 + $0x50] sm:$0xff]
      %v4900 = vld [vmem:[#allocation3 + $0x58] sm:$0xff]
      %v4901 = vld [vmem:[#allocation3 + $0x60] sm:$0xff]
      %v4902 = vld [vmem:[#allocation3 + $0x68] sm:$0xff]
      %v4903 = vld [vmem:[#allocation3 + $0x70] sm:$0xff]
      %v4904 = vld [vmem:[#allocation3 + $0x78] sm:$0xff]
      %v4905 = vld [vmem:[#allocation3 + $0x80] sm:$0xff]
      %v4906 = vld [vmem:[#allocation3 + $0x88] sm:$0xff]
      %v4907 = vld [vmem:[#allocation3 + $0x90] sm:$0xff]
      %v4908 = vld [vmem:[#allocation3 + $0x98] sm:$0xff]
      %v4909 = vld [vmem:[#allocation3 + $0xa0] sm:$0xff]
      %v4910 = vld [vmem:[#allocation3 + $0xa8] sm:$0xff]
      %v4911 = vld [vmem:[#allocation3 + $0xb0] sm:$0xff]
      %v4912 = vld [vmem:[#allocation3 + $0xb8] sm:$0xff]
      %v4913 = vld [vmem:[#allocation3 + $0xc0] sm:$0xff]
      %v4914 = vld [vmem:[#allocation3 + $0xc8] sm:$0xff]
      %v4915 = vld [vmem:[#allocation3 + $0xd0] sm:$0xff]
      %v4916 = vld [vmem:[#allocation3 + $0xd8] sm:$0xff]
      %v4917 = vld [vmem:[#allocation3 + $0xe0] sm:$0xff]
      %v4918 = vld [vmem:[#allocation3 + $0xe8] sm:$0xff]
      %v4919 = vld [vmem:[#allocation3 + $0xf0] sm:$0xff]
      %v4920 = vld [vmem:[#allocation3 + $0xf8] sm:$0xff]
      %v4921 = vsub.f32 %v4889, %v4884
      %v4922 = vsub.f32 %v4890, %v4884
      %v4923 = vsub.f32 %v4891, %v4884
      %v4924 = vsub.f32 %v4892, %v4884
      %v4925 = vsub.f32 %v4893, %v4884
      %v4926 = vsub.f32 %v4894, %v4884
      %v4927 = vsub.f32 %v4895, %v4884
      %v4928 = vsub.f32 %v4896, %v4884
      %v4929 = vsub.f32 %v4897, %v4884
      %v4930 = vsub.f32 %v4898, %v4884
      %v4931 = vsub.f32 %v4899, %v4884
      %v4932 = vsub.f32 %v4900, %v4884
      %v4933 = vsub.f32 %v4901, %v4884
      %v4934 = vsub.f32 %v4902, %v4884
      %v4935 = vsub.f32 %v4903, %v4884
      %v4936 = vsub.f32 %v4904, %v4884
      %v4937 = vsub.f32 %v4905, %v4884
      %v4938 = vsub.f32 %v4906, %v4884
      %v4939 = vsub.f32 %v4907, %v4884
      %v4940 = vsub.f32 %v4908, %v4884
      %v4941 = vsub.f32 %v4909, %v4884
      %v4942 = vsub.f32 %v4910, %v4884
      %v4943 = vsub.f32 %v4911, %v4884
      %v4944 = vsub.f32 %v4912, %v4884
      %v4945 = vsub.f32 %v4913, %v4884
      %v4946 = vsub.f32 %v4914, %v4884
      %v4947 = vsub.f32 %v4915, %v4884
      %v4948 = vsub.f32 %v4916, %v4884
      %v4949 = vsub.f32 %v4917, %v4884
      %v4950 = vsub.f32 %v4918, %v4884
      %v4951 = vsub.f32 %v4919, %v4884
      %v4952 = vsub.f32 %v4920, %v4884
      %v4953 = vadd.f32 %v4888, 1e-05
      %v4954 = vrsqrt.pop %v4953
      %v4955 = vmul.f32 %v4921, %v4954
      %v4956 = vmul.f32 %v4922, %v4954
      %v4957 = vmul.f32 %v4923, %v4954
      %v4958 = vmul.f32 %v4924, %v4954
      %v4959 = vmul.f32 %v4925, %v4954
      %v4960 = vmul.f32 %v4926, %v4954
      %v4961 = vmul.f32 %v4927, %v4954
      %v4962 = vmul.f32 %v4928, %v4954
      %v4963 = vmul.f32 %v4929, %v4954
      %v4964 = vmul.f32 %v4930, %v4954
      %v4965 = vmul.f32 %v4931, %v4954
      %v4966 = vmul.f32 %v4932, %v4954
      %v4967 = vmul.f32 %v4933, %v4954
      %v4968 = vmul.f32 %v4934, %v4954
      %v4969 = vmul.f32 %v4935, %v4954
      %v4970 = vmul.f32 %v4936, %v4954
      %v4971 = vmul.f32 %v4937, %v4954
      %v4972 = vmul.f32 %v4938, %v4954
      %v4973 = vmul.f32 %v4939, %v4954
      %v4974 = vmul.f32 %v4940, %v4954
      %v4975 = vmul.f32 %v4941, %v4954
      %v4976 = vmul.f32 %v4942, %v4954
      %v4977 = vmul.f32 %v4943, %v4954
      %v4978 = vmul.f32 %v4944, %v4954
      %v4979 = vmul.f32 %v4945, %v4954
      %v4980 = vmul.f32 %v4946, %v4954
      %v4981 = vmul.f32 %v4947, %v4954
      %v4982 = vmul.f32 %v4948, %v4954
      %v4983 = vmul.f32 %v4949, %v4954
      %v4984 = vmul.f32 %v4950, %v4954
      %v4985 = vmul.f32 %v4951, %v4954
      %v4986 = vmul.f32 %v4952, %v4954
      %v4987 = vmax.f32 %v4955, 0.0
      %v4988 = vmax.f32 %v4956, 0.0
      %v4989 = vmax.f32 %v4957, 0.0
      %v4990 = vmax.f32 %v4958, 0.0
      %v4991 = vmax.f32 %v4959, 0.0
      %v4992 = vmax.f32 %v4960, 0.0
      %v4993 = vmax.f32 %v4961, 0.0
      %v4994 = vmax.f32 %v4962, 0.0
      %v4995 = vmax.f32 %v4963, 0.0
      %v4996 = vmax.f32 %v4964, 0.0
      %v4997 = vmax.f32 %v4965, 0.0
      %v4998 = vmax.f32 %v4966, 0.0
      %v4999 = vmax.f32 %v4967, 0.0
      %v5000 = vmax.f32 %v4968, 0.0
      %v5001 = vmax.f32 %v4969, 0.0
      %v5002 = vmax.f32 %v4970, 0.0
      %v5003 = vmax.f32 %v4971, 0.0
      %v5004 = vmax.f32 %v4972, 0.0
      %v5005 = vmax.f32 %v4973, 0.0
      %v5006 = vmax.f32 %v4974, 0.0
      %v5007 = vmax.f32 %v4975, 0.0
      %v5008 = vmax.f32 %v4976, 0.0
      %v5009 = vmax.f32 %v4977, 0.0
      %v5010 = vmax.f32 %v4978, 0.0
      %v5011 = vmax.f32 %v4979, 0.0
      %v5012 = vmax.f32 %v4980, 0.0
      %v5013 = vmax.f32 %v4981, 0.0
      %v5014 = vmax.f32 %v4982, 0.0
      %v5015 = vmax.f32 %v4983, 0.0
      %v5016 = vmax.f32 %v4984, 0.0
      %v5017 = vmax.f32 %v4985, 0.0
      %v5018 = vmax.f32 %v4986, 0.0
      %v5019 = vpack.c.bf16 %v4988, %v4987
      %v5020 = vpack.c.bf16 %v4990, %v4989
      %v5021 = vpack.c.bf16 %v4992, %v4991
      %v5022 = vpack.c.bf16 %v4994, %v4993
      %v5023 = vpack.c.bf16 %v4996, %v4995
      %v5024 = vpack.c.bf16 %v4998, %v4997
      %v5025 = vpack.c.bf16 %v5000, %v4999
      %v5026 = vpack.c.bf16 %v5002, %v5001
      %v5027 = vpack.c.bf16 %v5004, %v5003
      %v5028 = vpack.c.bf16 %v5006, %v5005
      %v5029 = vpack.c.bf16 %v5008, %v5007
      %v5030 = vpack.c.bf16 %v5010, %v5009
      %v5031 = vpack.c.bf16 %v5012, %v5011
      %v5032 = vpack.c.bf16 %v5014, %v5013
      %v5033 = vpack.c.bf16 %v5016, %v5015
      %v5034 = vpack.c.bf16 %v5018, %v5017
      %v5051 = vunpack.c.l.b16 %v5019
      %v5052 = vunpack.c.h.b16 %v5019
      %v5053 = vunpack.c.l.b16 %v5020
      %v5054 = vunpack.c.h.b16 %v5020
      %v5055 = vunpack.c.l.b16 %v5021
      %v5056 = vunpack.c.h.b16 %v5021
      %v5057 = vunpack.c.l.b16 %v5022
      %v5058 = vunpack.c.h.b16 %v5022
      %v5059 = vunpack.c.l.b16 %v5023
      %v5060 = vunpack.c.h.b16 %v5023
      %v5061 = vunpack.c.l.b16 %v5024
      %v5062 = vunpack.c.h.b16 %v5024
      %v5063 = vunpack.c.l.b16 %v5025
      %v5064 = vunpack.c.h.b16 %v5025
      %v5065 = vunpack.c.l.b16 %v5026
      %v5066 = vunpack.c.h.b16 %v5026
      %v5067 = vunpack.c.l.b16 %v5027
      %v5068 = vunpack.c.h.b16 %v5027
      %v5069 = vunpack.c.l.b16 %v5028
      %v5070 = vunpack.c.h.b16 %v5028
      %v5071 = vunpack.c.l.b16 %v5029
      %v5072 = vunpack.c.h.b16 %v5029
      %v5073 = vunpack.c.l.b16 %v5030
      %v5074 = vunpack.c.h.b16 %v5030
      %v5075 = vunpack.c.l.b16 %v5031
      %v5076 = vunpack.c.h.b16 %v5031
      %v5077 = vunpack.c.l.b16 %v5032
      %v5078 = vunpack.c.h.b16 %v5032
      %v5079 = vunpack.c.l.b16 %v5033
      %v5080 = vunpack.c.h.b16 %v5033
      %v5081 = vunpack.c.l.b16 %v5034
      %v5082 = vunpack.c.h.b16 %v5034
      %v5083 = vpack.c.b16 %v5051, %v5051
      %v5084 = vpack.c.b16 %v5052, %v5052
      %v5085 = vpack.c.b16 %v5053, %v5053
      %v5086 = vpack.c.b16 %v5054, %v5054
      %v5087 = vpack.c.b16 %v5055, %v5055
      %v5088 = vpack.c.b16 %v5056, %v5056
      %v5089 = vpack.c.b16 %v5057, %v5057
      %v5090 = vpack.c.b16 %v5058, %v5058
      %v5091 = vpack.c.b16 %v5059, %v5059
      %v5092 = vpack.c.b16 %v5060, %v5060
      %v5093 = vpack.c.b16 %v5061, %v5061
      %v5094 = vpack.c.b16 %v5062, %v5062
      %v5095 = vpack.c.b16 %v5063, %v5063
      %v5096 = vpack.c.b16 %v5064, %v5064
      %v5097 = vpack.c.b16 %v5065, %v5065
      %v5098 = vpack.c.b16 %v5066, %v5066
      %v5099 = vpack.c.b16 %v5067, %v5067
      %v5100 = vpack.c.b16 %v5068, %v5068
      %v5101 = vpack.c.b16 %v5069, %v5069
      %v5102 = vpack.c.b16 %v5070, %v5070
      %v5103 = vpack.c.b16 %v5071, %v5071
      %v5104 = vpack.c.b16 %v5072, %v5072
      %v5105 = vpack.c.b16 %v5073, %v5073
      %v5106 = vpack.c.b16 %v5074, %v5074
      %v5107 = vpack.c.b16 %v5075, %v5075
      %v5108 = vpack.c.b16 %v5076, %v5076
      %v5109 = vpack.c.b16 %v5077, %v5077
      %v5110 = vpack.c.b16 %v5078, %v5078
      %v5111 = vpack.c.b16 %v5079, %v5079
      %v5112 = vpack.c.b16 %v5080, %v5080
      %v5113 = vpack.c.b16 %v5081, %v5081
      %v5114 = vpack.c.b16 %v5082, %v5082
      %v5116 = vshrl.u32 %v5083, 16
      %v5118 = vrot.slane %v5116, 7
      %v5119 = vshll.u32 %v5083, 16
      %v5121 = vor.u32 %v5118, %v5119
      %v5122 = vrot.slane %v5118, 4
      %v5124 = vshrl.u32 %v5084, 16
      %v5126 = vrot.slane %v5124, 7
      %v5127 = vshll.u32 %v5084, 16
      %v5129 = vor.u32 %v5126, %v5127
      %v5130 = vsel %vm321, %v5122, %v5129
      %v5131 = vrot.slane %v5126, 4
      %v5133 = vshrl.u32 %v5085, 16
      %v5135 = vrot.slane %v5133, 7
      %v5136 = vshll.u32 %v5085, 16
      %v5138 = vor.u32 %v5135, %v5136
      %v5139 = vrot.slane %v5135, 4
      %v5141 = vshrl.u32 %v5086, 16
      %v5143 = vrot.slane %v5141, 7
      %v5144 = vshll.u32 %v5086, 16
      %v5146 = vor.u32 %v5143, %v5144
      %v5147 = vsel %vm321, %v5139, %v5146
      %v5148 = vrot.slane %v5143, 4
      %v5150 = vshrl.u32 %v5087, 16
      %v5152 = vrot.slane %v5150, 7
      %v5153 = vshll.u32 %v5087, 16
      %v5155 = vor.u32 %v5152, %v5153
      %v5156 = vrot.slane %v5152, 4
      %v5158 = vshrl.u32 %v5088, 16
      %v5160 = vrot.slane %v5158, 7
      %v5161 = vshll.u32 %v5088, 16
      %v5163 = vor.u32 %v5160, %v5161
      %v5164 = vsel %vm321, %v5156, %v5163
      %v5165 = vrot.slane %v5160, 4
      %v5167 = vshrl.u32 %v5089, 16
      %v5169 = vrot.slane %v5167, 7
      %v5170 = vshll.u32 %v5089, 16
      %v5172 = vor.u32 %v5169, %v5170
      %v5173 = vrot.slane %v5169, 4
      %v5175 = vshrl.u32 %v5090, 16
      %v5177 = vrot.slane %v5175, 7
      %v5178 = vshll.u32 %v5090, 16
      %v5180 = vor.u32 %v5177, %v5178
      %v5181 = vsel %vm321, %v5173, %v5180
      %v5182 = vrot.slane %v5177, 4
      %v5184 = vshrl.u32 %v5091, 16
      %v5186 = vrot.slane %v5184, 7
      %v5187 = vshll.u32 %v5091, 16
      %v5189 = vor.u32 %v5186, %v5187
      %v5190 = vrot.slane %v5186, 4
      %v5192 = vshrl.u32 %v5092, 16
      %v5194 = vrot.slane %v5192, 7
      %v5195 = vshll.u32 %v5092, 16
      %v5197 = vor.u32 %v5194, %v5195
      %v5198 = vsel %vm321, %v5190, %v5197
      %v5199 = vrot.slane %v5194, 4
      %v5201 = vshrl.u32 %v5093, 16
      %v5203 = vrot.slane %v5201, 7
      %v5204 = vshll.u32 %v5093, 16
      %v5206 = vor.u32 %v5203, %v5204
      %v5207 = vrot.slane %v5203, 4
      %v5209 = vshrl.u32 %v5094, 16
      %v5211 = vrot.slane %v5209, 7
      %v5212 = vshll.u32 %v5094, 16
      %v5214 = vor.u32 %v5211, %v5212
      %v5215 = vsel %vm321, %v5207, %v5214
      %v5216 = vrot.slane %v5211, 4
      %v5218 = vshrl.u32 %v5095, 16
      %v5220 = vrot.slane %v5218, 7
      %v5221 = vshll.u32 %v5095, 16
      %v5223 = vor.u32 %v5220, %v5221
      %v5224 = vrot.slane %v5220, 4
      %v5226 = vshrl.u32 %v5096, 16
      %v5228 = vrot.slane %v5226, 7
      %v5229 = vshll.u32 %v5096, 16
      %v5231 = vor.u32 %v5228, %v5229
      %v5232 = vsel %vm321, %v5224, %v5231
      %v5233 = vrot.slane %v5228, 4
      %v5235 = vshrl.u32 %v5097, 16
      %v5237 = vrot.slane %v5235, 7
      %v5238 = vshll.u32 %v5097, 16
      %v5240 = vor.u32 %v5237, %v5238
      %v5241 = vrot.slane %v5237, 4
      %v5243 = vshrl.u32 %v5098, 16
      %v5245 = vrot.slane %v5243, 7
      %v5246 = vshll.u32 %v5098, 16
      %v5248 = vor.u32 %v5245, %v5246
      %v5249 = vsel %vm321, %v5241, %v5248
      %v5250 = vrot.slane %v5245, 4
      %v5252 = vshrl.u32 %v5099, 16
      %v5254 = vrot.slane %v5252, 7
      %v5255 = vshll.u32 %v5099, 16
      %v5257 = vor.u32 %v5254, %v5255
      %v5258 = vrot.slane %v5254, 4
      %v5260 = vshrl.u32 %v5100, 16
      %v5262 = vrot.slane %v5260, 7
      %v5263 = vshll.u32 %v5100, 16
      %v5265 = vor.u32 %v5262, %v5263
      %v5266 = vsel %vm321, %v5258, %v5265
      %v5267 = vrot.slane %v5262, 4
      %v5269 = vshrl.u32 %v5101, 16
      %v5271 = vrot.slane %v5269, 7
      %v5272 = vshll.u32 %v5101, 16
      %v5274 = vor.u32 %v5271, %v5272
      %v5275 = vrot.slane %v5271, 4
      %v5277 = vshrl.u32 %v5102, 16
      %v5279 = vrot.slane %v5277, 7
      %v5280 = vshll.u32 %v5102, 16
      %v5282 = vor.u32 %v5279, %v5280
      %v5283 = vsel %vm321, %v5275, %v5282
      %v5284 = vrot.slane %v5279, 4
      %v5286 = vshrl.u32 %v5103, 16
      %v5288 = vrot.slane %v5286, 7
      %v5289 = vshll.u32 %v5103, 16
      %v5291 = vor.u32 %v5288, %v5289
      %v5292 = vrot.slane %v5288, 4
      %v5294 = vshrl.u32 %v5104, 16
      %v5296 = vrot.slane %v5294, 7
      %v5297 = vshll.u32 %v5104, 16
      %v5299 = vor.u32 %v5296, %v5297
      %v5300 = vsel %vm321, %v5292, %v5299
      %v5301 = vrot.slane %v5296, 4
      %v5303 = vshrl.u32 %v5105, 16
      %v5305 = vrot.slane %v5303, 7
      %v5306 = vshll.u32 %v5105, 16
      %v5308 = vor.u32 %v5305, %v5306
      %v5309 = vrot.slane %v5305, 4
      %v5311 = vshrl.u32 %v5106, 16
      %v5313 = vrot.slane %v5311, 7
      %v5314 = vshll.u32 %v5106, 16
      %v5316 = vor.u32 %v5313, %v5314
      %v5317 = vsel %vm321, %v5309, %v5316
      %v5318 = vrot.slane %v5313, 4
      %v5320 = vshrl.u32 %v5107, 16
      %v5322 = vrot.slane %v5320, 7
      %v5323 = vshll.u32 %v5107, 16
      %v5325 = vor.u32 %v5322, %v5323
      %v5326 = vrot.slane %v5322, 4
      %v5328 = vshrl.u32 %v5108, 16
      %v5330 = vrot.slane %v5328, 7
      %v5331 = vshll.u32 %v5108, 16
      %v5333 = vor.u32 %v5330, %v5331
      %v5334 = vsel %vm321, %v5326, %v5333
      %v5335 = vrot.slane %v5330, 4
      %v5337 = vshrl.u32 %v5109, 16
      %v5339 = vrot.slane %v5337, 7
      %v5340 = vshll.u32 %v5109, 16
      %v5342 = vor.u32 %v5339, %v5340
      %v5343 = vrot.slane %v5339, 4
      %v5345 = vshrl.u32 %v5110, 16
      %v5347 = vrot.slane %v5345, 7
      %v5348 = vshll.u32 %v5110, 16
      %v5350 = vor.u32 %v5347, %v5348
      %v5351 = vsel %vm321, %v5343, %v5350
      %v5352 = vrot.slane %v5347, 4
      %v5354 = vshrl.u32 %v5111, 16
      %v5356 = vrot.slane %v5354, 7
      %v5357 = vshll.u32 %v5111, 16
      %v5359 = vor.u32 %v5356, %v5357
      %v5360 = vrot.slane %v5356, 4
      %v5362 = vshrl.u32 %v5112, 16
      %v5364 = vrot.slane %v5362, 7
      %v5365 = vshll.u32 %v5112, 16
      %v5367 = vor.u32 %v5364, %v5365
      %v5368 = vsel %vm321, %v5360, %v5367
      %v5369 = vrot.slane %v5364, 4
      %v5371 = vshrl.u32 %v5113, 16
      %v5373 = vrot.slane %v5371, 7
      %v5374 = vshll.u32 %v5113, 16
      %v5376 = vor.u32 %v5373, %v5374
      %v5377 = vrot.slane %v5373, 4
      %v5379 = vshrl.u32 %v5114, 16
      %v5381 = vrot.slane %v5379, 7
      %v5382 = vshll.u32 %v5114, 16
      %v5384 = vor.u32 %v5381, %v5382
      %v5385 = vsel %vm321, %v5377, %v5384
      %v5386 = vrot.slane %v5381, 4
      %v5435 = vld [vmem:[%s642] sm:$0xf]
      %v5436 = vsel %vm645, %v5121, %v5435
      %5437 = vst [vmem:[%s642] sm:$0xf] %v5436
      %5438 = vst.msk [vmem:[%s642 + $0x4] sm:$0xf] %vm649, %v5130
      %v5439 = vld [vmem:[%s642 + $0x8] sm:$0x1]
      %v5440 = vsel %vm652, %v5131, %v5439
      %5441 = vst [vmem:[%s642 + $0x8] sm:$0x1] %v5440
      %v5442 = vld [vmem:[%s642 + $0xc] sm:$0xf]
      %v5443 = vsel %vm645, %v5138, %v5442
      %5444 = vst [vmem:[%s642 + $0xc] sm:$0xf] %v5443
      %5445 = vst.msk [vmem:[%s642 + $0x10] sm:$0xf] %vm649, %v5147
      %v5446 = vld [vmem:[%s642 + $0x14] sm:$0x1]
      %v5447 = vsel %vm652, %v5148, %v5446
      %5448 = vst [vmem:[%s642 + $0x14] sm:$0x1] %v5447
      %v5449 = vld [vmem:[%s642 + $0x18] sm:$0xf]
      %v5450 = vsel %vm645, %v5155, %v5449
      %5451 = vst [vmem:[%s642 + $0x18] sm:$0xf] %v5450
      %5452 = vst.msk [vmem:[%s642 + $0x1c] sm:$0xf] %vm649, %v5164
      %v5453 = vld [vmem:[%s642 + $0x20] sm:$0x1]
      %v5454 = vsel %vm652, %v5165, %v5453
      %5455 = vst [vmem:[%s642 + $0x20] sm:$0x1] %v5454
      %v5456 = vld [vmem:[%s642 + $0x24] sm:$0xf]
      %v5457 = vsel %vm645, %v5172, %v5456
      %5458 = vst [vmem:[%s642 + $0x24] sm:$0xf] %v5457
      %5459 = vst.msk [vmem:[%s642 + $0x28] sm:$0xf] %vm649, %v5181
      %v5460 = vld [vmem:[%s642 + $0x2c] sm:$0x1]
      %v5461 = vsel %vm652, %v5182, %v5460
      %5462 = vst [vmem:[%s642 + $0x2c] sm:$0x1] %v5461
      %v5463 = vld [vmem:[%s642 + $0x30] sm:$0xf]
      %v5464 = vsel %vm645, %v5189, %v5463
      %5465 = vst [vmem:[%s642 + $0x30] sm:$0xf] %v5464
      %5466 = vst.msk [vmem:[%s642 + $0x34] sm:$0xf] %vm649, %v5198
      %v5467 = vld [vmem:[%s642 + $0x38] sm:$0x1]
      %v5468 = vsel %vm652, %v5199, %v5467
      %5469 = vst [vmem:[%s642 + $0x38] sm:$0x1] %v5468
      %v5470 = vld [vmem:[%s642 + $0x3c] sm:$0xf]
      %v5471 = vsel %vm645, %v5206, %v5470
      %5472 = vst [vmem:[%s642 + $0x3c] sm:$0xf] %v5471
      %5473 = vst.msk [vmem:[%s642 + $0x40] sm:$0xf] %vm649, %v5215
      %v5474 = vld [vmem:[%s642 + $0x44] sm:$0x1]
      %v5475 = vsel %vm652, %v5216, %v5474
      %5476 = vst [vmem:[%s642 + $0x44] sm:$0x1] %v5475
      %v5477 = vld [vmem:[%s642 + $0x48] sm:$0xf]
      %v5478 = vsel %vm645, %v5223, %v5477
      %5479 = vst [vmem:[%s642 + $0x48] sm:$0xf] %v5478
      %5480 = vst.msk [vmem:[%s642 + $0x4c] sm:$0xf] %vm649, %v5232
      %v5481 = vld [vmem:[%s642 + $0x50] sm:$0x1]
      %v5482 = vsel %vm652, %v5233, %v5481
      %5483 = vst [vmem:[%s642 + $0x50] sm:$0x1] %v5482
      %v5484 = vld [vmem:[%s642 + $0x54] sm:$0xf]
      %v5485 = vsel %vm645, %v5240, %v5484
      %5486 = vst [vmem:[%s642 + $0x54] sm:$0xf] %v5485
      %5487 = vst.msk [vmem:[%s642 + $0x58] sm:$0xf] %vm649, %v5249
      %v5488 = vld [vmem:[%s642 + $0x5c] sm:$0x1]
      %v5489 = vsel %vm652, %v5250, %v5488
      %5490 = vst [vmem:[%s642 + $0x5c] sm:$0x1] %v5489
      %v5491 = vld [vmem:[%s642 + $0x60] sm:$0xf]
      %v5492 = vsel %vm645, %v5257, %v5491
      %5493 = vst [vmem:[%s642 + $0x60] sm:$0xf] %v5492
      %5494 = vst.msk [vmem:[%s642 + $0x64] sm:$0xf] %vm649, %v5266
      %v5495 = vld [vmem:[%s642 + $0x68] sm:$0x1]
      %v5496 = vsel %vm652, %v5267, %v5495
      %5497 = vst [vmem:[%s642 + $0x68] sm:$0x1] %v5496
      %v5498 = vld [vmem:[%s642 + $0x6c] sm:$0xf]
      %v5499 = vsel %vm645, %v5274, %v5498
      %5500 = vst [vmem:[%s642 + $0x6c] sm:$0xf] %v5499
      %5501 = vst.msk [vmem:[%s642 + $0x70] sm:$0xf] %vm649, %v5283
      %v5502 = vld [vmem:[%s642 + $0x74] sm:$0x1]
      %v5503 = vsel %vm652, %v5284, %v5502
      %5504 = vst [vmem:[%s642 + $0x74] sm:$0x1] %v5503
      %v5505 = vld [vmem:[%s642 + $0x78] sm:$0xf]
      %v5506 = vsel %vm645, %v5291, %v5505
      %5507 = vst [vmem:[%s642 + $0x78] sm:$0xf] %v5506
      %5508 = vst.msk [vmem:[%s642 + $0x7c] sm:$0xf] %vm649, %v5300
      %v5509 = vld [vmem:[%s642 + $0x80] sm:$0x1]
      %v5510 = vsel %vm652, %v5301, %v5509
      %5511 = vst [vmem:[%s642 + $0x80] sm:$0x1] %v5510
      %v5512 = vld [vmem:[%s642 + $0x84] sm:$0xf]
      %v5513 = vsel %vm645, %v5308, %v5512
      %5514 = vst [vmem:[%s642 + $0x84] sm:$0xf] %v5513
      %5515 = vst.msk [vmem:[%s642 + $0x88] sm:$0xf] %vm649, %v5317
      %v5516 = vld [vmem:[%s642 + $0x8c] sm:$0x1]
      %v5517 = vsel %vm652, %v5318, %v5516
      %5518 = vst [vmem:[%s642 + $0x8c] sm:$0x1] %v5517
      %v5519 = vld [vmem:[%s642 + $0x90] sm:$0xf]
      %v5520 = vsel %vm645, %v5325, %v5519
      %5521 = vst [vmem:[%s642 + $0x90] sm:$0xf] %v5520
      %5522 = vst.msk [vmem:[%s642 + $0x94] sm:$0xf] %vm649, %v5334
      %v5523 = vld [vmem:[%s642 + $0x98] sm:$0x1]
      %v5524 = vsel %vm652, %v5335, %v5523
      %5525 = vst [vmem:[%s642 + $0x98] sm:$0x1] %v5524
      %v5526 = vld [vmem:[%s642 + $0x9c] sm:$0xf]
      %v5527 = vsel %vm645, %v5342, %v5526
      %5528 = vst [vmem:[%s642 + $0x9c] sm:$0xf] %v5527
      %5529 = vst.msk [vmem:[%s642 + $0xa0] sm:$0xf] %vm649, %v5351
      %v5530 = vld [vmem:[%s642 + $0xa4] sm:$0x1]
      %v5531 = vsel %vm652, %v5352, %v5530
      %5532 = vst [vmem:[%s642 + $0xa4] sm:$0x1] %v5531
      %v5533 = vld [vmem:[%s642 + $0xa8] sm:$0xf]
      %v5534 = vsel %vm645, %v5359, %v5533
      %5535 = vst [vmem:[%s642 + $0xa8] sm:$0xf] %v5534
      %5536 = vst.msk [vmem:[%s642 + $0xac] sm:$0xf] %vm649, %v5368
      %v5537 = vld [vmem:[%s642 + $0xb0] sm:$0x1]
      %v5538 = vsel %vm652, %v5369, %v5537
      %5539 = vst [vmem:[%s642 + $0xb0] sm:$0x1] %v5538
      %v5540 = vld [vmem:[%s642 + $0xb4] sm:$0xf]
      %v5541 = vsel %vm645, %v5376, %v5540
      %5542 = vst [vmem:[%s642 + $0xb4] sm:$0xf] %v5541
      %5543 = vst.msk [vmem:[%s642 + $0xb8] sm:$0xf] %vm649, %v5385
      %v5544 = vld [vmem:[%s642 + $0xbc] sm:$0x1]
      %v5545 = vsel %vm652, %v5386, %v5544
      %5546 = vst [vmem:[%s642 + $0xbc] sm:$0x1] %v5545
      %v5547 = vld [vmem:[#allocation2] sm:$0xf]
      %v5548 = vsel %vm645, %v5138, %v5547
      %5549 = vst [vmem:[#allocation2] sm:$0xf] %v5548
      %5550 = vst.msk [vmem:[#allocation2 + $0x4] sm:$0xf] %vm649, %v5147
      %v5551 = vld [vmem:[#allocation2 + $0x8] sm:$0x1]
      %v5552 = vsel %vm652, %v5148, %v5551
      %5553 = vst [vmem:[#allocation2 + $0x8] sm:$0x1] %v5552
      %v5554 = vld [vmem:[%s768] sm:$0xf]
      %v5555 = vsel %vm645, %v5359, %v5554
      %5556 = vst [vmem:[%s768] sm:$0xf] %v5555
      %5557 = vst.msk [vmem:[%s768 + $0x4] sm:$0xf] %vm649, %v5368
      %v5558 = vld [vmem:[%s768 + $0x8] sm:$0x1]
      %v5559 = vsel %vm652, %v5369, %v5558
      %5560 = vst [vmem:[%s768 + $0x8] sm:$0x1] %v5559
      %v5561 = vld [vmem:[#allocation2] sm:$0x2]
      %v5562 = vld [vmem:[#allocation2 + $0xc] sm:$0x2]
      %v5563 = vld [vmem:[#allocation2 + $0x18] sm:$0x2]
      %v5564 = vld [vmem:[#allocation2 + $0x24] sm:$0x2]
      %v5565 = vld [vmem:[#allocation2 + $0x30] sm:$0x2]
      %v5566 = vld [vmem:[#allocation2 + $0x3c] sm:$0x2]
      %v5567 = vld [vmem:[#allocation2 + $0x48] sm:$0x2]
      %v5568 = vld [vmem:[#allocation2 + $0x54] sm:$0x2]
      %v5569 = vld [vmem:[#allocation2 + $0x60] sm:$0x2]
      %v5570 = vld [vmem:[#allocation2 + $0x6c] sm:$0x2]
      %v5571 = vld [vmem:[#allocation2 + $0x78] sm:$0x2]
      %v5572 = vld [vmem:[#allocation2 + $0x84] sm:$0x2]
      %v5573 = vld [vmem:[#allocation2 + $0x90] sm:$0x2]
      %v5574 = vld [vmem:[#allocation2 + $0x9c] sm:$0x2]
      %v5575 = vld [vmem:[#allocation2 + $0xa8] sm:$0x2]
      %v5576 = vld [vmem:[#allocation2 + $0xb4] sm:$0x2]
      %v5577 = vld [vmem:[#allocation2 + $0xc0] sm:$0x2]
      %v5578 = vld [vmem:[#allocation2 + $0xcc] sm:$0x2]
      %v5597 = vrot.slane %v5561, 5
      %v5598 = vrot.slane %v5597, 4
      %v5599 = vrot.slane %v5562, 5
      %v5600 = vrot.slane %v5599, 4
      %v5601 = vrot.slane %v5563, 5
      %v5602 = vrot.slane %v5601, 4
      %v5603 = vrot.slane %v5564, 5
      %v5604 = vrot.slane %v5603, 4
      %v5605 = vrot.slane %v5565, 5
      %v5606 = vrot.slane %v5605, 4
      %v5607 = vrot.slane %v5566, 5
      %v5608 = vrot.slane %v5607, 4
      %v5609 = vrot.slane %v5567, 5
      %v5610 = vrot.slane %v5609, 4
      %v5611 = vrot.slane %v5568, 5
      %v5612 = vrot.slane %v5611, 4
      %v5613 = vrot.slane %v5569, 5
      %v5614 = vrot.slane %v5613, 4
      %v5615 = vrot.slane %v5570, 5
      %v5616 = vrot.slane %v5615, 4
      %v5617 = vrot.slane %v5571, 5
      %v5618 = vrot.slane %v5617, 4
      %v5619 = vrot.slane %v5572, 5
      %v5620 = vrot.slane %v5619, 4
      %v5621 = vrot.slane %v5573, 5
      %v5622 = vrot.slane %v5621, 4
      %v5623 = vrot.slane %v5574, 5
      %v5624 = vrot.slane %v5623, 4
      %v5625 = vrot.slane %v5575, 5
      %v5626 = vrot.slane %v5625, 4
      %v5627 = vrot.slane %v5576, 5
      %v5628 = vrot.slane %v5627, 4
      %v5629 = vrot.slane %v5577, 5
      %v5630 = vrot.slane %v5629, 4
      %v5631 = vrot.slane %v5578, 5
      %v5632 = vrot.slane %v5631, 4
      %v5651 = vld [vmem:[#allocation2] sm:$0x1]
      %v5652 = vsel %vm652, %v5598, %v5651
      %5653 = vst [vmem:[#allocation2] sm:$0x1] %v5652
      %v5654 = vld [vmem:[#allocation2 + $0xc] sm:$0x1]
      %v5655 = vsel %vm652, %v5600, %v5654
      %5656 = vst [vmem:[#allocation2 + $0xc] sm:$0x1] %v5655
      %v5657 = vld [vmem:[#allocation2 + $0x18] sm:$0x1]
      %v5658 = vsel %vm652, %v5602, %v5657
      %5659 = vst [vmem:[#allocation2 + $0x18] sm:$0x1] %v5658
      %v5660 = vld [vmem:[#allocation2 + $0x24] sm:$0x1]
      %v5661 = vsel %vm652, %v5604, %v5660
      %5662 = vst [vmem:[#allocation2 + $0x24] sm:$0x1] %v5661
      %v5663 = vld [vmem:[#allocation2 + $0x30] sm:$0x1]
      %v5664 = vsel %vm652, %v5606, %v5663
      %5665 = vst [vmem:[#allocation2 + $0x30] sm:$0x1] %v5664
      %v5666 = vld [vmem:[#allocation2 + $0x3c] sm:$0x1]
      %v5667 = vsel %vm652, %v5608, %v5666
      %5668 = vst [vmem:[#allocation2 + $0x3c] sm:$0x1] %v5667
      %v5669 = vld [vmem:[#allocation2 + $0x48] sm:$0x1]
      %v5670 = vsel %vm652, %v5610, %v5669
      %5671 = vst [vmem:[#allocation2 + $0x48] sm:$0x1] %v5670
      %v5672 = vld [vmem:[#allocation2 + $0x54] sm:$0x1]
      %v5673 = vsel %vm652, %v5612, %v5672
      %5674 = vst [vmem:[#allocation2 + $0x54] sm:$0x1] %v5673
      %v5675 = vld [vmem:[#allocation2 + $0x60] sm:$0x1]
      %v5676 = vsel %vm652, %v5614, %v5675
      %5677 = vst [vmem:[#allocation2 + $0x60] sm:$0x1] %v5676
      %v5678 = vld [vmem:[#allocation2 + $0x6c] sm:$0x1]
      %v5679 = vsel %vm652, %v5616, %v5678
      %5680 = vst [vmem:[#allocation2 + $0x6c] sm:$0x1] %v5679
      %v5681 = vld [vmem:[#allocation2 + $0x78] sm:$0x1]
      %v5682 = vsel %vm652, %v5618, %v5681
      %5683 = vst [vmem:[#allocation2 + $0x78] sm:$0x1] %v5682
      %v5684 = vld [vmem:[#allocation2 + $0x84] sm:$0x1]
      %v5685 = vsel %vm652, %v5620, %v5684
      %5686 = vst [vmem:[#allocation2 + $0x84] sm:$0x1] %v5685
      %v5687 = vld [vmem:[#allocation2 + $0x90] sm:$0x1]
      %v5688 = vsel %vm652, %v5622, %v5687
      %5689 = vst [vmem:[#allocation2 + $0x90] sm:$0x1] %v5688
      %v5690 = vld [vmem:[#allocation2 + $0x9c] sm:$0x1]
      %v5691 = vsel %vm652, %v5624, %v5690
      %5692 = vst [vmem:[#allocation2 + $0x9c] sm:$0x1] %v5691
      %v5693 = vld [vmem:[#allocation2 + $0xa8] sm:$0x1]
      %v5694 = vsel %vm652, %v5626, %v5693
      %5695 = vst [vmem:[#allocation2 + $0xa8] sm:$0x1] %v5694
      %v5696 = vld [vmem:[#allocation2 + $0xb4] sm:$0x1]
      %v5697 = vsel %vm652, %v5628, %v5696
      %5698 = vst [vmem:[#allocation2 + $0xb4] sm:$0x1] %v5697
      %v5699 = vld [vmem:[#allocation2 + $0xc0] sm:$0x1]
      %v5700 = vsel %vm652, %v5630, %v5699
      %5701 = vst [vmem:[#allocation2 + $0xc0] sm:$0x1] %v5700
      %v5702 = vld [vmem:[#allocation2 + $0xcc] sm:$0x1]
      %v5703 = vsel %vm652, %v5632, %v5702
      %5704 = vst [vmem:[#allocation2 + $0xcc] sm:$0x1] %v5703
      %v5705 = vld [vmem:[#allocation2 + $0x4] sm:$0x8]
      %v5706 = vld [vmem:[#allocation2 + $0x10] sm:$0x8]
      %v5707 = vld [vmem:[#allocation2 + $0x1c] sm:$0x8]
      %v5708 = vld [vmem:[#allocation2 + $0x28] sm:$0x8]
      %v5709 = vld [vmem:[#allocation2 + $0x34] sm:$0x8]
      %v5710 = vld [vmem:[#allocation2 + $0x40] sm:$0x8]
      %v5711 = vld [vmem:[#allocation2 + $0x4c] sm:$0x8]
      %v5712 = vld [vmem:[#allocation2 + $0x58] sm:$0x8]
      %v5713 = vld [vmem:[#allocation2 + $0x64] sm:$0x8]
      %v5714 = vld [vmem:[#allocation2 + $0x70] sm:$0x8]
      %v5715 = vld [vmem:[#allocation2 + $0x7c] sm:$0x8]
      %v5716 = vld [vmem:[#allocation2 + $0x88] sm:$0x8]
      %v5717 = vld [vmem:[#allocation2 + $0x94] sm:$0x8]
      %v5718 = vld [vmem:[#allocation2 + $0xa0] sm:$0x8]
      %v5719 = vld [vmem:[#allocation2 + $0xac] sm:$0x8]
      %v5720 = vld [vmem:[#allocation2 + $0xb8] sm:$0x8]
      %v5721 = vld [vmem:[#allocation2 + $0xc4] sm:$0x8]
      %v5722 = vld [vmem:[#allocation2 + $0xd0] sm:$0x8]
      %v5741 = vrot.slane %v5705, 7
      %v5742 = vrot.slane %v5741, 4
      %v5743 = vrot.slane %v5706, 7
      %v5744 = vrot.slane %v5743, 4
      %v5745 = vrot.slane %v5707, 7
      %v5746 = vrot.slane %v5745, 4
      %v5747 = vrot.slane %v5708, 7
      %v5748 = vrot.slane %v5747, 4
      %v5749 = vrot.slane %v5709, 7
      %v5750 = vrot.slane %v5749, 4
      %v5751 = vrot.slane %v5710, 7
      %v5752 = vrot.slane %v5751, 4
      %v5753 = vrot.slane %v5711, 7
      %v5754 = vrot.slane %v5753, 4
      %v5755 = vrot.slane %v5712, 7
      %v5756 = vrot.slane %v5755, 4
      %v5757 = vrot.slane %v5713, 7
      %v5758 = vrot.slane %v5757, 4
      %v5759 = vrot.slane %v5714, 7
      %v5760 = vrot.slane %v5759, 4
      %v5761 = vrot.slane %v5715, 7
      %v5762 = vrot.slane %v5761, 4
      %v5763 = vrot.slane %v5716, 7
      %v5764 = vrot.slane %v5763, 4
      %v5765 = vrot.slane %v5717, 7
      %v5766 = vrot.slane %v5765, 4
      %v5767 = vrot.slane %v5718, 7
      %v5768 = vrot.slane %v5767, 4
      %v5769 = vrot.slane %v5719, 7
      %v5770 = vrot.slane %v5769, 4
      %v5771 = vrot.slane %v5720, 7
      %v5772 = vrot.slane %v5771, 4
      %v5773 = vrot.slane %v5721, 7
      %v5774 = vrot.slane %v5773, 4
      %v5775 = vrot.slane %v5722, 7
      %v5776 = vrot.slane %v5775, 4
      %v5795 = vld [vmem:[#allocation2 + $0x8] sm:$0x1]
      %v5796 = vsel %vm1010, %v5742, %v5795
      %5797 = vst [vmem:[#allocation2 + $0x8] sm:$0x1] %v5796
      %v5798 = vld [vmem:[#allocation2 + $0x14] sm:$0x1]
      %v5799 = vsel %vm1010, %v5744, %v5798
      %5800 = vst [vmem:[#allocation2 + $0x14] sm:$0x1] %v5799
      %v5801 = vld [vmem:[#allocation2 + $0x20] sm:$0x1]
      %v5802 = vsel %vm1010, %v5746, %v5801
      %5803 = vst [vmem:[#allocation2 + $0x20] sm:$0x1] %v5802
      %v5804 = vld [vmem:[#allocation2 + $0x2c] sm:$0x1]
      %v5805 = vsel %vm1010, %v5748, %v5804
      %5806 = vst [vmem:[#allocation2 + $0x2c] sm:$0x1] %v5805
      %v5807 = vld [vmem:[#allocation2 + $0x38] sm:$0x1]
      %v5808 = vsel %vm1010, %v5750, %v5807
      %5809 = vst [vmem:[#allocation2 + $0x38] sm:$0x1] %v5808
      %v5810 = vld [vmem:[#allocation2 + $0x44] sm:$0x1]
      %v5811 = vsel %vm1010, %v5752, %v5810
      %5812 = vst [vmem:[#allocation2 + $0x44] sm:$0x1] %v5811
      %v5813 = vld [vmem:[#allocation2 + $0x50] sm:$0x1]
      %v5814 = vsel %vm1010, %v5754, %v5813
      %5815 = vst [vmem:[#allocation2 + $0x50] sm:$0x1] %v5814
      %v5816 = vld [vmem:[#allocation2 + $0x5c] sm:$0x1]
      %v5817 = vsel %vm1010, %v5756, %v5816
      %5818 = vst [vmem:[#allocation2 + $0x5c] sm:$0x1] %v5817
      %v5819 = vld [vmem:[#allocation2 + $0x68] sm:$0x1]
      %v5820 = vsel %vm1010, %v5758, %v5819
      %5821 = vst [vmem:[#allocation2 + $0x68] sm:$0x1] %v5820
      %v5822 = vld [vmem:[#allocation2 + $0x74] sm:$0x1]
      %v5823 = vsel %vm1010, %v5760, %v5822
      %5824 = vst [vmem:[#allocation2 + $0x74] sm:$0x1] %v5823
      %v5825 = vld [vmem:[#allocation2 + $0x80] sm:$0x1]
      %v5826 = vsel %vm1010, %v5762, %v5825
      %5827 = vst [vmem:[#allocation2 + $0x80] sm:$0x1] %v5826
      %v5828 = vld [vmem:[#allocation2 + $0x8c] sm:$0x1]
      %v5829 = vsel %vm1010, %v5764, %v5828
      %5830 = vst [vmem:[#allocation2 + $0x8c] sm:$0x1] %v5829
      %v5831 = vld [vmem:[#allocation2 + $0x98] sm:$0x1]
      %v5832 = vsel %vm1010, %v5766, %v5831
      %5833 = vst [vmem:[#allocation2 + $0x98] sm:$0x1] %v5832
      %v5834 = vld [vmem:[#allocation2 + $0xa4] sm:$0x1]
      %v5835 = vsel %vm1010, %v5768, %v5834
      %5836 = vst [vmem:[#allocation2 + $0xa4] sm:$0x1] %v5835
      %v5837 = vld [vmem:[#allocation2 + $0xb0] sm:$0x1]
      %v5838 = vsel %vm1010, %v5770, %v5837
      %5839 = vst [vmem:[#allocation2 + $0xb0] sm:$0x1] %v5838
      %v5840 = vld [vmem:[#allocation2 + $0xbc] sm:$0x1]
      %v5841 = vsel %vm1010, %v5772, %v5840
      %5842 = vst [vmem:[#allocation2 + $0xbc] sm:$0x1] %v5841
      %v5843 = vld [vmem:[#allocation2 + $0xc8] sm:$0x1]
      %v5844 = vsel %vm1010, %v5774, %v5843
      %5845 = vst [vmem:[#allocation2 + $0xc8] sm:$0x1] %v5844
      %v5846 = vld [vmem:[#allocation2 + $0xd4] sm:$0x1]
      %v5847 = vsel %vm1010, %v5776, %v5846
      %5848 = vst [vmem:[#allocation2 + $0xd4] sm:$0x1] %v5847
      %v5849 = vld [vmem:[#allocation2] sm:$0xf]
      %v5850 = vld [vmem:[#allocation2 + $0x4] sm:$0xf]
      %v5851 = vld [vmem:[#allocation2 + $0x8] sm:$0xf]
      %v5852 = vld [vmem:[#allocation2 + $0xc] sm:$0xf]
      %v5853 = vld [vmem:[#allocation2 + $0x10] sm:$0xf]
      %v5854 = vld [vmem:[#allocation2 + $0x14] sm:$0xf]
      %v5855 = vld [vmem:[#allocation2 + $0x18] sm:$0xf]
      %v5856 = vld [vmem:[#allocation2 + $0x1c] sm:$0xf]
      %v5857 = vld [vmem:[#allocation2 + $0x20] sm:$0xf]
      %v5858 = vld [vmem:[#allocation2 + $0x24] sm:$0xf]
      %v5859 = vld [vmem:[#allocation2 + $0x28] sm:$0xf]
      %v5860 = vld [vmem:[#allocation2 + $0x2c] sm:$0xf]
      %v5861 = vld [vmem:[#allocation2 + $0x30] sm:$0xf]
      %v5862 = vld [vmem:[#allocation2 + $0x34] sm:$0xf]
      %v5863 = vld [vmem:[#allocation2 + $0x38] sm:$0xf]
      %v5864 = vld [vmem:[#allocation2 + $0x3c] sm:$0xf]
      %v5865 = vld [vmem:[#allocation2 + $0x40] sm:$0xf]
      %v5866 = vld [vmem:[#allocation2 + $0x44] sm:$0xf]
      %v5867 = vld [vmem:[#allocation2 + $0x48] sm:$0xf]
      %v5868 = vld [vmem:[#allocation2 + $0x4c] sm:$0xf]
      %v5869 = vld [vmem:[#allocation2 + $0x50] sm:$0xf]
      %v5870 = vld [vmem:[#allocation2 + $0x54] sm:$0xf]
      %v5871 = vld [vmem:[#allocation2 + $0x58] sm:$0xf]
      %v5872 = vld [vmem:[#allocation2 + $0x5c] sm:$0xf]
      %v5873 = vld [vmem:[%s2] sm:$0x3]
      %s5874 = scalar_lea.vmem %s2, 2
      %v5875 = vld [vmem:[%s5874] sm:$0x3]
      %s5876 = scalar_lea.vmem %s2, 4
      %v5877 = vld [vmem:[%s5876] sm:$0x3]
      %v5878 = vld [vmem:[%s642] sm:$0xf]
      %v5879 = vld [vmem:[%s642 + $0x4] sm:$0xf]
      %v5880 = vld [vmem:[%s642 + $0x8] sm:$0xf]
      %v5881 = vld [vmem:[%s642 + $0xc] sm:$0xf]
      %v5882 = vld [vmem:[%s642 + $0x10] sm:$0xf]
      %v5883 = vld [vmem:[%s642 + $0x14] sm:$0xf]
      %v5884 = vld [vmem:[%s642 + $0x18] sm:$0xf]
      %v5885 = vld [vmem:[%s642 + $0x1c] sm:$0xf]
      %v5886 = vld [vmem:[%s642 + $0x20] sm:$0xf]
      %v5887 = vld [vmem:[%s642 + $0x24] sm:$0xf]
      %v5888 = vld [vmem:[%s642 + $0x28] sm:$0xf]
      %v5889 = vld [vmem:[%s642 + $0x2c] sm:$0xf]
      %v5890 = vld [vmem:[%s642 + $0x30] sm:$0xf]
      %v5891 = vld [vmem:[%s642 + $0x34] sm:$0xf]
      %v5892 = vld [vmem:[%s642 + $0x38] sm:$0xf]
      %v5893 = vld [vmem:[%s642 + $0x3c] sm:$0xf]
      %v5894 = vld [vmem:[%s642 + $0x40] sm:$0xf]
      %v5895 = vld [vmem:[%s642 + $0x44] sm:$0xf]
      %v5896 = vld [vmem:[%s642 + $0x48] sm:$0xf]
      %v5897 = vld [vmem:[%s642 + $0x4c] sm:$0xf]
      %v5898 = vld [vmem:[%s642 + $0x50] sm:$0xf]
      %v5899 = vld [vmem:[%s642 + $0x54] sm:$0xf]
      %v5900 = vld [vmem:[%s642 + $0x58] sm:$0xf]
      %v5901 = vld [vmem:[%s642 + $0x5c] sm:$0xf]
      %s5902 = scalar_lea.vmem %s2, 6
      %v5903 = vld [vmem:[%s5902] sm:$0x3]
      %v5928 = vunpack.c.l.b16 %v5878
      %v5929 = vunpack.c.l.b16 %v5879
      %v5930 = vunpack.c.l.b16 %v5880
      %v5931 = vunpack.c.l.b16 %v5881
      %v5932 = vunpack.c.l.b16 %v5882
      %v5933 = vunpack.c.l.b16 %v5883
      %v5934 = vunpack.c.l.b16 %v5884
      %v5935 = vunpack.c.l.b16 %v5885
      %v5936 = vunpack.c.l.b16 %v5886
      %v5937 = vunpack.c.l.b16 %v5887
      %v5938 = vunpack.c.l.b16 %v5888
      %v5939 = vunpack.c.l.b16 %v5889
      %v5940 = vunpack.c.l.b16 %v5890
      %v5941 = vunpack.c.l.b16 %v5891
      %v5942 = vunpack.c.l.b16 %v5892
      %v5943 = vunpack.c.l.b16 %v5893
      %v5944 = vunpack.c.l.b16 %v5894
      %v5945 = vunpack.c.l.b16 %v5895
      %v5946 = vunpack.c.l.b16 %v5896
      %v5947 = vunpack.c.l.b16 %v5897
      %v5948 = vunpack.c.l.b16 %v5898
      %v5949 = vunpack.c.l.b16 %v5899
      %v5950 = vunpack.c.l.b16 %v5900
      %v5951 = vunpack.c.l.b16 %v5901
      %v5952 = vpack.c.b16 %v5929, %v5928
      %v5953 = vpack.c.b16 %v5931, %v5930
      %v5954 = vpack.c.b16 %v5933, %v5932
      %v5955 = vpack.c.b16 %v5935, %v5934
      %v5956 = vpack.c.b16 %v5937, %v5936
      %v5957 = vpack.c.b16 %v5939, %v5938
      %v5958 = vpack.c.b16 %v5941, %v5940
      %v5959 = vpack.c.b16 %v5943, %v5942
      %v5960 = vpack.c.b16 %v5945, %v5944
      %v5961 = vpack.c.b16 %v5947, %v5946
      %v5962 = vpack.c.b16 %v5949, %v5948
      %v5963 = vpack.c.b16 %v5951, %v5950
      %v5965 = vsel %vm1180, %v5952, 0
      %v5968 = vsel %vm1180, %v5953, 0
      %v5971 = vsel %vm1180, %v5954, 0
      %v5974 = vsel %vm1180, %v5955, 0
      %v5977 = vsel %vm1180, %v5956, 0
      %v5980 = vsel %vm1180, %v5957, 0
      %v5983 = vsel %vm1180, %v5958, 0
      %v5986 = vsel %vm1180, %v5959, 0
      %v5989 = vsel %vm1180, %v5960, 0
      %v5992 = vsel %vm1180, %v5961, 0
      %v5995 = vsel %vm1180, %v5962, 0
      %v5998 = vsel %vm1180, %v5963, 0
      %v6001 = vsel %vm1217, %v5903, 0
      %6003 = vmatprep.subr.bf16.mxu0 0
      %6004 = vmatpush1.bf16.msra.mxu0 %v6001
      %6005 = vmatprep.subr.bf16.mxu0 0
      %6006 = vmatpush1.bf16.msra.mxu0 0
      %6007 = vmatprep.subr.bf16.mxu0 0
      %6008 = vmatpush1.bf16.msra.mxu0 0
      %6009 = vmatprep.subr.bf16.mxu0 0
      %6010 = vmatpush1.bf16.msra.mxu0 0
      %6011 = vmatprep.subr.bf16.mxu0 0
      %6012 = vmatpush1.bf16.msra.mxu0 0
      %6013 = vmatprep.subr.bf16.mxu0 0
      %6014 = vmatpush1.bf16.msra.mxu0 0
      %6015 = vmatprep.subr.bf16.mxu0 0
      %6016 = vmatpush1.bf16.msra.mxu0 0
      %6017 = vmatprep.subr.bf16.mxu0 0
      %6018 = vmatpush1.bf16.msra.mxu0 0
      %6019 = vmatprep.subr.bf16.mxu0 0
      %6020 = vmatpush1.bf16.msra.mxu0 0
      %6021 = vmatprep.subr.bf16.mxu0 0
      %6022 = vmatpush1.bf16.msra.mxu0 0
      %6023 = vmatprep.subr.bf16.mxu0 0
      %6024 = vmatpush1.bf16.msra.mxu0 0
      %6025 = vmatprep.subr.bf16.mxu0 0
      %6026 = vmatpush1.bf16.msra.mxu0 0
      %6027 = vmatprep.subr.bf16.mxu0 0
      %6028 = vmatpush1.bf16.msra.mxu0 0
      %6029 = vmatprep.subr.bf16.mxu0 0
      %6030 = vmatpush1.bf16.msra.mxu0 0
      %6031 = vmatprep.subr.bf16.mxu0 0
      %6032 = vmatpush1.bf16.msra.mxu0 0
      %6033 = vmatprep.subr.bf16.mxu0 0
      %6034 = vmatpush1.bf16.msra.mxu0 0
      %6035 = vmatprep.mubr.bf16.mxu0 0
      %6036 = vmatmul.mubr.bf16.gmra.mrb[0].mxu0 %v5965
      %v6037 = vpop.f32.mrb[0].mxu0
      %v6038 = vadd.f32 0.0, %v6037
      %v6039 = vpop.f32.mrb[0].mxu0
      %v6040 = vpop.f32.mrb[0].mxu0
      %v6041 = vadd.f32 0.0, %v6040
      %v6042 = vpop.f32.mrb[0].mxu0
      %6043 = vmatprep.mubr.bf16.mxu0 0
      %6044 = vmatmul.mubr.bf16.gmra.mrb[0].mxu0 %v5968
      %v6045 = vpop.f32.mrb[0].mxu0
      %v6046 = vpop.f32.mrb[0].mxu0
      %v6047 = vpop.f32.mrb[0].mxu0
      %v6048 = vadd.f32 0.0, %v6047
      %v6049 = vpop.f32.mrb[0].mxu0
      %6050 = vmatprep.mubr.bf16.mxu0 0
      %6051 = vmatmul.mubr.bf16.gmra.mrb[0].mxu0 %v5971
      %v6052 = vpop.f32.mrb[0].mxu0
      %v6053 = vadd.f32 0.0, %v6052
      %v6054 = vpop.f32.mrb[0].mxu0
      %v6055 = vpop.f32.mrb[0].mxu0
      %v6056 = vpop.f32.mrb[0].mxu0
      %6057 = vmatprep.mubr.bf16.mxu0 0
      %6058 = vmatmul.mubr.bf16.gmra.mrb[0].mxu0 %v5974
      %v6059 = vpop.f32.mrb[0].mxu0
      %v6060 = vadd.f32 0.0, %v6059
      %v6061 = vpop.f32.mrb[0].mxu0
      %v6062 = vpop.f32.mrb[0].mxu0
      %v6063 = vadd.f32 0.0, %v6062
      %v6064 = vpop.f32.mrb[0].mxu0
      %6065 = vmatprep.mubr.bf16.mxu0 0
      %6066 = vmatmul.mubr.bf16.gmra.mrb[0].mxu0 %v5977
      %v6067 = vpop.f32.mrb[0].mxu0
      %v6068 = vpop.f32.mrb[0].mxu0
      %v6069 = vpop.f32.mrb[0].mxu0
      %v6070 = vadd.f32 0.0, %v6069
      %v6071 = vpop.f32.mrb[0].mxu0
      %6072 = vmatprep.mubr.bf16.mxu0 0
      %6073 = vmatmul.mubr.bf16.gmra.mrb[0].mxu0 %v5980
      %v6074 = vpop.f32.mrb[0].mxu0
      %v6075 = vadd.f32 0.0, %v6074
      %v6076 = vpop.f32.mrb[0].mxu0
      %v6077 = vpop.f32.mrb[0].mxu0
      %v6078 = vpop.f32.mrb[0].mxu0
      %6079 = vmatprep.mubr.bf16.mxu0 0
      %6080 = vmatmul.mubr.bf16.gmra.mrb[0].mxu0 %v5983
      %v6081 = vpop.f32.mrb[0].mxu0
      %v6082 = vadd.f32 0.0, %v6081
      %v6083 = vpop.f32.mrb[0].mxu0
      %v6084 = vpop.f32.mrb[0].mxu0
      %v6085 = vadd.f32 0.0, %v6084
      %v6086 = vpop.f32.mrb[0].mxu0
      %6087 = vmatprep.mubr.bf16.mxu0 0
      %6088 = vmatmul.mubr.bf16.gmra.mrb[0].mxu0 %v5986
      %v6089 = vpop.f32.mrb[0].mxu0
      %v6090 = vpop.f32.mrb[0].mxu0
      %v6091 = vpop.f32.mrb[0].mxu0
      %v6092 = vadd.f32 0.0, %v6091
      %v6093 = vpop.f32.mrb[0].mxu0
      %6094 = vmatprep.mubr.bf16.mxu0 0
      %6095 = vmatmul.mubr.bf16.gmra.mrb[0].mxu0 %v5989
      %v6096 = vpop.f32.mrb[0].mxu0
      %v6097 = vadd.f32 0.0, %v6096
      %v6098 = vpop.f32.mrb[0].mxu0
      %v6099 = vpop.f32.mrb[0].mxu0
      %v6100 = vpop.f32.mrb[0].mxu0
      %6101 = vmatprep.mubr.bf16.mxu0 0
      %6102 = vmatmul.mubr.bf16.gmra.mrb[0].mxu0 %v5992
      %v6103 = vpop.f32.mrb[0].mxu0
      %v6104 = vadd.f32 0.0, %v6103
      %v6105 = vpop.f32.mrb[0].mxu0
      %v6106 = vpop.f32.mrb[0].mxu0
      %v6107 = vadd.f32 0.0, %v6106
      %v6108 = vpop.f32.mrb[0].mxu0
      %6109 = vmatprep.mubr.bf16.mxu0 0
      %6110 = vmatmul.mubr.bf16.gmra.mrb[0].mxu0 %v5995
      %v6111 = vpop.f32.mrb[0].mxu0
      %v6112 = vpop.f32.mrb[0].mxu0
      %v6113 = vpop.f32.mrb[0].mxu0
      %v6114 = vadd.f32 0.0, %v6113
      %v6115 = vpop.f32.mrb[0].mxu0
      %6116 = vmatprep.mubr.bf16.mxu0 0
      %6117 = vmatmul.mubr.bf16.gmra.mrb[0].mxu0 %v5998
      %v6118 = vpop.f32.mrb[0].mxu0
      %v6119 = vadd.f32 0.0, %v6118
      %v6120 = vpop.f32.mrb[0].mxu0
      %v6121 = vpop.f32.mrb[0].mxu0
      %v6122 = vpop.f32.mrb[0].mxu0
      %6123 = vdwg.mxu0
      %v6148 = vunpack.c.l.b16 %v5849
      %v6149 = vunpack.c.l.b16 %v5850
      %v6150 = vunpack.c.l.b16 %v5851
      %v6151 = vunpack.c.l.b16 %v5852
      %v6152 = vunpack.c.l.b16 %v5853
      %v6153 = vunpack.c.l.b16 %v5854
      %v6154 = vunpack.c.l.b16 %v5855
      %v6155 = vunpack.c.l.b16 %v5856
      %v6156 = vunpack.c.l.b16 %v5857
      %v6157 = vunpack.c.l.b16 %v5858
      %v6158 = vunpack.c.l.b16 %v5859
      %v6159 = vunpack.c.l.b16 %v5860
      %v6160 = vunpack.c.l.b16 %v5861
      %v6161 = vunpack.c.l.b16 %v5862
      %v6162 = vunpack.c.l.b16 %v5863
      %v6163 = vunpack.c.l.b16 %v5864
      %v6164 = vunpack.c.l.b16 %v5865
      %v6165 = vunpack.c.l.b16 %v5866
      %v6166 = vunpack.c.l.b16 %v5867
      %v6167 = vunpack.c.l.b16 %v5868
      %v6168 = vunpack.c.l.b16 %v5869
      %v6169 = vunpack.c.l.b16 %v5870
      %v6170 = vunpack.c.l.b16 %v5871
      %v6171 = vunpack.c.l.b16 %v5872
      %v6172 = vpack.c.b16 %v6149, %v6148
      %v6173 = vpack.c.b16 %v6151, %v6150
      %v6174 = vpack.c.b16 %v6153, %v6152
      %v6175 = vpack.c.b16 %v6155, %v6154
      %v6176 = vpack.c.b16 %v6157, %v6156
      %v6177 = vpack.c.b16 %v6159, %v6158
      %v6178 = vpack.c.b16 %v6161, %v6160
      %v6179 = vpack.c.b16 %v6163, %v6162
      %v6180 = vpack.c.b16 %v6165, %v6164
      %v6181 = vpack.c.b16 %v6167, %v6166
      %v6182 = vpack.c.b16 %v6169, %v6168
      %v6183 = vpack.c.b16 %v6171, %v6170
      %v6185 = vsel %vm1180, %v6172, 0
      %v6188 = vsel %vm1180, %v6173, 0
      %v6191 = vsel %vm1180, %v6174, 0
      %v6194 = vsel %vm1180, %v6175, 0
      %v6197 = vsel %vm1180, %v6176, 0
      %v6200 = vsel %vm1180, %v6177, 0
      %v6203 = vsel %vm1180, %v6178, 0
      %v6206 = vsel %vm1180, %v6179, 0
      %v6209 = vsel %vm1180, %v6180, 0
      %v6212 = vsel %vm1180, %v6181, 0
      %v6215 = vsel %vm1180, %v6182, 0
      %v6218 = vsel %vm1180, %v6183, 0
      %v6221 = vsel %vm1217, %v5873, 0
      %6223 = vmatprep.subr.bf16.mxu0 0
      %6224 = vmatpush1.bf16.msra.mxu0 %v6221
      %6225 = vmatprep.subr.bf16.mxu0 0
      %6226 = vmatpush1.bf16.msra.mxu0 0
      %6227 = vmatprep.subr.bf16.mxu0 0
      %6228 = vmatpush1.bf16.msra.mxu0 0
      %6229 = vmatprep.subr.bf16.mxu0 0
      %6230 = vmatpush1.bf16.msra.mxu0 0
      %6231 = vmatprep.subr.bf16.mxu0 0
      %6232 = vmatpush1.bf16.msra.mxu0 0
      %6233 = vmatprep.subr.bf16.mxu0 0
      %6234 = vmatpush1.bf16.msra.mxu0 0
      %6235 = vmatprep.subr.bf16.mxu0 0
      %6236 = vmatpush1.bf16.msra.mxu0 0
      %6237 = vmatprep.subr.bf16.mxu0 0
      %6238 = vmatpush1.bf16.msra.mxu0 0
      %6239 = vmatprep.subr.bf16.mxu0 0
      %6240 = vmatpush1.bf16.msra.mxu0 0
      %6241 = vmatprep.subr.bf16.mxu0 0
      %6242 = vmatpush1.bf16.msra.mxu0 0
      %6243 = vmatprep.subr.bf16.mxu0 0
      %6244 = vmatpush1.bf16.msra.mxu0 0
      %6245 = vmatprep.subr.bf16.mxu0 0
      %6246 = vmatpush1.bf16.msra.mxu0 0
      %6247 = vmatprep.subr.bf16.mxu0 0
      %6248 = vmatpush1.bf16.msra.mxu0 0
      %6249 = vmatprep.subr.bf16.mxu0 0
      %6250 = vmatpush1.bf16.msra.mxu0 0
      %6251 = vmatprep.subr.bf16.mxu0 0
      %6252 = vmatpush1.bf16.msra.mxu0 0
      %6253 = vmatprep.subr.bf16.mxu0 0
      %6254 = vmatpush1.bf16.msra.mxu0 0
      %6255 = vmatprep.mubr.bf16.mxu0 0
      %6256 = vmatmul.mubr.bf16.gmra.mrb[0].mxu0 %v6185
      %v6257 = vpop.f32.mrb[0].mxu0
      %v6258 = vadd.f32 %v6038, %v6257
      %v6259 = vpop.f32.mrb[0].mxu0
      %v6260 = vpop.f32.mrb[0].mxu0
      %v6261 = vadd.f32 %v6041, %v6260
      %v6262 = vpop.f32.mrb[0].mxu0
      %6263 = vmatprep.mubr.bf16.mxu0 0
      %6264 = vmatmul.mubr.bf16.gmra.mrb[0].mxu0 %v6188
      %v6265 = vpop.f32.mrb[0].mxu0
      %v6266 = vpop.f32.mrb[0].mxu0
      %v6267 = vpop.f32.mrb[0].mxu0
      %v6268 = vadd.f32 %v6048, %v6267
      %v6269 = vpop.f32.mrb[0].mxu0
      %6270 = vmatprep.mubr.bf16.mxu0 0
      %6271 = vmatmul.mubr.bf16.gmra.mrb[0].mxu0 %v6191
      %v6272 = vpop.f32.mrb[0].mxu0
      %v6273 = vadd.f32 %v6053, %v6272
      %v6274 = vpop.f32.mrb[0].mxu0
      %v6275 = vpop.f32.mrb[0].mxu0
      %v6276 = vpop.f32.mrb[0].mxu0
      %6277 = vmatprep.mubr.bf16.mxu0 0
      %6278 = vmatmul.mubr.bf16.gmra.mrb[0].mxu0 %v6194
      %v6279 = vpop.f32.mrb[0].mxu0
      %v6280 = vadd.f32 %v6060, %v6279
      %v6281 = vpop.f32.mrb[0].mxu0
      %v6282 = vpop.f32.mrb[0].mxu0
      %v6283 = vadd.f32 %v6063, %v6282
      %v6284 = vpop.f32.mrb[0].mxu0
      %6285 = vmatprep.mubr.bf16.mxu0 0
      %6286 = vmatmul.mubr.bf16.gmra.mrb[0].mxu0 %v6197
      %v6287 = vpop.f32.mrb[0].mxu0
      %v6288 = vpop.f32.mrb[0].mxu0
      %v6289 = vpop.f32.mrb[0].mxu0
      %v6290 = vadd.f32 %v6070, %v6289
      %v6291 = vpop.f32.mrb[0].mxu0
      %6292 = vmatprep.mubr.bf16.mxu0 0
      %6293 = vmatmul.mubr.bf16.gmra.mrb[0].mxu0 %v6200
      %v6294 = vpop.f32.mrb[0].mxu0
      %v6295 = vadd.f32 %v6075, %v6294
      %v6296 = vpop.f32.mrb[0].mxu0
      %v6297 = vpop.f32.mrb[0].mxu0
      %v6298 = vpop.f32.mrb[0].mxu0
      %6299 = vmatprep.mubr.bf16.mxu0 0
      %6300 = vmatmul.mubr.bf16.gmra.mrb[0].mxu0 %v6203
      %v6301 = vpop.f32.mrb[0].mxu0
      %v6302 = vadd.f32 %v6082, %v6301
      %v6303 = vpop.f32.mrb[0].mxu0
      %v6304 = vpop.f32.mrb[0].mxu0
      %v6305 = vadd.f32 %v6085, %v6304
      %v6306 = vpop.f32.mrb[0].mxu0
      %6307 = vmatprep.mubr.bf16.mxu0 0
      %6308 = vmatmul.mubr.bf16.gmra.mrb[0].mxu0 %v6206
      %v6309 = vpop.f32.mrb[0].mxu0
      %v6310 = vpop.f32.mrb[0].mxu0
      %v6311 = vpop.f32.mrb[0].mxu0
      %v6312 = vadd.f32 %v6092, %v6311
      %v6313 = vpop.f32.mrb[0].mxu0
      %6314 = vmatprep.mubr.bf16.mxu0 0
      %6315 = vmatmul.mubr.bf16.gmra.mrb[0].mxu0 %v6209
      %v6316 = vpop.f32.mrb[0].mxu0
      %v6317 = vadd.f32 %v6097, %v6316
      %v6318 = vpop.f32.mrb[0].mxu0
      %v6319 = vpop.f32.mrb[0].mxu0
      %v6320 = vpop.f32.mrb[0].mxu0
      %6321 = vmatprep.mubr.bf16.mxu0 0
      %6322 = vmatmul.mubr.bf16.gmra.mrb[0].mxu0 %v6212
      %v6323 = vpop.f32.mrb[0].mxu0
      %v6324 = vadd.f32 %v6104, %v6323
      %v6325 = vpop.f32.mrb[0].mxu0
      %v6326 = vpop.f32.mrb[0].mxu0
      %v6327 = vadd.f32 %v6107, %v6326
      %v6328 = vpop.f32.mrb[0].mxu0
      %6329 = vmatprep.mubr.bf16.mxu0 0
      %6330 = vmatmul.mubr.bf16.gmra.mrb[0].mxu0 %v6215
      %v6331 = vpop.f32.mrb[0].mxu0
      %v6332 = vpop.f32.mrb[0].mxu0
      %v6333 = vpop.f32.mrb[0].mxu0
      %v6334 = vadd.f32 %v6114, %v6333
      %v6335 = vpop.f32.mrb[0].mxu0
      %6336 = vmatprep.mubr.bf16.mxu0 0
      %6337 = vmatmul.mubr.bf16.gmra.mrb[0].mxu0 %v6218
      %v6338 = vpop.f32.mrb[0].mxu0
      %v6339 = vadd.f32 %v6119, %v6338
      %v6340 = vpop.f32.mrb[0].mxu0
      %v6341 = vpop.f32.mrb[0].mxu0
      %v6342 = vpop.f32.mrb[0].mxu0
      %6343 = vdwg.mxu0
      %s6344 = scalar_lea.vmem %s2, 8
      %v6345 = vld [vmem:[%s6344] sm:$0x3]
      %v6347 = vsel %vm1217, %v6345, 0
      %6349 = vmatprep.subr.bf16.mxu0 0
      %6350 = vmatpush1.bf16.msra.mxu0 %v6347
      %6351 = vmatprep.subr.bf16.mxu0 0
      %6352 = vmatpush1.bf16.msra.mxu0 0
      %6353 = vmatprep.subr.bf16.mxu0 0
      %6354 = vmatpush1.bf16.msra.mxu0 0
      %6355 = vmatprep.subr.bf16.mxu0 0
      %6356 = vmatpush1.bf16.msra.mxu0 0
      %6357 = vmatprep.subr.bf16.mxu0 0
      %6358 = vmatpush1.bf16.msra.mxu0 0
      %6359 = vmatprep.subr.bf16.mxu0 0
      %6360 = vmatpush1.bf16.msra.mxu0 0
      %6361 = vmatprep.subr.bf16.mxu0 0
      %6362 = vmatpush1.bf16.msra.mxu0 0
      %6363 = vmatprep.subr.bf16.mxu0 0
      %6364 = vmatpush1.bf16.msra.mxu0 0
      %6365 = vmatprep.subr.bf16.mxu0 0
      %6366 = vmatpush1.bf16.msra.mxu0 0
      %6367 = vmatprep.subr.bf16.mxu0 0
      %6368 = vmatpush1.bf16.msra.mxu0 0
      %6369 = vmatprep.subr.bf16.mxu0 0
      %6370 = vmatpush1.bf16.msra.mxu0 0
      %6371 = vmatprep.subr.bf16.mxu0 0
      %6372 = vmatpush1.bf16.msra.mxu0 0
      %6373 = vmatprep.subr.bf16.mxu0 0
      %6374 = vmatpush1.bf16.msra.mxu0 0
      %6375 = vmatprep.subr.bf16.mxu0 0
      %6376 = vmatpush1.bf16.msra.mxu0 0
      %6377 = vmatprep.subr.bf16.mxu0 0
      %6378 = vmatpush1.bf16.msra.mxu0 0
      %6379 = vmatprep.subr.bf16.mxu0 0
      %6380 = vmatpush1.bf16.msra.mxu0 0
      %6381 = vmatprep.mubr.bf16.mxu0 0
      %6382 = vmatmul.mubr.bf16.gmra.mrb[0].mxu0 %v5965
      %v6383 = vpop.f32.mrb[0].mxu0
      %v6384 = vadd.f32 0.0, %v6383
      %v6385 = vpop.f32.mrb[0].mxu0
      %v6386 = vpop.f32.mrb[0].mxu0
      %v6387 = vadd.f32 0.0, %v6386
      %v6388 = vpop.f32.mrb[0].mxu0
      %6389 = vmatprep.mubr.bf16.mxu0 0
      %6390 = vmatmul.mubr.bf16.gmra.mrb[0].mxu0 %v5968
      %v6391 = vpop.f32.mrb[0].mxu0
      %v6392 = vadd.f32 0.0, %v6391
      %v6393 = vpop.f32.mrb[0].mxu0
      %v6394 = vpop.f32.mrb[0].mxu0
      %v6395 = vadd.f32 0.0, %v6394
      %v6396 = vpop.f32.mrb[0].mxu0
      %6397 = vmatprep.mubr.bf16.mxu0 0
      %6398 = vmatmul.mubr.bf16.gmra.mrb[0].mxu0 %v5971
      %v6399 = vpop.f32.mrb[0].mxu0
      %v6400 = vadd.f32 0.0, %v6399
      %v6401 = vpop.f32.mrb[0].mxu0
      %v6402 = vpop.f32.mrb[0].mxu0
      %v6403 = vadd.f32 0.0, %v6402
      %v6404 = vpop.f32.mrb[0].mxu0
      %6405 = vmatprep.mubr.bf16.mxu0 0
      %6406 = vmatmul.mubr.bf16.gmra.mrb[0].mxu0 %v5974
      %v6407 = vpop.f32.mrb[0].mxu0
      %v6408 = vadd.f32 0.0, %v6407
      %v6409 = vpop.f32.mrb[0].mxu0
      %v6410 = vpop.f32.mrb[0].mxu0
      %v6411 = vadd.f32 0.0, %v6410
      %v6412 = vpop.f32.mrb[0].mxu0
      %6413 = vmatprep.mubr.bf16.mxu0 0
      %6414 = vmatmul.mubr.bf16.gmra.mrb[0].mxu0 %v5977
      %v6415 = vpop.f32.mrb[0].mxu0
      %v6416 = vadd.f32 0.0, %v6415
      %v6417 = vpop.f32.mrb[0].mxu0
      %v6418 = vpop.f32.mrb[0].mxu0
      %v6419 = vadd.f32 0.0, %v6418
      %v6420 = vpop.f32.mrb[0].mxu0
      %6421 = vmatprep.mubr.bf16.mxu0 0
      %6422 = vmatmul.mubr.bf16.gmra.mrb[0].mxu0 %v5980
      %v6423 = vpop.f32.mrb[0].mxu0
      %v6424 = vadd.f32 0.0, %v6423
      %v6425 = vpop.f32.mrb[0].mxu0
      %v6426 = vpop.f32.mrb[0].mxu0
      %v6427 = vadd.f32 0.0, %v6426
      %v6428 = vpop.f32.mrb[0].mxu0
      %6429 = vmatprep.mubr.bf16.mxu0 0
      %6430 = vmatmul.mubr.bf16.gmra.mrb[0].mxu0 %v5983
      %v6431 = vpop.f32.mrb[0].mxu0
      %v6432 = vadd.f32 0.0, %v6431
      %v6433 = vpop.f32.mrb[0].mxu0
      %v6434 = vpop.f32.mrb[0].mxu0
      %v6435 = vadd.f32 0.0, %v6434
      %v6436 = vpop.f32.mrb[0].mxu0
      %6437 = vmatprep.mubr.bf16.mxu0 0
      %6438 = vmatmul.mubr.bf16.gmra.mrb[0].mxu0 %v5986
      %v6439 = vpop.f32.mrb[0].mxu0
      %v6440 = vadd.f32 0.0, %v6439
      %v6441 = vpop.f32.mrb[0].mxu0
      %v6442 = vpop.f32.mrb[0].mxu0
      %v6443 = vadd.f32 0.0, %v6442
      %v6444 = vpop.f32.mrb[0].mxu0
      %6445 = vmatprep.mubr.bf16.mxu0 0
      %6446 = vmatmul.mubr.bf16.gmra.mrb[0].mxu0 %v5989
      %v6447 = vpop.f32.mrb[0].mxu0
      %v6448 = vadd.f32 0.0, %v6447
      %v6449 = vpop.f32.mrb[0].mxu0
      %v6450 = vpop.f32.mrb[0].mxu0
      %v6451 = vadd.f32 0.0, %v6450
      %v6452 = vpop.f32.mrb[0].mxu0
      %6453 = vmatprep.mubr.bf16.mxu0 0
      %6454 = vmatmul.mubr.bf16.gmra.mrb[0].mxu0 %v5992
      %v6455 = vpop.f32.mrb[0].mxu0
      %v6456 = vadd.f32 0.0, %v6455
      %v6457 = vpop.f32.mrb[0].mxu0
      %v6458 = vpop.f32.mrb[0].mxu0
      %v6459 = vadd.f32 0.0, %v6458
      %v6460 = vpop.f32.mrb[0].mxu0
      %6461 = vmatprep.mubr.bf16.mxu0 0
      %6462 = vmatmul.mubr.bf16.gmra.mrb[0].mxu0 %v5995
      %v6463 = vpop.f32.mrb[0].mxu0
      %v6464 = vadd.f32 0.0, %v6463
      %v6465 = vpop.f32.mrb[0].mxu0
      %v6466 = vpop.f32.mrb[0].mxu0
      %v6467 = vadd.f32 0.0, %v6466
      %v6468 = vpop.f32.mrb[0].mxu0
      %6469 = vmatprep.mubr.bf16.mxu0 0
      %6470 = vmatmul.mubr.bf16.gmra.mrb[0].mxu0 %v5998
      %v6471 = vpop.f32.mrb[0].mxu0
      %v6472 = vadd.f32 0.0, %v6471
      %v6473 = vpop.f32.mrb[0].mxu0
      %v6474 = vpop.f32.mrb[0].mxu0
      %v6475 = vadd.f32 0.0, %v6474
      %v6476 = vpop.f32.mrb[0].mxu0
      %6477 = vdwg.mxu0
      %v6479 = vsel %vm1217, %v5875, 0
      %6481 = vmatprep.subr.bf16.mxu0 0
      %6482 = vmatpush1.bf16.msra.mxu0 %v6479
      %6483 = vmatprep.subr.bf16.mxu0 0
      %6484 = vmatpush1.bf16.msra.mxu0 0
      %6485 = vmatprep.subr.bf16.mxu0 0
      %6486 = vmatpush1.bf16.msra.mxu0 0
      %6487 = vmatprep.subr.bf16.mxu0 0
      %6488 = vmatpush1.bf16.msra.mxu0 0
      %6489 = vmatprep.subr.bf16.mxu0 0
      %6490 = vmatpush1.bf16.msra.mxu0 0
      %6491 = vmatprep.subr.bf16.mxu0 0
      %6492 = vmatpush1.bf16.msra.mxu0 0
      %6493 = vmatprep.subr.bf16.mxu0 0
      %6494 = vmatpush1.bf16.msra.mxu0 0
      %6495 = vmatprep.subr.bf16.mxu0 0
      %6496 = vmatpush1.bf16.msra.mxu0 0
      %6497 = vmatprep.subr.bf16.mxu0 0
      %6498 = vmatpush1.bf16.msra.mxu0 0
      %6499 = vmatprep.subr.bf16.mxu0 0
      %6500 = vmatpush1.bf16.msra.mxu0 0
      %6501 = vmatprep.subr.bf16.mxu0 0
      %6502 = vmatpush1.bf16.msra.mxu0 0
      %6503 = vmatprep.subr.bf16.mxu0 0
      %6504 = vmatpush1.bf16.msra.mxu0 0
      %6505 = vmatprep.subr.bf16.mxu0 0
      %6506 = vmatpush1.bf16.msra.mxu0 0
      %6507 = vmatprep.subr.bf16.mxu0 0
      %6508 = vmatpush1.bf16.msra.mxu0 0
      %6509 = vmatprep.subr.bf16.mxu0 0
      %6510 = vmatpush1.bf16.msra.mxu0 0
      %6511 = vmatprep.subr.bf16.mxu0 0
      %6512 = vmatpush1.bf16.msra.mxu0 0
      %6513 = vmatprep.mubr.bf16.mxu0 0
      %6514 = vmatmul.mubr.bf16.gmra.mrb[0].mxu0 %v6185
      %v6515 = vpop.f32.mrb[0].mxu0
      %v6516 = vadd.f32 %v6384, %v6515
      %v6517 = vpop.f32.mrb[0].mxu0
      %v6518 = vpop.f32.mrb[0].mxu0
      %v6519 = vadd.f32 %v6387, %v6518
      %v6520 = vpop.f32.mrb[0].mxu0
      %6521 = vmatprep.mubr.bf16.mxu0 0
      %6522 = vmatmul.mubr.bf16.gmra.mrb[0].mxu0 %v6188
      %v6523 = vpop.f32.mrb[0].mxu0
      %v6524 = vadd.f32 %v6392, %v6523
      %v6525 = vpop.f32.mrb[0].mxu0
      %v6526 = vpop.f32.mrb[0].mxu0
      %v6527 = vadd.f32 %v6395, %v6526
      %v6528 = vpop.f32.mrb[0].mxu0
      %6529 = vmatprep.mubr.bf16.mxu0 0
      %6530 = vmatmul.mubr.bf16.gmra.mrb[0].mxu0 %v6191
      %v6531 = vpop.f32.mrb[0].mxu0
      %v6532 = vadd.f32 %v6400, %v6531
      %v6533 = vpop.f32.mrb[0].mxu0
      %v6534 = vpop.f32.mrb[0].mxu0
      %v6535 = vadd.f32 %v6403, %v6534
      %v6536 = vpop.f32.mrb[0].mxu0
      %6537 = vmatprep.mubr.bf16.mxu0 0
      %6538 = vmatmul.mubr.bf16.gmra.mrb[0].mxu0 %v6194
      %v6539 = vpop.f32.mrb[0].mxu0
      %v6540 = vadd.f32 %v6408, %v6539
      %v6541 = vpop.f32.mrb[0].mxu0
      %v6542 = vpop.f32.mrb[0].mxu0
      %v6543 = vadd.f32 %v6411, %v6542
      %v6544 = vpop.f32.mrb[0].mxu0
      %6545 = vmatprep.mubr.bf16.mxu0 0
      %6546 = vmatmul.mubr.bf16.gmra.mrb[0].mxu0 %v6197
      %v6547 = vpop.f32.mrb[0].mxu0
      %v6548 = vadd.f32 %v6416, %v6547
      %v6549 = vpop.f32.mrb[0].mxu0
      %v6550 = vpop.f32.mrb[0].mxu0
      %v6551 = vadd.f32 %v6419, %v6550
      %v6552 = vpop.f32.mrb[0].mxu0
      %6553 = vmatprep.mubr.bf16.mxu0 0
      %6554 = vmatmul.mubr.bf16.gmra.mrb[0].mxu0 %v6200
      %v6555 = vpop.f32.mrb[0].mxu0
      %v6556 = vadd.f32 %v6424, %v6555
      %v6557 = vpop.f32.mrb[0].mxu0
      %v6558 = vpop.f32.mrb[0].mxu0
      %v6559 = vadd.f32 %v6427, %v6558
      %v6560 = vpop.f32.mrb[0].mxu0
      %6561 = vmatprep.mubr.bf16.mxu0 0
      %6562 = vmatmul.mubr.bf16.gmra.mrb[0].mxu0 %v6203
      %v6563 = vpop.f32.mrb[0].mxu0
      %v6564 = vadd.f32 %v6432, %v6563
      %v6565 = vpop.f32.mrb[0].mxu0
      %v6566 = vpop.f32.mrb[0].mxu0
      %v6567 = vadd.f32 %v6435, %v6566
      %v6568 = vpop.f32.mrb[0].mxu0
      %6569 = vmatprep.mubr.bf16.mxu0 0
      %6570 = vmatmul.mubr.bf16.gmra.mrb[0].mxu0 %v6206
      %v6571 = vpop.f32.mrb[0].mxu0
      %v6572 = vadd.f32 %v6440, %v6571
      %v6573 = vpop.f32.mrb[0].mxu0
      %v6574 = vpop.f32.mrb[0].mxu0
      %v6575 = vadd.f32 %v6443, %v6574
      %v6576 = vpop.f32.mrb[0].mxu0
      %6577 = vmatprep.mubr.bf16.mxu0 0
      %6578 = vmatmul.mubr.bf16.gmra.mrb[0].mxu0 %v6209
      %v6579 = vpop.f32.mrb[0].mxu0
      %v6580 = vadd.f32 %v6448, %v6579
      %v6581 = vpop.f32.mrb[0].mxu0
      %v6582 = vpop.f32.mrb[0].mxu0
      %v6583 = vadd.f32 %v6451, %v6582
      %v6584 = vpop.f32.mrb[0].mxu0
      %6585 = vmatprep.mubr.bf16.mxu0 0
      %6586 = vmatmul.mubr.bf16.gmra.mrb[0].mxu0 %v6212
      %v6587 = vpop.f32.mrb[0].mxu0
      %v6588 = vadd.f32 %v6456, %v6587
      %v6589 = vpop.f32.mrb[0].mxu0
      %v6590 = vpop.f32.mrb[0].mxu0
      %v6591 = vadd.f32 %v6459, %v6590
      %v6592 = vpop.f32.mrb[0].mxu0
      %6593 = vmatprep.mubr.bf16.mxu0 0
      %6594 = vmatmul.mubr.bf16.gmra.mrb[0].mxu0 %v6215
      %v6595 = vpop.f32.mrb[0].mxu0
      %v6596 = vadd.f32 %v6464, %v6595
      %v6597 = vpop.f32.mrb[0].mxu0
      %v6598 = vpop.f32.mrb[0].mxu0
      %v6599 = vadd.f32 %v6467, %v6598
      %v6600 = vpop.f32.mrb[0].mxu0
      %6601 = vmatprep.mubr.bf16.mxu0 0
      %6602 = vmatmul.mubr.bf16.gmra.mrb[0].mxu0 %v6218
      %v6603 = vpop.f32.mrb[0].mxu0
      %v6604 = vadd.f32 %v6472, %v6603
      %v6605 = vpop.f32.mrb[0].mxu0
      %v6606 = vpop.f32.mrb[0].mxu0
      %v6607 = vadd.f32 %v6475, %v6606
      %v6608 = vpop.f32.mrb[0].mxu0
      %6609 = vdwg.mxu0
      %s6610 = scalar_lea.vmem %s2, 10
      %v6611 = vld [vmem:[%s6610] sm:$0x3]
      %v6613 = vsel %vm1217, %v6611, 0
      %6615 = vmatprep.subr.bf16.mxu0 0
      %6616 = vmatpush1.bf16.msra.mxu0 %v6613
      %6617 = vmatprep.subr.bf16.mxu0 0
      %6618 = vmatpush1.bf16.msra.mxu0 0
      %6619 = vmatprep.subr.bf16.mxu0 0
      %6620 = vmatpush1.bf16.msra.mxu0 0
      %6621 = vmatprep.subr.bf16.mxu0 0
      %6622 = vmatpush1.bf16.msra.mxu0 0
      %6623 = vmatprep.subr.bf16.mxu0 0
      %6624 = vmatpush1.bf16.msra.mxu0 0
      %6625 = vmatprep.subr.bf16.mxu0 0
      %6626 = vmatpush1.bf16.msra.mxu0 0
      %6627 = vmatprep.subr.bf16.mxu0 0
      %6628 = vmatpush1.bf16.msra.mxu0 0
      %6629 = vmatprep.subr.bf16.mxu0 0
      %6630 = vmatpush1.bf16.msra.mxu0 0
      %6631 = vmatprep.subr.bf16.mxu0 0
      %6632 = vmatpush1.bf16.msra.mxu0 0
      %6633 = vmatprep.subr.bf16.mxu0 0
      %6634 = vmatpush1.bf16.msra.mxu0 0
      %6635 = vmatprep.subr.bf16.mxu0 0
      %6636 = vmatpush1.bf16.msra.mxu0 0
      %6637 = vmatprep.subr.bf16.mxu0 0
      %6638 = vmatpush1.bf16.msra.mxu0 0
      %6639 = vmatprep.subr.bf16.mxu0 0
      %6640 = vmatpush1.bf16.msra.mxu0 0
      %6641 = vmatprep.subr.bf16.mxu0 0
      %6642 = vmatpush1.bf16.msra.mxu0 0
      %6643 = vmatprep.subr.bf16.mxu0 0
      %6644 = vmatpush1.bf16.msra.mxu0 0
      %6645 = vmatprep.subr.bf16.mxu0 0
      %6646 = vmatpush1.bf16.msra.mxu0 0
      %6647 = vmatprep.mubr.bf16.mxu0 0
      %6648 = vmatmul.mubr.bf16.gmra.mrb[0].mxu0 %v5965
      %v6649 = vpop.f32.mrb[0].mxu0
      %v6650 = vadd.f32 0.0, %v6649
      %v6651 = vpop.f32.mrb[0].mxu0
      %v6652 = vpop.f32.mrb[0].mxu0
      %v6653 = vadd.f32 0.0, %v6652
      %v6654 = vpop.f32.mrb[0].mxu0
      %6655 = vmatprep.mubr.bf16.mxu0 0
      %6656 = vmatmul.mubr.bf16.gmra.mrb[0].mxu0 %v5968
      %v6657 = vpop.f32.mrb[0].mxu0
      %v6658 = vadd.f32 0.0, %v6657
      %v6659 = vpop.f32.mrb[0].mxu0
      %v6660 = vpop.f32.mrb[0].mxu0
      %v6661 = vadd.f32 0.0, %v6660
      %v6662 = vpop.f32.mrb[0].mxu0
      %6663 = vmatprep.mubr.bf16.mxu0 0
      %6664 = vmatmul.mubr.bf16.gmra.mrb[0].mxu0 %v5971
      %v6665 = vpop.f32.mrb[0].mxu0
      %v6666 = vadd.f32 0.0, %v6665
      %v6667 = vpop.f32.mrb[0].mxu0
      %v6668 = vpop.f32.mrb[0].mxu0
      %v6669 = vadd.f32 0.0, %v6668
      %v6670 = vpop.f32.mrb[0].mxu0
      %6671 = vmatprep.mubr.bf16.mxu0 0
      %6672 = vmatmul.mubr.bf16.gmra.mrb[0].mxu0 %v5974
      %v6673 = vpop.f32.mrb[0].mxu0
      %v6674 = vadd.f32 0.0, %v6673
      %v6675 = vpop.f32.mrb[0].mxu0
      %v6676 = vpop.f32.mrb[0].mxu0
      %v6677 = vadd.f32 0.0, %v6676
      %v6678 = vpop.f32.mrb[0].mxu0
      %6679 = vmatprep.mubr.bf16.mxu0 0
      %6680 = vmatmul.mubr.bf16.gmra.mrb[0].mxu0 %v5977
      %v6681 = vpop.f32.mrb[0].mxu0
      %v6682 = vadd.f32 0.0, %v6681
      %v6683 = vpop.f32.mrb[0].mxu0
      %v6684 = vpop.f32.mrb[0].mxu0
      %v6685 = vadd.f32 0.0, %v6684
      %v6686 = vpop.f32.mrb[0].mxu0
      %6687 = vmatprep.mubr.bf16.mxu0 0
      %6688 = vmatmul.mubr.bf16.gmra.mrb[0].mxu0 %v5980
      %v6689 = vpop.f32.mrb[0].mxu0
      %v6690 = vadd.f32 0.0, %v6689
      %v6691 = vpop.f32.mrb[0].mxu0
      %v6692 = vpop.f32.mrb[0].mxu0
      %v6693 = vadd.f32 0.0, %v6692
      %v6694 = vpop.f32.mrb[0].mxu0
      %6695 = vmatprep.mubr.bf16.mxu0 0
      %6696 = vmatmul.mubr.bf16.gmra.mrb[0].mxu0 %v5983
      %v6697 = vpop.f32.mrb[0].mxu0
      %v6698 = vadd.f32 0.0, %v6697
      %v6699 = vpop.f32.mrb[0].mxu0
      %v6700 = vpop.f32.mrb[0].mxu0
      %v6701 = vadd.f32 0.0, %v6700
      %v6702 = vpop.f32.mrb[0].mxu0
      %6703 = vmatprep.mubr.bf16.mxu0 0
      %6704 = vmatmul.mubr.bf16.gmra.mrb[0].mxu0 %v5986
      %v6705 = vpop.f32.mrb[0].mxu0
      %v6706 = vadd.f32 0.0, %v6705
      %v6707 = vpop.f32.mrb[0].mxu0
      %v6708 = vpop.f32.mrb[0].mxu0
      %v6709 = vadd.f32 0.0, %v6708
      %v6710 = vpop.f32.mrb[0].mxu0
      %6711 = vmatprep.mubr.bf16.mxu0 0
      %6712 = vmatmul.mubr.bf16.gmra.mrb[0].mxu0 %v5989
      %v6713 = vpop.f32.mrb[0].mxu0
      %v6714 = vadd.f32 0.0, %v6713
      %v6715 = vpop.f32.mrb[0].mxu0
      %v6716 = vpop.f32.mrb[0].mxu0
      %v6717 = vadd.f32 0.0, %v6716
      %v6718 = vpop.f32.mrb[0].mxu0
      %6719 = vmatprep.mubr.bf16.mxu0 0
      %6720 = vmatmul.mubr.bf16.gmra.mrb[0].mxu0 %v5992
      %v6721 = vpop.f32.mrb[0].mxu0
      %v6722 = vadd.f32 0.0, %v6721
      %v6723 = vpop.f32.mrb[0].mxu0
      %v6724 = vpop.f32.mrb[0].mxu0
      %v6725 = vadd.f32 0.0, %v6724
      %v6726 = vpop.f32.mrb[0].mxu0
      %6727 = vmatprep.mubr.bf16.mxu0 0
      %6728 = vmatmul.mubr.bf16.gmra.mrb[0].mxu0 %v5995
      %v6729 = vpop.f32.mrb[0].mxu0
      %v6730 = vadd.f32 0.0, %v6729
      %v6731 = vpop.f32.mrb[0].mxu0
      %v6732 = vpop.f32.mrb[0].mxu0
      %v6733 = vadd.f32 0.0, %v6732
      %v6734 = vpop.f32.mrb[0].mxu0
      %6735 = vmatprep.mubr.bf16.mxu0 0
      %6736 = vmatmul.mubr.bf16.gmra.mrb[0].mxu0 %v5998
      %v6737 = vpop.f32.mrb[0].mxu0
      %v6738 = vadd.f32 0.0, %v6737
      %v6739 = vpop.f32.mrb[0].mxu0
      %v6740 = vpop.f32.mrb[0].mxu0
      %v6741 = vadd.f32 0.0, %v6740
      %v6742 = vpop.f32.mrb[0].mxu0
      %6743 = vdwg.mxu0
      %v6745 = vsel %vm1217, %v5877, 0
      %6747 = vmatprep.subr.bf16.mxu0 0
      %6748 = vmatpush1.bf16.msra.mxu0 %v6745
      %6749 = vmatprep.subr.bf16.mxu0 0
      %6750 = vmatpush1.bf16.msra.mxu0 0
      %6751 = vmatprep.subr.bf16.mxu0 0
      %6752 = vmatpush1.bf16.msra.mxu0 0
      %6753 = vmatprep.subr.bf16.mxu0 0
      %6754 = vmatpush1.bf16.msra.mxu0 0
      %6755 = vmatprep.subr.bf16.mxu0 0
      %6756 = vmatpush1.bf16.msra.mxu0 0
      %6757 = vmatprep.subr.bf16.mxu0 0
      %6758 = vmatpush1.bf16.msra.mxu0 0
      %6759 = vmatprep.subr.bf16.mxu0 0
      %6760 = vmatpush1.bf16.msra.mxu0 0
      %6761 = vmatprep.subr.bf16.mxu0 0
      %6762 = vmatpush1.bf16.msra.mxu0 0
      %6763 = vmatprep.subr.bf16.mxu0 0
      %6764 = vmatpush1.bf16.msra.mxu0 0
      %6765 = vmatprep.subr.bf16.mxu0 0
      %6766 = vmatpush1.bf16.msra.mxu0 0
      %6767 = vmatprep.subr.bf16.mxu0 0
      %6768 = vmatpush1.bf16.msra.mxu0 0
      %6769 = vmatprep.subr.bf16.mxu0 0
      %6770 = vmatpush1.bf16.msra.mxu0 0
      %6771 = vmatprep.subr.bf16.mxu0 0
      %6772 = vmatpush1.bf16.msra.mxu0 0
      %6773 = vmatprep.subr.bf16.mxu0 0
      %6774 = vmatpush1.bf16.msra.mxu0 0
      %6775 = vmatprep.subr.bf16.mxu0 0
      %6776 = vmatpush1.bf16.msra.mxu0 0
      %6777 = vmatprep.subr.bf16.mxu0 0
      %6778 = vmatpush1.bf16.msra.mxu0 0
      %6779 = vmatprep.mubr.bf16.mxu0 0
      %6780 = vmatmul.mubr.bf16.gmra.mrb[0].mxu0 %v6185
      %v6781 = vpop.f32.mrb[0].mxu0
      %v6782 = vadd.f32 %v6650, %v6781
      %v6783 = vpop.f32.mrb[0].mxu0
      %v6784 = vpop.f32.mrb[0].mxu0
      %v6785 = vadd.f32 %v6653, %v6784
      %v6786 = vpop.f32.mrb[0].mxu0
      %6787 = vmatprep.mubr.bf16.mxu0 0
      %6788 = vmatmul.mubr.bf16.gmra.mrb[0].mxu0 %v6188
      %v6789 = vpop.f32.mrb[0].mxu0
      %v6790 = vadd.f32 %v6658, %v6789
      %v6791 = vpop.f32.mrb[0].mxu0
      %v6792 = vpop.f32.mrb[0].mxu0
      %v6793 = vadd.f32 %v6661, %v6792
      %v6794 = vpop.f32.mrb[0].mxu0
      %6795 = vmatprep.mubr.bf16.mxu0 0
      %6796 = vmatmul.mubr.bf16.gmra.mrb[0].mxu0 %v6191
      %v6797 = vpop.f32.mrb[0].mxu0
      %v6798 = vadd.f32 %v6666, %v6797
      %v6799 = vpop.f32.mrb[0].mxu0
      %v6800 = vpop.f32.mrb[0].mxu0
      %v6801 = vadd.f32 %v6669, %v6800
      %v6802 = vpop.f32.mrb[0].mxu0
      %6803 = vmatprep.mubr.bf16.mxu0 0
      %6804 = vmatmul.mubr.bf16.gmra.mrb[0].mxu0 %v6194
      %v6805 = vpop.f32.mrb[0].mxu0
      %v6806 = vadd.f32 %v6674, %v6805
      %v6807 = vpop.f32.mrb[0].mxu0
      %v6808 = vpop.f32.mrb[0].mxu0
      %v6809 = vadd.f32 %v6677, %v6808
      %v6810 = vpop.f32.mrb[0].mxu0
      %6811 = vmatprep.mubr.bf16.mxu0 0
      %6812 = vmatmul.mubr.bf16.gmra.mrb[0].mxu0 %v6197
      %v6813 = vpop.f32.mrb[0].mxu0
      %v6814 = vadd.f32 %v6682, %v6813
      %v6815 = vpop.f32.mrb[0].mxu0
      %v6816 = vpop.f32.mrb[0].mxu0
      %v6817 = vadd.f32 %v6685, %v6816
      %v6818 = vpop.f32.mrb[0].mxu0
      %6819 = vmatprep.mubr.bf16.mxu0 0
      %6820 = vmatmul.mubr.bf16.gmra.mrb[0].mxu0 %v6200
      %v6821 = vpop.f32.mrb[0].mxu0
      %v6822 = vadd.f32 %v6690, %v6821
      %v6823 = vpop.f32.mrb[0].mxu0
      %v6824 = vpop.f32.mrb[0].mxu0
      %v6825 = vadd.f32 %v6693, %v6824
      %v6826 = vpop.f32.mrb[0].mxu0
      %6827 = vmatprep.mubr.bf16.mxu0 0
      %6828 = vmatmul.mubr.bf16.gmra.mrb[0].mxu0 %v6203
      %v6829 = vpop.f32.mrb[0].mxu0
      %v6830 = vadd.f32 %v6698, %v6829
      %v6831 = vpop.f32.mrb[0].mxu0
      %v6832 = vpop.f32.mrb[0].mxu0
      %v6833 = vadd.f32 %v6701, %v6832
      %v6834 = vpop.f32.mrb[0].mxu0
      %6835 = vmatprep.mubr.bf16.mxu0 0
      %6836 = vmatmul.mubr.bf16.gmra.mrb[0].mxu0 %v6206
      %v6837 = vpop.f32.mrb[0].mxu0
      %v6838 = vadd.f32 %v6706, %v6837
      %v6839 = vpop.f32.mrb[0].mxu0
      %v6840 = vpop.f32.mrb[0].mxu0
      %v6841 = vadd.f32 %v6709, %v6840
      %v6842 = vpop.f32.mrb[0].mxu0
      %6843 = vmatprep.mubr.bf16.mxu0 0
      %6844 = vmatmul.mubr.bf16.gmra.mrb[0].mxu0 %v6209
      %v6845 = vpop.f32.mrb[0].mxu0
      %v6846 = vadd.f32 %v6714, %v6845
      %v6847 = vpop.f32.mrb[0].mxu0
      %v6848 = vpop.f32.mrb[0].mxu0
      %v6849 = vadd.f32 %v6717, %v6848
      %v6850 = vpop.f32.mrb[0].mxu0
      %6851 = vmatprep.mubr.bf16.mxu0 0
      %6852 = vmatmul.mubr.bf16.gmra.mrb[0].mxu0 %v6212
      %v6853 = vpop.f32.mrb[0].mxu0
      %v6854 = vadd.f32 %v6722, %v6853
      %v6855 = vpop.f32.mrb[0].mxu0
      %v6856 = vpop.f32.mrb[0].mxu0
      %v6857 = vadd.f32 %v6725, %v6856
      %v6858 = vpop.f32.mrb[0].mxu0
      %6859 = vmatprep.mubr.bf16.mxu0 0
      %6860 = vmatmul.mubr.bf16.gmra.mrb[0].mxu0 %v6215
      %v6861 = vpop.f32.mrb[0].mxu0
      %v6862 = vadd.f32 %v6730, %v6861
      %v6863 = vpop.f32.mrb[0].mxu0
      %v6864 = vpop.f32.mrb[0].mxu0
      %v6865 = vadd.f32 %v6733, %v6864
      %v6866 = vpop.f32.mrb[0].mxu0
      %6867 = vmatprep.mubr.bf16.mxu0 0
      %6868 = vmatmul.mubr.bf16.gmra.mrb[0].mxu0 %v6218
      %v6869 = vpop.f32.mrb[0].mxu0
      %v6870 = vadd.f32 %v6738, %v6869
      %v6871 = vpop.f32.mrb[0].mxu0
      %v6872 = vpop.f32.mrb[0].mxu0
      %v6873 = vadd.f32 %v6741, %v6872
      %v6874 = vpop.f32.mrb[0].mxu0
      %6875 = vdwg.mxu0
      %v6876 = vld [vmem:[%s2094] sm:$0xf]
      %v6877 = vld [vmem:[%s2094 + $0x4] sm:$0xf]
      %v6878 = vld [vmem:[%s2094 + $0x8] sm:$0xf]
      %v6879 = vld [vmem:[%s2094 + $0xc] sm:$0xf]
      %v6880 = vld [vmem:[%s2094 + $0x10] sm:$0xf]
      %v6881 = vld [vmem:[%s2094 + $0x14] sm:$0xf]
      %v6882 = vld [vmem:[%s2094 + $0x18] sm:$0xf]
      %v6883 = vld [vmem:[%s2094 + $0x1c] sm:$0xf]
      %v6884 = vld [vmem:[%s2094 + $0x20] sm:$0xf]
      %v6885 = vld [vmem:[%s2094 + $0x24] sm:$0xf]
      %v6886 = vld [vmem:[%s2094 + $0x28] sm:$0xf]
      %v6887 = vld [vmem:[%s2094 + $0x2c] sm:$0xf]
      %v6888 = vld [vmem:[%s2094 + $0x30] sm:$0xf]
      %v6889 = vld [vmem:[%s2094 + $0x34] sm:$0xf]
      %v6890 = vld [vmem:[%s2094 + $0x38] sm:$0xf]
      %v6891 = vld [vmem:[%s2094 + $0x3c] sm:$0xf]
      %v6892 = vld [vmem:[%s2094 + $0x40] sm:$0xf]
      %v6893 = vld [vmem:[%s2094 + $0x44] sm:$0xf]
      %v6894 = vld [vmem:[%s2094 + $0x48] sm:$0xf]
      %v6895 = vld [vmem:[%s2094 + $0x4c] sm:$0xf]
      %v6896 = vld [vmem:[%s2094 + $0x50] sm:$0xf]
      %v6897 = vld [vmem:[%s2094 + $0x54] sm:$0xf]
      %v6898 = vld [vmem:[%s2094 + $0x58] sm:$0xf]
      %v6899 = vld [vmem:[%s2094 + $0x5c] sm:$0xf]
      %s6900 = scalar_lea.vmem %s2, 12
      %v6901 = vld [vmem:[%s6900] sm:$0x3]
      %v6926 = vunpack.c.l.b16 %v6876
      %v6927 = vunpack.c.l.b16 %v6877
      %v6928 = vunpack.c.l.b16 %v6878
      %v6929 = vunpack.c.l.b16 %v6879
      %v6930 = vunpack.c.l.b16 %v6880
      %v6931 = vunpack.c.l.b16 %v6881
      %v6932 = vunpack.c.l.b16 %v6882
      %v6933 = vunpack.c.l.b16 %v6883
      %v6934 = vunpack.c.l.b16 %v6884
      %v6935 = vunpack.c.l.b16 %v6885
      %v6936 = vunpack.c.l.b16 %v6886
      %v6937 = vunpack.c.l.b16 %v6887
      %v6938 = vunpack.c.l.b16 %v6888
      %v6939 = vunpack.c.l.b16 %v6889
      %v6940 = vunpack.c.l.b16 %v6890
      %v6941 = vunpack.c.l.b16 %v6891
      %v6942 = vunpack.c.l.b16 %v6892
      %v6943 = vunpack.c.l.b16 %v6893
      %v6944 = vunpack.c.l.b16 %v6894
      %v6945 = vunpack.c.l.b16 %v6895
      %v6946 = vunpack.c.l.b16 %v6896
      %v6947 = vunpack.c.l.b16 %v6897
      %v6948 = vunpack.c.l.b16 %v6898
      %v6949 = vunpack.c.l.b16 %v6899
      %v6950 = vpack.c.b16 %v6927, %v6926
      %v6951 = vpack.c.b16 %v6929, %v6928
      %v6952 = vpack.c.b16 %v6931, %v6930
      %v6953 = vpack.c.b16 %v6933, %v6932
      %v6954 = vpack.c.b16 %v6935, %v6934
      %v6955 = vpack.c.b16 %v6937, %v6936
      %v6956 = vpack.c.b16 %v6939, %v6938
      %v6957 = vpack.c.b16 %v6941, %v6940
      %v6958 = vpack.c.b16 %v6943, %v6942
      %v6959 = vpack.c.b16 %v6945, %v6944
      %v6960 = vpack.c.b16 %v6947, %v6946
      %v6961 = vpack.c.b16 %v6949, %v6948
      %v6963 = vsel %vm1180, %v6950, 0
      %v6966 = vsel %vm1180, %v6951, 0
      %v6969 = vsel %vm1180, %v6952, 0
      %v6972 = vsel %vm1180, %v6953, 0
      %v6975 = vsel %vm1180, %v6954, 0
      %v6978 = vsel %vm1180, %v6955, 0
      %v6981 = vsel %vm1180, %v6956, 0
      %v6984 = vsel %vm1180, %v6957, 0
      %v6987 = vsel %vm1180, %v6958, 0
      %v6990 = vsel %vm1180, %v6959, 0
      %v6993 = vsel %vm1180, %v6960, 0
      %v6996 = vsel %vm1180, %v6961, 0
      %v6999 = vsel %vm1217, %v6901, 0
      %7001 = vmatprep.subr.bf16.mxu0 0
      %7002 = vmatpush1.bf16.msra.mxu0 %v6999
      %7003 = vmatprep.subr.bf16.mxu0 0
      %7004 = vmatpush1.bf16.msra.mxu0 0
      %7005 = vmatprep.subr.bf16.mxu0 0
      %7006 = vmatpush1.bf16.msra.mxu0 0
      %7007 = vmatprep.subr.bf16.mxu0 0
      %7008 = vmatpush1.bf16.msra.mxu0 0
      %7009 = vmatprep.subr.bf16.mxu0 0
      %7010 = vmatpush1.bf16.msra.mxu0 0
      %7011 = vmatprep.subr.bf16.mxu0 0
      %7012 = vmatpush1.bf16.msra.mxu0 0
      %7013 = vmatprep.subr.bf16.mxu0 0
      %7014 = vmatpush1.bf16.msra.mxu0 0
      %7015 = vmatprep.subr.bf16.mxu0 0
      %7016 = vmatpush1.bf16.msra.mxu0 0
      %7017 = vmatprep.subr.bf16.mxu0 0
      %7018 = vmatpush1.bf16.msra.mxu0 0
      %7019 = vmatprep.subr.bf16.mxu0 0
      %7020 = vmatpush1.bf16.msra.mxu0 0
      %7021 = vmatprep.subr.bf16.mxu0 0
      %7022 = vmatpush1.bf16.msra.mxu0 0
      %7023 = vmatprep.subr.bf16.mxu0 0
      %7024 = vmatpush1.bf16.msra.mxu0 0
      %7025 = vmatprep.subr.bf16.mxu0 0
      %7026 = vmatpush1.bf16.msra.mxu0 0
      %7027 = vmatprep.subr.bf16.mxu0 0
      %7028 = vmatpush1.bf16.msra.mxu0 0
      %7029 = vmatprep.subr.bf16.mxu0 0
      %7030 = vmatpush1.bf16.msra.mxu0 0
      %7031 = vmatprep.subr.bf16.mxu0 0
      %7032 = vmatpush1.bf16.msra.mxu0 0
      %7033 = vmatprep.mubr.bf16.mxu0 0
      %7034 = vmatmul.mubr.bf16.gmra.mrb[0].mxu0 %v6963
      %v7035 = vpop.f32.mrb[0].mxu0
      %v7036 = vadd.f32 0.0, %v7035
      %v7037 = vpop.f32.mrb[0].mxu0
      %v7038 = vpop.f32.mrb[0].mxu0
      %v7039 = vadd.f32 0.0, %v7038
      %v7040 = vpop.f32.mrb[0].mxu0
      %7041 = vmatprep.mubr.bf16.mxu0 0
      %7042 = vmatmul.mubr.bf16.gmra.mrb[0].mxu0 %v6966
      %v7043 = vpop.f32.mrb[0].mxu0
      %v7044 = vpop.f32.mrb[0].mxu0
      %v7045 = vpop.f32.mrb[0].mxu0
      %v7046 = vadd.f32 0.0, %v7045
      %v7047 = vpop.f32.mrb[0].mxu0
      %7048 = vmatprep.mubr.bf16.mxu0 0
      %7049 = vmatmul.mubr.bf16.gmra.mrb[0].mxu0 %v6969
      %v7050 = vpop.f32.mrb[0].mxu0
      %v7051 = vadd.f32 0.0, %v7050
      %v7052 = vpop.f32.mrb[0].mxu0
      %v7053 = vpop.f32.mrb[0].mxu0
      %v7054 = vpop.f32.mrb[0].mxu0
      %7055 = vmatprep.mubr.bf16.mxu0 0
      %7056 = vmatmul.mubr.bf16.gmra.mrb[0].mxu0 %v6972
      %v7057 = vpop.f32.mrb[0].mxu0
      %v7058 = vadd.f32 0.0, %v7057
      %v7059 = vpop.f32.mrb[0].mxu0
      %v7060 = vpop.f32.mrb[0].mxu0
      %v7061 = vadd.f32 0.0, %v7060
      %v7062 = vpop.f32.mrb[0].mxu0
      %7063 = vmatprep.mubr.bf16.mxu0 0
      %7064 = vmatmul.mubr.bf16.gmra.mrb[0].mxu0 %v6975
      %v7065 = vpop.f32.mrb[0].mxu0
      %v7066 = vpop.f32.mrb[0].mxu0
      %v7067 = vpop.f32.mrb[0].mxu0
      %v7068 = vadd.f32 0.0, %v7067
      %v7069 = vpop.f32.mrb[0].mxu0
      %7070 = vmatprep.mubr.bf16.mxu0 0
      %7071 = vmatmul.mubr.bf16.gmra.mrb[0].mxu0 %v6978
      %v7072 = vpop.f32.mrb[0].mxu0
      %v7073 = vadd.f32 0.0, %v7072
      %v7074 = vpop.f32.mrb[0].mxu0
      %v7075 = vpop.f32.mrb[0].mxu0
      %v7076 = vpop.f32.mrb[0].mxu0
      %7077 = vmatprep.mubr.bf16.mxu0 0
      %7078 = vmatmul.mubr.bf16.gmra.mrb[0].mxu0 %v6981
      %v7079 = vpop.f32.mrb[0].mxu0
      %v7080 = vadd.f32 0.0, %v7079
      %v7081 = vpop.f32.mrb[0].mxu0
      %v7082 = vpop.f32.mrb[0].mxu0
      %v7083 = vadd.f32 0.0, %v7082
      %v7084 = vpop.f32.mrb[0].mxu0
      %7085 = vmatprep.mubr.bf16.mxu0 0
      %7086 = vmatmul.mubr.bf16.gmra.mrb[0].mxu0 %v6984
      %v7087 = vpop.f32.mrb[0].mxu0
      %v7088 = vpop.f32.mrb[0].mxu0
      %v7089 = vpop.f32.mrb[0].mxu0
      %v7090 = vadd.f32 0.0, %v7089
      %v7091 = vpop.f32.mrb[0].mxu0
      %7092 = vmatprep.mubr.bf16.mxu0 0
      %7093 = vmatmul.mubr.bf16.gmra.mrb[0].mxu0 %v6987
      %v7094 = vpop.f32.mrb[0].mxu0
      %v7095 = vadd.f32 0.0, %v7094
      %v7096 = vpop.f32.mrb[0].mxu0
      %v7097 = vpop.f32.mrb[0].mxu0
      %v7098 = vpop.f32.mrb[0].mxu0
      %7099 = vmatprep.mubr.bf16.mxu0 0
      %7100 = vmatmul.mubr.bf16.gmra.mrb[0].mxu0 %v6990
      %v7101 = vpop.f32.mrb[0].mxu0
      %v7102 = vadd.f32 0.0, %v7101
      %v7103 = vpop.f32.mrb[0].mxu0
      %v7104 = vpop.f32.mrb[0].mxu0
      %v7105 = vadd.f32 0.0, %v7104
      %v7106 = vpop.f32.mrb[0].mxu0
      %7107 = vmatprep.mubr.bf16.mxu0 0
      %7108 = vmatmul.mubr.bf16.gmra.mrb[0].mxu0 %v6993
      %v7109 = vpop.f32.mrb[0].mxu0
      %v7110 = vpop.f32.mrb[0].mxu0
      %v7111 = vpop.f32.mrb[0].mxu0
      %v7112 = vadd.f32 0.0, %v7111
      %v7113 = vpop.f32.mrb[0].mxu0
      %7114 = vmatprep.mubr.bf16.mxu0 0
      %7115 = vmatmul.mubr.bf16.gmra.mrb[0].mxu0 %v6996
      %v7116 = vpop.f32.mrb[0].mxu0
      %v7117 = vadd.f32 0.0, %v7116
      %v7118 = vpop.f32.mrb[0].mxu0
      %v7119 = vpop.f32.mrb[0].mxu0
      %v7120 = vpop.f32.mrb[0].mxu0
      %7121 = vdwg.mxu0
      %v7122 = vadd.f32 %v6258, %v7036
      %v7123 = vadd.f32 %v6261, %v7039
      %v7124 = vadd.f32 %v6268, %v7046
      %v7125 = vadd.f32 %v6273, %v7051
      %v7126 = vadd.f32 %v6280, %v7058
      %v7127 = vadd.f32 %v6283, %v7061
      %v7128 = vadd.f32 %v6290, %v7068
      %v7129 = vadd.f32 %v6295, %v7073
      %v7130 = vadd.f32 %v6302, %v7080
      %v7131 = vadd.f32 %v6305, %v7083
      %v7132 = vadd.f32 %v6312, %v7090
      %v7133 = vadd.f32 %v6317, %v7095
      %v7134 = vadd.f32 %v6324, %v7102
      %v7135 = vadd.f32 %v6327, %v7105
      %v7136 = vadd.f32 %v6334, %v7112
      %v7137 = vadd.f32 %v6339, %v7117
      %s7138 = scalar_lea.vmem %s2, 14
      %v7139 = vld [vmem:[%s7138] sm:$0x3]
      %v7141 = vsel %vm1217, %v7139, 0
      %7143 = vmatprep.subr.bf16.mxu0 0
      %7144 = vmatpush1.bf16.msra.mxu0 %v7141
      %7145 = vmatprep.subr.bf16.mxu0 0
      %7146 = vmatpush1.bf16.msra.mxu0 0
      %7147 = vmatprep.subr.bf16.mxu0 0
      %7148 = vmatpush1.bf16.msra.mxu0 0
      %7149 = vmatprep.subr.bf16.mxu0 0
      %7150 = vmatpush1.bf16.msra.mxu0 0
      %7151 = vmatprep.subr.bf16.mxu0 0
      %7152 = vmatpush1.bf16.msra.mxu0 0
      %7153 = vmatprep.subr.bf16.mxu0 0
      %7154 = vmatpush1.bf16.msra.mxu0 0
      %7155 = vmatprep.subr.bf16.mxu0 0
      %7156 = vmatpush1.bf16.msra.mxu0 0
      %7157 = vmatprep.subr.bf16.mxu0 0
      %7158 = vmatpush1.bf16.msra.mxu0 0
      %7159 = vmatprep.subr.bf16.mxu0 0
      %7160 = vmatpush1.bf16.msra.mxu0 0
      %7161 = vmatprep.subr.bf16.mxu0 0
      %7162 = vmatpush1.bf16.msra.mxu0 0
      %7163 = vmatprep.subr.bf16.mxu0 0
      %7164 = vmatpush1.bf16.msra.mxu0 0
      %7165 = vmatprep.subr.bf16.mxu0 0
      %7166 = vmatpush1.bf16.msra.mxu0 0
      %7167 = vmatprep.subr.bf16.mxu0 0
      %7168 = vmatpush1.bf16.msra.mxu0 0
      %7169 = vmatprep.subr.bf16.mxu0 0
      %7170 = vmatpush1.bf16.msra.mxu0 0
      %7171 = vmatprep.subr.bf16.mxu0 0
      %7172 = vmatpush1.bf16.msra.mxu0 0
      %7173 = vmatprep.subr.bf16.mxu0 0
      %7174 = vmatpush1.bf16.msra.mxu0 0
      %7175 = vmatprep.mubr.bf16.mxu0 0
      %7176 = vmatmul.mubr.bf16.gmra.mrb[0].mxu0 %v6963
      %v7177 = vpop.f32.mrb[0].mxu0
      %v7178 = vadd.f32 0.0, %v7177
      %v7179 = vpop.f32.mrb[0].mxu0
      %v7180 = vpop.f32.mrb[0].mxu0
      %v7181 = vadd.f32 0.0, %v7180
      %v7182 = vpop.f32.mrb[0].mxu0
      %7183 = vmatprep.mubr.bf16.mxu0 0
      %7184 = vmatmul.mubr.bf16.gmra.mrb[0].mxu0 %v6966
      %v7185 = vpop.f32.mrb[0].mxu0
      %v7186 = vadd.f32 0.0, %v7185
      %v7187 = vpop.f32.mrb[0].mxu0
      %v7188 = vpop.f32.mrb[0].mxu0
      %v7189 = vadd.f32 0.0, %v7188
      %v7190 = vpop.f32.mrb[0].mxu0
      %7191 = vmatprep.mubr.bf16.mxu0 0
      %7192 = vmatmul.mubr.bf16.gmra.mrb[0].mxu0 %v6969
      %v7193 = vpop.f32.mrb[0].mxu0
      %v7194 = vadd.f32 0.0, %v7193
      %v7195 = vpop.f32.mrb[0].mxu0
      %v7196 = vpop.f32.mrb[0].mxu0
      %v7197 = vadd.f32 0.0, %v7196
      %v7198 = vpop.f32.mrb[0].mxu0
      %7199 = vmatprep.mubr.bf16.mxu0 0
      %7200 = vmatmul.mubr.bf16.gmra.mrb[0].mxu0 %v6972
      %v7201 = vpop.f32.mrb[0].mxu0
      %v7202 = vadd.f32 0.0, %v7201
      %v7203 = vpop.f32.mrb[0].mxu0
      %v7204 = vpop.f32.mrb[0].mxu0
      %v7205 = vadd.f32 0.0, %v7204
      %v7206 = vpop.f32.mrb[0].mxu0
      %7207 = vmatprep.mubr.bf16.mxu0 0
      %7208 = vmatmul.mubr.bf16.gmra.mrb[0].mxu0 %v6975
      %v7209 = vpop.f32.mrb[0].mxu0
      %v7210 = vadd.f32 0.0, %v7209
      %v7211 = vpop.f32.mrb[0].mxu0
      %v7212 = vpop.f32.mrb[0].mxu0
      %v7213 = vadd.f32 0.0, %v7212
      %v7214 = vpop.f32.mrb[0].mxu0
      %7215 = vmatprep.mubr.bf16.mxu0 0
      %7216 = vmatmul.mubr.bf16.gmra.mrb[0].mxu0 %v6978
      %v7217 = vpop.f32.mrb[0].mxu0
      %v7218 = vadd.f32 0.0, %v7217
      %v7219 = vpop.f32.mrb[0].mxu0
      %v7220 = vpop.f32.mrb[0].mxu0
      %v7221 = vadd.f32 0.0, %v7220
      %v7222 = vpop.f32.mrb[0].mxu0
      %7223 = vmatprep.mubr.bf16.mxu0 0
      %7224 = vmatmul.mubr.bf16.gmra.mrb[0].mxu0 %v6981
      %v7225 = vpop.f32.mrb[0].mxu0
      %v7226 = vadd.f32 0.0, %v7225
      %v7227 = vpop.f32.mrb[0].mxu0
      %v7228 = vpop.f32.mrb[0].mxu0
      %v7229 = vadd.f32 0.0, %v7228
      %v7230 = vpop.f32.mrb[0].mxu0
      %7231 = vmatprep.mubr.bf16.mxu0 0
      %7232 = vmatmul.mubr.bf16.gmra.mrb[0].mxu0 %v6984
      %v7233 = vpop.f32.mrb[0].mxu0
      %v7234 = vadd.f32 0.0, %v7233
      %v7235 = vpop.f32.mrb[0].mxu0
      %v7236 = vpop.f32.mrb[0].mxu0
      %v7237 = vadd.f32 0.0, %v7236
      %v7238 = vpop.f32.mrb[0].mxu0
      %7239 = vmatprep.mubr.bf16.mxu0 0
      %7240 = vmatmul.mubr.bf16.gmra.mrb[0].mxu0 %v6987
      %v7241 = vpop.f32.mrb[0].mxu0
      %v7242 = vadd.f32 0.0, %v7241
      %v7243 = vpop.f32.mrb[0].mxu0
      %v7244 = vpop.f32.mrb[0].mxu0
      %v7245 = vadd.f32 0.0, %v7244
      %v7246 = vpop.f32.mrb[0].mxu0
      %7247 = vmatprep.mubr.bf16.mxu0 0
      %7248 = vmatmul.mubr.bf16.gmra.mrb[0].mxu0 %v6990
      %v7249 = vpop.f32.mrb[0].mxu0
      %v7250 = vadd.f32 0.0, %v7249
      %v7251 = vpop.f32.mrb[0].mxu0
      %v7252 = vpop.f32.mrb[0].mxu0
      %v7253 = vadd.f32 0.0, %v7252
      %v7254 = vpop.f32.mrb[0].mxu0
      %7255 = vmatprep.mubr.bf16.mxu0 0
      %7256 = vmatmul.mubr.bf16.gmra.mrb[0].mxu0 %v6993
      %v7257 = vpop.f32.mrb[0].mxu0
      %v7258 = vadd.f32 0.0, %v7257
      %v7259 = vpop.f32.mrb[0].mxu0
      %v7260 = vpop.f32.mrb[0].mxu0
      %v7261 = vadd.f32 0.0, %v7260
      %v7262 = vpop.f32.mrb[0].mxu0
      %7263 = vmatprep.mubr.bf16.mxu0 0
      %7264 = vmatmul.mubr.bf16.gmra.mrb[0].mxu0 %v6996
      %v7265 = vpop.f32.mrb[0].mxu0
      %v7266 = vadd.f32 0.0, %v7265
      %v7267 = vpop.f32.mrb[0].mxu0
      %v7268 = vpop.f32.mrb[0].mxu0
      %v7269 = vadd.f32 0.0, %v7268
      %v7270 = vpop.f32.mrb[0].mxu0
      %7271 = vdwg.mxu0
      %v7272 = vadd.f32 %v6516, %v7178
      %v7273 = vadd.f32 %v6519, %v7181
      %v7274 = vadd.f32 %v6524, %v7186
      %v7275 = vadd.f32 %v6527, %v7189
      %v7276 = vadd.f32 %v6532, %v7194
      %v7277 = vadd.f32 %v6535, %v7197
      %v7278 = vadd.f32 %v6540, %v7202
      %v7279 = vadd.f32 %v6543, %v7205
      %v7280 = vadd.f32 %v6548, %v7210
      %v7281 = vadd.f32 %v6551, %v7213
      %v7282 = vadd.f32 %v6556, %v7218
      %v7283 = vadd.f32 %v6559, %v7221
      %v7284 = vadd.f32 %v6564, %v7226
      %v7285 = vadd.f32 %v6567, %v7229
      %v7286 = vadd.f32 %v6572, %v7234
      %v7287 = vadd.f32 %v6575, %v7237
      %v7288 = vadd.f32 %v6580, %v7242
      %v7289 = vadd.f32 %v6583, %v7245
      %v7290 = vadd.f32 %v6588, %v7250
      %v7291 = vadd.f32 %v6591, %v7253
      %v7292 = vadd.f32 %v6596, %v7258
      %v7293 = vadd.f32 %v6599, %v7261
      %v7294 = vadd.f32 %v6604, %v7266
      %v7295 = vadd.f32 %v6607, %v7269
      %s7296 = scalar_lea.vmem %s2, 16
      %v7297 = vld [vmem:[%s7296] sm:$0x3]
      %v7299 = vsel %vm1217, %v7297, 0
      %7301 = vmatprep.subr.bf16.mxu0 0
      %7302 = vmatpush1.bf16.msra.mxu0 %v7299
      %7303 = vmatprep.subr.bf16.mxu0 0
      %7304 = vmatpush1.bf16.msra.mxu0 0
      %7305 = vmatprep.subr.bf16.mxu0 0
      %7306 = vmatpush1.bf16.msra.mxu0 0
      %7307 = vmatprep.subr.bf16.mxu0 0
      %7308 = vmatpush1.bf16.msra.mxu0 0
      %7309 = vmatprep.subr.bf16.mxu0 0
      %7310 = vmatpush1.bf16.msra.mxu0 0
      %7311 = vmatprep.subr.bf16.mxu0 0
      %7312 = vmatpush1.bf16.msra.mxu0 0
      %7313 = vmatprep.subr.bf16.mxu0 0
      %7314 = vmatpush1.bf16.msra.mxu0 0
      %7315 = vmatprep.subr.bf16.mxu0 0
      %7316 = vmatpush1.bf16.msra.mxu0 0
      %7317 = vmatprep.subr.bf16.mxu0 0
      %7318 = vmatpush1.bf16.msra.mxu0 0
      %7319 = vmatprep.subr.bf16.mxu0 0
      %7320 = vmatpush1.bf16.msra.mxu0 0
      %7321 = vmatprep.subr.bf16.mxu0 0
      %7322 = vmatpush1.bf16.msra.mxu0 0
      %7323 = vmatprep.subr.bf16.mxu0 0
      %7324 = vmatpush1.bf16.msra.mxu0 0
      %7325 = vmatprep.subr.bf16.mxu0 0
      %7326 = vmatpush1.bf16.msra.mxu0 0
      %7327 = vmatprep.subr.bf16.mxu0 0
      %7328 = vmatpush1.bf16.msra.mxu0 0
      %7329 = vmatprep.subr.bf16.mxu0 0
      %7330 = vmatpush1.bf16.msra.mxu0 0
      %7331 = vmatprep.subr.bf16.mxu0 0
      %7332 = vmatpush1.bf16.msra.mxu0 0
      %7333 = vmatprep.mubr.bf16.mxu0 0
      %7334 = vmatmul.mubr.bf16.gmra.mrb[0].mxu0 %v6963
      %v7335 = vpop.f32.mrb[0].mxu0
      %v7336 = vadd.f32 0.0, %v7335
      %v7337 = vpop.f32.mrb[0].mxu0
      %v7338 = vpop.f32.mrb[0].mxu0
      %v7339 = vadd.f32 0.0, %v7338
      %v7340 = vpop.f32.mrb[0].mxu0
      %7341 = vmatprep.mubr.bf16.mxu0 0
      %7342 = vmatmul.mubr.bf16.gmra.mrb[0].mxu0 %v6966
      %v7343 = vpop.f32.mrb[0].mxu0
      %v7344 = vadd.f32 0.0, %v7343
      %v7345 = vpop.f32.mrb[0].mxu0
      %v7346 = vpop.f32.mrb[0].mxu0
      %v7347 = vadd.f32 0.0, %v7346
      %v7348 = vpop.f32.mrb[0].mxu0
      %7349 = vmatprep.mubr.bf16.mxu0 0
      %7350 = vmatmul.mubr.bf16.gmra.mrb[0].mxu0 %v6969
      %v7351 = vpop.f32.mrb[0].mxu0
      %v7352 = vadd.f32 0.0, %v7351
      %v7353 = vpop.f32.mrb[0].mxu0
      %v7354 = vpop.f32.mrb[0].mxu0
      %v7355 = vadd.f32 0.0, %v7354
      %v7356 = vpop.f32.mrb[0].mxu0
      %7357 = vmatprep.mubr.bf16.mxu0 0
      %7358 = vmatmul.mubr.bf16.gmra.mrb[0].mxu0 %v6972
      %v7359 = vpop.f32.mrb[0].mxu0
      %v7360 = vadd.f32 0.0, %v7359
      %v7361 = vpop.f32.mrb[0].mxu0
      %v7362 = vpop.f32.mrb[0].mxu0
      %v7363 = vadd.f32 0.0, %v7362
      %v7364 = vpop.f32.mrb[0].mxu0
      %7365 = vmatprep.mubr.bf16.mxu0 0
      %7366 = vmatmul.mubr.bf16.gmra.mrb[0].mxu0 %v6975
      %v7367 = vpop.f32.mrb[0].mxu0
      %v7368 = vadd.f32 0.0, %v7367
      %v7369 = vpop.f32.mrb[0].mxu0
      %v7370 = vpop.f32.mrb[0].mxu0
      %v7371 = vadd.f32 0.0, %v7370
      %v7372 = vpop.f32.mrb[0].mxu0
      %7373 = vmatprep.mubr.bf16.mxu0 0
      %7374 = vmatmul.mubr.bf16.gmra.mrb[0].mxu0 %v6978
      %v7375 = vpop.f32.mrb[0].mxu0
      %v7376 = vadd.f32 0.0, %v7375
      %v7377 = vpop.f32.mrb[0].mxu0
      %v7378 = vpop.f32.mrb[0].mxu0
      %v7379 = vadd.f32 0.0, %v7378
      %v7380 = vpop.f32.mrb[0].mxu0
      %7381 = vmatprep.mubr.bf16.mxu0 0
      %7382 = vmatmul.mubr.bf16.gmra.mrb[0].mxu0 %v6981
      %v7383 = vpop.f32.mrb[0].mxu0
      %v7384 = vadd.f32 0.0, %v7383
      %v7385 = vpop.f32.mrb[0].mxu0
      %v7386 = vpop.f32.mrb[0].mxu0
      %v7387 = vadd.f32 0.0, %v7386
      %v7388 = vpop.f32.mrb[0].mxu0
      %7389 = vmatprep.mubr.bf16.mxu0 0
      %7390 = vmatmul.mubr.bf16.gmra.mrb[0].mxu0 %v6984
      %v7391 = vpop.f32.mrb[0].mxu0
      %v7392 = vadd.f32 0.0, %v7391
      %v7393 = vpop.f32.mrb[0].mxu0
      %v7394 = vpop.f32.mrb[0].mxu0
      %v7395 = vadd.f32 0.0, %v7394
      %v7396 = vpop.f32.mrb[0].mxu0
      %7397 = vmatprep.mubr.bf16.mxu0 0
      %7398 = vmatmul.mubr.bf16.gmra.mrb[0].mxu0 %v6987
      %v7399 = vpop.f32.mrb[0].mxu0
      %v7400 = vadd.f32 0.0, %v7399
      %v7401 = vpop.f32.mrb[0].mxu0
      %v7402 = vpop.f32.mrb[0].mxu0
      %v7403 = vadd.f32 0.0, %v7402
      %v7404 = vpop.f32.mrb[0].mxu0
      %7405 = vmatprep.mubr.bf16.mxu0 0
      %7406 = vmatmul.mubr.bf16.gmra.mrb[0].mxu0 %v6990
      %v7407 = vpop.f32.mrb[0].mxu0
      %v7408 = vadd.f32 0.0, %v7407
      %v7409 = vpop.f32.mrb[0].mxu0
      %v7410 = vpop.f32.mrb[0].mxu0
      %v7411 = vadd.f32 0.0, %v7410
      %v7412 = vpop.f32.mrb[0].mxu0
      %7413 = vmatprep.mubr.bf16.mxu0 0
      %7414 = vmatmul.mubr.bf16.gmra.mrb[0].mxu0 %v6993
      %v7415 = vpop.f32.mrb[0].mxu0
      %v7416 = vadd.f32 0.0, %v7415
      %v7417 = vpop.f32.mrb[0].mxu0
      %v7418 = vpop.f32.mrb[0].mxu0
      %v7419 = vadd.f32 0.0, %v7418
      %v7420 = vpop.f32.mrb[0].mxu0
      %7421 = vmatprep.mubr.bf16.mxu0 0
      %7422 = vmatmul.mubr.bf16.gmra.mrb[0].mxu0 %v6996
      %v7423 = vpop.f32.mrb[0].mxu0
      %v7424 = vadd.f32 0.0, %v7423
      %v7425 = vpop.f32.mrb[0].mxu0
      %v7426 = vpop.f32.mrb[0].mxu0
      %v7427 = vadd.f32 0.0, %v7426
      %v7428 = vpop.f32.mrb[0].mxu0
      %7429 = vdwg.mxu0
      %v7430 = vadd.f32 %v6782, %v7336
      %v7431 = vadd.f32 %v6785, %v7339
      %v7432 = vadd.f32 %v6790, %v7344
      %v7433 = vadd.f32 %v6793, %v7347
      %v7434 = vadd.f32 %v6798, %v7352
      %v7435 = vadd.f32 %v6801, %v7355
      %v7436 = vadd.f32 %v6806, %v7360
      %v7437 = vadd.f32 %v6809, %v7363
      %v7438 = vadd.f32 %v6814, %v7368
      %v7439 = vadd.f32 %v6817, %v7371
      %v7440 = vadd.f32 %v6822, %v7376
      %v7441 = vadd.f32 %v6825, %v7379
      %v7442 = vadd.f32 %v6830, %v7384
      %v7443 = vadd.f32 %v6833, %v7387
      %v7444 = vadd.f32 %v6838, %v7392
      %v7445 = vadd.f32 %v6841, %v7395
      %v7446 = vadd.f32 %v6846, %v7400
      %v7447 = vadd.f32 %v6849, %v7403
      %v7448 = vadd.f32 %v6854, %v7408
      %v7449 = vadd.f32 %v6857, %v7411
      %v7450 = vadd.f32 %v6862, %v7416
      %v7451 = vadd.f32 %v6865, %v7419
      %v7452 = vadd.f32 %v6870, %v7424
      %v7453 = vadd.f32 %v6873, %v7427
      %v7478 = vrot.slane %v7272, 1
      %v7479 = vrot.slane %v7273, 1
      %v7480 = vsel %vm2697, %v7478, %v7479
      %v7481 = vrot.slane %v7274, 1
      %v7482 = vsel %vm2697, %v7479, %v7481
      %v7483 = vrot.slane %v7275, 1
      %v7484 = vrot.slane %v7276, 1
      %v7485 = vsel %vm2697, %v7483, %v7484
      %v7486 = vrot.slane %v7277, 1
      %v7487 = vsel %vm2697, %v7484, %v7486
      %v7488 = vrot.slane %v7278, 1
      %v7489 = vrot.slane %v7279, 1
      %v7490 = vsel %vm2697, %v7488, %v7489
      %v7491 = vrot.slane %v7280, 1
      %v7492 = vsel %vm2697, %v7489, %v7491
      %v7493 = vrot.slane %v7281, 1
      %v7494 = vrot.slane %v7282, 1
      %v7495 = vsel %vm2697, %v7493, %v7494
      %v7496 = vrot.slane %v7283, 1
      %v7497 = vsel %vm2697, %v7494, %v7496
      %v7498 = vrot.slane %v7284, 1
      %v7499 = vrot.slane %v7285, 1
      %v7500 = vsel %vm2697, %v7498, %v7499
      %v7501 = vrot.slane %v7286, 1
      %v7502 = vsel %vm2697, %v7499, %v7501
      %v7503 = vrot.slane %v7287, 1
      %v7504 = vrot.slane %v7288, 1
      %v7505 = vsel %vm2697, %v7503, %v7504
      %v7506 = vrot.slane %v7289, 1
      %v7507 = vsel %vm2697, %v7504, %v7506
      %v7508 = vrot.slane %v7290, 1
      %v7509 = vrot.slane %v7291, 1
      %v7510 = vsel %vm2697, %v7508, %v7509
      %v7511 = vrot.slane %v7292, 1
      %v7512 = vsel %vm2697, %v7509, %v7511
      %v7513 = vrot.slane %v7293, 1
      %v7514 = vrot.slane %v7294, 1
      %v7515 = vsel %vm2697, %v7513, %v7514
      %v7516 = vrot.slane %v7295, 1
      %v7517 = vsel %vm2697, %v7514, %v7516
      %v7534 = vadd.f32 %v7122, %v7480
      %v7535 = vadd.f32 %v7123, %v7482
      %v7536 = vadd.f32 %v7124, %v7485
      %v7537 = vadd.f32 %v7125, %v7487
      %v7538 = vadd.f32 %v7126, %v7490
      %v7539 = vadd.f32 %v7127, %v7492
      %v7540 = vadd.f32 %v7128, %v7495
      %v7541 = vadd.f32 %v7129, %v7497
      %v7542 = vadd.f32 %v7130, %v7500
      %v7543 = vadd.f32 %v7131, %v7502
      %v7544 = vadd.f32 %v7132, %v7505
      %v7545 = vadd.f32 %v7133, %v7507
      %v7546 = vadd.f32 %v7134, %v7510
      %v7547 = vadd.f32 %v7135, %v7512
      %v7548 = vadd.f32 %v7136, %v7515
      %v7549 = vadd.f32 %v7137, %v7517
      %v7574 = vrot.slane %v7430, 2
      %v7575 = vrot.slane %v7431, 2
      %v7576 = vsel %vm2794, %v7574, %v7575
      %v7577 = vrot.slane %v7432, 2
      %v7578 = vsel %vm2794, %v7575, %v7577
      %v7579 = vrot.slane %v7433, 2
      %v7580 = vrot.slane %v7434, 2
      %v7581 = vsel %vm2794, %v7579, %v7580
      %v7582 = vrot.slane %v7435, 2
      %v7583 = vsel %vm2794, %v7580, %v7582
      %v7584 = vrot.slane %v7436, 2
      %v7585 = vrot.slane %v7437, 2
      %v7586 = vsel %vm2794, %v7584, %v7585
      %v7587 = vrot.slane %v7438, 2
      %v7588 = vsel %vm2794, %v7585, %v7587
      %v7589 = vrot.slane %v7439, 2
      %v7590 = vrot.slane %v7440, 2
      %v7591 = vsel %vm2794, %v7589, %v7590
      %v7592 = vrot.slane %v7441, 2
      %v7593 = vsel %vm2794, %v7590, %v7592
      %v7594 = vrot.slane %v7442, 2
      %v7595 = vrot.slane %v7443, 2
      %v7596 = vsel %vm2794, %v7594, %v7595
      %v7597 = vrot.slane %v7444, 2
      %v7598 = vsel %vm2794, %v7595, %v7597
      %v7599 = vrot.slane %v7445, 2
      %v7600 = vrot.slane %v7446, 2
      %v7601 = vsel %vm2794, %v7599, %v7600
      %v7602 = vrot.slane %v7447, 2
      %v7603 = vsel %vm2794, %v7600, %v7602
      %v7604 = vrot.slane %v7448, 2
      %v7605 = vrot.slane %v7449, 2
      %v7606 = vsel %vm2794, %v7604, %v7605
      %v7607 = vrot.slane %v7450, 2
      %v7608 = vsel %vm2794, %v7605, %v7607
      %v7609 = vrot.slane %v7451, 2
      %v7610 = vrot.slane %v7452, 2
      %v7611 = vsel %vm2794, %v7609, %v7610
      %v7612 = vrot.slane %v7453, 2
      %v7613 = vsel %vm2794, %v7610, %v7612
      %v7630 = vadd.f32 %v7534, %v7576
      %v7631 = vadd.f32 %v7535, %v7578
      %v7632 = vadd.f32 %v7536, %v7581
      %v7633 = vadd.f32 %v7537, %v7583
      %v7634 = vadd.f32 %v7538, %v7586
      %v7635 = vadd.f32 %v7539, %v7588
      %v7636 = vadd.f32 %v7540, %v7591
      %v7637 = vadd.f32 %v7541, %v7593
      %v7638 = vadd.f32 %v7542, %v7596
      %v7639 = vadd.f32 %v7543, %v7598
      %v7640 = vadd.f32 %v7544, %v7601
      %v7641 = vadd.f32 %v7545, %v7603
      %v7642 = vadd.f32 %v7546, %v7606
      %v7643 = vadd.f32 %v7547, %v7608
      %v7644 = vadd.f32 %v7548, %v7611
      %v7645 = vadd.f32 %v7549, %v7613
      %7646 = vst.msk [vmem:[#allocation3] sm:$0xff] %vm1180, %v7630
      %7647 = vst.msk [vmem:[#allocation3 + $0x8] sm:$0xff] %vm1180, %v7631
      %7648 = vst.msk [vmem:[#allocation3 + $0x10] sm:$0xff] %vm1180, %v7632
      %7649 = vst.msk [vmem:[#allocation3 + $0x18] sm:$0xff] %vm1180, %v7633
      %7650 = vst.msk [vmem:[#allocation3 + $0x20] sm:$0xff] %vm1180, %v7634
      %7651 = vst.msk [vmem:[#allocation3 + $0x28] sm:$0xff] %vm1180, %v7635
      %7652 = vst.msk [vmem:[#allocation3 + $0x30] sm:$0xff] %vm1180, %v7636
      %7653 = vst.msk [vmem:[#allocation3 + $0x38] sm:$0xff] %vm1180, %v7637
      %7654 = vst.msk [vmem:[#allocation3 + $0x40] sm:$0xff] %vm1180, %v7638
      %7655 = vst.msk [vmem:[#allocation3 + $0x48] sm:$0xff] %vm1180, %v7639
      %7656 = vst.msk [vmem:[#allocation3 + $0x50] sm:$0xff] %vm1180, %v7640
      %7657 = vst.msk [vmem:[#allocation3 + $0x58] sm:$0xff] %vm1180, %v7641
      %7658 = vst.msk [vmem:[#allocation3 + $0x60] sm:$0xff] %vm1180, %v7642
      %7659 = vst.msk [vmem:[#allocation3 + $0x68] sm:$0xff] %vm1180, %v7643
      %7660 = vst.msk [vmem:[#allocation3 + $0x70] sm:$0xff] %vm1180, %v7644
      %7661 = vst.msk [vmem:[#allocation3 + $0x78] sm:$0xff] %vm1180, %v7645
      %v7662 = vsel %vm1180, %v7630, 0.0
      %v7663 = vsel %vm1180, %v7632, 0.0
      %v7664 = vadd.f32 %v7662, %v7663
      %v7665 = vsel %vm1180, %v7634, 0.0
      %v7666 = vadd.f32 %v7664, %v7665
      %v7667 = vsel %vm1180, %v7636, 0.0
      %v7668 = vadd.f32 %v7666, %v7667
      %v7669 = vsel %vm1180, %v7638, 0.0
      %v7670 = vadd.f32 %v7668, %v7669
      %v7671 = vsel %vm1180, %v7640, 0.0
      %v7672 = vadd.f32 %v7670, %v7671
      %v7673 = vsel %vm1180, %v7642, 0.0
      %v7674 = vadd.f32 %v7672, %v7673
      %v7675 = vsel %vm1180, %v7644, 0.0
      %v7676 = vadd.f32 %v7674, %v7675
      %v7677 = vsel %vm1180, %v7631, 0.0
      %v7678 = vsel %vm1180, %v7633, 0.0
      %v7679 = vadd.f32 %v7677, %v7678
      %v7680 = vsel %vm1180, %v7635, 0.0
      %v7681 = vadd.f32 %v7679, %v7680
      %v7682 = vsel %vm1180, %v7637, 0.0
      %v7683 = vadd.f32 %v7681, %v7682
      %v7684 = vsel %vm1180, %v7639, 0.0
      %v7685 = vadd.f32 %v7683, %v7684
      %v7686 = vsel %vm1180, %v7641, 0.0
      %v7687 = vadd.f32 %v7685, %v7686
      %v7688 = vsel %vm1180, %v7643, 0.0
      %v7689 = vadd.f32 %v7687, %v7688
      %v7690 = vsel %vm1180, %v7645, 0.0
      %v7691 = vadd.f32 %v7689, %v7690
      %v7692 = vsel %vm1180, %v7676, 0.0
      %v7693 = vsel %vm1180, %v7691, 0.0
      %v7694 = vadd.f32 %v7692, %v7693
      %v7695 = vrot.slane %v7694, 4
      %v7696 = vadd.f32 %v7694, %v7695
      %v7697 = vrot.slane %v7696, 2
      %v7698 = vadd.f32 %v7696, %v7697
      %v7699 = vrot.slane %v7698, 1
      %v7700 = vadd.f32 %v7698, %v7699
      %v7701 = vadd.f32 %v7700, 0.0
      %v7702 = vmul.f32 %v7630, %v7630
      %v7703 = vmul.f32 %v7631, %v7631
      %v7704 = vmul.f32 %v7632, %v7632
      %v7705 = vmul.f32 %v7633, %v7633
      %v7706 = vmul.f32 %v7634, %v7634
      %v7707 = vmul.f32 %v7635, %v7635
      %v7708 = vmul.f32 %v7636, %v7636
      %v7709 = vmul.f32 %v7637, %v7637
      %v7710 = vmul.f32 %v7638, %v7638
      %v7711 = vmul.f32 %v7639, %v7639
      %v7712 = vmul.f32 %v7640, %v7640
      %v7713 = vmul.f32 %v7641, %v7641
      %v7714 = vmul.f32 %v7642, %v7642
      %v7715 = vmul.f32 %v7643, %v7643
      %v7716 = vmul.f32 %v7644, %v7644
      %v7717 = vmul.f32 %v7645, %v7645
      %v7718 = vsel %vm1180, %v7702, 0.0
      %v7719 = vsel %vm1180, %v7704, 0.0
      %v7720 = vadd.f32 %v7718, %v7719
      %v7721 = vsel %vm1180, %v7706, 0.0
      %v7722 = vadd.f32 %v7720, %v7721
      %v7723 = vsel %vm1180, %v7708, 0.0
      %v7724 = vadd.f32 %v7722, %v7723
      %v7725 = vsel %vm1180, %v7710, 0.0
      %v7726 = vadd.f32 %v7724, %v7725
      %v7727 = vsel %vm1180, %v7712, 0.0
      %v7728 = vadd.f32 %v7726, %v7727
      %v7729 = vsel %vm1180, %v7714, 0.0
      %v7730 = vadd.f32 %v7728, %v7729
      %v7731 = vsel %vm1180, %v7716, 0.0
      %v7732 = vadd.f32 %v7730, %v7731
      %v7733 = vsel %vm1180, %v7703, 0.0
      %v7734 = vsel %vm1180, %v7705, 0.0
      %v7735 = vadd.f32 %v7733, %v7734
      %v7736 = vsel %vm1180, %v7707, 0.0
      %v7737 = vadd.f32 %v7735, %v7736
      %v7738 = vsel %vm1180, %v7709, 0.0
      %v7739 = vadd.f32 %v7737, %v7738
      %v7740 = vsel %vm1180, %v7711, 0.0
      %v7741 = vadd.f32 %v7739, %v7740
      %v7742 = vsel %vm1180, %v7713, 0.0
      %v7743 = vadd.f32 %v7741, %v7742
      %v7744 = vsel %vm1180, %v7715, 0.0
      %v7745 = vadd.f32 %v7743, %v7744
      %v7746 = vsel %vm1180, %v7717, 0.0
      %v7747 = vadd.f32 %v7745, %v7746
      %v7748 = vsel %vm1180, %v7732, 0.0
      %v7749 = vsel %vm1180, %v7747, 0.0
      %v7750 = vadd.f32 %v7748, %v7749
      %v7751 = vrot.slane %v7750, 4
      %v7752 = vadd.f32 %v7750, %v7751
      %v7753 = vrot.slane %v7752, 2
      %v7754 = vadd.f32 %v7752, %v7753
      %v7755 = vrot.slane %v7754, 1
      %v7756 = vadd.f32 %v7754, %v7755
      %v7757 = vadd.f32 %v7756, 0.0
      %v7758 = vld [vmem:[%s2979] sm:$0xf]
      %v7759 = vld [vmem:[%s2979 + $0x4] sm:$0xf]
      %v7760 = vld [vmem:[%s2979 + $0x8] sm:$0xf]
      %v7761 = vld [vmem:[%s2979 + $0xc] sm:$0xf]
      %v7762 = vld [vmem:[%s2979 + $0x10] sm:$0xf]
      %v7763 = vld [vmem:[%s2979 + $0x14] sm:$0xf]
      %v7764 = vld [vmem:[%s2979 + $0x18] sm:$0xf]
      %v7765 = vld [vmem:[%s2979 + $0x1c] sm:$0xf]
      %v7766 = vld [vmem:[%s2979 + $0x20] sm:$0xf]
      %v7767 = vld [vmem:[%s2979 + $0x24] sm:$0xf]
      %v7768 = vld [vmem:[%s2979 + $0x28] sm:$0xf]
      %v7769 = vld [vmem:[%s2979 + $0x2c] sm:$0xf]
      %v7770 = vld [vmem:[%s2979 + $0x30] sm:$0xf]
      %v7771 = vld [vmem:[%s2979 + $0x34] sm:$0xf]
      %v7772 = vld [vmem:[%s2979 + $0x38] sm:$0xf]
      %v7773 = vld [vmem:[%s2979 + $0x3c] sm:$0xf]
      %v7774 = vld [vmem:[%s2979 + $0x40] sm:$0xf]
      %v7775 = vld [vmem:[%s2979 + $0x44] sm:$0xf]
      %v7776 = vld [vmem:[%s2979 + $0x48] sm:$0xf]
      %v7777 = vld [vmem:[%s2979 + $0x4c] sm:$0xf]
      %v7778 = vld [vmem:[%s2979 + $0x50] sm:$0xf]
      %v7779 = vld [vmem:[%s2979 + $0x54] sm:$0xf]
      %v7780 = vld [vmem:[%s2979 + $0x58] sm:$0xf]
      %v7781 = vld [vmem:[%s2979 + $0x5c] sm:$0xf]
      %v7782 = vld [vmem:[%s2] sm:$0x3]
      %v7783 = vld [vmem:[%s5874] sm:$0x3]
      %v7784 = vld [vmem:[%s5876] sm:$0x3]
      %v7785 = vld [vmem:[%s3007] sm:$0xf]
      %v7786 = vld [vmem:[%s3007 + $0x4] sm:$0xf]
      %v7787 = vld [vmem:[%s3007 + $0x8] sm:$0xf]
      %v7788 = vld [vmem:[%s3007 + $0xc] sm:$0xf]
      %v7789 = vld [vmem:[%s3007 + $0x10] sm:$0xf]
      %v7790 = vld [vmem:[%s3007 + $0x14] sm:$0xf]
      %v7791 = vld [vmem:[%s3007 + $0x18] sm:$0xf]
      %v7792 = vld [vmem:[%s3007 + $0x1c] sm:$0xf]
      %v7793 = vld [vmem:[%s3007 + $0x20] sm:$0xf]
      %v7794 = vld [vmem:[%s3007 + $0x24] sm:$0xf]
      %v7795 = vld [vmem:[%s3007 + $0x28] sm:$0xf]
      %v7796 = vld [vmem:[%s3007 + $0x2c] sm:$0xf]
      %v7797 = vld [vmem:[%s3007 + $0x30] sm:$0xf]
      %v7798 = vld [vmem:[%s3007 + $0x34] sm:$0xf]
      %v7799 = vld [vmem:[%s3007 + $0x38] sm:$0xf]
      %v7800 = vld [vmem:[%s3007 + $0x3c] sm:$0xf]
      %v7801 = vld [vmem:[%s3007 + $0x40] sm:$0xf]
      %v7802 = vld [vmem:[%s3007 + $0x44] sm:$0xf]
      %v7803 = vld [vmem:[%s3007 + $0x48] sm:$0xf]
      %v7804 = vld [vmem:[%s3007 + $0x4c] sm:$0xf]
      %v7805 = vld [vmem:[%s3007 + $0x50] sm:$0xf]
      %v7806 = vld [vmem:[%s3007 + $0x54] sm:$0xf]
      %v7807 = vld [vmem:[%s3007 + $0x58] sm:$0xf]
      %v7808 = vld [vmem:[%s3007 + $0x5c] sm:$0xf]
      %v7809 = vld [vmem:[%s5902] sm:$0x3]
      %v7834 = vunpack.c.l.b16 %v7785
      %v7835 = vunpack.c.l.b16 %v7786
      %v7836 = vunpack.c.l.b16 %v7787
      %v7837 = vunpack.c.l.b16 %v7788
      %v7838 = vunpack.c.l.b16 %v7789
      %v7839 = vunpack.c.l.b16 %v7790
      %v7840 = vunpack.c.l.b16 %v7791
      %v7841 = vunpack.c.l.b16 %v7792
      %v7842 = vunpack.c.l.b16 %v7793
      %v7843 = vunpack.c.l.b16 %v7794
      %v7844 = vunpack.c.l.b16 %v7795
      %v7845 = vunpack.c.l.b16 %v7796
      %v7846 = vunpack.c.l.b16 %v7797
      %v7847 = vunpack.c.l.b16 %v7798
      %v7848 = vunpack.c.l.b16 %v7799
      %v7849 = vunpack.c.l.b16 %v7800
      %v7850 = vunpack.c.l.b16 %v7801
      %v7851 = vunpack.c.l.b16 %v7802
      %v7852 = vunpack.c.l.b16 %v7803
      %v7853 = vunpack.c.l.b16 %v7804
      %v7854 = vunpack.c.l.b16 %v7805
      %v7855 = vunpack.c.l.b16 %v7806
      %v7856 = vunpack.c.l.b16 %v7807
      %v7857 = vunpack.c.l.b16 %v7808
      %v7858 = vpack.c.b16 %v7835, %v7834
      %v7859 = vpack.c.b16 %v7837, %v7836
      %v7860 = vpack.c.b16 %v7839, %v7838
      %v7861 = vpack.c.b16 %v7841, %v7840
      %v7862 = vpack.c.b16 %v7843, %v7842
      %v7863 = vpack.c.b16 %v7845, %v7844
      %v7864 = vpack.c.b16 %v7847, %v7846
      %v7865 = vpack.c.b16 %v7849, %v7848
      %v7866 = vpack.c.b16 %v7851, %v7850
      %v7867 = vpack.c.b16 %v7853, %v7852
      %v7868 = vpack.c.b16 %v7855, %v7854
      %v7869 = vpack.c.b16 %v7857, %v7856
      %v7871 = vsel %vm1180, %v7858, 0
      %v7874 = vsel %vm1180, %v7859, 0
      %v7877 = vsel %vm1180, %v7860, 0
      %v7880 = vsel %vm1180, %v7861, 0
      %v7883 = vsel %vm1180, %v7862, 0
      %v7886 = vsel %vm1180, %v7863, 0
      %v7889 = vsel %vm1180, %v7864, 0
      %v7892 = vsel %vm1180, %v7865, 0
      %v7895 = vsel %vm1180, %v7866, 0
      %v7898 = vsel %vm1180, %v7867, 0
      %v7901 = vsel %vm1180, %v7868, 0
      %v7904 = vsel %vm1180, %v7869, 0
      %v7907 = vsel %vm1217, %v7809, 0
      %7909 = vmatprep.subr.bf16.mxu0 0
      %7910 = vmatpush1.bf16.msra.mxu0 %v7907
      %7911 = vmatprep.subr.bf16.mxu0 0
      %7912 = vmatpush1.bf16.msra.mxu0 0
      %7913 = vmatprep.subr.bf16.mxu0 0
      %7914 = vmatpush1.bf16.msra.mxu0 0
      %7915 = vmatprep.subr.bf16.mxu0 0
      %7916 = vmatpush1.bf16.msra.mxu0 0
      %7917 = vmatprep.subr.bf16.mxu0 0
      %7918 = vmatpush1.bf16.msra.mxu0 0
      %7919 = vmatprep.subr.bf16.mxu0 0
      %7920 = vmatpush1.bf16.msra.mxu0 0
      %7921 = vmatprep.subr.bf16.mxu0 0
      %7922 = vmatpush1.bf16.msra.mxu0 0
      %7923 = vmatprep.subr.bf16.mxu0 0
      %7924 = vmatpush1.bf16.msra.mxu0 0
      %7925 = vmatprep.subr.bf16.mxu0 0
      %7926 = vmatpush1.bf16.msra.mxu0 0
      %7927 = vmatprep.subr.bf16.mxu0 0
      %7928 = vmatpush1.bf16.msra.mxu0 0
      %7929 = vmatprep.subr.bf16.mxu0 0
      %7930 = vmatpush1.bf16.msra.mxu0 0
      %7931 = vmatprep.subr.bf16.mxu0 0
      %7932 = vmatpush1.bf16.msra.mxu0 0
      %7933 = vmatprep.subr.bf16.mxu0 0
      %7934 = vmatpush1.bf16.msra.mxu0 0
      %7935 = vmatprep.subr.bf16.mxu0 0
      %7936 = vmatpush1.bf16.msra.mxu0 0
      %7937 = vmatprep.subr.bf16.mxu0 0
      %7938 = vmatpush1.bf16.msra.mxu0 0
      %7939 = vmatprep.subr.bf16.mxu0 0
      %7940 = vmatpush1.bf16.msra.mxu0 0
      %7941 = vmatprep.mubr.bf16.mxu0 0
      %7942 = vmatmul.mubr.bf16.gmra.mrb[0].mxu0 %v7871
      %v7943 = vpop.f32.mrb[0].mxu0
      %v7944 = vadd.f32 0.0, %v7943
      %v7945 = vpop.f32.mrb[0].mxu0
      %v7946 = vpop.f32.mrb[0].mxu0
      %v7947 = vadd.f32 0.0, %v7946
      %v7948 = vpop.f32.mrb[0].mxu0
      %7949 = vmatprep.mubr.bf16.mxu0 0
      %7950 = vmatmul.mubr.bf16.gmra.mrb[0].mxu0 %v7874
      %v7951 = vpop.f32.mrb[0].mxu0
      %v7952 = vpop.f32.mrb[0].mxu0
      %v7953 = vpop.f32.mrb[0].mxu0
      %v7954 = vadd.f32 0.0, %v7953
      %v7955 = vpop.f32.mrb[0].mxu0
      %7956 = vmatprep.mubr.bf16.mxu0 0
      %7957 = vmatmul.mubr.bf16.gmra.mrb[0].mxu0 %v7877
      %v7958 = vpop.f32.mrb[0].mxu0
      %v7959 = vadd.f32 0.0, %v7958
      %v7960 = vpop.f32.mrb[0].mxu0
      %v7961 = vpop.f32.mrb[0].mxu0
      %v7962 = vpop.f32.mrb[0].mxu0
      %7963 = vmatprep.mubr.bf16.mxu0 0
      %7964 = vmatmul.mubr.bf16.gmra.mrb[0].mxu0 %v7880
      %v7965 = vpop.f32.mrb[0].mxu0
      %v7966 = vadd.f32 0.0, %v7965
      %v7967 = vpop.f32.mrb[0].mxu0
      %v7968 = vpop.f32.mrb[0].mxu0
      %v7969 = vadd.f32 0.0, %v7968
      %v7970 = vpop.f32.mrb[0].mxu0
      %7971 = vmatprep.mubr.bf16.mxu0 0
      %7972 = vmatmul.mubr.bf16.gmra.mrb[0].mxu0 %v7883
      %v7973 = vpop.f32.mrb[0].mxu0
      %v7974 = vpop.f32.mrb[0].mxu0
      %v7975 = vpop.f32.mrb[0].mxu0
      %v7976 = vadd.f32 0.0, %v7975
      %v7977 = vpop.f32.mrb[0].mxu0
      %7978 = vmatprep.mubr.bf16.mxu0 0
      %7979 = vmatmul.mubr.bf16.gmra.mrb[0].mxu0 %v7886
      %v7980 = vpop.f32.mrb[0].mxu0
      %v7981 = vadd.f32 0.0, %v7980
      %v7982 = vpop.f32.mrb[0].mxu0
      %v7983 = vpop.f32.mrb[0].mxu0
      %v7984 = vpop.f32.mrb[0].mxu0
      %7985 = vmatprep.mubr.bf16.mxu0 0
      %7986 = vmatmul.mubr.bf16.gmra.mrb[0].mxu0 %v7889
      %v7987 = vpop.f32.mrb[0].mxu0
      %v7988 = vadd.f32 0.0, %v7987
      %v7989 = vpop.f32.mrb[0].mxu0
      %v7990 = vpop.f32.mrb[0].mxu0
      %v7991 = vadd.f32 0.0, %v7990
      %v7992 = vpop.f32.mrb[0].mxu0
      %7993 = vmatprep.mubr.bf16.mxu0 0
      %7994 = vmatmul.mubr.bf16.gmra.mrb[0].mxu0 %v7892
      %v7995 = vpop.f32.mrb[0].mxu0
      %v7996 = vpop.f32.mrb[0].mxu0
      %v7997 = vpop.f32.mrb[0].mxu0
      %v7998 = vadd.f32 0.0, %v7997
      %v7999 = vpop.f32.mrb[0].mxu0
      %8000 = vmatprep.mubr.bf16.mxu0 0
      %8001 = vmatmul.mubr.bf16.gmra.mrb[0].mxu0 %v7895
      %v8002 = vpop.f32.mrb[0].mxu0
      %v8003 = vadd.f32 0.0, %v8002
      %v8004 = vpop.f32.mrb[0].mxu0
      %v8005 = vpop.f32.mrb[0].mxu0
      %v8006 = vpop.f32.mrb[0].mxu0
      %8007 = vmatprep.mubr.bf16.mxu0 0
      %8008 = vmatmul.mubr.bf16.gmra.mrb[0].mxu0 %v7898
      %v8009 = vpop.f32.mrb[0].mxu0
      %v8010 = vadd.f32 0.0, %v8009
      %v8011 = vpop.f32.mrb[0].mxu0
      %v8012 = vpop.f32.mrb[0].mxu0
      %v8013 = vadd.f32 0.0, %v8012
      %v8014 = vpop.f32.mrb[0].mxu0
      %8015 = vmatprep.mubr.bf16.mxu0 0
      %8016 = vmatmul.mubr.bf16.gmra.mrb[0].mxu0 %v7901
      %v8017 = vpop.f32.mrb[0].mxu0
      %v8018 = vpop.f32.mrb[0].mxu0
      %v8019 = vpop.f32.mrb[0].mxu0
      %v8020 = vadd.f32 0.0, %v8019
      %v8021 = vpop.f32.mrb[0].mxu0
      %8022 = vmatprep.mubr.bf16.mxu0 0
      %8023 = vmatmul.mubr.bf16.gmra.mrb[0].mxu0 %v7904
      %v8024 = vpop.f32.mrb[0].mxu0
      %v8025 = vadd.f32 0.0, %v8024
      %v8026 = vpop.f32.mrb[0].mxu0
      %v8027 = vpop.f32.mrb[0].mxu0
      %v8028 = vpop.f32.mrb[0].mxu0
      %8029 = vdwg.mxu0
      %v8054 = vunpack.c.l.b16 %v7758
      %v8055 = vunpack.c.l.b16 %v7759
      %v8056 = vunpack.c.l.b16 %v7760
      %v8057 = vunpack.c.l.b16 %v7761
      %v8058 = vunpack.c.l.b16 %v7762
      %v8059 = vunpack.c.l.b16 %v7763
      %v8060 = vunpack.c.l.b16 %v7764
      %v8061 = vunpack.c.l.b16 %v7765
      %v8062 = vunpack.c.l.b16 %v7766
      %v8063 = vunpack.c.l.b16 %v7767
      %v8064 = vunpack.c.l.b16 %v7768
      %v8065 = vunpack.c.l.b16 %v7769
      %v8066 = vunpack.c.l.b16 %v7770
      %v8067 = vunpack.c.l.b16 %v7771
      %v8068 = vunpack.c.l.b16 %v7772
      %v8069 = vunpack.c.l.b16 %v7773
      %v8070 = vunpack.c.l.b16 %v7774
      %v8071 = vunpack.c.l.b16 %v7775
      %v8072 = vunpack.c.l.b16 %v7776
      %v8073 = vunpack.c.l.b16 %v7777
      %v8074 = vunpack.c.l.b16 %v7778
      %v8075 = vunpack.c.l.b16 %v7779
      %v8076 = vunpack.c.l.b16 %v7780
      %v8077 = vunpack.c.l.b16 %v7781
      %v8078 = vpack.c.b16 %v8055, %v8054
      %v8079 = vpack.c.b16 %v8057, %v8056
      %v8080 = vpack.c.b16 %v8059, %v8058
      %v8081 = vpack.c.b16 %v8061, %v8060
      %v8082 = vpack.c.b16 %v8063, %v8062
      %v8083 = vpack.c.b16 %v8065, %v8064
      %v8084 = vpack.c.b16 %v8067, %v8066
      %v8085 = vpack.c.b16 %v8069, %v8068
      %v8086 = vpack.c.b16 %v8071, %v8070
      %v8087 = vpack.c.b16 %v8073, %v8072
      %v8088 = vpack.c.b16 %v8075, %v8074
      %v8089 = vpack.c.b16 %v8077, %v8076
      %v8091 = vsel %vm1180, %v8078, 0
      %v8094 = vsel %vm1180, %v8079, 0
      %v8097 = vsel %vm1180, %v8080, 0
      %v8100 = vsel %vm1180, %v8081, 0
      %v8103 = vsel %vm1180, %v8082, 0
      %v8106 = vsel %vm1180, %v8083, 0
      %v8109 = vsel %vm1180, %v8084, 0
      %v8112 = vsel %vm1180, %v8085, 0
      %v8115 = vsel %vm1180, %v8086, 0
      %v8118 = vsel %vm1180, %v8087, 0
      %v8121 = vsel %vm1180, %v8088, 0
      %v8124 = vsel %vm1180, %v8089, 0
      %v8127 = vsel %vm1217, %v7782, 0
      %8129 = vmatprep.subr.bf16.mxu0 0
      %8130 = vmatpush1.bf16.msra.mxu0 %v8127
      %8131 = vmatprep.subr.bf16.mxu0 0
      %8132 = vmatpush1.bf16.msra.mxu0 0
      %8133 = vmatprep.subr.bf16.mxu0 0
      %8134 = vmatpush1.bf16.msra.mxu0 0
      %8135 = vmatprep.subr.bf16.mxu0 0
      %8136 = vmatpush1.bf16.msra.mxu0 0
      %8137 = vmatprep.subr.bf16.mxu0 0
      %8138 = vmatpush1.bf16.msra.mxu0 0
      %8139 = vmatprep.subr.bf16.mxu0 0
      %8140 = vmatpush1.bf16.msra.mxu0 0
      %8141 = vmatprep.subr.bf16.mxu0 0
      %8142 = vmatpush1.bf16.msra.mxu0 0
      %8143 = vmatprep.subr.bf16.mxu0 0
      %8144 = vmatpush1.bf16.msra.mxu0 0
      %8145 = vmatprep.subr.bf16.mxu0 0
      %8146 = vmatpush1.bf16.msra.mxu0 0
      %8147 = vmatprep.subr.bf16.mxu0 0
      %8148 = vmatpush1.bf16.msra.mxu0 0
      %8149 = vmatprep.subr.bf16.mxu0 0
      %8150 = vmatpush1.bf16.msra.mxu0 0
      %8151 = vmatprep.subr.bf16.mxu0 0
      %8152 = vmatpush1.bf16.msra.mxu0 0
      %8153 = vmatprep.subr.bf16.mxu0 0
      %8154 = vmatpush1.bf16.msra.mxu0 0
      %8155 = vmatprep.subr.bf16.mxu0 0
      %8156 = vmatpush1.bf16.msra.mxu0 0
      %8157 = vmatprep.subr.bf16.mxu0 0
      %8158 = vmatpush1.bf16.msra.mxu0 0
      %8159 = vmatprep.subr.bf16.mxu0 0
      %8160 = vmatpush1.bf16.msra.mxu0 0
      %8161 = vmatprep.mubr.bf16.mxu0 0
      %8162 = vmatmul.mubr.bf16.gmra.mrb[0].mxu0 %v8091
      %v8163 = vpop.f32.mrb[0].mxu0
      %v8164 = vadd.f32 %v7944, %v8163
      %v8165 = vpop.f32.mrb[0].mxu0
      %v8166 = vpop.f32.mrb[0].mxu0
      %v8167 = vadd.f32 %v7947, %v8166
      %v8168 = vpop.f32.mrb[0].mxu0
      %8169 = vmatprep.mubr.bf16.mxu0 0
      %8170 = vmatmul.mubr.bf16.gmra.mrb[0].mxu0 %v8094
      %v8171 = vpop.f32.mrb[0].mxu0
      %v8172 = vpop.f32.mrb[0].mxu0
      %v8173 = vpop.f32.mrb[0].mxu0
      %v8174 = vadd.f32 %v7954, %v8173
      %v8175 = vpop.f32.mrb[0].mxu0
      %8176 = vmatprep.mubr.bf16.mxu0 0
      %8177 = vmatmul.mubr.bf16.gmra.mrb[0].mxu0 %v8097
      %v8178 = vpop.f32.mrb[0].mxu0
      %v8179 = vadd.f32 %v7959, %v8178
      %v8180 = vpop.f32.mrb[0].mxu0
      %v8181 = vpop.f32.mrb[0].mxu0
      %v8182 = vpop.f32.mrb[0].mxu0
      %8183 = vmatprep.mubr.bf16.mxu0 0
      %8184 = vmatmul.mubr.bf16.gmra.mrb[0].mxu0 %v8100
      %v8185 = vpop.f32.mrb[0].mxu0
      %v8186 = vadd.f32 %v7966, %v8185
      %v8187 = vpop.f32.mrb[0].mxu0
      %v8188 = vpop.f32.mrb[0].mxu0
      %v8189 = vadd.f32 %v7969, %v8188
      %v8190 = vpop.f32.mrb[0].mxu0
      %8191 = vmatprep.mubr.bf16.mxu0 0
      %8192 = vmatmul.mubr.bf16.gmra.mrb[0].mxu0 %v8103
      %v8193 = vpop.f32.mrb[0].mxu0
      %v8194 = vpop.f32.mrb[0].mxu0
      %v8195 = vpop.f32.mrb[0].mxu0
      %v8196 = vadd.f32 %v7976, %v8195
      %v8197 = vpop.f32.mrb[0].mxu0
      %8198 = vmatprep.mubr.bf16.mxu0 0
      %8199 = vmatmul.mubr.bf16.gmra.mrb[0].mxu0 %v8106
      %v8200 = vpop.f32.mrb[0].mxu0
      %v8201 = vadd.f32 %v7981, %v8200
      %v8202 = vpop.f32.mrb[0].mxu0
      %v8203 = vpop.f32.mrb[0].mxu0
      %v8204 = vpop.f32.mrb[0].mxu0
      %8205 = vmatprep.mubr.bf16.mxu0 0
      %8206 = vmatmul.mubr.bf16.gmra.mrb[0].mxu0 %v8109
      %v8207 = vpop.f32.mrb[0].mxu0
      %v8208 = vadd.f32 %v7988, %v8207
      %v8209 = vpop.f32.mrb[0].mxu0
      %v8210 = vpop.f32.mrb[0].mxu0
      %v8211 = vadd.f32 %v7991, %v8210
      %v8212 = vpop.f32.mrb[0].mxu0
      %8213 = vmatprep.mubr.bf16.mxu0 0
      %8214 = vmatmul.mubr.bf16.gmra.mrb[0].mxu0 %v8112
      %v8215 = vpop.f32.mrb[0].mxu0
      %v8216 = vpop.f32.mrb[0].mxu0
      %v8217 = vpop.f32.mrb[0].mxu0
      %v8218 = vadd.f32 %v7998, %v8217
      %v8219 = vpop.f32.mrb[0].mxu0
      %8220 = vmatprep.mubr.bf16.mxu0 0
      %8221 = vmatmul.mubr.bf16.gmra.mrb[0].mxu0 %v8115
      %v8222 = vpop.f32.mrb[0].mxu0
      %v8223 = vadd.f32 %v8003, %v8222
      %v8224 = vpop.f32.mrb[0].mxu0
      %v8225 = vpop.f32.mrb[0].mxu0
      %v8226 = vpop.f32.mrb[0].mxu0
      %8227 = vmatprep.mubr.bf16.mxu0 0
      %8228 = vmatmul.mubr.bf16.gmra.mrb[0].mxu0 %v8118
      %v8229 = vpop.f32.mrb[0].mxu0
      %v8230 = vadd.f32 %v8010, %v8229
      %v8231 = vpop.f32.mrb[0].mxu0
      %v8232 = vpop.f32.mrb[0].mxu0
      %v8233 = vadd.f32 %v8013, %v8232
      %v8234 = vpop.f32.mrb[0].mxu0
      %8235 = vmatprep.mubr.bf16.mxu0 0
      %8236 = vmatmul.mubr.bf16.gmra.mrb[0].mxu0 %v8121
      %v8237 = vpop.f32.mrb[0].mxu0
      %v8238 = vpop.f32.mrb[0].mxu0
      %v8239 = vpop.f32.mrb[0].mxu0
      %v8240 = vadd.f32 %v8020, %v8239
      %v8241 = vpop.f32.mrb[0].mxu0
      %8242 = vmatprep.mubr.bf16.mxu0 0
      %8243 = vmatmul.mubr.bf16.gmra.mrb[0].mxu0 %v8124
      %v8244 = vpop.f32.mrb[0].mxu0
      %v8245 = vadd.f32 %v8025, %v8244
      %v8246 = vpop.f32.mrb[0].mxu0
      %v8247 = vpop.f32.mrb[0].mxu0
      %v8248 = vpop.f32.mrb[0].mxu0
      %8249 = vdwg.mxu0
      %v8250 = vld [vmem:[%s6344] sm:$0x3]
      %v8252 = vsel %vm1217, %v8250, 0
      %8254 = vmatprep.subr.bf16.mxu0 0
      %8255 = vmatpush1.bf16.msra.mxu0 %v8252
      %8256 = vmatprep.subr.bf16.mxu0 0
      %8257 = vmatpush1.bf16.msra.mxu0 0
      %8258 = vmatprep.subr.bf16.mxu0 0
      %8259 = vmatpush1.bf16.msra.mxu0 0
      %8260 = vmatprep.subr.bf16.mxu0 0
      %8261 = vmatpush1.bf16.msra.mxu0 0
      %8262 = vmatprep.subr.bf16.mxu0 0
      %8263 = vmatpush1.bf16.msra.mxu0 0
      %8264 = vmatprep.subr.bf16.mxu0 0
      %8265 = vmatpush1.bf16.msra.mxu0 0
      %8266 = vmatprep.subr.bf16.mxu0 0
      %8267 = vmatpush1.bf16.msra.mxu0 0
      %8268 = vmatprep.subr.bf16.mxu0 0
      %8269 = vmatpush1.bf16.msra.mxu0 0
      %8270 = vmatprep.subr.bf16.mxu0 0
      %8271 = vmatpush1.bf16.msra.mxu0 0
      %8272 = vmatprep.subr.bf16.mxu0 0
      %8273 = vmatpush1.bf16.msra.mxu0 0
      %8274 = vmatprep.subr.bf16.mxu0 0
      %8275 = vmatpush1.bf16.msra.mxu0 0
      %8276 = vmatprep.subr.bf16.mxu0 0
      %8277 = vmatpush1.bf16.msra.mxu0 0
      %8278 = vmatprep.subr.bf16.mxu0 0
      %8279 = vmatpush1.bf16.msra.mxu0 0
      %8280 = vmatprep.subr.bf16.mxu0 0
      %8281 = vmatpush1.bf16.msra.mxu0 0
      %8282 = vmatprep.subr.bf16.mxu0 0
      %8283 = vmatpush1.bf16.msra.mxu0 0
      %8284 = vmatprep.subr.bf16.mxu0 0
      %8285 = vmatpush1.bf16.msra.mxu0 0
      %8286 = vmatprep.mubr.bf16.mxu0 0
      %8287 = vmatmul.mubr.bf16.gmra.mrb[0].mxu0 %v7871
      %v8288 = vpop.f32.mrb[0].mxu0
      %v8289 = vadd.f32 0.0, %v8288
      %v8290 = vpop.f32.mrb[0].mxu0
      %v8291 = vpop.f32.mrb[0].mxu0
      %v8292 = vadd.f32 0.0, %v8291
      %v8293 = vpop.f32.mrb[0].mxu0
      %8294 = vmatprep.mubr.bf16.mxu0 0
      %8295 = vmatmul.mubr.bf16.gmra.mrb[0].mxu0 %v7874
      %v8296 = vpop.f32.mrb[0].mxu0
      %v8297 = vadd.f32 0.0, %v8296
      %v8298 = vpop.f32.mrb[0].mxu0
      %v8299 = vpop.f32.mrb[0].mxu0
      %v8300 = vadd.f32 0.0, %v8299
      %v8301 = vpop.f32.mrb[0].mxu0
      %8302 = vmatprep.mubr.bf16.mxu0 0
      %8303 = vmatmul.mubr.bf16.gmra.mrb[0].mxu0 %v7877
      %v8304 = vpop.f32.mrb[0].mxu0
      %v8305 = vadd.f32 0.0, %v8304
      %v8306 = vpop.f32.mrb[0].mxu0
      %v8307 = vpop.f32.mrb[0].mxu0
      %v8308 = vadd.f32 0.0, %v8307
      %v8309 = vpop.f32.mrb[0].mxu0
      %8310 = vmatprep.mubr.bf16.mxu0 0
      %8311 = vmatmul.mubr.bf16.gmra.mrb[0].mxu0 %v7880
      %v8312 = vpop.f32.mrb[0].mxu0
      %v8313 = vadd.f32 0.0, %v8312
      %v8314 = vpop.f32.mrb[0].mxu0
      %v8315 = vpop.f32.mrb[0].mxu0
      %v8316 = vadd.f32 0.0, %v8315
      %v8317 = vpop.f32.mrb[0].mxu0
      %8318 = vmatprep.mubr.bf16.mxu0 0
      %8319 = vmatmul.mubr.bf16.gmra.mrb[0].mxu0 %v7883
      %v8320 = vpop.f32.mrb[0].mxu0
      %v8321 = vadd.f32 0.0, %v8320
      %v8322 = vpop.f32.mrb[0].mxu0
      %v8323 = vpop.f32.mrb[0].mxu0
      %v8324 = vadd.f32 0.0, %v8323
      %v8325 = vpop.f32.mrb[0].mxu0
      %8326 = vmatprep.mubr.bf16.mxu0 0
      %8327 = vmatmul.mubr.bf16.gmra.mrb[0].mxu0 %v7886
      %v8328 = vpop.f32.mrb[0].mxu0
      %v8329 = vadd.f32 0.0, %v8328
      %v8330 = vpop.f32.mrb[0].mxu0
      %v8331 = vpop.f32.mrb[0].mxu0
      %v8332 = vadd.f32 0.0, %v8331
      %v8333 = vpop.f32.mrb[0].mxu0
      %8334 = vmatprep.mubr.bf16.mxu0 0
      %8335 = vmatmul.mubr.bf16.gmra.mrb[0].mxu0 %v7889
      %v8336 = vpop.f32.mrb[0].mxu0
      %v8337 = vadd.f32 0.0, %v8336
      %v8338 = vpop.f32.mrb[0].mxu0
      %v8339 = vpop.f32.mrb[0].mxu0
      %v8340 = vadd.f32 0.0, %v8339
      %v8341 = vpop.f32.mrb[0].mxu0
      %8342 = vmatprep.mubr.bf16.mxu0 0
      %8343 = vmatmul.mubr.bf16.gmra.mrb[0].mxu0 %v7892
      %v8344 = vpop.f32.mrb[0].mxu0
      %v8345 = vadd.f32 0.0, %v8344
      %v8346 = vpop.f32.mrb[0].mxu0
      %v8347 = vpop.f32.mrb[0].mxu0
      %v8348 = vadd.f32 0.0, %v8347
      %v8349 = vpop.f32.mrb[0].mxu0
      %8350 = vmatprep.mubr.bf16.mxu0 0
      %8351 = vmatmul.mubr.bf16.gmra.mrb[0].mxu0 %v7895
      %v8352 = vpop.f32.mrb[0].mxu0
      %v8353 = vadd.f32 0.0, %v8352
      %v8354 = vpop.f32.mrb[0].mxu0
      %v8355 = vpop.f32.mrb[0].mxu0
      %v8356 = vadd.f32 0.0, %v8355
      %v8357 = vpop.f32.mrb[0].mxu0
      %8358 = vmatprep.mubr.bf16.mxu0 0
      %8359 = vmatmul.mubr.bf16.gmra.mrb[0].mxu0 %v7898
      %v8360 = vpop.f32.mrb[0].mxu0
      %v8361 = vadd.f32 0.0, %v8360
      %v8362 = vpop.f32.mrb[0].mxu0
      %v8363 = vpop.f32.mrb[0].mxu0
      %v8364 = vadd.f32 0.0, %v8363
      %v8365 = vpop.f32.mrb[0].mxu0
      %8366 = vmatprep.mubr.bf16.mxu0 0
      %8367 = vmatmul.mubr.bf16.gmra.mrb[0].mxu0 %v7901
      %v8368 = vpop.f32.mrb[0].mxu0
      %v8369 = vadd.f32 0.0, %v8368
      %v8370 = vpop.f32.mrb[0].mxu0
      %v8371 = vpop.f32.mrb[0].mxu0
      %v8372 = vadd.f32 0.0, %v8371
      %v8373 = vpop.f32.mrb[0].mxu0
      %8374 = vmatprep.mubr.bf16.mxu0 0
      %8375 = vmatmul.mubr.bf16.gmra.mrb[0].mxu0 %v7904
      %v8376 = vpop.f32.mrb[0].mxu0
      %v8377 = vadd.f32 0.0, %v8376
      %v8378 = vpop.f32.mrb[0].mxu0
      %v8379 = vpop.f32.mrb[0].mxu0
      %v8380 = vadd.f32 0.0, %v8379
      %v8381 = vpop.f32.mrb[0].mxu0
      %8382 = vdwg.mxu0
      %v8384 = vsel %vm1217, %v7783, 0
      %8386 = vmatprep.subr.bf16.mxu0 0
      %8387 = vmatpush1.bf16.msra.mxu0 %v8384
      %8388 = vmatprep.subr.bf16.mxu0 0
      %8389 = vmatpush1.bf16.msra.mxu0 0
      %8390 = vmatprep.subr.bf16.mxu0 0
      %8391 = vmatpush1.bf16.msra.mxu0 0
      %8392 = vmatprep.subr.bf16.mxu0 0
      %8393 = vmatpush1.bf16.msra.mxu0 0
      %8394 = vmatprep.subr.bf16.mxu0 0
      %8395 = vmatpush1.bf16.msra.mxu0 0
      %8396 = vmatprep.subr.bf16.mxu0 0
      %8397 = vmatpush1.bf16.msra.mxu0 0
      %8398 = vmatprep.subr.bf16.mxu0 0
      %8399 = vmatpush1.bf16.msra.mxu0 0
      %8400 = vmatprep.subr.bf16.mxu0 0
      %8401 = vmatpush1.bf16.msra.mxu0 0
      %8402 = vmatprep.subr.bf16.mxu0 0
      %8403 = vmatpush1.bf16.msra.mxu0 0
      %8404 = vmatprep.subr.bf16.mxu0 0
      %8405 = vmatpush1.bf16.msra.mxu0 0
      %8406 = vmatprep.subr.bf16.mxu0 0
      %8407 = vmatpush1.bf16.msra.mxu0 0
      %8408 = vmatprep.subr.bf16.mxu0 0
      %8409 = vmatpush1.bf16.msra.mxu0 0
      %8410 = vmatprep.subr.bf16.mxu0 0
      %8411 = vmatpush1.bf16.msra.mxu0 0
      %8412 = vmatprep.subr.bf16.mxu0 0
      %8413 = vmatpush1.bf16.msra.mxu0 0
      %8414 = vmatprep.subr.bf16.mxu0 0
      %8415 = vmatpush1.bf16.msra.mxu0 0
      %8416 = vmatprep.subr.bf16.mxu0 0
      %8417 = vmatpush1.bf16.msra.mxu0 0
      %8418 = vmatprep.mubr.bf16.mxu0 0
      %8419 = vmatmul.mubr.bf16.gmra.mrb[0].mxu0 %v8091
      %v8420 = vpop.f32.mrb[0].mxu0
      %v8421 = vadd.f32 %v8289, %v8420
      %v8422 = vpop.f32.mrb[0].mxu0
      %v8423 = vpop.f32.mrb[0].mxu0
      %v8424 = vadd.f32 %v8292, %v8423
      %v8425 = vpop.f32.mrb[0].mxu0
      %8426 = vmatprep.mubr.bf16.mxu0 0
      %8427 = vmatmul.mubr.bf16.gmra.mrb[0].mxu0 %v8094
      %v8428 = vpop.f32.mrb[0].mxu0
      %v8429 = vadd.f32 %v8297, %v8428
      %v8430 = vpop.f32.mrb[0].mxu0
      %v8431 = vpop.f32.mrb[0].mxu0
      %v8432 = vadd.f32 %v8300, %v8431
      %v8433 = vpop.f32.mrb[0].mxu0
      %8434 = vmatprep.mubr.bf16.mxu0 0
      %8435 = vmatmul.mubr.bf16.gmra.mrb[0].mxu0 %v8097
      %v8436 = vpop.f32.mrb[0].mxu0
      %v8437 = vadd.f32 %v8305, %v8436
      %v8438 = vpop.f32.mrb[0].mxu0
      %v8439 = vpop.f32.mrb[0].mxu0
      %v8440 = vadd.f32 %v8308, %v8439
      %v8441 = vpop.f32.mrb[0].mxu0
      %8442 = vmatprep.mubr.bf16.mxu0 0
      %8443 = vmatmul.mubr.bf16.gmra.mrb[0].mxu0 %v8100
      %v8444 = vpop.f32.mrb[0].mxu0
      %v8445 = vadd.f32 %v8313, %v8444
      %v8446 = vpop.f32.mrb[0].mxu0
      %v8447 = vpop.f32.mrb[0].mxu0
      %v8448 = vadd.f32 %v8316, %v8447
      %v8449 = vpop.f32.mrb[0].mxu0
      %8450 = vmatprep.mubr.bf16.mxu0 0
      %8451 = vmatmul.mubr.bf16.gmra.mrb[0].mxu0 %v8103
      %v8452 = vpop.f32.mrb[0].mxu0
      %v8453 = vadd.f32 %v8321, %v8452
      %v8454 = vpop.f32.mrb[0].mxu0
      %v8455 = vpop.f32.mrb[0].mxu0
      %v8456 = vadd.f32 %v8324, %v8455
      %v8457 = vpop.f32.mrb[0].mxu0
      %8458 = vmatprep.mubr.bf16.mxu0 0
      %8459 = vmatmul.mubr.bf16.gmra.mrb[0].mxu0 %v8106
      %v8460 = vpop.f32.mrb[0].mxu0
      %v8461 = vadd.f32 %v8329, %v8460
      %v8462 = vpop.f32.mrb[0].mxu0
      %v8463 = vpop.f32.mrb[0].mxu0
      %v8464 = vadd.f32 %v8332, %v8463
      %v8465 = vpop.f32.mrb[0].mxu0
      %8466 = vmatprep.mubr.bf16.mxu0 0
      %8467 = vmatmul.mubr.bf16.gmra.mrb[0].mxu0 %v8109
      %v8468 = vpop.f32.mrb[0].mxu0
      %v8469 = vadd.f32 %v8337, %v8468
      %v8470 = vpop.f32.mrb[0].mxu0
      %v8471 = vpop.f32.mrb[0].mxu0
      %v8472 = vadd.f32 %v8340, %v8471
      %v8473 = vpop.f32.mrb[0].mxu0
      %8474 = vmatprep.mubr.bf16.mxu0 0
      %8475 = vmatmul.mubr.bf16.gmra.mrb[0].mxu0 %v8112
      %v8476 = vpop.f32.mrb[0].mxu0
      %v8477 = vadd.f32 %v8345, %v8476
      %v8478 = vpop.f32.mrb[0].mxu0
      %v8479 = vpop.f32.mrb[0].mxu0
      %v8480 = vadd.f32 %v8348, %v8479
      %v8481 = vpop.f32.mrb[0].mxu0
      %8482 = vmatprep.mubr.bf16.mxu0 0
      %8483 = vmatmul.mubr.bf16.gmra.mrb[0].mxu0 %v8115
      %v8484 = vpop.f32.mrb[0].mxu0
      %v8485 = vadd.f32 %v8353, %v8484
      %v8486 = vpop.f32.mrb[0].mxu0
      %v8487 = vpop.f32.mrb[0].mxu0
      %v8488 = vadd.f32 %v8356, %v8487
      %v8489 = vpop.f32.mrb[0].mxu0
      %8490 = vmatprep.mubr.bf16.mxu0 0
      %8491 = vmatmul.mubr.bf16.gmra.mrb[0].mxu0 %v8118
      %v8492 = vpop.f32.mrb[0].mxu0
      %v8493 = vadd.f32 %v8361, %v8492
      %v8494 = vpop.f32.mrb[0].mxu0
      %v8495 = vpop.f32.mrb[0].mxu0
      %v8496 = vadd.f32 %v8364, %v8495
      %v8497 = vpop.f32.mrb[0].mxu0
      %8498 = vmatprep.mubr.bf16.mxu0 0
      %8499 = vmatmul.mubr.bf16.gmra.mrb[0].mxu0 %v8121
      %v8500 = vpop.f32.mrb[0].mxu0
      %v8501 = vadd.f32 %v8369, %v8500
      %v8502 = vpop.f32.mrb[0].mxu0
      %v8503 = vpop.f32.mrb[0].mxu0
      %v8504 = vadd.f32 %v8372, %v8503
      %v8505 = vpop.f32.mrb[0].mxu0
      %8506 = vmatprep.mubr.bf16.mxu0 0
      %8507 = vmatmul.mubr.bf16.gmra.mrb[0].mxu0 %v8124
      %v8508 = vpop.f32.mrb[0].mxu0
      %v8509 = vadd.f32 %v8377, %v8508
      %v8510 = vpop.f32.mrb[0].mxu0
      %v8511 = vpop.f32.mrb[0].mxu0
      %v8512 = vadd.f32 %v8380, %v8511
      %v8513 = vpop.f32.mrb[0].mxu0
      %8514 = vdwg.mxu0
      %v8515 = vld [vmem:[%s6610] sm:$0x3]
      %v8517 = vsel %vm1217, %v8515, 0
      %8519 = vmatprep.subr.bf16.mxu0 0
      %8520 = vmatpush1.bf16.msra.mxu0 %v8517
      %8521 = vmatprep.subr.bf16.mxu0 0
      %8522 = vmatpush1.bf16.msra.mxu0 0
      %8523 = vmatprep.subr.bf16.mxu0 0
      %8524 = vmatpush1.bf16.msra.mxu0 0
      %8525 = vmatprep.subr.bf16.mxu0 0
      %8526 = vmatpush1.bf16.msra.mxu0 0
      %8527 = vmatprep.subr.bf16.mxu0 0
      %8528 = vmatpush1.bf16.msra.mxu0 0
      %8529 = vmatprep.subr.bf16.mxu0 0
      %8530 = vmatpush1.bf16.msra.mxu0 0
      %8531 = vmatprep.subr.bf16.mxu0 0
      %8532 = vmatpush1.bf16.msra.mxu0 0
      %8533 = vmatprep.subr.bf16.mxu0 0
      %8534 = vmatpush1.bf16.msra.mxu0 0
      %8535 = vmatprep.subr.bf16.mxu0 0
      %8536 = vmatpush1.bf16.msra.mxu0 0
      %8537 = vmatprep.subr.bf16.mxu0 0
      %8538 = vmatpush1.bf16.msra.mxu0 0
      %8539 = vmatprep.subr.bf16.mxu0 0
      %8540 = vmatpush1.bf16.msra.mxu0 0
      %8541 = vmatprep.subr.bf16.mxu0 0
      %8542 = vmatpush1.bf16.msra.mxu0 0
      %8543 = vmatprep.subr.bf16.mxu0 0
      %8544 = vmatpush1.bf16.msra.mxu0 0
      %8545 = vmatprep.subr.bf16.mxu0 0
      %8546 = vmatpush1.bf16.msra.mxu0 0
      %8547 = vmatprep.subr.bf16.mxu0 0
      %8548 = vmatpush1.bf16.msra.mxu0 0
      %8549 = vmatprep.subr.bf16.mxu0 0
      %8550 = vmatpush1.bf16.msra.mxu0 0
      %8551 = vmatprep.mubr.bf16.mxu0 0
      %8552 = vmatmul.mubr.bf16.gmra.mrb[0].mxu0 %v7871
      %v8553 = vpop.f32.mrb[0].mxu0
      %v8554 = vadd.f32 0.0, %v8553
      %v8555 = vpop.f32.mrb[0].mxu0
      %v8556 = vpop.f32.mrb[0].mxu0
      %v8557 = vadd.f32 0.0, %v8556
      %v8558 = vpop.f32.mrb[0].mxu0
      %8559 = vmatprep.mubr.bf16.mxu0 0
      %8560 = vmatmul.mubr.bf16.gmra.mrb[0].mxu0 %v7874
      %v8561 = vpop.f32.mrb[0].mxu0
      %v8562 = vadd.f32 0.0, %v8561
      %v8563 = vpop.f32.mrb[0].mxu0
      %v8564 = vpop.f32.mrb[0].mxu0
      %v8565 = vadd.f32 0.0, %v8564
      %v8566 = vpop.f32.mrb[0].mxu0
      %8567 = vmatprep.mubr.bf16.mxu0 0
      %8568 = vmatmul.mubr.bf16.gmra.mrb[0].mxu0 %v7877
      %v8569 = vpop.f32.mrb[0].mxu0
      %v8570 = vadd.f32 0.0, %v8569
      %v8571 = vpop.f32.mrb[0].mxu0
      %v8572 = vpop.f32.mrb[0].mxu0
      %v8573 = vadd.f32 0.0, %v8572
      %v8574 = vpop.f32.mrb[0].mxu0
      %8575 = vmatprep.mubr.bf16.mxu0 0
      %8576 = vmatmul.mubr.bf16.gmra.mrb[0].mxu0 %v7880
      %v8577 = vpop.f32.mrb[0].mxu0
      %v8578 = vadd.f32 0.0, %v8577
      %v8579 = vpop.f32.mrb[0].mxu0
      %v8580 = vpop.f32.mrb[0].mxu0
      %v8581 = vadd.f32 0.0, %v8580
      %v8582 = vpop.f32.mrb[0].mxu0
      %8583 = vmatprep.mubr.bf16.mxu0 0
      %8584 = vmatmul.mubr.bf16.gmra.mrb[0].mxu0 %v7883
      %v8585 = vpop.f32.mrb[0].mxu0
      %v8586 = vadd.f32 0.0, %v8585
      %v8587 = vpop.f32.mrb[0].mxu0
      %v8588 = vpop.f32.mrb[0].mxu0
      %v8589 = vadd.f32 0.0, %v8588
      %v8590 = vpop.f32.mrb[0].mxu0
      %8591 = vmatprep.mubr.bf16.mxu0 0
      %8592 = vmatmul.mubr.bf16.gmra.mrb[0].mxu0 %v7886
      %v8593 = vpop.f32.mrb[0].mxu0
      %v8594 = vadd.f32 0.0, %v8593
      %v8595 = vpop.f32.mrb[0].mxu0
      %v8596 = vpop.f32.mrb[0].mxu0
      %v8597 = vadd.f32 0.0, %v8596
      %v8598 = vpop.f32.mrb[0].mxu0
      %8599 = vmatprep.mubr.bf16.mxu0 0
      %8600 = vmatmul.mubr.bf16.gmra.mrb[0].mxu0 %v7889
      %v8601 = vpop.f32.mrb[0].mxu0
      %v8602 = vadd.f32 0.0, %v8601
      %v8603 = vpop.f32.mrb[0].mxu0
      %v8604 = vpop.f32.mrb[0].mxu0
      %v8605 = vadd.f32 0.0, %v8604
      %v8606 = vpop.f32.mrb[0].mxu0
      %8607 = vmatprep.mubr.bf16.mxu0 0
      %8608 = vmatmul.mubr.bf16.gmra.mrb[0].mxu0 %v7892
      %v8609 = vpop.f32.mrb[0].mxu0
      %v8610 = vadd.f32 0.0, %v8609
      %v8611 = vpop.f32.mrb[0].mxu0
      %v8612 = vpop.f32.mrb[0].mxu0
      %v8613 = vadd.f32 0.0, %v8612
      %v8614 = vpop.f32.mrb[0].mxu0
      %8615 = vmatprep.mubr.bf16.mxu0 0
      %8616 = vmatmul.mubr.bf16.gmra.mrb[0].mxu0 %v7895
      %v8617 = vpop.f32.mrb[0].mxu0
      %v8618 = vadd.f32 0.0, %v8617
      %v8619 = vpop.f32.mrb[0].mxu0
      %v8620 = vpop.f32.mrb[0].mxu0
      %v8621 = vadd.f32 0.0, %v8620
      %v8622 = vpop.f32.mrb[0].mxu0
      %8623 = vmatprep.mubr.bf16.mxu0 0
      %8624 = vmatmul.mubr.bf16.gmra.mrb[0].mxu0 %v7898
      %v8625 = vpop.f32.mrb[0].mxu0
      %v8626 = vadd.f32 0.0, %v8625
      %v8627 = vpop.f32.mrb[0].mxu0
      %v8628 = vpop.f32.mrb[0].mxu0
      %v8629 = vadd.f32 0.0, %v8628
      %v8630 = vpop.f32.mrb[0].mxu0
      %8631 = vmatprep.mubr.bf16.mxu0 0
      %8632 = vmatmul.mubr.bf16.gmra.mrb[0].mxu0 %v7901
      %v8633 = vpop.f32.mrb[0].mxu0
      %v8634 = vadd.f32 0.0, %v8633
      %v8635 = vpop.f32.mrb[0].mxu0
      %v8636 = vpop.f32.mrb[0].mxu0
      %v8637 = vadd.f32 0.0, %v8636
      %v8638 = vpop.f32.mrb[0].mxu0
      %8639 = vmatprep.mubr.bf16.mxu0 0
      %8640 = vmatmul.mubr.bf16.gmra.mrb[0].mxu0 %v7904
      %v8641 = vpop.f32.mrb[0].mxu0
      %v8642 = vadd.f32 0.0, %v8641
      %v8643 = vpop.f32.mrb[0].mxu0
      %v8644 = vpop.f32.mrb[0].mxu0
      %v8645 = vadd.f32 0.0, %v8644
      %v8646 = vpop.f32.mrb[0].mxu0
      %8647 = vdwg.mxu0
      %v8649 = vsel %vm1217, %v7784, 0
      %8651 = vmatprep.subr.bf16.mxu0 0
      %8652 = vmatpush1.bf16.msra.mxu0 %v8649
      %8653 = vmatprep.subr.bf16.mxu0 0
      %8654 = vmatpush1.bf16.msra.mxu0 0
      %8655 = vmatprep.subr.bf16.mxu0 0
      %8656 = vmatpush1.bf16.msra.mxu0 0
      %8657 = vmatprep.subr.bf16.mxu0 0
      %8658 = vmatpush1.bf16.msra.mxu0 0
      %8659 = vmatprep.subr.bf16.mxu0 0
      %8660 = vmatpush1.bf16.msra.mxu0 0
      %8661 = vmatprep.subr.bf16.mxu0 0
      %8662 = vmatpush1.bf16.msra.mxu0 0
      %8663 = vmatprep.subr.bf16.mxu0 0
      %8664 = vmatpush1.bf16.msra.mxu0 0
      %8665 = vmatprep.subr.bf16.mxu0 0
      %8666 = vmatpush1.bf16.msra.mxu0 0
      %8667 = vmatprep.subr.bf16.mxu0 0
      %8668 = vmatpush1.bf16.msra.mxu0 0
      %8669 = vmatprep.subr.bf16.mxu0 0
      %8670 = vmatpush1.bf16.msra.mxu0 0
      %8671 = vmatprep.subr.bf16.mxu0 0
      %8672 = vmatpush1.bf16.msra.mxu0 0
      %8673 = vmatprep.subr.bf16.mxu0 0
      %8674 = vmatpush1.bf16.msra.mxu0 0
      %8675 = vmatprep.subr.bf16.mxu0 0
      %8676 = vmatpush1.bf16.msra.mxu0 0
      %8677 = vmatprep.subr.bf16.mxu0 0
      %8678 = vmatpush1.bf16.msra.mxu0 0
      %8679 = vmatprep.subr.bf16.mxu0 0
      %8680 = vmatpush1.bf16.msra.mxu0 0
      %8681 = vmatprep.subr.bf16.mxu0 0
      %8682 = vmatpush1.bf16.msra.mxu0 0
      %8683 = vmatprep.mubr.bf16.mxu0 0
      %8684 = vmatmul.mubr.bf16.gmra.mrb[0].mxu0 %v8091
      %v8685 = vpop.f32.mrb[0].mxu0
      %v8686 = vadd.f32 %v8554, %v8685
      %v8687 = vpop.f32.mrb[0].mxu0
      %v8688 = vpop.f32.mrb[0].mxu0
      %v8689 = vadd.f32 %v8557, %v8688
      %v8690 = vpop.f32.mrb[0].mxu0
      %8691 = vmatprep.mubr.bf16.mxu0 0
      %8692 = vmatmul.mubr.bf16.gmra.mrb[0].mxu0 %v8094
      %v8693 = vpop.f32.mrb[0].mxu0
      %v8694 = vadd.f32 %v8562, %v8693
      %v8695 = vpop.f32.mrb[0].mxu0
      %v8696 = vpop.f32.mrb[0].mxu0
      %v8697 = vadd.f32 %v8565, %v8696
      %v8698 = vpop.f32.mrb[0].mxu0
      %8699 = vmatprep.mubr.bf16.mxu0 0
      %8700 = vmatmul.mubr.bf16.gmra.mrb[0].mxu0 %v8097
      %v8701 = vpop.f32.mrb[0].mxu0
      %v8702 = vadd.f32 %v8570, %v8701
      %v8703 = vpop.f32.mrb[0].mxu0
      %v8704 = vpop.f32.mrb[0].mxu0
      %v8705 = vadd.f32 %v8573, %v8704
      %v8706 = vpop.f32.mrb[0].mxu0
      %8707 = vmatprep.mubr.bf16.mxu0 0
      %8708 = vmatmul.mubr.bf16.gmra.mrb[0].mxu0 %v8100
      %v8709 = vpop.f32.mrb[0].mxu0
      %v8710 = vadd.f32 %v8578, %v8709
      %v8711 = vpop.f32.mrb[0].mxu0
      %v8712 = vpop.f32.mrb[0].mxu0
      %v8713 = vadd.f32 %v8581, %v8712
      %v8714 = vpop.f32.mrb[0].mxu0
      %8715 = vmatprep.mubr.bf16.mxu0 0
      %8716 = vmatmul.mubr.bf16.gmra.mrb[0].mxu0 %v8103
      %v8717 = vpop.f32.mrb[0].mxu0
      %v8718 = vadd.f32 %v8586, %v8717
      %v8719 = vpop.f32.mrb[0].mxu0
      %v8720 = vpop.f32.mrb[0].mxu0
      %v8721 = vadd.f32 %v8589, %v8720
      %v8722 = vpop.f32.mrb[0].mxu0
      %8723 = vmatprep.mubr.bf16.mxu0 0
      %8724 = vmatmul.mubr.bf16.gmra.mrb[0].mxu0 %v8106
      %v8725 = vpop.f32.mrb[0].mxu0
      %v8726 = vadd.f32 %v8594, %v8725
      %v8727 = vpop.f32.mrb[0].mxu0
      %v8728 = vpop.f32.mrb[0].mxu0
      %v8729 = vadd.f32 %v8597, %v8728
      %v8730 = vpop.f32.mrb[0].mxu0
      %8731 = vmatprep.mubr.bf16.mxu0 0
      %8732 = vmatmul.mubr.bf16.gmra.mrb[0].mxu0 %v8109
      %v8733 = vpop.f32.mrb[0].mxu0
      %v8734 = vadd.f32 %v8602, %v8733
      %v8735 = vpop.f32.mrb[0].mxu0
      %v8736 = vpop.f32.mrb[0].mxu0
      %v8737 = vadd.f32 %v8605, %v8736
      %v8738 = vpop.f32.mrb[0].mxu0
      %8739 = vmatprep.mubr.bf16.mxu0 0
      %8740 = vmatmul.mubr.bf16.gmra.mrb[0].mxu0 %v8112
      %v8741 = vpop.f32.mrb[0].mxu0
      %v8742 = vadd.f32 %v8610, %v8741
      %v8743 = vpop.f32.mrb[0].mxu0
      %v8744 = vpop.f32.mrb[0].mxu0
      %v8745 = vadd.f32 %v8613, %v8744
      %v8746 = vpop.f32.mrb[0].mxu0
      %8747 = vmatprep.mubr.bf16.mxu0 0
      %8748 = vmatmul.mubr.bf16.gmra.mrb[0].mxu0 %v8115
      %v8749 = vpop.f32.mrb[0].mxu0
      %v8750 = vadd.f32 %v8618, %v8749
      %v8751 = vpop.f32.mrb[0].mxu0
      %v8752 = vpop.f32.mrb[0].mxu0
      %v8753 = vadd.f32 %v8621, %v8752
      %v8754 = vpop.f32.mrb[0].mxu0
      %8755 = vmatprep.mubr.bf16.mxu0 0
      %8756 = vmatmul.mubr.bf16.gmra.mrb[0].mxu0 %v8118
      %v8757 = vpop.f32.mrb[0].mxu0
      %v8758 = vadd.f32 %v8626, %v8757
      %v8759 = vpop.f32.mrb[0].mxu0
      %v8760 = vpop.f32.mrb[0].mxu0
      %v8761 = vadd.f32 %v8629, %v8760
      %v8762 = vpop.f32.mrb[0].mxu0
      %8763 = vmatprep.mubr.bf16.mxu0 0
      %8764 = vmatmul.mubr.bf16.gmra.mrb[0].mxu0 %v8121
      %v8765 = vpop.f32.mrb[0].mxu0
      %v8766 = vadd.f32 %v8634, %v8765
      %v8767 = vpop.f32.mrb[0].mxu0
      %v8768 = vpop.f32.mrb[0].mxu0
      %v8769 = vadd.f32 %v8637, %v8768
      %v8770 = vpop.f32.mrb[0].mxu0
      %8771 = vmatprep.mubr.bf16.mxu0 0
      %8772 = vmatmul.mubr.bf16.gmra.mrb[0].mxu0 %v8124
      %v8773 = vpop.f32.mrb[0].mxu0
      %v8774 = vadd.f32 %v8642, %v8773
      %v8775 = vpop.f32.mrb[0].mxu0
      %v8776 = vpop.f32.mrb[0].mxu0
      %v8777 = vadd.f32 %v8645, %v8776
      %v8778 = vpop.f32.mrb[0].mxu0
      %8779 = vdwg.mxu0
      %v8780 = vld [vmem:[%s4003] sm:$0xf]
      %v8781 = vld [vmem:[%s4003 + $0x4] sm:$0xf]
      %v8782 = vld [vmem:[%s4003 + $0x8] sm:$0xf]
      %v8783 = vld [vmem:[%s4003 + $0xc] sm:$0xf]
      %v8784 = vld [vmem:[%s4003 + $0x10] sm:$0xf]
      %v8785 = vld [vmem:[%s4003 + $0x14] sm:$0xf]
      %v8786 = vld [vmem:[%s4003 + $0x18] sm:$0xf]
      %v8787 = vld [vmem:[%s4003 + $0x1c] sm:$0xf]
      %v8788 = vld [vmem:[%s4003 + $0x20] sm:$0xf]
      %v8789 = vld [vmem:[%s4003 + $0x24] sm:$0xf]
      %v8790 = vld [vmem:[%s4003 + $0x28] sm:$0xf]
      %v8791 = vld [vmem:[%s4003 + $0x2c] sm:$0xf]
      %v8792 = vld [vmem:[%s4003 + $0x30] sm:$0xf]
      %v8793 = vld [vmem:[%s4003 + $0x34] sm:$0xf]
      %v8794 = vld [vmem:[%s4003 + $0x38] sm:$0xf]
      %v8795 = vld [vmem:[%s4003 + $0x3c] sm:$0xf]
      %v8796 = vld [vmem:[%s4003 + $0x40] sm:$0xf]
      %v8797 = vld [vmem:[%s4003 + $0x44] sm:$0xf]
      %v8798 = vld [vmem:[%s4003 + $0x48] sm:$0xf]
      %v8799 = vld [vmem:[%s4003 + $0x4c] sm:$0xf]
      %v8800 = vld [vmem:[%s4003 + $0x50] sm:$0xf]
      %v8801 = vld [vmem:[%s4003 + $0x54] sm:$0xf]
      %v8802 = vld [vmem:[%s4003 + $0x58] sm:$0xf]
      %v8803 = vld [vmem:[%s4003 + $0x5c] sm:$0xf]
      %v8804 = vld [vmem:[%s6900] sm:$0x3]
      %v8829 = vunpack.c.l.b16 %v8780
      %v8830 = vunpack.c.l.b16 %v8781
      %v8831 = vunpack.c.l.b16 %v8782
      %v8832 = vunpack.c.l.b16 %v8783
      %v8833 = vunpack.c.l.b16 %v8784
      %v8834 = vunpack.c.l.b16 %v8785
      %v8835 = vunpack.c.l.b16 %v8786
      %v8836 = vunpack.c.l.b16 %v8787
      %v8837 = vunpack.c.l.b16 %v8788
      %v8838 = vunpack.c.l.b16 %v8789
      %v8839 = vunpack.c.l.b16 %v8790
      %v8840 = vunpack.c.l.b16 %v8791
      %v8841 = vunpack.c.l.b16 %v8792
      %v8842 = vunpack.c.l.b16 %v8793
      %v8843 = vunpack.c.l.b16 %v8794
      %v8844 = vunpack.c.l.b16 %v8795
      %v8845 = vunpack.c.l.b16 %v8796
      %v8846 = vunpack.c.l.b16 %v8797
      %v8847 = vunpack.c.l.b16 %v8798
      %v8848 = vunpack.c.l.b16 %v8799
      %v8849 = vunpack.c.l.b16 %v8800
      %v8850 = vunpack.c.l.b16 %v8801
      %v8851 = vunpack.c.l.b16 %v8802
      %v8852 = vunpack.c.l.b16 %v8803
      %v8853 = vpack.c.b16 %v8830, %v8829
      %v8854 = vpack.c.b16 %v8832, %v8831
      %v8855 = vpack.c.b16 %v8834, %v8833
      %v8856 = vpack.c.b16 %v8836, %v8835
      %v8857 = vpack.c.b16 %v8838, %v8837
      %v8858 = vpack.c.b16 %v8840, %v8839
      %v8859 = vpack.c.b16 %v8842, %v8841
      %v8860 = vpack.c.b16 %v8844, %v8843
      %v8861 = vpack.c.b16 %v8846, %v8845
      %v8862 = vpack.c.b16 %v8848, %v8847
      %v8863 = vpack.c.b16 %v8850, %v8849
      %v8864 = vpack.c.b16 %v8852, %v8851
      %v8866 = vsel %vm1180, %v8853, 0
      %v8869 = vsel %vm1180, %v8854, 0
      %v8872 = vsel %vm1180, %v8855, 0
      %v8875 = vsel %vm1180, %v8856, 0
      %v8878 = vsel %vm1180, %v8857, 0
      %v8881 = vsel %vm1180, %v8858, 0
      %v8884 = vsel %vm1180, %v8859, 0
      %v8887 = vsel %vm1180, %v8860, 0
      %v8890 = vsel %vm1180, %v8861, 0
      %v8893 = vsel %vm1180, %v8862, 0
      %v8896 = vsel %vm1180, %v8863, 0
      %v8899 = vsel %vm1180, %v8864, 0
      %v8902 = vsel %vm1217, %v8804, 0
      %8904 = vmatprep.subr.bf16.mxu0 0
      %8905 = vmatpush1.bf16.msra.mxu0 %v8902
      %8906 = vmatprep.subr.bf16.mxu0 0
      %8907 = vmatpush1.bf16.msra.mxu0 0
      %8908 = vmatprep.subr.bf16.mxu0 0
      %8909 = vmatpush1.bf16.msra.mxu0 0
      %8910 = vmatprep.subr.bf16.mxu0 0
      %8911 = vmatpush1.bf16.msra.mxu0 0
      %8912 = vmatprep.subr.bf16.mxu0 0
      %8913 = vmatpush1.bf16.msra.mxu0 0
      %8914 = vmatprep.subr.bf16.mxu0 0
      %8915 = vmatpush1.bf16.msra.mxu0 0
      %8916 = vmatprep.subr.bf16.mxu0 0
      %8917 = vmatpush1.bf16.msra.mxu0 0
      %8918 = vmatprep.subr.bf16.mxu0 0
      %8919 = vmatpush1.bf16.msra.mxu0 0
      %8920 = vmatprep.subr.bf16.mxu0 0
      %8921 = vmatpush1.bf16.msra.mxu0 0
      %8922 = vmatprep.subr.bf16.mxu0 0
      %8923 = vmatpush1.bf16.msra.mxu0 0
      %8924 = vmatprep.subr.bf16.mxu0 0
      %8925 = vmatpush1.bf16.msra.mxu0 0
      %8926 = vmatprep.subr.bf16.mxu0 0
      %8927 = vmatpush1.bf16.msra.mxu0 0
      %8928 = vmatprep.subr.bf16.mxu0 0
      %8929 = vmatpush1.bf16.msra.mxu0 0
      %8930 = vmatprep.subr.bf16.mxu0 0
      %8931 = vmatpush1.bf16.msra.mxu0 0
      %8932 = vmatprep.subr.bf16.mxu0 0
      %8933 = vmatpush1.bf16.msra.mxu0 0
      %8934 = vmatprep.subr.bf16.mxu0 0
      %8935 = vmatpush1.bf16.msra.mxu0 0
      %8936 = vmatprep.mubr.bf16.mxu0 0
      %8937 = vmatmul.mubr.bf16.gmra.mrb[0].mxu0 %v8866
      %v8938 = vpop.f32.mrb[0].mxu0
      %v8939 = vadd.f32 0.0, %v8938
      %v8940 = vpop.f32.mrb[0].mxu0
      %v8941 = vpop.f32.mrb[0].mxu0
      %v8942 = vadd.f32 0.0, %v8941
      %v8943 = vpop.f32.mrb[0].mxu0
      %8944 = vmatprep.mubr.bf16.mxu0 0
      %8945 = vmatmul.mubr.bf16.gmra.mrb[0].mxu0 %v8869
      %v8946 = vpop.f32.mrb[0].mxu0
      %v8947 = vpop.f32.mrb[0].mxu0
      %v8948 = vpop.f32.mrb[0].mxu0
      %v8949 = vadd.f32 0.0, %v8948
      %v8950 = vpop.f32.mrb[0].mxu0
      %8951 = vmatprep.mubr.bf16.mxu0 0
      %8952 = vmatmul.mubr.bf16.gmra.mrb[0].mxu0 %v8872
      %v8953 = vpop.f32.mrb[0].mxu0
      %v8954 = vadd.f32 0.0, %v8953
      %v8955 = vpop.f32.mrb[0].mxu0
      %v8956 = vpop.f32.mrb[0].mxu0
      %v8957 = vpop.f32.mrb[0].mxu0
      %8958 = vmatprep.mubr.bf16.mxu0 0
      %8959 = vmatmul.mubr.bf16.gmra.mrb[0].mxu0 %v8875
      %v8960 = vpop.f32.mrb[0].mxu0
      %v8961 = vadd.f32 0.0, %v8960
      %v8962 = vpop.f32.mrb[0].mxu0
      %v8963 = vpop.f32.mrb[0].mxu0
      %v8964 = vadd.f32 0.0, %v8963
      %v8965 = vpop.f32.mrb[0].mxu0
      %8966 = vmatprep.mubr.bf16.mxu0 0
      %8967 = vmatmul.mubr.bf16.gmra.mrb[0].mxu0 %v8878
      %v8968 = vpop.f32.mrb[0].mxu0
      %v8969 = vpop.f32.mrb[0].mxu0
      %v8970 = vpop.f32.mrb[0].mxu0
      %v8971 = vadd.f32 0.0, %v8970
      %v8972 = vpop.f32.mrb[0].mxu0
      %8973 = vmatprep.mubr.bf16.mxu0 0
      %8974 = vmatmul.mubr.bf16.gmra.mrb[0].mxu0 %v8881
      %v8975 = vpop.f32.mrb[0].mxu0
      %v8976 = vadd.f32 0.0, %v8975
      %v8977 = vpop.f32.mrb[0].mxu0
      %v8978 = vpop.f32.mrb[0].mxu0
      %v8979 = vpop.f32.mrb[0].mxu0
      %8980 = vmatprep.mubr.bf16.mxu0 0
      %8981 = vmatmul.mubr.bf16.gmra.mrb[0].mxu0 %v8884
      %v8982 = vpop.f32.mrb[0].mxu0
      %v8983 = vadd.f32 0.0, %v8982
      %v8984 = vpop.f32.mrb[0].mxu0
      %v8985 = vpop.f32.mrb[0].mxu0
      %v8986 = vadd.f32 0.0, %v8985
      %v8987 = vpop.f32.mrb[0].mxu0
      %8988 = vmatprep.mubr.bf16.mxu0 0
      %8989 = vmatmul.mubr.bf16.gmra.mrb[0].mxu0 %v8887
      %v8990 = vpop.f32.mrb[0].mxu0
      %v8991 = vpop.f32.mrb[0].mxu0
      %v8992 = vpop.f32.mrb[0].mxu0
      %v8993 = vadd.f32 0.0, %v8992
      %v8994 = vpop.f32.mrb[0].mxu0
      %8995 = vmatprep.mubr.bf16.mxu0 0
      %8996 = vmatmul.mubr.bf16.gmra.mrb[0].mxu0 %v8890
      %v8997 = vpop.f32.mrb[0].mxu0
      %v8998 = vadd.f32 0.0, %v8997
      %v8999 = vpop.f32.mrb[0].mxu0
      %v9000 = vpop.f32.mrb[0].mxu0
      %v9001 = vpop.f32.mrb[0].mxu0
      %9002 = vmatprep.mubr.bf16.mxu0 0
      %9003 = vmatmul.mubr.bf16.gmra.mrb[0].mxu0 %v8893
      %v9004 = vpop.f32.mrb[0].mxu0
      %v9005 = vadd.f32 0.0, %v9004
      %v9006 = vpop.f32.mrb[0].mxu0
      %v9007 = vpop.f32.mrb[0].mxu0
      %v9008 = vadd.f32 0.0, %v9007
      %v9009 = vpop.f32.mrb[0].mxu0
      %9010 = vmatprep.mubr.bf16.mxu0 0
      %9011 = vmatmul.mubr.bf16.gmra.mrb[0].mxu0 %v8896
      %v9012 = vpop.f32.mrb[0].mxu0
      %v9013 = vpop.f32.mrb[0].mxu0
      %v9014 = vpop.f32.mrb[0].mxu0
      %v9015 = vadd.f32 0.0, %v9014
      %v9016 = vpop.f32.mrb[0].mxu0
      %9017 = vmatprep.mubr.bf16.mxu0 0
      %9018 = vmatmul.mubr.bf16.gmra.mrb[0].mxu0 %v8899
      %v9019 = vpop.f32.mrb[0].mxu0
      %v9020 = vadd.f32 0.0, %v9019
      %v9021 = vpop.f32.mrb[0].mxu0
      %v9022 = vpop.f32.mrb[0].mxu0
      %v9023 = vpop.f32.mrb[0].mxu0
      %9024 = vdwg.mxu0
      %v9025 = vadd.f32 %v8164, %v8939
      %v9026 = vadd.f32 %v8167, %v8942
      %v9027 = vadd.f32 %v8174, %v8949
      %v9028 = vadd.f32 %v8179, %v8954
      %v9029 = vadd.f32 %v8186, %v8961
      %v9030 = vadd.f32 %v8189, %v8964
      %v9031 = vadd.f32 %v8196, %v8971
      %v9032 = vadd.f32 %v8201, %v8976
      %v9033 = vadd.f32 %v8208, %v8983
      %v9034 = vadd.f32 %v8211, %v8986
      %v9035 = vadd.f32 %v8218, %v8993
      %v9036 = vadd.f32 %v8223, %v8998
      %v9037 = vadd.f32 %v8230, %v9005
      %v9038 = vadd.f32 %v8233, %v9008
      %v9039 = vadd.f32 %v8240, %v9015
      %v9040 = vadd.f32 %v8245, %v9020
      %v9041 = vld [vmem:[%s7138] sm:$0x3]
      %v9043 = vsel %vm1217, %v9041, 0
      %9045 = vmatprep.subr.bf16.mxu0 0
      %9046 = vmatpush1.bf16.msra.mxu0 %v9043
      %9047 = vmatprep.subr.bf16.mxu0 0
      %9048 = vmatpush1.bf16.msra.mxu0 0
      %9049 = vmatprep.subr.bf16.mxu0 0
      %9050 = vmatpush1.bf16.msra.mxu0 0
      %9051 = vmatprep.subr.bf16.mxu0 0
      %9052 = vmatpush1.bf16.msra.mxu0 0
      %9053 = vmatprep.subr.bf16.mxu0 0
      %9054 = vmatpush1.bf16.msra.mxu0 0
      %9055 = vmatprep.subr.bf16.mxu0 0
      %9056 = vmatpush1.bf16.msra.mxu0 0
      %9057 = vmatprep.subr.bf16.mxu0 0
      %9058 = vmatpush1.bf16.msra.mxu0 0
      %9059 = vmatprep.subr.bf16.mxu0 0
      %9060 = vmatpush1.bf16.msra.mxu0 0
      %9061 = vmatprep.subr.bf16.mxu0 0
      %9062 = vmatpush1.bf16.msra.mxu0 0
      %9063 = vmatprep.subr.bf16.mxu0 0
      %9064 = vmatpush1.bf16.msra.mxu0 0
      %9065 = vmatprep.subr.bf16.mxu0 0
      %9066 = vmatpush1.bf16.msra.mxu0 0
      %9067 = vmatprep.subr.bf16.mxu0 0
      %9068 = vmatpush1.bf16.msra.mxu0 0
      %9069 = vmatprep.subr.bf16.mxu0 0
      %9070 = vmatpush1.bf16.msra.mxu0 0
      %9071 = vmatprep.subr.bf16.mxu0 0
      %9072 = vmatpush1.bf16.msra.mxu0 0
      %9073 = vmatprep.subr.bf16.mxu0 0
      %9074 = vmatpush1.bf16.msra.mxu0 0
      %9075 = vmatprep.subr.bf16.mxu0 0
      %9076 = vmatpush1.bf16.msra.mxu0 0
      %9077 = vmatprep.mubr.bf16.mxu0 0
      %9078 = vmatmul.mubr.bf16.gmra.mrb[0].mxu0 %v8866
      %v9079 = vpop.f32.mrb[0].mxu0
      %v9080 = vadd.f32 0.0, %v9079
      %v9081 = vpop.f32.mrb[0].mxu0
      %v9082 = vpop.f32.mrb[0].mxu0
      %v9083 = vadd.f32 0.0, %v9082
      %v9084 = vpop.f32.mrb[0].mxu0
      %9085 = vmatprep.mubr.bf16.mxu0 0
      %9086 = vmatmul.mubr.bf16.gmra.mrb[0].mxu0 %v8869
      %v9087 = vpop.f32.mrb[0].mxu0
      %v9088 = vadd.f32 0.0, %v9087
      %v9089 = vpop.f32.mrb[0].mxu0
      %v9090 = vpop.f32.mrb[0].mxu0
      %v9091 = vadd.f32 0.0, %v9090
      %v9092 = vpop.f32.mrb[0].mxu0
      %9093 = vmatprep.mubr.bf16.mxu0 0
      %9094 = vmatmul.mubr.bf16.gmra.mrb[0].mxu0 %v8872
      %v9095 = vpop.f32.mrb[0].mxu0
      %v9096 = vadd.f32 0.0, %v9095
      %v9097 = vpop.f32.mrb[0].mxu0
      %v9098 = vpop.f32.mrb[0].mxu0
      %v9099 = vadd.f32 0.0, %v9098
      %v9100 = vpop.f32.mrb[0].mxu0
      %9101 = vmatprep.mubr.bf16.mxu0 0
      %9102 = vmatmul.mubr.bf16.gmra.mrb[0].mxu0 %v8875
      %v9103 = vpop.f32.mrb[0].mxu0
      %v9104 = vadd.f32 0.0, %v9103
      %v9105 = vpop.f32.mrb[0].mxu0
      %v9106 = vpop.f32.mrb[0].mxu0
      %v9107 = vadd.f32 0.0, %v9106
      %v9108 = vpop.f32.mrb[0].mxu0
      %9109 = vmatprep.mubr.bf16.mxu0 0
      %9110 = vmatmul.mubr.bf16.gmra.mrb[0].mxu0 %v8878
      %v9111 = vpop.f32.mrb[0].mxu0
      %v9112 = vadd.f32 0.0, %v9111
      %v9113 = vpop.f32.mrb[0].mxu0
      %v9114 = vpop.f32.mrb[0].mxu0
      %v9115 = vadd.f32 0.0, %v9114
      %v9116 = vpop.f32.mrb[0].mxu0
      %9117 = vmatprep.mubr.bf16.mxu0 0
      %9118 = vmatmul.mubr.bf16.gmra.mrb[0].mxu0 %v8881
      %v9119 = vpop.f32.mrb[0].mxu0
      %v9120 = vadd.f32 0.0, %v9119
      %v9121 = vpop.f32.mrb[0].mxu0
      %v9122 = vpop.f32.mrb[0].mxu0
      %v9123 = vadd.f32 0.0, %v9122
      %v9124 = vpop.f32.mrb[0].mxu0
      %9125 = vmatprep.mubr.bf16.mxu0 0
      %9126 = vmatmul.mubr.bf16.gmra.mrb[0].mxu0 %v8884
      %v9127 = vpop.f32.mrb[0].mxu0
      %v9128 = vadd.f32 0.0, %v9127
      %v9129 = vpop.f32.mrb[0].mxu0
      %v9130 = vpop.f32.mrb[0].mxu0
      %v9131 = vadd.f32 0.0, %v9130
      %v9132 = vpop.f32.mrb[0].mxu0
      %9133 = vmatprep.mubr.bf16.mxu0 0
      %9134 = vmatmul.mubr.bf16.gmra.mrb[0].mxu0 %v8887
      %v9135 = vpop.f32.mrb[0].mxu0
      %v9136 = vadd.f32 0.0, %v9135
      %v9137 = vpop.f32.mrb[0].mxu0
      %v9138 = vpop.f32.mrb[0].mxu0
      %v9139 = vadd.f32 0.0, %v9138
      %v9140 = vpop.f32.mrb[0].mxu0
      %9141 = vmatprep.mubr.bf16.mxu0 0
      %9142 = vmatmul.mubr.bf16.gmra.mrb[0].mxu0 %v8890
      %v9143 = vpop.f32.mrb[0].mxu0
      %v9144 = vadd.f32 0.0, %v9143
      %v9145 = vpop.f32.mrb[0].mxu0
      %v9146 = vpop.f32.mrb[0].mxu0
      %v9147 = vadd.f32 0.0, %v9146
      %v9148 = vpop.f32.mrb[0].mxu0
      %9149 = vmatprep.mubr.bf16.mxu0 0
      %9150 = vmatmul.mubr.bf16.gmra.mrb[0].mxu0 %v8893
      %v9151 = vpop.f32.mrb[0].mxu0
      %v9152 = vadd.f32 0.0, %v9151
      %v9153 = vpop.f32.mrb[0].mxu0
      %v9154 = vpop.f32.mrb[0].mxu0
      %v9155 = vadd.f32 0.0, %v9154
      %v9156 = vpop.f32.mrb[0].mxu0
      %9157 = vmatprep.mubr.bf16.mxu0 0
      %9158 = vmatmul.mubr.bf16.gmra.mrb[0].mxu0 %v8896
      %v9159 = vpop.f32.mrb[0].mxu0
      %v9160 = vadd.f32 0.0, %v9159
      %v9161 = vpop.f32.mrb[0].mxu0
      %v9162 = vpop.f32.mrb[0].mxu0
      %v9163 = vadd.f32 0.0, %v9162
      %v9164 = vpop.f32.mrb[0].mxu0
      %9165 = vmatprep.mubr.bf16.mxu0 0
      %9166 = vmatmul.mubr.bf16.gmra.mrb[0].mxu0 %v8899
      %v9167 = vpop.f32.mrb[0].mxu0
      %v9168 = vadd.f32 0.0, %v9167
      %v9169 = vpop.f32.mrb[0].mxu0
      %v9170 = vpop.f32.mrb[0].mxu0
      %v9171 = vadd.f32 0.0, %v9170
      %v9172 = vpop.f32.mrb[0].mxu0
      %9173 = vdwg.mxu0
      %v9174 = vadd.f32 %v8421, %v9080
      %v9175 = vadd.f32 %v8424, %v9083
      %v9176 = vadd.f32 %v8429, %v9088
      %v9177 = vadd.f32 %v8432, %v9091
      %v9178 = vadd.f32 %v8437, %v9096
      %v9179 = vadd.f32 %v8440, %v9099
      %v9180 = vadd.f32 %v8445, %v9104
      %v9181 = vadd.f32 %v8448, %v9107
      %v9182 = vadd.f32 %v8453, %v9112
      %v9183 = vadd.f32 %v8456, %v9115
      %v9184 = vadd.f32 %v8461, %v9120
      %v9185 = vadd.f32 %v8464, %v9123
      %v9186 = vadd.f32 %v8469, %v9128
      %v9187 = vadd.f32 %v8472, %v9131
      %v9188 = vadd.f32 %v8477, %v9136
      %v9189 = vadd.f32 %v8480, %v9139
      %v9190 = vadd.f32 %v8485, %v9144
      %v9191 = vadd.f32 %v8488, %v9147
      %v9192 = vadd.f32 %v8493, %v9152
      %v9193 = vadd.f32 %v8496, %v9155
      %v9194 = vadd.f32 %v8501, %v9160
      %v9195 = vadd.f32 %v8504, %v9163
      %v9196 = vadd.f32 %v8509, %v9168
      %v9197 = vadd.f32 %v8512, %v9171
      %v9198 = vld [vmem:[%s7296] sm:$0x3]
      %v9200 = vsel %vm1217, %v9198, 0
      %9202 = vmatprep.subr.bf16.mxu0 0
      %9203 = vmatpush1.bf16.msra.mxu0 %v9200
      %9204 = vmatprep.subr.bf16.mxu0 0
      %9205 = vmatpush1.bf16.msra.mxu0 0
      %9206 = vmatprep.subr.bf16.mxu0 0
      %9207 = vmatpush1.bf16.msra.mxu0 0
      %9208 = vmatprep.subr.bf16.mxu0 0
      %9209 = vmatpush1.bf16.msra.mxu0 0
      %9210 = vmatprep.subr.bf16.mxu0 0
      %9211 = vmatpush1.bf16.msra.mxu0 0
      %9212 = vmatprep.subr.bf16.mxu0 0
      %9213 = vmatpush1.bf16.msra.mxu0 0
      %9214 = vmatprep.subr.bf16.mxu0 0
      %9215 = vmatpush1.bf16.msra.mxu0 0
      %9216 = vmatprep.subr.bf16.mxu0 0
      %9217 = vmatpush1.bf16.msra.mxu0 0
      %9218 = vmatprep.subr.bf16.mxu0 0
      %9219 = vmatpush1.bf16.msra.mxu0 0
      %9220 = vmatprep.subr.bf16.mxu0 0
      %9221 = vmatpush1.bf16.msra.mxu0 0
      %9222 = vmatprep.subr.bf16.mxu0 0
      %9223 = vmatpush1.bf16.msra.mxu0 0
      %9224 = vmatprep.subr.bf16.mxu0 0
      %9225 = vmatpush1.bf16.msra.mxu0 0
      %9226 = vmatprep.subr.bf16.mxu0 0
      %9227 = vmatpush1.bf16.msra.mxu0 0
      %9228 = vmatprep.subr.bf16.mxu0 0
      %9229 = vmatpush1.bf16.msra.mxu0 0
      %9230 = vmatprep.subr.bf16.mxu0 0
      %9231 = vmatpush1.bf16.msra.mxu0 0
      %9232 = vmatprep.subr.bf16.mxu0 0
      %9233 = vmatpush1.bf16.msra.mxu0 0
      %9234 = vmatprep.mubr.bf16.mxu0 0
      %9235 = vmatmul.mubr.bf16.gmra.mrb[0].mxu0 %v8866
      %v9236 = vpop.f32.mrb[0].mxu0
      %v9237 = vadd.f32 0.0, %v9236
      %v9238 = vpop.f32.mrb[0].mxu0
      %v9239 = vpop.f32.mrb[0].mxu0
      %v9240 = vadd.f32 0.0, %v9239
      %v9241 = vpop.f32.mrb[0].mxu0
      %9242 = vmatprep.mubr.bf16.mxu0 0
      %9243 = vmatmul.mubr.bf16.gmra.mrb[0].mxu0 %v8869
      %v9244 = vpop.f32.mrb[0].mxu0
      %v9245 = vadd.f32 0.0, %v9244
      %v9246 = vpop.f32.mrb[0].mxu0
      %v9247 = vpop.f32.mrb[0].mxu0
      %v9248 = vadd.f32 0.0, %v9247
      %v9249 = vpop.f32.mrb[0].mxu0
      %9250 = vmatprep.mubr.bf16.mxu0 0
      %9251 = vmatmul.mubr.bf16.gmra.mrb[0].mxu0 %v8872
      %v9252 = vpop.f32.mrb[0].mxu0
      %v9253 = vadd.f32 0.0, %v9252
      %v9254 = vpop.f32.mrb[0].mxu0
      %v9255 = vpop.f32.mrb[0].mxu0
      %v9256 = vadd.f32 0.0, %v9255
      %v9257 = vpop.f32.mrb[0].mxu0
      %9258 = vmatprep.mubr.bf16.mxu0 0
      %9259 = vmatmul.mubr.bf16.gmra.mrb[0].mxu0 %v8875
      %v9260 = vpop.f32.mrb[0].mxu0
      %v9261 = vadd.f32 0.0, %v9260
      %v9262 = vpop.f32.mrb[0].mxu0
      %v9263 = vpop.f32.mrb[0].mxu0
      %v9264 = vadd.f32 0.0, %v9263
      %v9265 = vpop.f32.mrb[0].mxu0
      %9266 = vmatprep.mubr.bf16.mxu0 0
      %9267 = vmatmul.mubr.bf16.gmra.mrb[0].mxu0 %v8878
      %v9268 = vpop.f32.mrb[0].mxu0
      %v9269 = vadd.f32 0.0, %v9268
      %v9270 = vpop.f32.mrb[0].mxu0
      %v9271 = vpop.f32.mrb[0].mxu0
      %v9272 = vadd.f32 0.0, %v9271
      %v9273 = vpop.f32.mrb[0].mxu0
      %9274 = vmatprep.mubr.bf16.mxu0 0
      %9275 = vmatmul.mubr.bf16.gmra.mrb[0].mxu0 %v8881
      %v9276 = vpop.f32.mrb[0].mxu0
      %v9277 = vadd.f32 0.0, %v9276
      %v9278 = vpop.f32.mrb[0].mxu0
      %v9279 = vpop.f32.mrb[0].mxu0
      %v9280 = vadd.f32 0.0, %v9279
      %v9281 = vpop.f32.mrb[0].mxu0
      %9282 = vmatprep.mubr.bf16.mxu0 0
      %9283 = vmatmul.mubr.bf16.gmra.mrb[0].mxu0 %v8884
      %v9284 = vpop.f32.mrb[0].mxu0
      %v9285 = vadd.f32 0.0, %v9284
      %v9286 = vpop.f32.mrb[0].mxu0
      %v9287 = vpop.f32.mrb[0].mxu0
      %v9288 = vadd.f32 0.0, %v9287
      %v9289 = vpop.f32.mrb[0].mxu0
      %9290 = vmatprep.mubr.bf16.mxu0 0
      %9291 = vmatmul.mubr.bf16.gmra.mrb[0].mxu0 %v8887
      %v9292 = vpop.f32.mrb[0].mxu0
      %v9293 = vadd.f32 0.0, %v9292
      %v9294 = vpop.f32.mrb[0].mxu0
      %v9295 = vpop.f32.mrb[0].mxu0
      %v9296 = vadd.f32 0.0, %v9295
      %v9297 = vpop.f32.mrb[0].mxu0
      %9298 = vmatprep.mubr.bf16.mxu0 0
      %9299 = vmatmul.mubr.bf16.gmra.mrb[0].mxu0 %v8890
      %v9300 = vpop.f32.mrb[0].mxu0
      %v9301 = vadd.f32 0.0, %v9300
      %v9302 = vpop.f32.mrb[0].mxu0
      %v9303 = vpop.f32.mrb[0].mxu0
      %v9304 = vadd.f32 0.0, %v9303
      %v9305 = vpop.f32.mrb[0].mxu0
      %9306 = vmatprep.mubr.bf16.mxu0 0
      %9307 = vmatmul.mubr.bf16.gmra.mrb[0].mxu0 %v8893
      %v9308 = vpop.f32.mrb[0].mxu0
      %v9309 = vadd.f32 0.0, %v9308
      %v9310 = vpop.f32.mrb[0].mxu0
      %v9311 = vpop.f32.mrb[0].mxu0
      %v9312 = vadd.f32 0.0, %v9311
      %v9313 = vpop.f32.mrb[0].mxu0
      %9314 = vmatprep.mubr.bf16.mxu0 0
      %9315 = vmatmul.mubr.bf16.gmra.mrb[0].mxu0 %v8896
      %v9316 = vpop.f32.mrb[0].mxu0
      %v9317 = vadd.f32 0.0, %v9316
      %v9318 = vpop.f32.mrb[0].mxu0
      %v9319 = vpop.f32.mrb[0].mxu0
      %v9320 = vadd.f32 0.0, %v9319
      %v9321 = vpop.f32.mrb[0].mxu0
      %9322 = vmatprep.mubr.bf16.mxu0 0
      %9323 = vmatmul.mubr.bf16.gmra.mrb[0].mxu0 %v8899
      %v9324 = vpop.f32.mrb[0].mxu0
      %v9325 = vadd.f32 0.0, %v9324
      %v9326 = vpop.f32.mrb[0].mxu0
      %v9327 = vpop.f32.mrb[0].mxu0
      %v9328 = vadd.f32 0.0, %v9327
      %v9329 = vpop.f32.mrb[0].mxu0
      %9330 = vdwg.mxu0
      %v9331 = vadd.f32 %v8686, %v9237
      %v9332 = vadd.f32 %v8689, %v9240
      %v9333 = vadd.f32 %v8694, %v9245
      %v9334 = vadd.f32 %v8697, %v9248
      %v9335 = vadd.f32 %v8702, %v9253
      %v9336 = vadd.f32 %v8705, %v9256
      %v9337 = vadd.f32 %v8710, %v9261
      %v9338 = vadd.f32 %v8713, %v9264
      %v9339 = vadd.f32 %v8718, %v9269
      %v9340 = vadd.f32 %v8721, %v9272
      %v9341 = vadd.f32 %v8726, %v9277
      %v9342 = vadd.f32 %v8729, %v9280
      %v9343 = vadd.f32 %v8734, %v9285
      %v9344 = vadd.f32 %v8737, %v9288
      %v9345 = vadd.f32 %v8742, %v9293
      %v9346 = vadd.f32 %v8745, %v9296
      %v9347 = vadd.f32 %v8750, %v9301
      %v9348 = vadd.f32 %v8753, %v9304
      %v9349 = vadd.f32 %v8758, %v9309
      %v9350 = vadd.f32 %v8761, %v9312
      %v9351 = vadd.f32 %v8766, %v9317
      %v9352 = vadd.f32 %v8769, %v9320
      %v9353 = vadd.f32 %v8774, %v9325
      %v9354 = vadd.f32 %v8777, %v9328
      %v9379 = vrot.slane %v9174, 1
      %v9380 = vrot.slane %v9175, 1
      %v9381 = vsel %vm2697, %v9379, %v9380
      %v9382 = vrot.slane %v9176, 1
      %v9383 = vsel %vm2697, %v9380, %v9382
      %v9384 = vrot.slane %v9177, 1
      %v9385 = vrot.slane %v9178, 1
      %v9386 = vsel %vm2697, %v9384, %v9385
      %v9387 = vrot.slane %v9179, 1
      %v9388 = vsel %vm2697, %v9385, %v9387
      %v9389 = vrot.slane %v9180, 1
      %v9390 = vrot.slane %v9181, 1
      %v9391 = vsel %vm2697, %v9389, %v9390
      %v9392 = vrot.slane %v9182, 1
      %v9393 = vsel %vm2697, %v9390, %v9392
      %v9394 = vrot.slane %v9183, 1
      %v9395 = vrot.slane %v9184, 1
      %v9396 = vsel %vm2697, %v9394, %v9395
      %v9397 = vrot.slane %v9185, 1
      %v9398 = vsel %vm2697, %v9395, %v9397
      %v9399 = vrot.slane %v9186, 1
      %v9400 = vrot.slane %v9187, 1
      %v9401 = vsel %vm2697, %v9399, %v9400
      %v9402 = vrot.slane %v9188, 1
      %v9403 = vsel %vm2697, %v9400, %v9402
      %v9404 = vrot.slane %v9189, 1
      %v9405 = vrot.slane %v9190, 1
      %v9406 = vsel %vm2697, %v9404, %v9405
      %v9407 = vrot.slane %v9191, 1
      %v9408 = vsel %vm2697, %v9405, %v9407
      %v9409 = vrot.slane %v9192, 1
      %v9410 = vrot.slane %v9193, 1
      %v9411 = vsel %vm2697, %v9409, %v9410
      %v9412 = vrot.slane %v9194, 1
      %v9413 = vsel %vm2697, %v9410, %v9412
      %v9414 = vrot.slane %v9195, 1
      %v9415 = vrot.slane %v9196, 1
      %v9416 = vsel %vm2697, %v9414, %v9415
      %v9417 = vrot.slane %v9197, 1
      %v9418 = vsel %vm2697, %v9415, %v9417
      %v9435 = vadd.f32 %v9025, %v9381
      %v9436 = vadd.f32 %v9026, %v9383
      %v9437 = vadd.f32 %v9027, %v9386
      %v9438 = vadd.f32 %v9028, %v9388
      %v9439 = vadd.f32 %v9029, %v9391
      %v9440 = vadd.f32 %v9030, %v9393
      %v9441 = vadd.f32 %v9031, %v9396
      %v9442 = vadd.f32 %v9032, %v9398
      %v9443 = vadd.f32 %v9033, %v9401
      %v9444 = vadd.f32 %v9034, %v9403
      %v9445 = vadd.f32 %v9035, %v9406
      %v9446 = vadd.f32 %v9036, %v9408
      %v9447 = vadd.f32 %v9037, %v9411
      %v9448 = vadd.f32 %v9038, %v9413
      %v9449 = vadd.f32 %v9039, %v9416
      %v9450 = vadd.f32 %v9040, %v9418
      %v9475 = vrot.slane %v9331, 2
      %v9476 = vrot.slane %v9332, 2
      %v9477 = vsel %vm2794, %v9475, %v9476
      %v9478 = vrot.slane %v9333, 2
      %v9479 = vsel %vm2794, %v9476, %v9478
      %v9480 = vrot.slane %v9334, 2
      %v9481 = vrot.slane %v9335, 2
      %v9482 = vsel %vm2794, %v9480, %v9481
      %v9483 = vrot.slane %v9336, 2
      %v9484 = vsel %vm2794, %v9481, %v9483
      %v9485 = vrot.slane %v9337, 2
      %v9486 = vrot.slane %v9338, 2
      %v9487 = vsel %vm2794, %v9485, %v9486
      %v9488 = vrot.slane %v9339, 2
      %v9489 = vsel %vm2794, %v9486, %v9488
      %v9490 = vrot.slane %v9340, 2
      %v9491 = vrot.slane %v9341, 2
      %v9492 = vsel %vm2794, %v9490, %v9491
      %v9493 = vrot.slane %v9342, 2
      %v9494 = vsel %vm2794, %v9491, %v9493
      %v9495 = vrot.slane %v9343, 2
      %v9496 = vrot.slane %v9344, 2
      %v9497 = vsel %vm2794, %v9495, %v9496
      %v9498 = vrot.slane %v9345, 2
      %v9499 = vsel %vm2794, %v9496, %v9498
      %v9500 = vrot.slane %v9346, 2
      %v9501 = vrot.slane %v9347, 2
      %v9502 = vsel %vm2794, %v9500, %v9501
      %v9503 = vrot.slane %v9348, 2
      %v9504 = vsel %vm2794, %v9501, %v9503
      %v9505 = vrot.slane %v9349, 2
      %v9506 = vrot.slane %v9350, 2
      %v9507 = vsel %vm2794, %v9505, %v9506
      %v9508 = vrot.slane %v9351, 2
      %v9509 = vsel %vm2794, %v9506, %v9508
      %v9510 = vrot.slane %v9352, 2
      %v9511 = vrot.slane %v9353, 2
      %v9512 = vsel %vm2794, %v9510, %v9511
      %v9513 = vrot.slane %v9354, 2
      %v9514 = vsel %vm2794, %v9511, %v9513
      %v9531 = vadd.f32 %v9435, %v9477
      %v9532 = vadd.f32 %v9436, %v9479
      %v9533 = vadd.f32 %v9437, %v9482
      %v9534 = vadd.f32 %v9438, %v9484
      %v9535 = vadd.f32 %v9439, %v9487
      %v9536 = vadd.f32 %v9440, %v9489
      %v9537 = vadd.f32 %v9441, %v9492
      %v9538 = vadd.f32 %v9442, %v9494
      %v9539 = vadd.f32 %v9443, %v9497
      %v9540 = vadd.f32 %v9444, %v9499
      %v9541 = vadd.f32 %v9445, %v9502
      %v9542 = vadd.f32 %v9446, %v9504
      %v9543 = vadd.f32 %v9447, %v9507
      %v9544 = vadd.f32 %v9448, %v9509
      %v9545 = vadd.f32 %v9449, %v9512
      %v9546 = vadd.f32 %v9450, %v9514
      %9547 = vst.msk [vmem:[%s4771] sm:$0xff] %vm1180, %v9531
      %9548 = vst.msk [vmem:[%s4771 + $0x8] sm:$0xff] %vm1180, %v9532
      %9549 = vst.msk [vmem:[%s4771 + $0x10] sm:$0xff] %vm1180, %v9533
      %9550 = vst.msk [vmem:[%s4771 + $0x18] sm:$0xff] %vm1180, %v9534
      %9551 = vst.msk [vmem:[%s4771 + $0x20] sm:$0xff] %vm1180, %v9535
      %9552 = vst.msk [vmem:[%s4771 + $0x28] sm:$0xff] %vm1180, %v9536
      %9553 = vst.msk [vmem:[%s4771 + $0x30] sm:$0xff] %vm1180, %v9537
      %9554 = vst.msk [vmem:[%s4771 + $0x38] sm:$0xff] %vm1180, %v9538
      %9555 = vst.msk [vmem:[%s4771 + $0x40] sm:$0xff] %vm1180, %v9539
      %9556 = vst.msk [vmem:[%s4771 + $0x48] sm:$0xff] %vm1180, %v9540
      %9557 = vst.msk [vmem:[%s4771 + $0x50] sm:$0xff] %vm1180, %v9541
      %9558 = vst.msk [vmem:[%s4771 + $0x58] sm:$0xff] %vm1180, %v9542
      %9559 = vst.msk [vmem:[%s4771 + $0x60] sm:$0xff] %vm1180, %v9543
      %9560 = vst.msk [vmem:[%s4771 + $0x68] sm:$0xff] %vm1180, %v9544
      %9561 = vst.msk [vmem:[%s4771 + $0x70] sm:$0xff] %vm1180, %v9545
      %9562 = vst.msk [vmem:[%s4771 + $0x78] sm:$0xff] %vm1180, %v9546
      %v9563 = vsel %vm1180, %v9531, 0.0
      %v9564 = vsel %vm1180, %v9533, 0.0
      %v9565 = vadd.f32 %v9563, %v9564
      %v9566 = vsel %vm1180, %v9535, 0.0
      %v9567 = vadd.f32 %v9565, %v9566
      %v9568 = vsel %vm1180, %v9537, 0.0
      %v9569 = vadd.f32 %v9567, %v9568
      %v9570 = vsel %vm1180, %v9539, 0.0
      %v9571 = vadd.f32 %v9569, %v9570
      %v9572 = vsel %vm1180, %v9541, 0.0
      %v9573 = vadd.f32 %v9571, %v9572
      %v9574 = vsel %vm1180, %v9543, 0.0
      %v9575 = vadd.f32 %v9573, %v9574
      %v9576 = vsel %vm1180, %v9545, 0.0
      %v9577 = vadd.f32 %v9575, %v9576
      %v9578 = vsel %vm1180, %v9532, 0.0
      %v9579 = vsel %vm1180, %v9534, 0.0
      %v9580 = vadd.f32 %v9578, %v9579
      %v9581 = vsel %vm1180, %v9536, 0.0
      %v9582 = vadd.f32 %v9580, %v9581
      %v9583 = vsel %vm1180, %v9538, 0.0
      %v9584 = vadd.f32 %v9582, %v9583
      %v9585 = vsel %vm1180, %v9540, 0.0
      %v9586 = vadd.f32 %v9584, %v9585
      %v9587 = vsel %vm1180, %v9542, 0.0
      %v9588 = vadd.f32 %v9586, %v9587
      %v9589 = vsel %vm1180, %v9544, 0.0
      %v9590 = vadd.f32 %v9588, %v9589
      %v9591 = vsel %vm1180, %v9546, 0.0
      %v9592 = vadd.f32 %v9590, %v9591
      %v9593 = vsel %vm1180, %v9577, 0.0
      %v9594 = vsel %vm1180, %v9592, 0.0
      %v9595 = vadd.f32 %v9593, %v9594
      %v9596 = vrot.slane %v9595, 4
      %v9597 = vadd.f32 %v9595, %v9596
      %v9598 = vrot.slane %v9597, 2
      %v9599 = vadd.f32 %v9597, %v9598
      %v9600 = vrot.slane %v9599, 1
      %v9601 = vadd.f32 %v9599, %v9600
      %v9602 = vadd.f32 %v7701, %v9601
      %v9603 = vmul.f32 %v9531, %v9531
      %v9604 = vmul.f32 %v9532, %v9532
      %v9605 = vmul.f32 %v9533, %v9533
      %v9606 = vmul.f32 %v9534, %v9534
      %v9607 = vmul.f32 %v9535, %v9535
      %v9608 = vmul.f32 %v9536, %v9536
      %v9609 = vmul.f32 %v9537, %v9537
      %v9610 = vmul.f32 %v9538, %v9538
      %v9611 = vmul.f32 %v9539, %v9539
      %v9612 = vmul.f32 %v9540, %v9540
      %v9613 = vmul.f32 %v9541, %v9541
      %v9614 = vmul.f32 %v9542, %v9542
      %v9615 = vmul.f32 %v9543, %v9543
      %v9616 = vmul.f32 %v9544, %v9544
      %v9617 = vmul.f32 %v9545, %v9545
      %v9618 = vmul.f32 %v9546, %v9546
      %v9619 = vsel %vm1180, %v9603, 0.0
      %v9620 = vsel %vm1180, %v9605, 0.0
      %v9621 = vadd.f32 %v9619, %v9620
      %v9622 = vsel %vm1180, %v9607, 0.0
      %v9623 = vadd.f32 %v9621, %v9622
      %v9624 = vsel %vm1180, %v9609, 0.0
      %v9625 = vadd.f32 %v9623, %v9624
      %v9626 = vsel %vm1180, %v9611, 0.0
      %v9627 = vadd.f32 %v9625, %v9626
      %v9628 = vsel %vm1180, %v9613, 0.0
      %v9629 = vadd.f32 %v9627, %v9628
      %v9630 = vsel %vm1180, %v9615, 0.0
      %v9631 = vadd.f32 %v9629, %v9630
      %v9632 = vsel %vm1180, %v9617, 0.0
      %v9633 = vadd.f32 %v9631, %v9632
      %v9634 = vsel %vm1180, %v9604, 0.0
      %v9635 = vsel %vm1180, %v9606, 0.0
      %v9636 = vadd.f32 %v9634, %v9635
      %v9637 = vsel %vm1180, %v9608, 0.0
      %v9638 = vadd.f32 %v9636, %v9637
      %v9639 = vsel %vm1180, %v9610, 0.0
      %v9640 = vadd.f32 %v9638, %v9639
      %v9641 = vsel %vm1180, %v9612, 0.0
      %v9642 = vadd.f32 %v9640, %v9641
      %v9643 = vsel %vm1180, %v9614, 0.0
      %v9644 = vadd.f32 %v9642, %v9643
      %v9645 = vsel %vm1180, %v9616, 0.0
      %v9646 = vadd.f32 %v9644, %v9645
      %v9647 = vsel %vm1180, %v9618, 0.0
      %v9648 = vadd.f32 %v9646, %v9647
      %v9649 = vsel %vm1180, %v9633, 0.0
      %v9650 = vsel %vm1180, %v9648, 0.0
      %v9651 = vadd.f32 %v9649, %v9650
      %v9652 = vrot.slane %v9651, 4
      %v9653 = vadd.f32 %v9651, %v9652
      %v9654 = vrot.slane %v9653, 2
      %v9655 = vadd.f32 %v9653, %v9654
      %v9656 = vrot.slane %v9655, 1
      %v9657 = vadd.f32 %v9655, %v9656
      %v9658 = vadd.f32 %v7757, %v9657
      %v9659 = vmul.f32 %v9602, 0.00390625
      %v9660 = vmul.f32 %v9658, 0.00390625
      %v9661 = vmul.f32 %v9659, %v9659
      %v9662 = vsub.f32 %v9660, %v9661
      %v9663 = vmax.f32 %v9662, 0.0
      %v9664 = vld [vmem:[#allocation3] sm:$0xff]
      %v9665 = vld [vmem:[#allocation3 + $0x8] sm:$0xff]
      %v9666 = vld [vmem:[#allocation3 + $0x10] sm:$0xff]
      %v9667 = vld [vmem:[#allocation3 + $0x18] sm:$0xff]
      %v9668 = vld [vmem:[#allocation3 + $0x20] sm:$0xff]
      %v9669 = vld [vmem:[#allocation3 + $0x28] sm:$0xff]
      %v9670 = vld [vmem:[#allocation3 + $0x30] sm:$0xff]
      %v9671 = vld [vmem:[#allocation3 + $0x38] sm:$0xff]
      %v9672 = vld [vmem:[#allocation3 + $0x40] sm:$0xff]
      %v9673 = vld [vmem:[#allocation3 + $0x48] sm:$0xff]
      %v9674 = vld [vmem:[#allocation3 + $0x50] sm:$0xff]
      %v9675 = vld [vmem:[#allocation3 + $0x58] sm:$0xff]
      %v9676 = vld [vmem:[#allocation3 + $0x60] sm:$0xff]
      %v9677 = vld [vmem:[#allocation3 + $0x68] sm:$0xff]
      %v9678 = vld [vmem:[#allocation3 + $0x70] sm:$0xff]
      %v9679 = vld [vmem:[#allocation3 + $0x78] sm:$0xff]
      %v9680 = vld [vmem:[#allocation3 + $0x80] sm:$0xff]
      %v9681 = vld [vmem:[#allocation3 + $0x88] sm:$0xff]
      %v9682 = vld [vmem:[#allocation3 + $0x90] sm:$0xff]
      %v9683 = vld [vmem:[#allocation3 + $0x98] sm:$0xff]
      %v9684 = vld [vmem:[#allocation3 + $0xa0] sm:$0xff]
      %v9685 = vld [vmem:[#allocation3 + $0xa8] sm:$0xff]
      %v9686 = vld [vmem:[#allocation3 + $0xb0] sm:$0xff]
      %v9687 = vld [vmem:[#allocation3 + $0xb8] sm:$0xff]
      %v9688 = vld [vmem:[#allocation3 + $0xc0] sm:$0xff]
      %v9689 = vld [vmem:[#allocation3 + $0xc8] sm:$0xff]
      %v9690 = vld [vmem:[#allocation3 + $0xd0] sm:$0xff]
      %v9691 = vld [vmem:[#allocation3 + $0xd8] sm:$0xff]
      %v9692 = vld [vmem:[#allocation3 + $0xe0] sm:$0xff]
      %v9693 = vld [vmem:[#allocation3 + $0xe8] sm:$0xff]
      %v9694 = vld [vmem:[#allocation3 + $0xf0] sm:$0xff]
      %v9695 = vld [vmem:[#allocation3 + $0xf8] sm:$0xff]
      %v9696 = vsub.f32 %v9664, %v9659
      %v9697 = vsub.f32 %v9665, %v9659
      %v9698 = vsub.f32 %v9666, %v9659
      %v9699 = vsub.f32 %v9667, %v9659
      %v9700 = vsub.f32 %v9668, %v9659
      %v9701 = vsub.f32 %v9669, %v9659
      %v9702 = vsub.f32 %v9670, %v9659
      %v9703 = vsub.f32 %v9671, %v9659
      %v9704 = vsub.f32 %v9672, %v9659
      %v9705 = vsub.f32 %v9673, %v9659
      %v9706 = vsub.f32 %v9674, %v9659
      %v9707 = vsub.f32 %v9675, %v9659
      %v9708 = vsub.f32 %v9676, %v9659
      %v9709 = vsub.f32 %v9677, %v9659
      %v9710 = vsub.f32 %v9678, %v9659
      %v9711 = vsub.f32 %v9679, %v9659
      %v9712 = vsub.f32 %v9680, %v9659
      %v9713 = vsub.f32 %v9681, %v9659
      %v9714 = vsub.f32 %v9682, %v9659
      %v9715 = vsub.f32 %v9683, %v9659
      %v9716 = vsub.f32 %v9684, %v9659
      %v9717 = vsub.f32 %v9685, %v9659
      %v9718 = vsub.f32 %v9686, %v9659
      %v9719 = vsub.f32 %v9687, %v9659
      %v9720 = vsub.f32 %v9688, %v9659
      %v9721 = vsub.f32 %v9689, %v9659
      %v9722 = vsub.f32 %v9690, %v9659
      %v9723 = vsub.f32 %v9691, %v9659
      %v9724 = vsub.f32 %v9692, %v9659
      %v9725 = vsub.f32 %v9693, %v9659
      %v9726 = vsub.f32 %v9694, %v9659
      %v9727 = vsub.f32 %v9695, %v9659
      %v9728 = vadd.f32 %v9663, 1e-05
      %v9729 = vrsqrt.pop %v9728
      %v9730 = vmul.f32 %v9696, %v9729
      %v9731 = vmul.f32 %v9697, %v9729
      %v9732 = vmul.f32 %v9698, %v9729
      %v9733 = vmul.f32 %v9699, %v9729
      %v9734 = vmul.f32 %v9700, %v9729
      %v9735 = vmul.f32 %v9701, %v9729
      %v9736 = vmul.f32 %v9702, %v9729
      %v9737 = vmul.f32 %v9703, %v9729
      %v9738 = vmul.f32 %v9704, %v9729
      %v9739 = vmul.f32 %v9705, %v9729
      %v9740 = vmul.f32 %v9706, %v9729
      %v9741 = vmul.f32 %v9707, %v9729
      %v9742 = vmul.f32 %v9708, %v9729
      %v9743 = vmul.f32 %v9709, %v9729
      %v9744 = vmul.f32 %v9710, %v9729
      %v9745 = vmul.f32 %v9711, %v9729
      %v9746 = vmul.f32 %v9712, %v9729
      %v9747 = vmul.f32 %v9713, %v9729
      %v9748 = vmul.f32 %v9714, %v9729
      %v9749 = vmul.f32 %v9715, %v9729
      %v9750 = vmul.f32 %v9716, %v9729
      %v9751 = vmul.f32 %v9717, %v9729
      %v9752 = vmul.f32 %v9718, %v9729
      %v9753 = vmul.f32 %v9719, %v9729
      %v9754 = vmul.f32 %v9720, %v9729
      %v9755 = vmul.f32 %v9721, %v9729
      %v9756 = vmul.f32 %v9722, %v9729
      %v9757 = vmul.f32 %v9723, %v9729
      %v9758 = vmul.f32 %v9724, %v9729
      %v9759 = vmul.f32 %v9725, %v9729
      %v9760 = vmul.f32 %v9726, %v9729
      %v9761 = vmul.f32 %v9727, %v9729
      %v9762 = vld [vmem:[%s165] sm:$0xff]
      %v9763 = vld [vmem:[%s165 + $0x8] sm:$0xff]
      %v9764 = vld [vmem:[%s165 + $0x10] sm:$0xff]
      %v9765 = vld [vmem:[%s165 + $0x18] sm:$0xff]
      %v9766 = vld [vmem:[%s165 + $0x20] sm:$0xff]
      %v9767 = vld [vmem:[%s165 + $0x28] sm:$0xff]
      %v9768 = vld [vmem:[%s165 + $0x30] sm:$0xff]
      %v9769 = vld [vmem:[%s165 + $0x38] sm:$0xff]
      %v9770 = vld [vmem:[%s165 + $0x40] sm:$0xff]
      %v9771 = vld [vmem:[%s165 + $0x48] sm:$0xff]
      %v9772 = vld [vmem:[%s165 + $0x50] sm:$0xff]
      %v9773 = vld [vmem:[%s165 + $0x58] sm:$0xff]
      %v9774 = vld [vmem:[%s165 + $0x60] sm:$0xff]
      %v9775 = vld [vmem:[%s165 + $0x68] sm:$0xff]
      %v9776 = vld [vmem:[%s165 + $0x70] sm:$0xff]
      %v9777 = vld [vmem:[%s165 + $0x78] sm:$0xff]
      %v9778 = vld [vmem:[%s165 + $0x80] sm:$0xff]
      %v9779 = vld [vmem:[%s165 + $0x88] sm:$0xff]
      %v9780 = vld [vmem:[%s165 + $0x90] sm:$0xff]
      %v9781 = vld [vmem:[%s165 + $0x98] sm:$0xff]
      %v9782 = vld [vmem:[%s165 + $0xa0] sm:$0xff]
      %v9783 = vld [vmem:[%s165 + $0xa8] sm:$0xff]
      %v9784 = vld [vmem:[%s165 + $0xb0] sm:$0xff]
      %v9785 = vld [vmem:[%s165 + $0xb8] sm:$0xff]
      %v9786 = vld [vmem:[%s165 + $0xc0] sm:$0xff]
      %v9787 = vld [vmem:[%s165 + $0xc8] sm:$0xff]
      %v9788 = vld [vmem:[%s165 + $0xd0] sm:$0xff]
      %v9789 = vld [vmem:[%s165 + $0xd8] sm:$0xff]
      %v9790 = vld [vmem:[%s165 + $0xe0] sm:$0xff]
      %v9791 = vld [vmem:[%s165 + $0xe8] sm:$0xff]
      %v9792 = vld [vmem:[%s165 + $0xf0] sm:$0xff]
      %v9793 = vld [vmem:[%s165 + $0xf8] sm:$0xff]
      %v9794 = vadd.f32 %v9762, %v9730
      %v9795 = vadd.f32 %v9763, %v9731
      %v9796 = vadd.f32 %v9764, %v9732
      %v9797 = vadd.f32 %v9765, %v9733
      %v9798 = vadd.f32 %v9766, %v9734
      %v9799 = vadd.f32 %v9767, %v9735
      %v9800 = vadd.f32 %v9768, %v9736
      %v9801 = vadd.f32 %v9769, %v9737
      %v9802 = vadd.f32 %v9770, %v9738
      %v9803 = vadd.f32 %v9771, %v9739
      %v9804 = vadd.f32 %v9772, %v9740
      %v9805 = vadd.f32 %v9773, %v9741
      %v9806 = vadd.f32 %v9774, %v9742
      %v9807 = vadd.f32 %v9775, %v9743
      %v9808 = vadd.f32 %v9776, %v9744
      %v9809 = vadd.f32 %v9777, %v9745
      %v9810 = vadd.f32 %v9778, %v9746
      %v9811 = vadd.f32 %v9779, %v9747
      %v9812 = vadd.f32 %v9780, %v9748
      %v9813 = vadd.f32 %v9781, %v9749
      %v9814 = vadd.f32 %v9782, %v9750
      %v9815 = vadd.f32 %v9783, %v9751
      %v9816 = vadd.f32 %v9784, %v9752
      %v9817 = vadd.f32 %v9785, %v9753
      %v9818 = vadd.f32 %v9786, %v9754
      %v9819 = vadd.f32 %v9787, %v9755
      %v9820 = vadd.f32 %v9788, %v9756
      %v9821 = vadd.f32 %v9789, %v9757
      %v9822 = vadd.f32 %v9790, %v9758
      %v9823 = vadd.f32 %v9791, %v9759
      %v9824 = vadd.f32 %v9792, %v9760
      %v9825 = vadd.f32 %v9793, %v9761
      %9826 = vst.msk [vmem:[%s170] sm:$0xff] %vm1180, %v9794
      %9827 = vst.msk [vmem:[%s170 + $0x8] sm:$0xff] %vm1180, %v9795
      %9828 = vst.msk [vmem:[%s170 + $0x10] sm:$0xff] %vm1180, %v9796
      %9829 = vst.msk [vmem:[%s170 + $0x18] sm:$0xff] %vm1180, %v9797
      %9830 = vst.msk [vmem:[%s170 + $0x20] sm:$0xff] %vm1180, %v9798
      %9831 = vst.msk [vmem:[%s170 + $0x28] sm:$0xff] %vm1180, %v9799
      %9832 = vst.msk [vmem:[%s170 + $0x30] sm:$0xff] %vm1180, %v9800
      %9833 = vst.msk [vmem:[%s170 + $0x38] sm:$0xff] %vm1180, %v9801
      %9834 = vst.msk [vmem:[%s170 + $0x40] sm:$0xff] %vm1180, %v9802
      %9835 = vst.msk [vmem:[%s170 + $0x48] sm:$0xff] %vm1180, %v9803
      %9836 = vst.msk [vmem:[%s170 + $0x50] sm:$0xff] %vm1180, %v9804
      %9837 = vst.msk [vmem:[%s170 + $0x58] sm:$0xff] %vm1180, %v9805
      %9838 = vst.msk [vmem:[%s170 + $0x60] sm:$0xff] %vm1180, %v9806
      %9839 = vst.msk [vmem:[%s170 + $0x68] sm:$0xff] %vm1180, %v9807
      %9840 = vst.msk [vmem:[%s170 + $0x70] sm:$0xff] %vm1180, %v9808
      %9841 = vst.msk [vmem:[%s170 + $0x78] sm:$0xff] %vm1180, %v9809
      %9842 = vst.msk [vmem:[%s170 + $0x80] sm:$0xff] %vm1180, %v9810
      %9843 = vst.msk [vmem:[%s170 + $0x88] sm:$0xff] %vm1180, %v9811
      %9844 = vst.msk [vmem:[%s170 + $0x90] sm:$0xff] %vm1180, %v9812
      %9845 = vst.msk [vmem:[%s170 + $0x98] sm:$0xff] %vm1180, %v9813
      %9846 = vst.msk [vmem:[%s170 + $0xa0] sm:$0xff] %vm1180, %v9814
      %9847 = vst.msk [vmem:[%s170 + $0xa8] sm:$0xff] %vm1180, %v9815
      %9848 = vst.msk [vmem:[%s170 + $0xb0] sm:$0xff] %vm1180, %v9816
      %9849 = vst.msk [vmem:[%s170 + $0xb8] sm:$0xff] %vm1180, %v9817
      %9850 = vst.msk [vmem:[%s170 + $0xc0] sm:$0xff] %vm1180, %v9818
      %9851 = vst.msk [vmem:[%s170 + $0xc8] sm:$0xff] %vm1180, %v9819
      %9852 = vst.msk [vmem:[%s170 + $0xd0] sm:$0xff] %vm1180, %v9820
      %9853 = vst.msk [vmem:[%s170 + $0xd8] sm:$0xff] %vm1180, %v9821
      %9854 = vst.msk [vmem:[%s170 + $0xe0] sm:$0xff] %vm1180, %v9822
      %9855 = vst.msk [vmem:[%s170 + $0xe8] sm:$0xff] %vm1180, %v9823
      %9856 = vst.msk [vmem:[%s170 + $0xf0] sm:$0xff] %vm1180, %v9824
      %9857 = vst.msk [vmem:[%s170 + $0xf8] sm:$0xff] %vm1180, %v9825
      %p9858 = scmp.lt.s32.totalorder %s14, 1
      %s9859 = scalar_select %p9858, %s14, 1
      %s9860 = smul.addr %s9859, 32
      %s9861 = smul.addr %s9860, 8
      %s9862 = scalar_lea.vmem %s3, %s9861
      // Predicated region
      $region33: #{tpu_custom_call.1} parent=31 // pred_check
        %p9863 = pneg %p100
      $region34: #{tpu_custom_call.1} parent=31 // pred_check_branch
        %9865 = sbr.rel (%p9863) target = $region36
      $region35: #{tpu_custom_call.1} parent=31 // pred_region
        _
      $region36: #{tpu_custom_call.1} parent=31 // pred_fallthru
        _
    $region32: #{tpu_custom_call.1} parent=5 // pred_fallthru
      _
    %p9866 = scmp.le.s32.totalorder 2, %s9
    // Predicated region
    $region37: #{tpu_custom_call.1} parent=5 // pred_check
      %p9867 = pneg %p9866
    $region38: #{tpu_custom_call.1} parent=5 // pred_check_branch
      %9869 = sbr.rel (%p9867) target = $region40
    $region39: #{tpu_custom_call.1} parent=5 // pred_region
      %s9870 = ssub.s32 %s9, 2
      // Predicated region
      $region41: #{tpu_custom_call.1} parent=39 // pred_check
        %p9871 = pneg %p106
      $region42: #{tpu_custom_call.1} parent=39 // pred_check_branch
        %9873 = sbr.rel (%p9871) target = $region44
      $region43: #{tpu_custom_call.1} parent=39 // pred_region
        %p9874 = scmp.lt.s32.totalorder %s15, 1
        %s9875 = scalar_select %p9874, %s15, 1
        %s9876 = smul.addr %s9875, 32
        %s9877 = smul.addr %s9876, 8
        %s9878 = scalar_lea.vmem %s3, %s9877
      $region44: #{tpu_custom_call.1} parent=39 // pred_fallthru
        _
    $region40: #{tpu_custom_call.1} parent=5 // pred_fallthru
      _
  $region6: #{tpu_custom_call.1} parent=0 // loop_footer
    %s13 = sadd.s32 1, %s9
  $region7: #{tpu_custom_call.1} parent=0 // loop_footer_branch
    %8 = sbr.rel target = $region3
  $region8: #{tpu_custom_call.1} parent=0 // loop_exit
    _

</llo_original>
